<compile_context>
chip_gen: v7x
topology: tpu7x:2x2x1
jax: 0.10.0
libtpu: 0.0.40
codegen_flags: <defaults>
</compile_context>

<pallas_src>
import jax
import jax.numpy as jnp
from jax.experimental import pallas as pl
from jax.experimental.pallas import tpu as pltpu


# ----------------------------------------------------------------------------
# In-kernel helpers
# ----------------------------------------------------------------------------
def _store_padded(pad_ref, interior):
    """Write `interior` [B,H,W,C] into pad_ref [B,H+2,W+2,C] with a zero border.

    Only the two border rows get a separate (cheap, major-dim) store; the zero
    border columns are folded into a single W-aligned interior store, so there
    is no full-scratch zero-fill and no offset-1 masked store.
    """
    B, H, W, C = interior.shape
    zrow = jnp.zeros((B, 1, W + 2, C), interior.dtype)
    zcol = jnp.zeros((B, H, 1, C), interior.dtype)
    pad_ref[:, 0:1, :, :] = zrow
    pad_ref[:, H + 1:H + 2, :, :] = zrow
    pad_ref[:, 1:H + 1, :, :] = jnp.concatenate([zcol, interior, zcol], axis=2)


def _im2col_3x3(pad_ref, B, H, W, C):
    """[B*H*W, 9*C] im2col patch for a 3x3/s1 conv from a zero-padded scratch.

    C is a multiple of 128, so every concat boundary is lane-aligned.
    """
    return jnp.concatenate(
        [pad_ref[:, ky:ky + H, kx:kx + W, :].reshape(B * H * W, C)
         for ky in range(3) for kx in range(3)], axis=1)


# ----------------------------------------------------------------------------
# Fused Inception-A kernel (one grid step == B_tile images)
# ----------------------------------------------------------------------------
def _inception_a_kernel(x_ref, w_comb_ref, b_comb_ref, w23_ref, b23_ref,
                        w3b_ref, b3b_ref, b_b4_ref, invcnt_ref,
                        o_ref,
                        pad23_ref, pad3b_ref):
    B, H, W, C = x_ref.shape                  # C = 384
    M = B * H * W

    x2d = x_ref[...].reshape(M, C)            # bf16, M = B*H*W rows for the MXU

    # ---- fused shared-input 1x1 convs, cols [t2 64 | t3 64 | b1 96 | 0 32 | b4pre 96]
    y = jnp.dot(x2d, w_comb_ref[...], preferred_element_type=jnp.float32)
    y = y + b_comb_ref[...]                   # b4pre columns carry zero bias here
    t23 = jnp.maximum(y[:, 0:128], 0.0).astype(jnp.bfloat16)     # lane-aligned
    b1 = jnp.maximum(y[:, 128:224], 0.0).astype(jnp.bfloat16)
    b4pre = y[:, 256:352]                     # f32; bias/ReLU only after pooling

    # ---- branch2 3x3 (64->96) + branch3 first 3x3 (64->96): one block-diagonal
    #      conv on a single 128-lane padded scratch
    _store_padded(pad23_ref, t23.reshape(B, H, W, 128))
    r23 = jnp.dot(_im2col_3x3(pad23_ref, B, H, W, 128), w23_ref[...],
                  preferred_element_type=jnp.float32)
    r23 = jnp.maximum(r23 + b23_ref[...], 0.0)
    b2 = r23[:, 0:96].astype(jnp.bfloat16)
    u128 = r23[:, 128:256].astype(jnp.bfloat16)   # u in lanes 0:96, exact zeros 96:128

    # ---- branch3 second 3x3 (96->96), Cin zero-padded to 128 lanes
    _store_padded(pad3b_ref, u128.reshape(B, H, W, 128))
    b3 = jnp.dot(_im2col_3x3(pad3b_ref, B, H, W, 128), w3b_ref[...],
                 preferred_element_type=jnp.float32)
    b3 = jnp.maximum(b3 + b3b_ref[...], 0.0).astype(jnp.bfloat16)

    # ---- branch4: avgpool(3x3,s1,p1,count_include_pad=False) commuted with the
    #      (already applied) 1x1 conv; pool the 96-channel map in f32 (v5e-safe)
    v = b4pre.reshape(B, H, W, 96)
    zc = jnp.zeros((B, H, 1, 96), jnp.float32)
    rs = (v
          + jnp.concatenate([v[:, :, 1:, :], zc], axis=2)
          + jnp.concatenate([zc, v[:, :, :W - 1, :]], axis=2))
    zr = jnp.zeros((B, 1, W, 96), jnp.float32)
    ps = (rs
          + jnp.concatenate([rs[:, 1:, :, :], zr], axis=1)
          + jnp.concatenate([zr, rs[:, :H - 1, :, :]], axis=1))
    pooled = (ps * invcnt_ref[...]).reshape(M, 96)     # divide by valid count
    b4 = jnp.maximum(pooled + b_b4_ref[...], 0.0).astype(jnp.bfloat16)

    # ---- assemble in-register; one lane-dense (384 = 3x128) bf16 store
    o_ref[...] = jnp.concatenate([b1, b2, b3, b4], axis=1).reshape(B, H, W, 384)


# ----------------------------------------------------------------------------
# Wrapper
# ----------------------------------------------------------------------------
def _inv_count_map(H, W):
    # reciprocal of #valid (non-pad) elements per 3x3/s1/p1 window
    r = (jnp.minimum(jnp.arange(H) + 2, H)
         - jnp.maximum(jnp.arange(H) - 1, 0)).astype(jnp.float32)
    c = (jnp.minimum(jnp.arange(W) + 2, W)
         - jnp.maximum(jnp.arange(W) - 1, 0)).astype(jnp.float32)
    cnt = r[:, None] * c[None, :]
    return (1.0 / cnt).reshape(H, W, 1)


def inception_a_forward(x_nchw, p, *, b_tile=4):
    # NCHW -> NHWC boundary glue (bf16 both ways; interface stays NCHW).
    x = jnp.transpose(x_nchw, (0, 2, 3, 1)).astype(jnp.bfloat16)
    N, H, W, C = x.shape
    bt = min(b_tile, N)
    while N % bt:
        bt -= 1
    inv_cnt = _inv_count_map(H, W)

    out = pl.pallas_call(
        _inception_a_kernel,
        out_shape=jax.ShapeDtypeStruct((N, H, W, 384), jnp.bfloat16),
        grid=(N // bt,),
        in_specs=[
            pl.BlockSpec((bt, H, W, C), lambda n: (n, 0, 0, 0)),   # x (B_tile images)
            pl.BlockSpec((C, 352), lambda n: (0, 0)),              # fused 1x1 W
            pl.BlockSpec((1, 352), lambda n: (0, 0)),              # fused 1x1 bias
            pl.BlockSpec((9 * 128, 256), lambda n: (0, 0)),        # b2+b3a block-diag 3x3
            pl.BlockSpec((1, 256), lambda n: (0, 0)),
            pl.BlockSpec((9 * 128, 96), lambda n: (0, 0)),         # b3b 3x3 (Cin->128)
            pl.BlockSpec((1, 96), lambda n: (0, 0)),
            pl.BlockSpec((1, 96), lambda n: (0, 0)),               # branch4 bias
            pl.BlockSpec((H, W, 1), lambda n: (0, 0, 0)),          # 1/count map
        ],
        out_specs=pl.BlockSpec((bt, H, W, 384), lambda n: (n, 0, 0, 0)),
        scratch_shapes=[
            pltpu.VMEM((bt, H + 2, W + 2, 128), jnp.bfloat16),     # padded [t2|t3]
            pltpu.VMEM((bt, H + 2, W + 2, 128), jnp.bfloat16),     # padded u (96->128)
        ],
        compiler_params=pltpu.CompilerParams(
            dimension_semantics=("parallel",)),
    )(x, p['w_comb'], p['b_comb'], p['w23'], p['b23'],
      p['w3b'], p['b3b'], p['b_b4'], inv_cnt)

    return jnp.transpose(out, (0, 3, 1, 2))                        # bf16, NCHW


# ----------------------------------------------------------------------------
# Parameter construction (deterministic, synthetic) + BN folding (eval mode)
# ----------------------------------------------------------------------------
def make_conv_bn(key, cin, cout, k):
    kw, kg, kb, km, kv = jax.random.split(key, 5)
    w_hwio = jax.random.normal(kw, (k, k, cin, cout), jnp.float32) \
        * (1.0 / (k * k * cin)) ** 0.5
    gamma = 1.0 + 0.1 * jax.random.normal(kg, (cout,), jnp.float32)
    beta = 0.1 * jax.random.normal(kb, (cout,), jnp.float32)
    mean = 0.1 * jax.random.normal(km, (cout,), jnp.float32)
    var = 1.0 + 0.5 * jax.random.uniform(kv, (cout,), jnp.float32)
    scale = gamma / jnp.sqrt(var + 1e-3)            # BatchNorm eps = 0.001
    bias = beta - mean * scale
    w_folded = (w_hwio * scale).astype(jnp.bfloat16)        # [k,k,cin,cout]
    return dict(w=w_folded, b=bias.reshape(1, cout).astype(jnp.float32),
                pad=(k - 1) // 2)


def init_inception_a_params(key):
    ks = jax.random.split(key, 7)
    b1 = make_conv_bn(ks[0], 384, 96, 1)
    b2_1 = make_conv_bn(ks[1], 384, 64, 1)
    b2_2 = make_conv_bn(ks[2], 64, 96, 3)
    b3_1 = make_conv_bn(ks[3], 384, 64, 1)
    b3_2 = make_conv_bn(ks[4], 64, 96, 3)
    b3_3 = make_conv_bn(ks[5], 96, 96, 3)
    b4 = make_conv_bn(ks[6], 384, 96, 1)

    raw = dict(b1=b1, b2_1=b2_1, b2_2=b2_2,
               b3_1=b3_1, b3_2=b3_2, b3_3=b3_3, b4=b4)

    # Fused shared-input 1x1: cols [t2 64 | t3 64 | b1 96 | zero 32 | b4pre 96]
    # (branch4's 1x1 is applied pre-pool; its bias goes in only after pooling).
    zw32 = jnp.zeros((384, 32), jnp.bfloat16)
    w_comb = jnp.concatenate(
        [b2_1['w'][0, 0], b3_1['w'][0, 0], b1['w'][0, 0], zw32, b4['w'][0, 0]],
        axis=-1)                                                   # [384, 352]
    b_comb = jnp.concatenate(
        [b2_1['b'], b3_1['b'], b1['b'],
         jnp.zeros((1, 32), jnp.float32), jnp.zeros((1, 96), jnp.float32)],
        axis=-1)                                                   # [1, 352]

    # Block-diagonal 3x3 for branch2 (64->96) and branch3a (64->96):
    # Cin padded to 128 lanes, Cout layout [b2 96 | 0 32 | u 96 | 0 32] so that
    # cols 128:256 give u already zero-padded to 128 lanes.
    w23 = jnp.zeros((3, 3, 128, 256), jnp.float32)
    w23 = w23.at[:, :, 0:64, 0:96].set(b2_2['w'].astype(jnp.float32))
    w23 = w23.at[:, :, 64:128, 128:224].set(b3_2['w'].astype(jnp.float32))
    w23 = w23.reshape(9 * 128, 256).astype(jnp.bfloat16)
    b23 = jnp.concatenate(
        [b2_2['b'], jnp.zeros((1, 32), jnp.float32),
         b3_2['b'], jnp.zeros((1, 32), jnp.float32)], axis=-1)     # [1, 256]

    # branch3 second 3x3 (96->96), Cin zero-padded 96->128.
    w3b = jnp.zeros((3, 3, 128, 96), jnp.float32)
    w3b = w3b.at[:, :, 0:96, :].set(b3_3['w'].astype(jnp.float32))
    w3b = w3b.reshape(9 * 128, 96).astype(jnp.bfloat16)

    return dict(raw=raw,
                w_comb=w_comb, b_comb=b_comb,
                w23=w23, b23=b23,
                w3b=w3b, b3b=b3_3['b'],
                b_b4=b4['b'])


# ----------------------------------------------------------------------------
# Pure-JAX reference (faithful per-branch: pool BEFORE branch4's 1x1 conv)
# ----------------------------------------------------------------------------
def _ref_conv(x_b, blk):
    pad = blk['pad']
    y = jax.lax.conv_general_dilated(
        x_b, blk['w'], (1, 1), [(pad, pad), (pad, pad)],
        dimension_numbers=('NHWC', 'HWIO', 'NHWC'),
        preferred_element_type=jnp.float32)
    return jnp.maximum(y + blk['b'].reshape(1, 1, 1, -1), 0.0)


def inception_a_reference(x_nchw, p):
    r = p['raw']
    x = jnp.transpose(x_nchw, (0, 2, 3, 1)).astype(jnp.bfloat16)
    N, H, W, C = x.shape

    b1 = _ref_conv(x, r['b1'])
    t2 = _ref_conv(x, r['b2_1']).astype(jnp.bfloat16)
    b2 = _ref_conv(t2, r['b2_2'])
    t3 = _ref_conv(x, r['b3_1']).astype(jnp.bfloat16)
    u = _ref_conv(t3, r['b3_2']).astype(jnp.bfloat16)
    b3 = _ref_conv(u, r['b3_3'])

    xf = x.astype(jnp.float32)
    s = jax.lax.reduce_window(xf, 0.0, jax.lax.add,
                              (1, 3, 3, 1), (1, 1, 1, 1), 'SAME')
    pooled = (s * _inv_count_map(H, W).reshape(1, H, W, 1)).astype(jnp.bfloat16)
    b4 = _ref_conv(pooled, r['b4'])

    out = jnp.concatenate([b1, b2, b3, b4], axis=-1)
    return jnp.transpose(out, (0, 3, 1, 2))


# ----------------------------------------------------------------------------
if __name__ == "__main__":
    key = jax.random.PRNGKey(0)
    kx, kp = jax.random.split(key)

    # NCHW input; in_channels fixed at 384 by the module. batch=8 so that
    # B_tile=4 images per grid step give M=256 MXU rows and grid=(2,).
    x = jax.random.normal(kx, (8, 384, 8, 8), jnp.float32)
    params = init_inception_a_params(kp)

    fwd = jax.jit(inception_a_forward)
    out = jax.block_until_ready(fwd(x, params))
    assert out.shape == (8, 384, 8, 8), out.shape

    ref = jax.block_until_ready(inception_a_reference(x, params))
    # Tolerance covers bf16 output rounding and the pool/1x1 commutation in
    # branch4 (reference pools first, kernel convolves first; both f32-acc).
    err = float(jnp.max(jnp.abs(out.astype(jnp.float32) - ref.astype(jnp.float32))))
    if err > 1e-1:
        raise AssertionError(f"mismatch vs reference, max abs err = {err}")

    print("KERNEL_OK")
</pallas_src>

<mosaic_0001>
module attributes {stable_mosaic.version = 11 : i64} {
  func.func @_inception_a_kernel(%arg0: i32, %arg1: memref<4x8x8x384xbf16, #tpu.memory_space<vmem>>, %arg2: memref<384x352xbf16, #tpu.memory_space<vmem>>, %arg3: memref<1x352xf32, #tpu.memory_space<vmem>>, %arg4: memref<1152x256xbf16, #tpu.memory_space<vmem>>, %arg5: memref<1x256xf32, #tpu.memory_space<vmem>>, %arg6: memref<1152x96xbf16, #tpu.memory_space<vmem>>, %arg7: memref<1x96xf32, #tpu.memory_space<vmem>>, %arg8: memref<1x96xf32, #tpu.memory_space<vmem>>, %arg9: memref<8x8x1xf32, #tpu.memory_space<vmem>>, %arg10: memref<4x8x8x384xbf16, #tpu.memory_space<vmem>>, %arg11: memref<4x10x10x128xbf16, #tpu.memory_space<vmem>>, %arg12: memref<4x10x10x128xbf16, #tpu.memory_space<vmem>>) attributes {dimension_semantics = [#tpu.dimension_semantics<parallel>], iteration_bounds = array<i64: 2>, scalar_prefetch = 0 : i64, scratch_operands = 2 : i64, tpu.core_type = #tpu.core_type<tc>, window_params = [{transform_indices = @transform_0, window_bounds = array<i64: 4, 8, 8, 384>}, {pipeline_mode = #tpu.pipeline_mode<synchronous>, transform_indices = @transform_1, window_bounds = array<i64: 384, 352>}, {pipeline_mode = #tpu.pipeline_mode<synchronous>, transform_indices = @transform_2, window_bounds = array<i64: 1, 352>}, {pipeline_mode = #tpu.pipeline_mode<synchronous>, transform_indices = @transform_3, window_bounds = array<i64: 1152, 256>}, {pipeline_mode = #tpu.pipeline_mode<synchronous>, transform_indices = @transform_4, window_bounds = array<i64: 1, 256>}, {pipeline_mode = #tpu.pipeline_mode<synchronous>, transform_indices = @transform_5, window_bounds = array<i64: 1152, 96>}, {pipeline_mode = #tpu.pipeline_mode<synchronous>, transform_indices = @transform_6, window_bounds = array<i64: 1, 96>}, {pipeline_mode = #tpu.pipeline_mode<synchronous>, transform_indices = @transform_7, window_bounds = array<i64: 1, 96>}, {pipeline_mode = #tpu.pipeline_mode<synchronous>, transform_indices = @transform_8, window_bounds = array<i64: 8, 8, 1>}, {transform_indices = @transform_9, window_bounds = array<i64: 4, 8, 8, 384>}]} {
    %c0 = arith.constant 0 : index
    %c0_0 = arith.constant 0 : index
    %c0_1 = arith.constant 0 : index
    %c0_2 = arith.constant 0 : index
    %0 = vector.load %arg1[%c0, %c0_0, %c0_1, %c0_2] : memref<4x8x8x384xbf16, #tpu.memory_space<vmem>>, vector<4x8x8x384xbf16>
    %1 = vector.shape_cast %0 : vector<4x8x8x384xbf16> to vector<256x384xbf16>
    %c0_3 = arith.constant 0 : index
    %c0_4 = arith.constant 0 : index
    %2 = vector.load %arg2[%c0_3, %c0_4] : memref<384x352xbf16, #tpu.memory_space<vmem>>, vector<384x352xbf16>
    %cst = arith.constant dense<0.000000e+00> : vector<256x352xf32>
    %3 = tpu.matmul %1, %2, %cst {dimension_numbers = #tpu.dot_dimension_numbers<[1], [0], [0], [1], [0, 0, 1, 1], [], []>} : vector<256x384xbf16>, vector<384x352xbf16>, vector<256x352xf32> -> vector<256x352xf32>
    %c0_5 = arith.constant 0 : index
    %c0_6 = arith.constant 0 : index
    %4 = vector.load %arg3[%c0_5, %c0_6] : memref<1x352xf32, #tpu.memory_space<vmem>>, vector<1x352xf32>
    %5 = vector.broadcast %4 : vector<1x352xf32> to vector<256x352xf32>
    %6 = arith.addf %3, %5 : vector<256x352xf32>
    %7 = vector.extract_strided_slice %6 {offsets = [0, 0], sizes = [256, 128], strides = [1, 1]} : vector<256x352xf32> to vector<256x128xf32>
    %cst_7 = arith.constant 0.000000e+00 : f32
    %8 = vector.broadcast %cst_7 : f32 to vector<256x128xf32>
    %9 = arith.maximumf %7, %8 : vector<256x128xf32>
    %10 = arith.truncf %9 : vector<256x128xf32> to vector<256x128xbf16>
    %11 = vector.extract_strided_slice %6 {offsets = [0, 128], sizes = [256, 96], strides = [1, 1]} : vector<256x352xf32> to vector<256x96xf32>
    %cst_8 = arith.constant 0.000000e+00 : f32
    %12 = vector.broadcast %cst_8 : f32 to vector<256x96xf32>
    %13 = arith.maximumf %11, %12 : vector<256x96xf32>
    %14 = arith.truncf %13 : vector<256x96xf32> to vector<256x96xbf16>
    %15 = vector.extract_strided_slice %6 {offsets = [0, 256], sizes = [256, 96], strides = [1, 1]} : vector<256x352xf32> to vector<256x96xf32>
    %16 = vector.shape_cast %10 : vector<256x128xbf16> to vector<4x8x8x128xbf16>
    %cst_9 = arith.constant 0.000000e+00 : bf16
    %17 = vector.broadcast %cst_9 : bf16 to vector<4x1x10x128xbf16>
    %cst_10 = arith.constant 0.000000e+00 : bf16
    %18 = vector.broadcast %cst_10 : bf16 to vector<4x8x1x128xbf16>
    %c0_11 = arith.constant 0 : index
    %c0_12 = arith.constant 0 : index
    %c0_13 = arith.constant 0 : index
    %c0_14 = arith.constant 0 : index
    %19 = vector.load %arg11[%c0_11, %c0_12, %c0_13, %c0_14] : memref<4x10x10x128xbf16, #tpu.memory_space<vmem>>, vector<4x1x10x128xbf16>
    tpu.vector_store %arg11[%c0_11, %c0_12, %c0_13, %c0_14], %17 {strides = array<i32>} : memref<4x10x10x128xbf16, #tpu.memory_space<vmem>>, vector<4x1x10x128xbf16>,
    %c0_15 = arith.constant 0 : index
    %c9 = arith.constant 9 : index
    %c0_16 = arith.constant 0 : index
    %c0_17 = arith.constant 0 : index
    %20 = vector.load %arg11[%c0_15, %c9, %c0_16, %c0_17] : memref<4x10x10x128xbf16, #tpu.memory_space<vmem>>, vector<4x1x10x128xbf16>
    tpu.vector_store %arg11[%c0_15, %c9, %c0_16, %c0_17], %17 {strides = array<i32>} : memref<4x10x10x128xbf16, #tpu.memory_space<vmem>>, vector<4x1x10x128xbf16>,
    %21 = tpu.concatenate %18, %16, %18 in 2 : vector<4x8x1x128xbf16>, vector<4x8x8x128xbf16>, vector<4x8x1x128xbf16> -> vector<4x8x10x128xbf16>
    %c0_18 = arith.constant 0 : index
    %c1 = arith.constant 1 : index
    %c0_19 = arith.constant 0 : index
    %c0_20 = arith.constant 0 : index
    %22 = vector.load %arg11[%c0_18, %c1, %c0_19, %c0_20] : memref<4x10x10x128xbf16, #tpu.memory_space<vmem>>, vector<4x8x10x128xbf16>
    tpu.vector_store %arg11[%c0_18, %c1, %c0_19, %c0_20], %21 {strides = array<i32>} : memref<4x10x10x128xbf16, #tpu.memory_space<vmem>>, vector<4x8x10x128xbf16>,
    %c0_21 = arith.constant 0 : index
    %c0_22 = arith.constant 0 : index
    %c0_23 = arith.constant 0 : index
    %c0_24 = arith.constant 0 : index
    %23 = vector.load %arg11[%c0_21, %c0_22, %c0_23, %c0_24] : memref<4x10x10x128xbf16, #tpu.memory_space<vmem>>, vector<4x8x8x128xbf16>
    %24 = vector.shape_cast %23 : vector<4x8x8x128xbf16> to vector<256x128xbf16>
    %c0_25 = arith.constant 0 : index
    %c0_26 = arith.constant 0 : index
    %c1_27 = arith.constant 1 : index
    %c0_28 = arith.constant 0 : index
    %25 = vector.load %arg11[%c0_25, %c0_26, %c1_27, %c0_28] : memref<4x10x10x128xbf16, #tpu.memory_space<vmem>>, vector<4x8x8x128xbf16>
    %26 = vector.shape_cast %25 : vector<4x8x8x128xbf16> to vector<256x128xbf16>
    %c0_29 = arith.constant 0 : index
    %c0_30 = arith.constant 0 : index
    %c2 = arith.constant 2 : index
    %c0_31 = arith.constant 0 : index
    %27 = vector.load %arg11[%c0_29, %c0_30, %c2, %c0_31] : memref<4x10x10x128xbf16, #tpu.memory_space<vmem>>, vector<4x8x8x128xbf16>
    %28 = vector.shape_cast %27 : vector<4x8x8x128xbf16> to vector<256x128xbf16>
    %c0_32 = arith.constant 0 : index
    %c1_33 = arith.constant 1 : index
    %c0_34 = arith.constant 0 : index
    %c0_35 = arith.constant 0 : index
    %29 = vector.load %arg11[%c0_32, %c1_33, %c0_34, %c0_35] : memref<4x10x10x128xbf16, #tpu.memory_space<vmem>>, vector<4x8x8x128xbf16>
    %30 = vector.shape_cast %29 : vector<4x8x8x128xbf16> to vector<256x128xbf16>
    %c0_36 = arith.constant 0 : index
    %c1_37 = arith.constant 1 : index
    %c1_38 = arith.constant 1 : index
    %c0_39 = arith.constant 0 : index
    %31 = vector.load %arg11[%c0_36, %c1_37, %c1_38, %c0_39] : memref<4x10x10x128xbf16, #tpu.memory_space<vmem>>, vector<4x8x8x128xbf16>
    %32 = vector.shape_cast %31 : vector<4x8x8x128xbf16> to vector<256x128xbf16>
    %c0_40 = arith.constant 0 : index
    %c1_41 = arith.constant 1 : index
    %c2_42 = arith.constant 2 : index
    %c0_43 = arith.constant 0 : index
    %33 = vector.load %arg11[%c0_40, %c1_41, %c2_42, %c0_43] : memref<4x10x10x128xbf16, #tpu.memory_space<vmem>>, vector<4x8x8x128xbf16>
    %34 = vector.shape_cast %33 : vector<4x8x8x128xbf16> to vector<256x128xbf16>
    %c0_44 = arith.constant 0 : index
    %c2_45 = arith.constant 2 : index
    %c0_46 = arith.constant 0 : index
    %c0_47 = arith.constant 0 : index
    %35 = vector.load %arg11[%c0_44, %c2_45, %c0_46, %c0_47] : memref<4x10x10x128xbf16, #tpu.memory_space<vmem>>, vector<4x8x8x128xbf16>
    %36 = vector.shape_cast %35 : vector<4x8x8x128xbf16> to vector<256x128xbf16>
    %c0_48 = arith.constant 0 : index
    %c2_49 = arith.constant 2 : index
    %c1_50 = arith.constant 1 : index
    %c0_51 = arith.constant 0 : index
    %37 = vector.load %arg11[%c0_48, %c2_49, %c1_50, %c0_51] : memref<4x10x10x128xbf16, #tpu.memory_space<vmem>>, vector<4x8x8x128xbf16>
    %38 = vector.shape_cast %37 : vector<4x8x8x128xbf16> to vector<256x128xbf16>
    %c0_52 = arith.constant 0 : index
    %c2_53 = arith.constant 2 : index
    %c2_54 = arith.constant 2 : index
    %c0_55 = arith.constant 0 : index
    %39 = vector.load %arg11[%c0_52, %c2_53, %c2_54, %c0_55] : memref<4x10x10x128xbf16, #tpu.memory_space<vmem>>, vector<4x8x8x128xbf16>
    %40 = vector.shape_cast %39 : vector<4x8x8x128xbf16> to vector<256x128xbf16>
    %41 = tpu.concatenate %24, %26, %28, %30, %32, %34, %36, %38, %40 in 1 : vector<256x128xbf16>, vector<256x128xbf16>, vector<256x128xbf16>, vector<256x128xbf16>, vector<256x128xbf16>, vector<256x128xbf16>, vector<256x128xbf16>, vector<256x128xbf16>, vector<256x128xbf16> -> vector<256x1152xbf16>
    %c0_56 = arith.constant 0 : index
    %c0_57 = arith.constant 0 : index
    %42 = vector.load %arg4[%c0_56, %c0_57] : memref<1152x256xbf16, #tpu.memory_space<vmem>>, vector<1152x256xbf16>
    %cst_58 = arith.constant dense<0.000000e+00> : vector<256x256xf32>
    %43 = tpu.matmul %41, %42, %cst_58 {dimension_numbers = #tpu.dot_dimension_numbers<[1], [0], [0], [1], [0, 0, 1, 1], [], []>} : vector<256x1152xbf16>, vector<1152x256xbf16>, vector<256x256xf32> -> vector<256x256xf32>
    %c0_59 = arith.constant 0 : index
    %c0_60 = arith.constant 0 : index
    %44 = vector.load %arg5[%c0_59, %c0_60] : memref<1x256xf32, #tpu.memory_space<vmem>>, vector<1x256xf32>
    %45 = vector.broadcast %44 : vector<1x256xf32> to vector<256x256xf32>
    %46 = arith.addf %43, %45 : vector<256x256xf32>
    %cst_61 = arith.constant 0.000000e+00 : f32
    %47 = vector.broadcast %cst_61 : f32 to vector<256x256xf32>
    %48 = arith.maximumf %46, %47 : vector<256x256xf32>
    %49 = vector.extract_strided_slice %48 {offsets = [0, 0], sizes = [256, 96], strides = [1, 1]} : vector<256x256xf32> to vector<256x96xf32>
    %50 = arith.truncf %49 : vector<256x96xf32> to vector<256x96xbf16>
    %51 = vector.extract_strided_slice %48 {offsets = [0, 128], sizes = [256, 128], strides = [1, 1]} : vector<256x256xf32> to vector<256x128xf32>
    %52 = arith.truncf %51 : vector<256x128xf32> to vector<256x128xbf16>
    %53 = vector.shape_cast %52 : vector<256x128xbf16> to vector<4x8x8x128xbf16>
    %cst_62 = arith.constant 0.000000e+00 : bf16
    %54 = vector.broadcast %cst_62 : bf16 to vector<4x1x10x128xbf16>
    %cst_63 = arith.constant 0.000000e+00 : bf16
    %55 = vector.broadcast %cst_63 : bf16 to vector<4x8x1x128xbf16>
    %c0_64 = arith.constant 0 : index
    %c0_65 = arith.constant 0 : index
    %c0_66 = arith.constant 0 : index
    %c0_67 = arith.constant 0 : index
    %56 = vector.load %arg12[%c0_64, %c0_65, %c0_66, %c0_67] : memref<4x10x10x128xbf16, #tpu.memory_space<vmem>>, vector<4x1x10x128xbf16>
    tpu.vector_store %arg12[%c0_64, %c0_65, %c0_66, %c0_67], %54 {strides = array<i32>} : memref<4x10x10x128xbf16, #tpu.memory_space<vmem>>, vector<4x1x10x128xbf16>,
    %c0_68 = arith.constant 0 : index
    %c9_69 = arith.constant 9 : index
    %c0_70 = arith.constant 0 : index
    %c0_71 = arith.constant 0 : index
    %57 = vector.load %arg12[%c0_68, %c9_69, %c0_70, %c0_71] : memref<4x10x10x128xbf16, #tpu.memory_space<vmem>>, vector<4x1x10x128xbf16>
    tpu.vector_store %arg12[%c0_68, %c9_69, %c0_70, %c0_71], %54 {strides = array<i32>} : memref<4x10x10x128xbf16, #tpu.memory_space<vmem>>, vector<4x1x10x128xbf16>,
    %58 = tpu.concatenate %55, %53, %55 in 2 : vector<4x8x1x128xbf16>, vector<4x8x8x128xbf16>, vector<4x8x1x128xbf16> -> vector<4x8x10x128xbf16>
    %c0_72 = arith.constant 0 : index
    %c1_73 = arith.constant 1 : index
    %c0_74 = arith.constant 0 : index
    %c0_75 = arith.constant 0 : index
    %59 = vector.load %arg12[%c0_72, %c1_73, %c0_74, %c0_75] : memref<4x10x10x128xbf16, #tpu.memory_space<vmem>>, vector<4x8x10x128xbf16>
    tpu.vector_store %arg12[%c0_72, %c1_73, %c0_74, %c0_75], %58 {strides = array<i32>} : memref<4x10x10x128xbf16, #tpu.memory_space<vmem>>, vector<4x8x10x128xbf16>,
    %c0_76 = arith.constant 0 : index
    %c0_77 = arith.constant 0 : index
    %c0_78 = arith.constant 0 : index
    %c0_79 = arith.constant 0 : index
    %60 = vector.load %arg12[%c0_76, %c0_77, %c0_78, %c0_79] : memref<4x10x10x128xbf16, #tpu.memory_space<vmem>>, vector<4x8x8x128xbf16>
    %61 = vector.shape_cast %60 : vector<4x8x8x128xbf16> to vector<256x128xbf16>
    %c0_80 = arith.constant 0 : index
    %c0_81 = arith.constant 0 : index
    %c1_82 = arith.constant 1 : index
    %c0_83 = arith.constant 0 : index
    %62 = vector.load %arg12[%c0_80, %c0_81, %c1_82, %c0_83] : memref<4x10x10x128xbf16, #tpu.memory_space<vmem>>, vector<4x8x8x128xbf16>
    %63 = vector.shape_cast %62 : vector<4x8x8x128xbf16> to vector<256x128xbf16>
    %c0_84 = arith.constant 0 : index
    %c0_85 = arith.constant 0 : index
    %c2_86 = arith.constant 2 : index
    %c0_87 = arith.constant 0 : index
    %64 = vector.load %arg12[%c0_84, %c0_85, %c2_86, %c0_87] : memref<4x10x10x128xbf16, #tpu.memory_space<vmem>>, vector<4x8x8x128xbf16>
    %65 = vector.shape_cast %64 : vector<4x8x8x128xbf16> to vector<256x128xbf16>
    %c0_88 = arith.constant 0 : index
    %c1_89 = arith.constant 1 : index
    %c0_90 = arith.constant 0 : index
    %c0_91 = arith.constant 0 : index
    %66 = vector.load %arg12[%c0_88, %c1_89, %c0_90, %c0_91] : memref<4x10x10x128xbf16, #tpu.memory_space<vmem>>, vector<4x8x8x128xbf16>
    %67 = vector.shape_cast %66 : vector<4x8x8x128xbf16> to vector<256x128xbf16>
    %c0_92 = arith.constant 0 : index
    %c1_93 = arith.constant 1 : index
    %c1_94 = arith.constant 1 : index
    %c0_95 = arith.constant 0 : index
    %68 = vector.load %arg12[%c0_92, %c1_93, %c1_94, %c0_95] : memref<4x10x10x128xbf16, #tpu.memory_space<vmem>>, vector<4x8x8x128xbf16>
    %69 = vector.shape_cast %68 : vector<4x8x8x128xbf16> to vector<256x128xbf16>
    %c0_96 = arith.constant 0 : index
    %c1_97 = arith.constant 1 : index
    %c2_98 = arith.constant 2 : index
    %c0_99 = arith.constant 0 : index
    %70 = vector.load %arg12[%c0_96, %c1_97, %c2_98, %c0_99] : memref<4x10x10x128xbf16, #tpu.memory_space<vmem>>, vector<4x8x8x128xbf16>
    %71 = vector.shape_cast %70 : vector<4x8x8x128xbf16> to vector<256x128xbf16>
    %c0_100 = arith.constant 0 : index
    %c2_101 = arith.constant 2 : index
    %c0_102 = arith.constant 0 : index
    %c0_103 = arith.constant 0 : index
    %72 = vector.load %arg12[%c0_100, %c2_101, %c0_102, %c0_103] : memref<4x10x10x128xbf16, #tpu.memory_space<vmem>>, vector<4x8x8x128xbf16>
    %73 = vector.shape_cast %72 : vector<4x8x8x128xbf16> to vector<256x128xbf16>
    %c0_104 = arith.constant 0 : index
    %c2_105 = arith.constant 2 : index
    %c1_106 = arith.constant 1 : index
    %c0_107 = arith.constant 0 : index
    %74 = vector.load %arg12[%c0_104, %c2_105, %c1_106, %c0_107] : memref<4x10x10x128xbf16, #tpu.memory_space<vmem>>, vector<4x8x8x128xbf16>
    %75 = vector.shape_cast %74 : vector<4x8x8x128xbf16> to vector<256x128xbf16>
    %c0_108 = arith.constant 0 : index
    %c2_109 = arith.constant 2 : index
    %c2_110 = arith.constant 2 : index
    %c0_111 = arith.constant 0 : index
    %76 = vector.load %arg12[%c0_108, %c2_109, %c2_110, %c0_111] : memref<4x10x10x128xbf16, #tpu.memory_space<vmem>>, vector<4x8x8x128xbf16>
    %77 = vector.shape_cast %76 : vector<4x8x8x128xbf16> to vector<256x128xbf16>
    %78 = tpu.concatenate %61, %63, %65, %67, %69, %71, %73, %75, %77 in 1 : vector<256x128xbf16>, vector<256x128xbf16>, vector<256x128xbf16>, vector<256x128xbf16>, vector<256x128xbf16>, vector<256x128xbf16>, vector<256x128xbf16>, vector<256x128xbf16>, vector<256x128xbf16> -> vector<256x1152xbf16>
    %c0_112 = arith.constant 0 : index
    %c0_113 = arith.constant 0 : index
    %79 = vector.load %arg6[%c0_112, %c0_113] : memref<1152x96xbf16, #tpu.memory_space<vmem>>, vector<1152x96xbf16>
    %cst_114 = arith.constant dense<0.000000e+00> : vector<256x96xf32>
    %80 = tpu.matmul %78, %79, %cst_114 {dimension_numbers = #tpu.dot_dimension_numbers<[1], [0], [0], [1], [0, 0, 1, 1], [], []>} : vector<256x1152xbf16>, vector<1152x96xbf16>, vector<256x96xf32> -> vector<256x96xf32>
    %c0_115 = arith.constant 0 : index
    %c0_116 = arith.constant 0 : index
    %81 = vector.load %arg7[%c0_115, %c0_116] : memref<1x96xf32, #tpu.memory_space<vmem>>, vector<1x96xf32>
    %82 = vector.broadcast %81 : vector<1x96xf32> to vector<256x96xf32>
    %83 = arith.addf %80, %82 : vector<256x96xf32>
    %cst_117 = arith.constant 0.000000e+00 : f32
    %84 = vector.broadcast %cst_117 : f32 to vector<256x96xf32>
    %85 = arith.maximumf %83, %84 : vector<256x96xf32>
    %86 = arith.truncf %85 : vector<256x96xf32> to vector<256x96xbf16>
    %87 = vector.shape_cast %15 : vector<256x96xf32> to vector<4x8x8x96xf32>
    %cst_118 = arith.constant 0.000000e+00 : f32
    %88 = vector.broadcast %cst_118 : f32 to vector<4x8x1x96xf32>
    %89 = vector.extract_strided_slice %87 {offsets = [0, 0, 1, 0], sizes = [4, 8, 7, 96], strides = [1, 1, 1, 1]} : vector<4x8x8x96xf32> to vector<4x8x7x96xf32>
    %90 = tpu.concatenate %89, %88 in 2 : vector<4x8x7x96xf32>, vector<4x8x1x96xf32> -> vector<4x8x8x96xf32>
    %91 = arith.addf %87, %90 : vector<4x8x8x96xf32>
    %92 = vector.extract_strided_slice %87 {offsets = [0, 0, 0, 0], sizes = [4, 8, 7, 96], strides = [1, 1, 1, 1]} : vector<4x8x8x96xf32> to vector<4x8x7x96xf32>
    %93 = tpu.concatenate %88, %92 in 2 : vector<4x8x1x96xf32>, vector<4x8x7x96xf32> -> vector<4x8x8x96xf32>
    %94 = arith.addf %91, %93 : vector<4x8x8x96xf32>
    %cst_119 = arith.constant 0.000000e+00 : f32
    %95 = vector.broadcast %cst_119 : f32 to vector<4x1x8x96xf32>
    %96 = vector.extract_strided_slice %94 {offsets = [0, 1, 0, 0], sizes = [4, 7, 8, 96], strides = [1, 1, 1, 1]} : vector<4x8x8x96xf32> to vector<4x7x8x96xf32>
    %97 = tpu.concatenate %96, %95 in 1 : vector<4x7x8x96xf32>, vector<4x1x8x96xf32> -> vector<4x8x8x96xf32>
    %98 = arith.addf %94, %97 : vector<4x8x8x96xf32>
    %99 = vector.extract_strided_slice %94 {offsets = [0, 0, 0, 0], sizes = [4, 7, 8, 96], strides = [1, 1, 1, 1]} : vector<4x8x8x96xf32> to vector<4x7x8x96xf32>
    %100 = tpu.concatenate %95, %99 in 1 : vector<4x1x8x96xf32>, vector<4x7x8x96xf32> -> vector<4x8x8x96xf32>
    %101 = arith.addf %98, %100 : vector<4x8x8x96xf32>
    %c0_120 = arith.constant 0 : index
    %c0_121 = arith.constant 0 : index
    %c0_122 = arith.constant 0 : index
    %102 = vector.load %arg9[%c0_120, %c0_121, %c0_122] : memref<8x8x1xf32, #tpu.memory_space<vmem>>, vector<8x8x1xf32>
    %103 = vector.shape_cast %102 : vector<8x8x1xf32> to vector<1x8x8x1xf32>
    %104 = vector.broadcast %103 : vector<1x8x8x1xf32> to vector<4x8x8x96xf32>
    %105 = arith.mulf %101, %104 : vector<4x8x8x96xf32>
    %106 = vector.shape_cast %105 : vector<4x8x8x96xf32> to vector<256x96xf32>
    %c0_123 = arith.constant 0 : index
    %c0_124 = arith.constant 0 : index
    %107 = vector.load %arg8[%c0_123, %c0_124] : memref<1x96xf32, #tpu.memory_space<vmem>>, vector<1x96xf32>
    %108 = vector.broadcast %107 : vector<1x96xf32> to vector<256x96xf32>
    %109 = arith.addf %106, %108 : vector<256x96xf32>
    %cst_125 = arith.constant 0.000000e+00 : f32
    %110 = vector.broadcast %cst_125 : f32 to vector<256x96xf32>
    %111 = arith.maximumf %109, %110 : vector<256x96xf32>
    %112 = arith.truncf %111 : vector<256x96xf32> to vector<256x96xbf16>
    %113 = tpu.concatenate %14, %50, %86, %112 in 1 : vector<256x96xbf16>, vector<256x96xbf16>, vector<256x96xbf16>, vector<256x96xbf16> -> vector<256x384xbf16>
    %114 = vector.shape_cast %113 : vector<256x384xbf16> to vector<4x8x8x384xbf16>
    %c0_126 = arith.constant 0 : index
    %c0_127 = arith.constant 0 : index
    %c0_128 = arith.constant 0 : index
    %c0_129 = arith.constant 0 : index
    %115 = vector.load %arg10[%c0_126, %c0_127, %c0_128, %c0_129] : memref<4x8x8x384xbf16, #tpu.memory_space<vmem>>, vector<4x8x8x384xbf16>
    tpu.vector_store %arg10[%c0_126, %c0_127, %c0_128, %c0_129], %114 {strides = array<i32>} : memref<4x8x8x384xbf16, #tpu.memory_space<vmem>>, vector<4x8x8x384xbf16>,
    return
  }
  func.func @transform_0(%arg0: i32) -> (i32, i32, i32, i32) {
    %c0_i32 = arith.constant 0 : i32
    %c0_i32_0 = arith.constant 0 : i32
    %c0_i32_1 = arith.constant 0 : i32
    %c0_i32_2 = arith.constant 0 : i32
    return %arg0, %c0_i32, %c0_i32_0, %c0_i32_1 : i32, i32, i32, i32
  }
  func.func @transform_1(%arg0: i32) -> (i32, i32) {
    %c0_i32 = arith.constant 0 : i32
    %c0_i32_0 = arith.constant 0 : i32
    %c0_i32_1 = arith.constant 0 : i32
    return %c0_i32, %c0_i32_0 : i32, i32
  }
  func.func @transform_2(%arg0: i32) -> (i32, i32) {
    %c0_i32 = arith.constant 0 : i32
    %c0_i32_0 = arith.constant 0 : i32
    %c0_i32_1 = arith.constant 0 : i32
    return %c0_i32, %c0_i32_0 : i32, i32
  }
  func.func @transform_3(%arg0: i32) -> (i32, i32) {
    %c0_i32 = arith.constant 0 : i32
    %c0_i32_0 = arith.constant 0 : i32
    %c0_i32_1 = arith.constant 0 : i32
    return %c0_i32, %c0_i32_0 : i32, i32
  }
  func.func @transform_4(%arg0: i32) -> (i32, i32) {
    %c0_i32 = arith.constant 0 : i32
    %c0_i32_0 = arith.constant 0 : i32
    %c0_i32_1 = arith.constant 0 : i32
    return %c0_i32, %c0_i32_0 : i32, i32
  }
  func.func @transform_5(%arg0: i32) -> (i32, i32) {
    %c0_i32 = arith.constant 0 : i32
    %c0_i32_0 = arith.constant 0 : i32
    %c0_i32_1 = arith.constant 0 : i32
    return %c0_i32, %c0_i32_0 : i32, i32
  }
  func.func @transform_6(%arg0: i32) -> (i32, i32) {
    %c0_i32 = arith.constant 0 : i32
    %c0_i32_0 = arith.constant 0 : i32
    %c0_i32_1 = arith.constant 0 : i32
    return %c0_i32, %c0_i32_0 : i32, i32
  }
  func.func @transform_7(%arg0: i32) -> (i32, i32) {
    %c0_i32 = arith.constant 0 : i32
    %c0_i32_0 = arith.constant 0 : i32
    %c0_i32_1 = arith.constant 0 : i32
    return %c0_i32, %c0_i32_0 : i32, i32
  }
  func.func @transform_8(%arg0: i32) -> (i32, i32, i32) {
    %c0_i32 = arith.constant 0 : i32
    %c0_i32_0 = arith.constant 0 : i32
    %c0_i32_1 = arith.constant 0 : i32
    %c0_i32_2 = arith.constant 0 : i32
    return %c0_i32, %c0_i32_0, %c0_i32_1 : i32, i32, i32
  }
  func.func @transform_9(%arg0: i32) -> (i32, i32, i32, i32) {
    %c0_i32 = arith.constant 0 : i32
    %c0_i32_0 = arith.constant 0 : i32
    %c0_i32_1 = arith.constant 0 : i32
    %c0_i32_2 = arith.constant 0 : i32
    return %arg0, %c0_i32, %c0_i32_0, %c0_i32_1 : i32, i32, i32, i32
  }
}

</mosaic_0001>

<llo_original>
// kernel: inception_a_forward.1
$region0: #{inception_a_forward.1}
  #allocation0 [shape = 'u32[]', space=smem, size = 0x4, offset = 0x4, fixed_abs, tag = 'smem constant byte address 0x4 - core index']
  #allocation1 [shape = 'u32[144,128]{1,0:T(1,128)}', space=vmem, size = 0x12000, scoped, tag = 'internal scratch']
  #allocation2 [shape = 'bf16[4,10,10,128]{3,2,1,0:T(8,128)(2,1)}', space=vmem, size = 0x28000, scoped, tag = 'scratch operand']
  #allocation3 [shape = 'bf16[4,10,10,128]{3,2,1,0:T(8,128)(2,1)}', space=vmem, size = 0x28000, scoped, tag = 'scratch operand']
  %s0 = inlined_call_operand.vmem [shape: bf16[8,8,8,384], index: 0, kind: input, shape index: {}]
  %s1 = inlined_call_operand.vmem [shape: bf16[384,352], index: 1, kind: input, shape index: {}]
  %s2 = inlined_call_operand.vmem [shape: f32[1,352], index: 2, kind: input, shape index: {}]
  %s3 = inlined_call_operand.vmem [shape: bf16[1152,256], index: 3, kind: input, shape index: {}]
  %s4 = inlined_call_operand.vmem [shape: f32[1,256], index: 4, kind: input, shape index: {}]
  %s5 = inlined_call_operand.vmem [shape: bf16[1152,96], index: 5, kind: input, shape index: {}]
  %s6 = inlined_call_operand.vmem [shape: f32[1,96], index: 6, kind: input, shape index: {}]
  %s7 = inlined_call_operand.vmem [shape: f32[1,96], index: 7, kind: input, shape index: {}]
  %s8 = inlined_call_operand.vmem [shape: f32[8,8,1], index: 8, kind: input, shape index: {}]
  %s9 = inlined_call_operand.hbm [shape: bf16[8,8,8,384], index: 9, kind: output, shape index: {}]
  %s10 = sld [smem:[#allocation0]]
  $region69: #{inception_a_forward.1} parent=0
    _
  %s12 = ssub.s32 1, %s10
  %s13 = scalar_select 0, %s12, %s10
  $region1: #{inception_a_forward.1} parent=0
    #allocation4 [shape = 'u8[393216]{0}', space=vmem, size = 0x60000, scoped, tag = 'output window, operand 0']
    #allocation5 [shape = 's32[2]{0}', space=sflag, size = 0x8, scoped, tag = 'scoped memory for inception_a_forward.1']
    %14 = vsyncpa [#allocation5], 0
    %s15 = scalar_lea.sflag [#allocation5], 1
    %16 = vsyncpa %s15, 0
    loop: start=0, step=1, limit=4
    $region2: #{inception_a_forward.1} parent=1 // loop_pre_header
      _
    $region3: #{inception_a_forward.1} parent=1 // loop_header
      %s18 = sphi 0, %s22
      %p19 = scmp.ge.s32.totalorder %s18, 4
      %s28 = sphi 0, %s30
      %s31 = sphi 0, %s28
      %s32 = sphi 0, %s31
      %s48 = sphi 0, %s32
      %s52 = sphi 0, %s52
      %s54 = sphi 0, %s52
      %s55 = sphi 0, %s54
      %s69 = sphi 0, %s55
      %s73 = sphi 0, %s73
      %s75 = sphi 0, %s73
      %s76 = sphi 0, %s75
      %s90 = sphi 0, %s76
      %s94 = sphi 0, %s94
      %s96 = sphi 0, %s94
      %s97 = sphi 0, %s96
      %s111 = sphi 0, %s97
      %s115 = sphi 0, %s115
      %s117 = sphi 0, %s115
      %s118 = sphi 0, %s117
      %s132 = sphi 0, %s118
      %s136 = sphi 0, %s136
      %s138 = sphi 0, %s136
      %s139 = sphi 0, %s138
      %s153 = sphi 0, %s139
      %s157 = sphi 0, %s157
      %s159 = sphi 0, %s157
      %s160 = sphi 0, %s159
      %s174 = sphi 0, %s160
      %s178 = sphi 0, %s178
      %s180 = sphi 0, %s178
      %s181 = sphi 0, %s180
      %s195 = sphi 0, %s181
      %s199 = sphi 0, %s199
      %s201 = sphi 0, %s199
      %s202 = sphi 0, %s201
      %s216 = sphi 0, %s202
      %s222 = sphi 0, %s224
      %s225 = sphi 0, %s222
      %s226 = sphi 0, %s225
      %s242 = sphi 0, %s226
    $region4: #{inception_a_forward.1} parent=1 // loop_header_branch
      %21 = sbr.rel (%p19) target = $region8
    $region5: #{inception_a_forward.1} parent=1 // loop_body
      %s23 = ssub.s32 %s18, 1
      %s24 = ssub.s32 %s18, 2
      %s25 = sadd.s32 %s18, 1
      %s26 = ssub.s32 %s18, %s25
      %p27 = scmp.eq.s32.totalorder %s26, 0
      %s29 = sadd.s32 %s28, 1
      %s30 = scalar_select %p27, %s28, %s29
      %p33 = pneg %p27
      %p34 = scmp.eq.s32.totalorder %s18, 1
      %p35 = por %p33, %p34
      %p36 = scmp.ne.s32.totalorder %s28, %s31
      %p37 = scmp.eq.s32.totalorder %s18, 0
      %p38 = por %p36, %p37
      %p39 = scmp.ne.s32.totalorder %s28, %s31
      %p40 = scmp.eq.s32.totalorder %s23, 1
      %p41 = por %p39, %p40
      %p42 = scmp.ne.s32.totalorder %s31, %s32
      %p43 = scmp.eq.s32.totalorder %s23, 0
      %p44 = por %p42, %p43
      %p45 = scmp.ne.s32.totalorder %s31, %s32
      %p46 = scmp.eq.s32.totalorder %s24, 1
      %p47 = por %p45, %p46
      %p49 = scmp.ne.s32.totalorder %s32, %s48
      %p50 = scmp.eq.s32.totalorder %s24, 0
      %p51 = por %p49, %p50
      %s53 = sadd.s32 %s52, 1
      %p56 = scmp.eq.s32.totalorder %s18, 1
      %p57 = scmp.ne.s32.totalorder %s52, %s54
      %p58 = scmp.eq.s32.totalorder %s18, 0
      %p59 = por %p57, %p58
      %p60 = scmp.ne.s32.totalorder %s52, %s54
      %p61 = scmp.eq.s32.totalorder %s23, 1
      %p62 = por %p60, %p61
      %p63 = scmp.ne.s32.totalorder %s54, %s55
      %p64 = scmp.eq.s32.totalorder %s23, 0
      %p65 = por %p63, %p64
      %p66 = scmp.ne.s32.totalorder %s54, %s55
      %p67 = scmp.eq.s32.totalorder %s24, 1
      %p68 = por %p66, %p67
      %p70 = scmp.ne.s32.totalorder %s55, %s69
      %p71 = scmp.eq.s32.totalorder %s24, 0
      %p72 = por %p70, %p71
      %s74 = sadd.s32 %s73, 1
      %p77 = scmp.eq.s32.totalorder %s18, 1
      %p78 = scmp.ne.s32.totalorder %s73, %s75
      %p79 = scmp.eq.s32.totalorder %s18, 0
      %p80 = por %p78, %p79
      %p81 = scmp.ne.s32.totalorder %s73, %s75
      %p82 = scmp.eq.s32.totalorder %s23, 1
      %p83 = por %p81, %p82
      %p84 = scmp.ne.s32.totalorder %s75, %s76
      %p85 = scmp.eq.s32.totalorder %s23, 0
      %p86 = por %p84, %p85
      %p87 = scmp.ne.s32.totalorder %s75, %s76
      %p88 = scmp.eq.s32.totalorder %s24, 1
      %p89 = por %p87, %p88
      %p91 = scmp.ne.s32.totalorder %s76, %s90
      %p92 = scmp.eq.s32.totalorder %s24, 0
      %p93 = por %p91, %p92
      %s95 = sadd.s32 %s94, 1
      %p98 = scmp.eq.s32.totalorder %s18, 1
      %p99 = scmp.ne.s32.totalorder %s94, %s96
      %p100 = scmp.eq.s32.totalorder %s18, 0
      %p101 = por %p99, %p100
      %p102 = scmp.ne.s32.totalorder %s94, %s96
      %p103 = scmp.eq.s32.totalorder %s23, 1
      %p104 = por %p102, %p103
      %p105 = scmp.ne.s32.totalorder %s96, %s97
      %p106 = scmp.eq.s32.totalorder %s23, 0
      %p107 = por %p105, %p106
      %p108 = scmp.ne.s32.totalorder %s96, %s97
      %p109 = scmp.eq.s32.totalorder %s24, 1
      %p110 = por %p108, %p109
      %p112 = scmp.ne.s32.totalorder %s97, %s111
      %p113 = scmp.eq.s32.totalorder %s24, 0
      %p114 = por %p112, %p113
      %s116 = sadd.s32 %s115, 1
      %p119 = scmp.eq.s32.totalorder %s18, 1
      %p120 = scmp.ne.s32.totalorder %s115, %s117
      %p121 = scmp.eq.s32.totalorder %s18, 0
      %p122 = por %p120, %p121
      %p123 = scmp.ne.s32.totalorder %s115, %s117
      %p124 = scmp.eq.s32.totalorder %s23, 1
      %p125 = por %p123, %p124
      %p126 = scmp.ne.s32.totalorder %s117, %s118
      %p127 = scmp.eq.s32.totalorder %s23, 0
      %p128 = por %p126, %p127
      %p129 = scmp.ne.s32.totalorder %s117, %s118
      %p130 = scmp.eq.s32.totalorder %s24, 1
      %p131 = por %p129, %p130
      %p133 = scmp.ne.s32.totalorder %s118, %s132
      %p134 = scmp.eq.s32.totalorder %s24, 0
      %p135 = por %p133, %p134
      %s137 = sadd.s32 %s136, 1
      %p140 = scmp.eq.s32.totalorder %s18, 1
      %p141 = scmp.ne.s32.totalorder %s136, %s138
      %p142 = scmp.eq.s32.totalorder %s18, 0
      %p143 = por %p141, %p142
      %p144 = scmp.ne.s32.totalorder %s136, %s138
      %p145 = scmp.eq.s32.totalorder %s23, 1
      %p146 = por %p144, %p145
      %p147 = scmp.ne.s32.totalorder %s138, %s139
      %p148 = scmp.eq.s32.totalorder %s23, 0
      %p149 = por %p147, %p148
      %p150 = scmp.ne.s32.totalorder %s138, %s139
      %p151 = scmp.eq.s32.totalorder %s24, 1
      %p152 = por %p150, %p151
      %p154 = scmp.ne.s32.totalorder %s139, %s153
      %p155 = scmp.eq.s32.totalorder %s24, 0
      %p156 = por %p154, %p155
      %s158 = sadd.s32 %s157, 1
      %p161 = scmp.eq.s32.totalorder %s18, 1
      %p162 = scmp.ne.s32.totalorder %s157, %s159
      %p163 = scmp.eq.s32.totalorder %s18, 0
      %p164 = por %p162, %p163
      %p165 = scmp.ne.s32.totalorder %s157, %s159
      %p166 = scmp.eq.s32.totalorder %s23, 1
      %p167 = por %p165, %p166
      %p168 = scmp.ne.s32.totalorder %s159, %s160
      %p169 = scmp.eq.s32.totalorder %s23, 0
      %p170 = por %p168, %p169
      %p171 = scmp.ne.s32.totalorder %s159, %s160
      %p172 = scmp.eq.s32.totalorder %s24, 1
      %p173 = por %p171, %p172
      %p175 = scmp.ne.s32.totalorder %s160, %s174
      %p176 = scmp.eq.s32.totalorder %s24, 0
      %p177 = por %p175, %p176
      %s179 = sadd.s32 %s178, 1
      %p182 = scmp.eq.s32.totalorder %s18, 1
      %p183 = scmp.ne.s32.totalorder %s178, %s180
      %p184 = scmp.eq.s32.totalorder %s18, 0
      %p185 = por %p183, %p184
      %p186 = scmp.ne.s32.totalorder %s178, %s180
      %p187 = scmp.eq.s32.totalorder %s23, 1
      %p188 = por %p186, %p187
      %p189 = scmp.ne.s32.totalorder %s180, %s181
      %p190 = scmp.eq.s32.totalorder %s23, 0
      %p191 = por %p189, %p190
      %p192 = scmp.ne.s32.totalorder %s180, %s181
      %p193 = scmp.eq.s32.totalorder %s24, 1
      %p194 = por %p192, %p193
      %p196 = scmp.ne.s32.totalorder %s181, %s195
      %p197 = scmp.eq.s32.totalorder %s24, 0
      %p198 = por %p196, %p197
      %s200 = sadd.s32 %s199, 1
      %p203 = scmp.eq.s32.totalorder %s18, 1
      %p204 = scmp.ne.s32.totalorder %s199, %s201
      %p205 = scmp.eq.s32.totalorder %s18, 0
      %p206 = por %p204, %p205
      %p207 = scmp.ne.s32.totalorder %s199, %s201
      %p208 = scmp.eq.s32.totalorder %s23, 1
      %p209 = por %p207, %p208
      %p210 = scmp.ne.s32.totalorder %s201, %s202
      %p211 = scmp.eq.s32.totalorder %s23, 0
      %p212 = por %p210, %p211
      %p213 = scmp.ne.s32.totalorder %s201, %s202
      %p214 = scmp.eq.s32.totalorder %s24, 1
      %p215 = por %p213, %p214
      %p217 = scmp.ne.s32.totalorder %s202, %s216
      %p218 = scmp.eq.s32.totalorder %s24, 0
      %p219 = por %p217, %p218
      %s220 = ssub.s32 %s18, %s25
      %p221 = scmp.eq.s32.totalorder %s220, 0
      %s223 = sadd.s32 %s222, 1
      %s224 = scalar_select %p221, %s222, %s223
      %p227 = pneg %p221
      %p228 = scmp.eq.s32.totalorder %s18, 1
      %p229 = por %p227, %p228
      %p230 = scmp.ne.s32.totalorder %s222, %s225
      %p231 = scmp.eq.s32.totalorder %s18, 0
      %p232 = por %p230, %p231
      %p233 = scmp.ne.s32.totalorder %s222, %s225
      %p234 = scmp.eq.s32.totalorder %s23, 1
      %p235 = por %p233, %p234
      %p236 = scmp.ne.s32.totalorder %s225, %s226
      %p237 = scmp.eq.s32.totalorder %s23, 0
      %p238 = por %p236, %p237
      %p239 = scmp.ne.s32.totalorder %s225, %s226
      %p240 = scmp.eq.s32.totalorder %s24, 1
      %p241 = por %p239, %p240
      %p243 = scmp.ne.s32.totalorder %s226, %s242
      %p244 = scmp.eq.s32.totalorder %s24, 0
      %p245 = por %p243, %p244
      %p246 = scmp.le.s32.totalorder 1, %s18
      %p247 = scmp.lt.s32.totalorder %s18, 3
      %p248 = pnand %p246, %p247
      %p249 = pneg %p248
      // Predicated region
      $region9: #{inception_a_forward.1} parent=5 // pred_check
        _
      $region10: #{inception_a_forward.1} parent=5 // pred_check_branch
        %251 = sbr.rel (%p248) target = $region12
      $region11: #{inception_a_forward.1} parent=5 // pred_region
        %s252 = ssub.s32 %s18, 1
        // Predicated region
        $region13: #{inception_a_forward.1} parent=11 // pred_check
          %p253 = pneg %p65
        $region14: #{inception_a_forward.1} parent=11 // pred_check_branch
          %255 = sbr.rel (%p253) target = $region16
        $region15: #{inception_a_forward.1} parent=11 // pred_region
          _
        $region16: #{inception_a_forward.1} parent=11 // pred_fallthru
          _
        // Predicated region
        $region17: #{inception_a_forward.1} parent=11 // pred_check
          %p256 = pneg %p86
        $region18: #{inception_a_forward.1} parent=11 // pred_check_branch
          %258 = sbr.rel (%p256) target = $region20
        $region19: #{inception_a_forward.1} parent=11 // pred_region
          _
        $region20: #{inception_a_forward.1} parent=11 // pred_fallthru
          _
        // Predicated region
        $region21: #{inception_a_forward.1} parent=11 // pred_check
          %p259 = pneg %p107
        $region22: #{inception_a_forward.1} parent=11 // pred_check_branch
          %261 = sbr.rel (%p259) target = $region24
        $region23: #{inception_a_forward.1} parent=11 // pred_region
          _
        $region24: #{inception_a_forward.1} parent=11 // pred_fallthru
          _
        // Predicated region
        $region25: #{inception_a_forward.1} parent=11 // pred_check
          %p262 = pneg %p128
        $region26: #{inception_a_forward.1} parent=11 // pred_check_branch
          %264 = sbr.rel (%p262) target = $region28
        $region27: #{inception_a_forward.1} parent=11 // pred_region
          _
        $region28: #{inception_a_forward.1} parent=11 // pred_fallthru
          _
        // Predicated region
        $region29: #{inception_a_forward.1} parent=11 // pred_check
          %p265 = pneg %p149
        $region30: #{inception_a_forward.1} parent=11 // pred_check_branch
          %267 = sbr.rel (%p265) target = $region32
        $region31: #{inception_a_forward.1} parent=11 // pred_region
          _
        $region32: #{inception_a_forward.1} parent=11 // pred_fallthru
          _
        // Predicated region
        $region33: #{inception_a_forward.1} parent=11 // pred_check
          %p268 = pneg %p170
        $region34: #{inception_a_forward.1} parent=11 // pred_check_branch
          %270 = sbr.rel (%p268) target = $region36
        $region35: #{inception_a_forward.1} parent=11 // pred_region
          _
        $region36: #{inception_a_forward.1} parent=11 // pred_fallthru
          _
        // Predicated region
        $region37: #{inception_a_forward.1} parent=11 // pred_check
          %p271 = pneg %p191
        $region38: #{inception_a_forward.1} parent=11 // pred_check_branch
          %273 = sbr.rel (%p271) target = $region40
        $region39: #{inception_a_forward.1} parent=11 // pred_region
          _
        $region40: #{inception_a_forward.1} parent=11 // pred_fallthru
          _
        // Predicated region
        $region41: #{inception_a_forward.1} parent=11 // pred_check
          %p274 = pneg %p212
        $region42: #{inception_a_forward.1} parent=11 // pred_check_branch
          %276 = sbr.rel (%p274) target = $region44
        $region43: #{inception_a_forward.1} parent=11 // pred_region
          _
        $region44: #{inception_a_forward.1} parent=11 // pred_fallthru
          _
      $region12: #{inception_a_forward.1} parent=5 // pred_fallthru
        _
      %p277 = scmp.lt.s32.totalorder %s18, 2
      // Predicated region
      $region45: #{inception_a_forward.1} parent=5 // pred_check
        %p278 = pneg %p277
      $region46: #{inception_a_forward.1} parent=5 // pred_check_branch
        %280 = sbr.rel (%p278) target = $region48
      $region47: #{inception_a_forward.1} parent=5 // pred_region
        // Predicated region
        $region49: #{inception_a_forward.1} parent=47 // pred_check
          %p281 = pneg %p38
        $region50: #{inception_a_forward.1} parent=47 // pred_check_branch
          %283 = sbr.rel (%p281) target = $region52
        $region51: #{inception_a_forward.1} parent=47 // pred_region
          %s284 = smul.u32 4, %s18
          %p285 = scmp.lt.s32.totalorder %s284, 7
          %s286 = scalar_select %p285, %s284, 7
          %s287 = smul.addr %s286, 24
          %s288 = smul.addr %s287, 4
          %s289 = scalar_lea.vmem %s0, %s288
          %s290 = smul.u32 4, %s18
        $region52: #{inception_a_forward.1} parent=47 // pred_fallthru
          _
      $region48: #{inception_a_forward.1} parent=5 // pred_fallthru
        _
      %p291 = scmp.le.s32.totalorder 1, %s18
      %p292 = scmp.lt.s32.totalorder %s18, 3
      %p293 = pnand %p291, %p292
      %p294 = pneg %p293
      // Predicated region
      $region53: #{inception_a_forward.1} parent=5 // pred_check
        _
      $region54: #{inception_a_forward.1} parent=5 // pred_check_branch
        %296 = sbr.rel (%p293) target = $region56
      $region55: #{inception_a_forward.1} parent=5 // pred_region
        %s297 = ssub.s32 %s18, 1
        %s298 = smul.u32 4, %s23
        %p299 = scmp.lt.s32.totalorder %s298, 7
        %s300 = scalar_select %p299, %s298, 7
        %s301 = smul.addr %s300, 24
        %s302 = smul.addr %s301, 4
        %s303 = scalar_lea.vmem %s0, %s302
        %p304 = pneg %p44
        %p305 = pneg %p41
        %p306 = pneg %p65
        %p307 = pneg %p62
        %p308 = pneg %p86
        %p309 = pneg %p83
        %p310 = pneg %p107
        %p311 = pneg %p104
        %p312 = pneg %p128
        %p313 = pneg %p125
        %p314 = pneg %p149
        %p315 = pneg %p146
        %p316 = pneg %p170
        %p317 = pneg %p167
        %p318 = pneg %p191
        %p319 = pneg %p188
        %p320 = pneg %p212
        %p321 = pneg %p209
        %p322 = pneg %p238
        %p323 = pneg %p235
        %s324 = sand.u32 %s225, 1
        %s325 = scalar_lea.sflag [#allocation5], %s324
        %s326 = sand.u32 %s225, 1
        %s327 = smul.addr %s326, 384
        %s328 = scalar_lea.vmem [#allocation4], %s327
        %s329 = smul.u32 4, %s23
        %p330 = scmp.lt.s32.totalorder %s329, 7
        %s331 = scalar_select %p330, %s329, 7
        %s332 = smul.addr %s331, 24
        %s333 = smul.addr %s332, 4
        %s334 = scalar_lea.vmem %s0, %s333
        %s335 = smul.u32 4, %s23
        %s336 = smul.u32 4, %s23
        %v338 = vld [vmem:[%s334] sm:$0xff]
        %v339 = vld [vmem:[%s334 + $0x8] sm:$0xf]
        %v340 = vld [vmem:[%s334 + $0xc] sm:$0xff]
        %v341 = vld [vmem:[%s334 + $0x14] sm:$0xf]
        %v342 = vld [vmem:[%s334 + $0x18] sm:$0xff]
        %v343 = vld [vmem:[%s334 + $0x20] sm:$0xf]
        %v344 = vld [vmem:[%s334 + $0x24] sm:$0xff]
        %v345 = vld [vmem:[%s334 + $0x2c] sm:$0xf]
        %v346 = vld [vmem:[%s334 + $0x30] sm:$0xff]
        %v347 = vld [vmem:[%s334 + $0x38] sm:$0xf]
        %v348 = vld [vmem:[%s334 + $0x3c] sm:$0xff]
        %v349 = vld [vmem:[%s334 + $0x44] sm:$0xf]
        %v350 = vld [vmem:[%s334 + $0x48] sm:$0xff]
        %v351 = vld [vmem:[%s334 + $0x50] sm:$0xf]
        %v352 = vld [vmem:[%s334 + $0x54] sm:$0xff]
        %v353 = vld [vmem:[%s334 + $0x5c] sm:$0xf]
        %v354 = vld [vmem:[%s334 + $0x60] sm:$0xff]
        %v355 = vld [vmem:[%s334 + $0x68] sm:$0xf]
        %v356 = vld [vmem:[%s334 + $0x6c] sm:$0xff]
        %v357 = vld [vmem:[%s334 + $0x74] sm:$0xf]
        %v358 = vld [vmem:[%s334 + $0x78] sm:$0xff]
        %v359 = vld [vmem:[%s334 + $0x80] sm:$0xf]
        %v360 = vld [vmem:[%s334 + $0x84] sm:$0xff]
        %v361 = vld [vmem:[%s334 + $0x8c] sm:$0xf]
        %v362 = vld [vmem:[%s334 + $0x90] sm:$0xff]
        %v363 = vld [vmem:[%s334 + $0x98] sm:$0xf]
        %v364 = vld [vmem:[%s334 + $0x9c] sm:$0xff]
        %v365 = vld [vmem:[%s334 + $0xa4] sm:$0xf]
        %v366 = vld [vmem:[%s334 + $0xa8] sm:$0xff]
        %v367 = vld [vmem:[%s334 + $0xb0] sm:$0xf]
        %v368 = vld [vmem:[%s334 + $0xb4] sm:$0xff]
        %v369 = vld [vmem:[%s334 + $0xbc] sm:$0xf]
        %v370 = vld [vmem:[%s334 + $0xc0] sm:$0xff]
        %v371 = vld [vmem:[%s334 + $0xc8] sm:$0xf]
        %v372 = vld [vmem:[%s334 + $0xcc] sm:$0xff]
        %v373 = vld [vmem:[%s334 + $0xd4] sm:$0xf]
        %v374 = vld [vmem:[%s334 + $0xd8] sm:$0xff]
        %v375 = vld [vmem:[%s334 + $0xe0] sm:$0xf]
        %v376 = vld [vmem:[%s334 + $0xe4] sm:$0xff]
        %v377 = vld [vmem:[%s334 + $0xec] sm:$0xf]
        %v378 = vld [vmem:[%s334 + $0xf0] sm:$0xff]
        %v379 = vld [vmem:[%s334 + $0xf8] sm:$0xf]
        %v380 = vld [vmem:[%s334 + $0xfc] sm:$0xff]
        %v381 = vld [vmem:[%s334 + $0x104] sm:$0xf]
        %v382 = vld [vmem:[%s334 + $0x108] sm:$0xff]
        %v383 = vld [vmem:[%s334 + $0x110] sm:$0xf]
        %v384 = vld [vmem:[%s334 + $0x114] sm:$0xff]
        %v385 = vld [vmem:[%s334 + $0x11c] sm:$0xf]
        %v386 = vld [vmem:[%s334 + $0x120] sm:$0xff]
        %v387 = vld [vmem:[%s334 + $0x128] sm:$0xf]
        %v388 = vld [vmem:[%s334 + $0x12c] sm:$0xff]
        %v389 = vld [vmem:[%s334 + $0x134] sm:$0xf]
        %v390 = vld [vmem:[%s334 + $0x138] sm:$0xff]
        %v391 = vld [vmem:[%s334 + $0x140] sm:$0xf]
        %v392 = vld [vmem:[%s334 + $0x144] sm:$0xff]
        %v393 = vld [vmem:[%s334 + $0x14c] sm:$0xf]
        %v394 = vld [vmem:[%s334 + $0x150] sm:$0xff]
        %v395 = vld [vmem:[%s334 + $0x158] sm:$0xf]
        %v396 = vld [vmem:[%s334 + $0x15c] sm:$0xff]
        %v397 = vld [vmem:[%s334 + $0x164] sm:$0xf]
        %v398 = vld [vmem:[%s334 + $0x168] sm:$0xff]
        %v399 = vld [vmem:[%s334 + $0x170] sm:$0xf]
        %v400 = vld [vmem:[%s334 + $0x174] sm:$0xff]
        %v401 = vld [vmem:[%s334 + $0x17c] sm:$0xf]
        %v402 = vld [vmem:[%s1] sm:$0xff]
        %v403 = vld [vmem:[%s1 + $0x8] sm:$0xf]
        %v404 = vld [vmem:[%s1 + $0xc] sm:$0xff]
        %v405 = vld [vmem:[%s1 + $0x14] sm:$0xf]
        %v406 = vld [vmem:[%s1 + $0x18] sm:$0xff]
        %v407 = vld [vmem:[%s1 + $0x20] sm:$0xf]
        %v408 = vld [vmem:[%s1 + $0x24] sm:$0xff]
        %v409 = vld [vmem:[%s1 + $0x2c] sm:$0xf]
        %v410 = vld [vmem:[%s1 + $0x30] sm:$0xff]
        %v411 = vld [vmem:[%s1 + $0x38] sm:$0xf]
        %v412 = vld [vmem:[%s1 + $0x3c] sm:$0xff]
        %v413 = vld [vmem:[%s1 + $0x44] sm:$0xf]
        %v414 = vld [vmem:[%s1 + $0x48] sm:$0xff]
        %v415 = vld [vmem:[%s1 + $0x50] sm:$0xf]
        %v416 = vld [vmem:[%s1 + $0x54] sm:$0xff]
        %v417 = vld [vmem:[%s1 + $0x5c] sm:$0xf]
        %v418 = vld [vmem:[%s1 + $0x60] sm:$0xff]
        %v419 = vld [vmem:[%s1 + $0x68] sm:$0xf]
        %v420 = vld [vmem:[%s1 + $0x6c] sm:$0xff]
        %v421 = vld [vmem:[%s1 + $0x74] sm:$0xf]
        %v422 = vld [vmem:[%s1 + $0x78] sm:$0xff]
        %v423 = vld [vmem:[%s1 + $0x80] sm:$0xf]
        %v424 = vld [vmem:[%s1 + $0x84] sm:$0xff]
        %v425 = vld [vmem:[%s1 + $0x8c] sm:$0xf]
        %v426 = vld [vmem:[%s1 + $0x90] sm:$0xff]
        %v427 = vld [vmem:[%s1 + $0x98] sm:$0xf]
        %v428 = vld [vmem:[%s1 + $0x9c] sm:$0xff]
        %v429 = vld [vmem:[%s1 + $0xa4] sm:$0xf]
        %v430 = vld [vmem:[%s1 + $0xa8] sm:$0xff]
        %v431 = vld [vmem:[%s1 + $0xb0] sm:$0xf]
        %v432 = vld [vmem:[%s1 + $0xb4] sm:$0xff]
        %v433 = vld [vmem:[%s1 + $0xbc] sm:$0xf]
        %v434 = vld [vmem:[%s1 + $0xc0] sm:$0xff]
        %v435 = vld [vmem:[%s1 + $0xc8] sm:$0xf]
        %v436 = vld [vmem:[%s1 + $0xcc] sm:$0xff]
        %v437 = vld [vmem:[%s1 + $0xd4] sm:$0xf]
        %v438 = vld [vmem:[%s1 + $0xd8] sm:$0xff]
        %v439 = vld [vmem:[%s1 + $0xe0] sm:$0xf]
        %v440 = vld [vmem:[%s1 + $0xe4] sm:$0xff]
        %v441 = vld [vmem:[%s1 + $0xec] sm:$0xf]
        %v442 = vld [vmem:[%s1 + $0xf0] sm:$0xff]
        %v443 = vld [vmem:[%s1 + $0xf8] sm:$0xf]
        %v444 = vld [vmem:[%s1 + $0xfc] sm:$0xff]
        %v445 = vld [vmem:[%s1 + $0x104] sm:$0xf]
        %v446 = vld [vmem:[%s1 + $0x108] sm:$0xff]
        %v447 = vld [vmem:[%s1 + $0x110] sm:$0xf]
        %v448 = vld [vmem:[%s1 + $0x114] sm:$0xff]
        %v449 = vld [vmem:[%s1 + $0x11c] sm:$0xf]
        %v450 = vld [vmem:[%s1 + $0x120] sm:$0xff]
        %v451 = vld [vmem:[%s1 + $0x128] sm:$0xf]
        %v452 = vld [vmem:[%s1 + $0x12c] sm:$0xff]
        %v453 = vld [vmem:[%s1 + $0x134] sm:$0xf]
        %v454 = vld [vmem:[%s1 + $0x138] sm:$0xff]
        %v455 = vld [vmem:[%s1 + $0x140] sm:$0xf]
        %v456 = vld [vmem:[%s1 + $0x144] sm:$0xff]
        %v457 = vld [vmem:[%s1 + $0x14c] sm:$0xf]
        %v458 = vld [vmem:[%s1 + $0x150] sm:$0xff]
        %v459 = vld [vmem:[%s1 + $0x158] sm:$0xf]
        %v460 = vld [vmem:[%s1 + $0x15c] sm:$0xff]
        %v461 = vld [vmem:[%s1 + $0x164] sm:$0xf]
        %v462 = vld [vmem:[%s1 + $0x168] sm:$0xff]
        %v463 = vld [vmem:[%s1 + $0x170] sm:$0xf]
        %v464 = vld [vmem:[%s1 + $0x174] sm:$0xff]
        %v465 = vld [vmem:[%s1 + $0x17c] sm:$0xf]
        %v466 = vld [vmem:[%s1 + $0x180] sm:$0xff]
        %v467 = vld [vmem:[%s1 + $0x188] sm:$0xf]
        %v468 = vld [vmem:[%s1 + $0x18c] sm:$0xff]
        %v469 = vld [vmem:[%s1 + $0x194] sm:$0xf]
        %v470 = vld [vmem:[%s1 + $0x198] sm:$0xff]
        %v471 = vld [vmem:[%s1 + $0x1a0] sm:$0xf]
        %v472 = vld [vmem:[%s1 + $0x1a4] sm:$0xff]
        %v473 = vld [vmem:[%s1 + $0x1ac] sm:$0xf]
        %v474 = vld [vmem:[%s1 + $0x1b0] sm:$0xff]
        %v475 = vld [vmem:[%s1 + $0x1b8] sm:$0xf]
        %v476 = vld [vmem:[%s1 + $0x1bc] sm:$0xff]
        %v477 = vld [vmem:[%s1 + $0x1c4] sm:$0xf]
        %v478 = vld [vmem:[%s1 + $0x1c8] sm:$0xff]
        %v479 = vld [vmem:[%s1 + $0x1d0] sm:$0xf]
        %v480 = vld [vmem:[%s1 + $0x1d4] sm:$0xff]
        %v481 = vld [vmem:[%s1 + $0x1dc] sm:$0xf]
        %v482 = vld [vmem:[%s1 + $0x1e0] sm:$0xff]
        %v483 = vld [vmem:[%s1 + $0x1e8] sm:$0xf]
        %v484 = vld [vmem:[%s1 + $0x1ec] sm:$0xff]
        %v485 = vld [vmem:[%s1 + $0x1f4] sm:$0xf]
        %v486 = vld [vmem:[%s1 + $0x1f8] sm:$0xff]
        %v487 = vld [vmem:[%s1 + $0x200] sm:$0xf]
        %v488 = vld [vmem:[%s1 + $0x204] sm:$0xff]
        %v489 = vld [vmem:[%s1 + $0x20c] sm:$0xf]
        %v490 = vld [vmem:[%s1 + $0x210] sm:$0xff]
        %v491 = vld [vmem:[%s1 + $0x218] sm:$0xf]
        %v492 = vld [vmem:[%s1 + $0x21c] sm:$0xff]
        %v493 = vld [vmem:[%s1 + $0x224] sm:$0xf]
        %v494 = vld [vmem:[%s1 + $0x228] sm:$0xff]
        %v495 = vld [vmem:[%s1 + $0x230] sm:$0xf]
        %v496 = vld [vmem:[%s1 + $0x234] sm:$0xff]
        %v497 = vld [vmem:[%s1 + $0x23c] sm:$0xf]
        %v498 = vld [vmem:[%s2] sm:$0x7]
        %v500 = vlaneseq
        %v501 = vshrl.u32 %v500, 7
        %v502 = vsub.s32 0, %v501
        %v503 = vrot.slane %v498, %v502
        %v504 = vlaneseq
        %v505 = vshrl.u32 %v504, 7
        %v506 = vsub.s32 1, %v505
        %v507 = vrot.slane %v498, %v506
        %v508 = vlaneseq
        %v509 = vshrl.u32 %v508, 7
        %v510 = vsub.s32 2, %v509
        %v511 = vrot.slane %v498, %v510
        %v579 = vunpack.c.l.b16 %v338
        %v580 = vunpack.c.h.b16 %v338
        %v581 = vunpack.c.l.b16 %v339
        %v582 = vunpack.c.l.b16 %v340
        %v583 = vunpack.c.h.b16 %v340
        %v584 = vunpack.c.l.b16 %v341
        %v585 = vunpack.c.l.b16 %v342
        %v586 = vunpack.c.h.b16 %v342
        %v587 = vunpack.c.l.b16 %v343
        %v588 = vunpack.c.l.b16 %v344
        %v589 = vunpack.c.h.b16 %v344
        %v590 = vunpack.c.l.b16 %v345
        %v591 = vunpack.c.l.b16 %v346
        %v592 = vunpack.c.h.b16 %v346
        %v593 = vunpack.c.l.b16 %v347
        %v594 = vunpack.c.l.b16 %v348
        %v595 = vunpack.c.h.b16 %v348
        %v596 = vunpack.c.l.b16 %v349
        %v597 = vunpack.c.l.b16 %v350
        %v598 = vunpack.c.h.b16 %v350
        %v599 = vunpack.c.l.b16 %v351
        %v600 = vunpack.c.l.b16 %v352
        %v601 = vunpack.c.h.b16 %v352
        %v602 = vunpack.c.l.b16 %v353
        %v603 = vunpack.c.l.b16 %v354
        %v604 = vunpack.c.h.b16 %v354
        %v605 = vunpack.c.l.b16 %v355
        %v606 = vunpack.c.l.b16 %v356
        %v607 = vunpack.c.h.b16 %v356
        %v608 = vunpack.c.l.b16 %v357
        %v609 = vunpack.c.l.b16 %v358
        %v610 = vunpack.c.h.b16 %v358
        %v611 = vunpack.c.l.b16 %v359
        %v612 = vunpack.c.l.b16 %v360
        %v613 = vunpack.c.h.b16 %v360
        %v614 = vunpack.c.l.b16 %v361
        %v615 = vunpack.c.l.b16 %v362
        %v616 = vunpack.c.h.b16 %v362
        %v617 = vunpack.c.l.b16 %v363
        %v618 = vunpack.c.l.b16 %v364
        %v619 = vunpack.c.h.b16 %v364
        %v620 = vunpack.c.l.b16 %v365
        %v621 = vunpack.c.l.b16 %v366
        %v622 = vunpack.c.h.b16 %v366
        %v623 = vunpack.c.l.b16 %v367
        %v624 = vunpack.c.l.b16 %v368
        %v625 = vunpack.c.h.b16 %v368
        %v626 = vunpack.c.l.b16 %v369
        %v627 = vunpack.c.l.b16 %v370
        %v628 = vunpack.c.h.b16 %v370
        %v629 = vunpack.c.l.b16 %v371
        %v630 = vunpack.c.l.b16 %v372
        %v631 = vunpack.c.h.b16 %v372
        %v632 = vunpack.c.l.b16 %v373
        %v633 = vunpack.c.l.b16 %v374
        %v634 = vunpack.c.h.b16 %v374
        %v635 = vunpack.c.l.b16 %v375
        %v636 = vunpack.c.l.b16 %v376
        %v637 = vunpack.c.h.b16 %v376
        %v638 = vunpack.c.l.b16 %v377
        %v639 = vunpack.c.l.b16 %v378
        %v640 = vunpack.c.h.b16 %v378
        %v641 = vunpack.c.l.b16 %v379
        %v642 = vunpack.c.l.b16 %v380
        %v643 = vunpack.c.h.b16 %v380
        %v644 = vunpack.c.l.b16 %v381
        %v645 = vunpack.c.l.b16 %v382
        %v646 = vunpack.c.h.b16 %v382
        %v647 = vunpack.c.l.b16 %v383
        %v648 = vunpack.c.l.b16 %v384
        %v649 = vunpack.c.h.b16 %v384
        %v650 = vunpack.c.l.b16 %v385
        %v651 = vunpack.c.l.b16 %v386
        %v652 = vunpack.c.h.b16 %v386
        %v653 = vunpack.c.l.b16 %v387
        %v654 = vunpack.c.l.b16 %v388
        %v655 = vunpack.c.h.b16 %v388
        %v656 = vunpack.c.l.b16 %v389
        %v657 = vunpack.c.l.b16 %v390
        %v658 = vunpack.c.h.b16 %v390
        %v659 = vunpack.c.l.b16 %v391
        %v660 = vunpack.c.l.b16 %v392
        %v661 = vunpack.c.h.b16 %v392
        %v662 = vunpack.c.l.b16 %v393
        %v663 = vunpack.c.l.b16 %v394
        %v664 = vunpack.c.h.b16 %v394
        %v665 = vunpack.c.l.b16 %v395
        %v666 = vunpack.c.l.b16 %v396
        %v667 = vunpack.c.h.b16 %v396
        %v668 = vunpack.c.l.b16 %v397
        %v669 = vunpack.c.l.b16 %v398
        %v670 = vunpack.c.h.b16 %v398
        %v671 = vunpack.c.l.b16 %v399
        %v672 = vunpack.c.l.b16 %v400
        %v673 = vunpack.c.h.b16 %v400
        %v674 = vunpack.c.l.b16 %v401
        %v675 = vpack.c.b16 %v582, %v579
        %v676 = vpack.c.b16 %v583, %v580
        %v677 = vpack.c.b16 %v584, %v581
        %v678 = vpack.c.b16 %v588, %v585
        %v679 = vpack.c.b16 %v589, %v586
        %v680 = vpack.c.b16 %v590, %v587
        %v681 = vpack.c.b16 %v594, %v591
        %v682 = vpack.c.b16 %v595, %v592
        %v683 = vpack.c.b16 %v596, %v593
        %v684 = vpack.c.b16 %v600, %v597
        %v685 = vpack.c.b16 %v601, %v598
        %v686 = vpack.c.b16 %v602, %v599
        %v687 = vpack.c.b16 %v606, %v603
        %v688 = vpack.c.b16 %v607, %v604
        %v689 = vpack.c.b16 %v608, %v605
        %v690 = vpack.c.b16 %v612, %v609
        %v691 = vpack.c.b16 %v613, %v610
        %v692 = vpack.c.b16 %v614, %v611
        %v693 = vpack.c.b16 %v618, %v615
        %v694 = vpack.c.b16 %v619, %v616
        %v695 = vpack.c.b16 %v620, %v617
        %v696 = vpack.c.b16 %v624, %v621
        %v697 = vpack.c.b16 %v625, %v622
        %v698 = vpack.c.b16 %v626, %v623
        %v699 = vpack.c.b16 %v630, %v627
        %v700 = vpack.c.b16 %v631, %v628
        %v701 = vpack.c.b16 %v632, %v629
        %v702 = vpack.c.b16 %v636, %v633
        %v703 = vpack.c.b16 %v637, %v634
        %v704 = vpack.c.b16 %v638, %v635
        %v705 = vpack.c.b16 %v642, %v639
        %v706 = vpack.c.b16 %v643, %v640
        %v707 = vpack.c.b16 %v644, %v641
        %v708 = vpack.c.b16 %v648, %v645
        %v709 = vpack.c.b16 %v649, %v646
        %v710 = vpack.c.b16 %v650, %v647
        %v711 = vpack.c.b16 %v654, %v651
        %v712 = vpack.c.b16 %v655, %v652
        %v713 = vpack.c.b16 %v656, %v653
        %v714 = vpack.c.b16 %v660, %v657
        %v715 = vpack.c.b16 %v661, %v658
        %v716 = vpack.c.b16 %v662, %v659
        %v717 = vpack.c.b16 %v666, %v663
        %v718 = vpack.c.b16 %v667, %v664
        %v719 = vpack.c.b16 %v668, %v665
        %v720 = vpack.c.b16 %v672, %v669
        %v721 = vpack.c.b16 %v673, %v670
        %v722 = vpack.c.b16 %v674, %v671
        %v867 = vunpack.c.l.b16 %v402
        %v868 = vunpack.c.h.b16 %v402
        %v869 = vunpack.c.l.b16 %v403
        %v870 = vunpack.c.l.b16 %v404
        %v871 = vunpack.c.h.b16 %v404
        %v872 = vunpack.c.l.b16 %v405
        %v873 = vunpack.c.l.b16 %v406
        %v874 = vunpack.c.h.b16 %v406
        %v875 = vunpack.c.l.b16 %v407
        %v876 = vunpack.c.l.b16 %v408
        %v877 = vunpack.c.h.b16 %v408
        %v878 = vunpack.c.l.b16 %v409
        %v879 = vunpack.c.l.b16 %v410
        %v880 = vunpack.c.h.b16 %v410
        %v881 = vunpack.c.l.b16 %v411
        %v882 = vunpack.c.l.b16 %v412
        %v883 = vunpack.c.h.b16 %v412
        %v884 = vunpack.c.l.b16 %v413
        %v885 = vunpack.c.l.b16 %v414
        %v886 = vunpack.c.h.b16 %v414
        %v887 = vunpack.c.l.b16 %v415
        %v888 = vunpack.c.l.b16 %v416
        %v889 = vunpack.c.h.b16 %v416
        %v890 = vunpack.c.l.b16 %v417
        %v891 = vunpack.c.l.b16 %v418
        %v892 = vunpack.c.h.b16 %v418
        %v893 = vunpack.c.l.b16 %v419
        %v894 = vunpack.c.l.b16 %v420
        %v895 = vunpack.c.h.b16 %v420
        %v896 = vunpack.c.l.b16 %v421
        %v897 = vunpack.c.l.b16 %v422
        %v898 = vunpack.c.h.b16 %v422
        %v899 = vunpack.c.l.b16 %v423
        %v900 = vunpack.c.l.b16 %v424
        %v901 = vunpack.c.h.b16 %v424
        %v902 = vunpack.c.l.b16 %v425
        %v903 = vunpack.c.l.b16 %v426
        %v904 = vunpack.c.h.b16 %v426
        %v905 = vunpack.c.l.b16 %v427
        %v906 = vunpack.c.l.b16 %v428
        %v907 = vunpack.c.h.b16 %v428
        %v908 = vunpack.c.l.b16 %v429
        %v909 = vunpack.c.l.b16 %v430
        %v910 = vunpack.c.h.b16 %v430
        %v911 = vunpack.c.l.b16 %v431
        %v912 = vunpack.c.l.b16 %v432
        %v913 = vunpack.c.h.b16 %v432
        %v914 = vunpack.c.l.b16 %v433
        %v915 = vunpack.c.l.b16 %v434
        %v916 = vunpack.c.h.b16 %v434
        %v917 = vunpack.c.l.b16 %v435
        %v918 = vunpack.c.l.b16 %v436
        %v919 = vunpack.c.h.b16 %v436
        %v920 = vunpack.c.l.b16 %v437
        %v921 = vunpack.c.l.b16 %v438
        %v922 = vunpack.c.h.b16 %v438
        %v923 = vunpack.c.l.b16 %v439
        %v924 = vunpack.c.l.b16 %v440
        %v925 = vunpack.c.h.b16 %v440
        %v926 = vunpack.c.l.b16 %v441
        %v927 = vunpack.c.l.b16 %v442
        %v928 = vunpack.c.h.b16 %v442
        %v929 = vunpack.c.l.b16 %v443
        %v930 = vunpack.c.l.b16 %v444
        %v931 = vunpack.c.h.b16 %v444
        %v932 = vunpack.c.l.b16 %v445
        %v933 = vunpack.c.l.b16 %v446
        %v934 = vunpack.c.h.b16 %v446
        %v935 = vunpack.c.l.b16 %v447
        %v936 = vunpack.c.l.b16 %v448
        %v937 = vunpack.c.h.b16 %v448
        %v938 = vunpack.c.l.b16 %v449
        %v939 = vunpack.c.l.b16 %v450
        %v940 = vunpack.c.h.b16 %v450
        %v941 = vunpack.c.l.b16 %v451
        %v942 = vunpack.c.l.b16 %v452
        %v943 = vunpack.c.h.b16 %v452
        %v944 = vunpack.c.l.b16 %v453
        %v945 = vunpack.c.l.b16 %v454
        %v946 = vunpack.c.h.b16 %v454
        %v947 = vunpack.c.l.b16 %v455
        %v948 = vunpack.c.l.b16 %v456
        %v949 = vunpack.c.h.b16 %v456
        %v950 = vunpack.c.l.b16 %v457
        %v951 = vunpack.c.l.b16 %v458
        %v952 = vunpack.c.h.b16 %v458
        %v953 = vunpack.c.l.b16 %v459
        %v954 = vunpack.c.l.b16 %v460
        %v955 = vunpack.c.h.b16 %v460
        %v956 = vunpack.c.l.b16 %v461
        %v957 = vunpack.c.l.b16 %v462
        %v958 = vunpack.c.h.b16 %v462
        %v959 = vunpack.c.l.b16 %v463
        %v960 = vunpack.c.l.b16 %v464
        %v961 = vunpack.c.h.b16 %v464
        %v962 = vunpack.c.l.b16 %v465
        %v963 = vunpack.c.l.b16 %v466
        %v964 = vunpack.c.h.b16 %v466
        %v965 = vunpack.c.l.b16 %v467
        %v966 = vunpack.c.l.b16 %v468
        %v967 = vunpack.c.h.b16 %v468
        %v968 = vunpack.c.l.b16 %v469
        %v969 = vunpack.c.l.b16 %v470
        %v970 = vunpack.c.h.b16 %v470
        %v971 = vunpack.c.l.b16 %v471
        %v972 = vunpack.c.l.b16 %v472
        %v973 = vunpack.c.h.b16 %v472
        %v974 = vunpack.c.l.b16 %v473
        %v975 = vunpack.c.l.b16 %v474
        %v976 = vunpack.c.h.b16 %v474
        %v977 = vunpack.c.l.b16 %v475
        %v978 = vunpack.c.l.b16 %v476
        %v979 = vunpack.c.h.b16 %v476
        %v980 = vunpack.c.l.b16 %v477
        %v981 = vunpack.c.l.b16 %v478
        %v982 = vunpack.c.h.b16 %v478
        %v983 = vunpack.c.l.b16 %v479
        %v984 = vunpack.c.l.b16 %v480
        %v985 = vunpack.c.h.b16 %v480
        %v986 = vunpack.c.l.b16 %v481
        %v987 = vunpack.c.l.b16 %v482
        %v988 = vunpack.c.h.b16 %v482
        %v989 = vunpack.c.l.b16 %v483
        %v990 = vunpack.c.l.b16 %v484
        %v991 = vunpack.c.h.b16 %v484
        %v992 = vunpack.c.l.b16 %v485
        %v993 = vunpack.c.l.b16 %v486
        %v994 = vunpack.c.h.b16 %v486
        %v995 = vunpack.c.l.b16 %v487
        %v996 = vunpack.c.l.b16 %v488
        %v997 = vunpack.c.h.b16 %v488
        %v998 = vunpack.c.l.b16 %v489
        %v999 = vunpack.c.l.b16 %v490
        %v1000 = vunpack.c.h.b16 %v490
        %v1001 = vunpack.c.l.b16 %v491
        %v1002 = vunpack.c.l.b16 %v492
        %v1003 = vunpack.c.h.b16 %v492
        %v1004 = vunpack.c.l.b16 %v493
        %v1005 = vunpack.c.l.b16 %v494
        %v1006 = vunpack.c.h.b16 %v494
        %v1007 = vunpack.c.l.b16 %v495
        %v1008 = vunpack.c.l.b16 %v496
        %v1009 = vunpack.c.h.b16 %v496
        %v1010 = vunpack.c.l.b16 %v497
        %v1011 = vpack.c.b16 %v870, %v867
        %v1012 = vpack.c.b16 %v871, %v868
        %v1013 = vpack.c.b16 %v872, %v869
        %v1014 = vpack.c.b16 %v876, %v873
        %v1015 = vpack.c.b16 %v877, %v874
        %v1016 = vpack.c.b16 %v878, %v875
        %v1017 = vpack.c.b16 %v882, %v879
        %v1018 = vpack.c.b16 %v883, %v880
        %v1019 = vpack.c.b16 %v884, %v881
        %v1020 = vpack.c.b16 %v888, %v885
        %v1021 = vpack.c.b16 %v889, %v886
        %v1022 = vpack.c.b16 %v890, %v887
        %v1023 = vpack.c.b16 %v894, %v891
        %v1024 = vpack.c.b16 %v895, %v892
        %v1025 = vpack.c.b16 %v896, %v893
        %v1026 = vpack.c.b16 %v900, %v897
        %v1027 = vpack.c.b16 %v901, %v898
        %v1028 = vpack.c.b16 %v902, %v899
        %v1029 = vpack.c.b16 %v906, %v903
        %v1030 = vpack.c.b16 %v907, %v904
        %v1031 = vpack.c.b16 %v908, %v905
        %v1032 = vpack.c.b16 %v912, %v909
        %v1033 = vpack.c.b16 %v913, %v910
        %v1034 = vpack.c.b16 %v914, %v911
        %v1035 = vpack.c.b16 %v918, %v915
        %v1036 = vpack.c.b16 %v919, %v916
        %v1037 = vpack.c.b16 %v920, %v917
        %v1038 = vpack.c.b16 %v924, %v921
        %v1039 = vpack.c.b16 %v925, %v922
        %v1040 = vpack.c.b16 %v926, %v923
        %v1041 = vpack.c.b16 %v930, %v927
        %v1042 = vpack.c.b16 %v931, %v928
        %v1043 = vpack.c.b16 %v932, %v929
        %v1044 = vpack.c.b16 %v936, %v933
        %v1045 = vpack.c.b16 %v937, %v934
        %v1046 = vpack.c.b16 %v938, %v935
        %v1047 = vpack.c.b16 %v942, %v939
        %v1048 = vpack.c.b16 %v943, %v940
        %v1049 = vpack.c.b16 %v944, %v941
        %v1050 = vpack.c.b16 %v948, %v945
        %v1051 = vpack.c.b16 %v949, %v946
        %v1052 = vpack.c.b16 %v950, %v947
        %v1053 = vpack.c.b16 %v954, %v951
        %v1054 = vpack.c.b16 %v955, %v952
        %v1055 = vpack.c.b16 %v956, %v953
        %v1056 = vpack.c.b16 %v960, %v957
        %v1057 = vpack.c.b16 %v961, %v958
        %v1058 = vpack.c.b16 %v962, %v959
        %v1059 = vpack.c.b16 %v966, %v963
        %v1060 = vpack.c.b16 %v967, %v964
        %v1061 = vpack.c.b16 %v968, %v965
        %v1062 = vpack.c.b16 %v972, %v969
        %v1063 = vpack.c.b16 %v973, %v970
        %v1064 = vpack.c.b16 %v974, %v971
        %v1065 = vpack.c.b16 %v978, %v975
        %v1066 = vpack.c.b16 %v979, %v976
        %v1067 = vpack.c.b16 %v980, %v977
        %v1068 = vpack.c.b16 %v984, %v981
        %v1069 = vpack.c.b16 %v985, %v982
        %v1070 = vpack.c.b16 %v986, %v983
        %v1071 = vpack.c.b16 %v990, %v987
        %v1072 = vpack.c.b16 %v991, %v988
        %v1073 = vpack.c.b16 %v992, %v989
        %v1074 = vpack.c.b16 %v996, %v993
        %v1075 = vpack.c.b16 %v997, %v994
        %v1076 = vpack.c.b16 %v998, %v995
        %v1077 = vpack.c.b16 %v1002, %v999
        %v1078 = vpack.c.b16 %v1003, %v1000
        %v1079 = vpack.c.b16 %v1004, %v1001
        %v1080 = vpack.c.b16 %v1008, %v1005
        %v1081 = vpack.c.b16 %v1009, %v1006
        %v1082 = vpack.c.b16 %v1010, %v1007
        %1155 = vmatprep.subr.bf16.mxu0 %v1012
        %1156 = vmatpush1.bf16.msra.mxu0 %v1011
        %1157 = vmatprep.subr.bf16.mxu0 %v1015
        %1158 = vmatpush1.bf16.msra.mxu0 %v1014
        %1159 = vmatprep.subr.bf16.mxu0 %v1018
        %1160 = vmatpush1.bf16.msra.mxu0 %v1017
        %1161 = vmatprep.subr.bf16.mxu0 %v1021
        %1162 = vmatpush1.bf16.msra.mxu0 %v1020
        %1163 = vmatprep.subr.bf16.mxu0 %v1024
        %1164 = vmatpush1.bf16.msra.mxu0 %v1023
        %1165 = vmatprep.subr.bf16.mxu0 %v1027
        %1166 = vmatpush1.bf16.msra.mxu0 %v1026
        %1167 = vmatprep.subr.bf16.mxu0 %v1030
        %1168 = vmatpush1.bf16.msra.mxu0 %v1029
        %1169 = vmatprep.subr.bf16.mxu0 %v1033
        %1170 = vmatpush1.bf16.msra.mxu0 %v1032
        %1171 = vmatprep.subr.bf16.mxu0 %v1036
        %1172 = vmatpush1.bf16.msra.mxu0 %v1035
        %1173 = vmatprep.subr.bf16.mxu0 %v1039
        %1174 = vmatpush1.bf16.msra.mxu0 %v1038
        %1175 = vmatprep.subr.bf16.mxu0 %v1042
        %1176 = vmatpush1.bf16.msra.mxu0 %v1041
        %1177 = vmatprep.subr.bf16.mxu0 %v1045
        %1178 = vmatpush1.bf16.msra.mxu0 %v1044
        %1179 = vmatprep.subr.bf16.mxu0 %v1048
        %1180 = vmatpush1.bf16.msra.mxu0 %v1047
        %1181 = vmatprep.subr.bf16.mxu0 %v1051
        %1182 = vmatpush1.bf16.msra.mxu0 %v1050
        %1183 = vmatprep.subr.bf16.mxu0 %v1054
        %1184 = vmatpush1.bf16.msra.mxu0 %v1053
        %1185 = vmatprep.subr.bf16.mxu0 %v1057
        %1186 = vmatpush1.bf16.msra.mxu0 %v1056
        %1187 = vmatprep.mubr.bf16.mxu0 %v676
        %1188 = vmatmul.mubr.bf16.gmra.mrb[0].mxu0 %v675
        %v1189 = vpop.f32.mrb[0].mxu0
        %v1190 = vadd.f32 %v503, %v1189
        %v1191 = vpop.f32.mrb[0].mxu0
        %v1192 = vadd.f32 %v507, %v1191
        %v1193 = vpop.f32.mrb[0].mxu0
        %v1194 = vadd.f32 %v503, %v1193
        %v1195 = vpop.f32.mrb[0].mxu0
        %v1196 = vadd.f32 %v507, %v1195
        %1197 = vmatprep.mubr.bf16.mxu0 %v679
        %1198 = vmatmul.mubr.bf16.gmra.mrb[0].mxu0 %v678
        %v1199 = vpop.f32.mrb[0].mxu0
        %v1200 = vadd.f32 %v503, %v1199
        %v1201 = vpop.f32.mrb[0].mxu0
        %v1202 = vadd.f32 %v507, %v1201
        %v1203 = vpop.f32.mrb[0].mxu0
        %v1204 = vadd.f32 %v503, %v1203
        %v1205 = vpop.f32.mrb[0].mxu0
        %v1206 = vadd.f32 %v507, %v1205
        %1207 = vmatprep.mubr.bf16.mxu0 %v682
        %1208 = vmatmul.mubr.bf16.gmra.mrb[0].mxu0 %v681
        %v1209 = vpop.f32.mrb[0].mxu0
        %v1210 = vadd.f32 %v503, %v1209
        %v1211 = vpop.f32.mrb[0].mxu0
        %v1212 = vadd.f32 %v507, %v1211
        %v1213 = vpop.f32.mrb[0].mxu0
        %v1214 = vadd.f32 %v503, %v1213
        %v1215 = vpop.f32.mrb[0].mxu0
        %v1216 = vadd.f32 %v507, %v1215
        %1217 = vmatprep.mubr.bf16.mxu0 %v685
        %1218 = vmatmul.mubr.bf16.gmra.mrb[0].mxu0 %v684
        %v1219 = vpop.f32.mrb[0].mxu0
        %v1220 = vadd.f32 %v503, %v1219
        %v1221 = vpop.f32.mrb[0].mxu0
        %v1222 = vadd.f32 %v507, %v1221
        %v1223 = vpop.f32.mrb[0].mxu0
        %v1224 = vadd.f32 %v503, %v1223
        %v1225 = vpop.f32.mrb[0].mxu0
        %v1226 = vadd.f32 %v507, %v1225
        %1227 = vmatprep.mubr.bf16.mxu0 %v688
        %1228 = vmatmul.mubr.bf16.gmra.mrb[0].mxu0 %v687
        %v1229 = vpop.f32.mrb[0].mxu0
        %v1230 = vadd.f32 %v503, %v1229
        %v1231 = vpop.f32.mrb[0].mxu0
        %v1232 = vadd.f32 %v507, %v1231
        %v1233 = vpop.f32.mrb[0].mxu0
        %v1234 = vadd.f32 %v503, %v1233
        %v1235 = vpop.f32.mrb[0].mxu0
        %v1236 = vadd.f32 %v507, %v1235
        %1237 = vmatprep.mubr.bf16.mxu0 %v691
        %1238 = vmatmul.mubr.bf16.gmra.mrb[0].mxu0 %v690
        %v1239 = vpop.f32.mrb[0].mxu0
        %v1240 = vadd.f32 %v503, %v1239
        %v1241 = vpop.f32.mrb[0].mxu0
        %v1242 = vadd.f32 %v507, %v1241
        %v1243 = vpop.f32.mrb[0].mxu0
        %v1244 = vadd.f32 %v503, %v1243
        %v1245 = vpop.f32.mrb[0].mxu0
        %v1246 = vadd.f32 %v507, %v1245
        %1247 = vmatprep.mubr.bf16.mxu0 %v694
        %1248 = vmatmul.mubr.bf16.gmra.mrb[0].mxu0 %v693
        %v1249 = vpop.f32.mrb[0].mxu0
        %v1250 = vadd.f32 %v503, %v1249
        %v1251 = vpop.f32.mrb[0].mxu0
        %v1252 = vadd.f32 %v507, %v1251
        %v1253 = vpop.f32.mrb[0].mxu0
        %v1254 = vadd.f32 %v503, %v1253
        %v1255 = vpop.f32.mrb[0].mxu0
        %v1256 = vadd.f32 %v507, %v1255
        %1257 = vmatprep.mubr.bf16.mxu0 %v697
        %1258 = vmatmul.mubr.bf16.gmra.mrb[0].mxu0 %v696
        %v1259 = vpop.f32.mrb[0].mxu0
        %v1260 = vadd.f32 %v503, %v1259
        %v1261 = vpop.f32.mrb[0].mxu0
        %v1262 = vadd.f32 %v507, %v1261
        %v1263 = vpop.f32.mrb[0].mxu0
        %v1264 = vadd.f32 %v503, %v1263
        %v1265 = vpop.f32.mrb[0].mxu0
        %v1266 = vadd.f32 %v507, %v1265
        %1267 = vmatprep.mubr.bf16.mxu0 %v700
        %1268 = vmatmul.mubr.bf16.gmra.mrb[0].mxu0 %v699
        %v1269 = vpop.f32.mrb[0].mxu0
        %v1270 = vadd.f32 %v503, %v1269
        %v1271 = vpop.f32.mrb[0].mxu0
        %v1272 = vadd.f32 %v507, %v1271
        %v1273 = vpop.f32.mrb[0].mxu0
        %v1274 = vadd.f32 %v503, %v1273
        %v1275 = vpop.f32.mrb[0].mxu0
        %v1276 = vadd.f32 %v507, %v1275
        %1277 = vmatprep.mubr.bf16.mxu0 %v703
        %1278 = vmatmul.mubr.bf16.gmra.mrb[0].mxu0 %v702
        %v1279 = vpop.f32.mrb[0].mxu0
        %v1280 = vadd.f32 %v503, %v1279
        %v1281 = vpop.f32.mrb[0].mxu0
        %v1282 = vadd.f32 %v507, %v1281
        %v1283 = vpop.f32.mrb[0].mxu0
        %v1284 = vadd.f32 %v503, %v1283
        %v1285 = vpop.f32.mrb[0].mxu0
        %v1286 = vadd.f32 %v507, %v1285
        %1287 = vmatprep.mubr.bf16.mxu0 %v706
        %1288 = vmatmul.mubr.bf16.gmra.mrb[0].mxu0 %v705
        %v1289 = vpop.f32.mrb[0].mxu0
        %v1290 = vadd.f32 %v503, %v1289
        %v1291 = vpop.f32.mrb[0].mxu0
        %v1292 = vadd.f32 %v507, %v1291
        %v1293 = vpop.f32.mrb[0].mxu0
        %v1294 = vadd.f32 %v503, %v1293
        %v1295 = vpop.f32.mrb[0].mxu0
        %v1296 = vadd.f32 %v507, %v1295
        %1297 = vmatprep.mubr.bf16.mxu0 %v709
        %1298 = vmatmul.mubr.bf16.gmra.mrb[0].mxu0 %v708
        %v1299 = vpop.f32.mrb[0].mxu0
        %v1300 = vadd.f32 %v503, %v1299
        %v1301 = vpop.f32.mrb[0].mxu0
        %v1302 = vadd.f32 %v507, %v1301
        %v1303 = vpop.f32.mrb[0].mxu0
        %v1304 = vadd.f32 %v503, %v1303
        %v1305 = vpop.f32.mrb[0].mxu0
        %v1306 = vadd.f32 %v507, %v1305
        %1307 = vmatprep.mubr.bf16.mxu0 %v712
        %1308 = vmatmul.mubr.bf16.gmra.mrb[0].mxu0 %v711
        %v1309 = vpop.f32.mrb[0].mxu0
        %v1310 = vadd.f32 %v503, %v1309
        %v1311 = vpop.f32.mrb[0].mxu0
        %v1312 = vadd.f32 %v507, %v1311
        %v1313 = vpop.f32.mrb[0].mxu0
        %v1314 = vadd.f32 %v503, %v1313
        %v1315 = vpop.f32.mrb[0].mxu0
        %v1316 = vadd.f32 %v507, %v1315
        %1317 = vmatprep.mubr.bf16.mxu0 %v715
        %1318 = vmatmul.mubr.bf16.gmra.mrb[0].mxu0 %v714
        %v1319 = vpop.f32.mrb[0].mxu0
        %v1320 = vadd.f32 %v503, %v1319
        %v1321 = vpop.f32.mrb[0].mxu0
        %v1322 = vadd.f32 %v507, %v1321
        %v1323 = vpop.f32.mrb[0].mxu0
        %v1324 = vadd.f32 %v503, %v1323
        %v1325 = vpop.f32.mrb[0].mxu0
        %v1326 = vadd.f32 %v507, %v1325
        %1327 = vmatprep.mubr.bf16.mxu0 %v718
        %1328 = vmatmul.mubr.bf16.gmra.mrb[0].mxu0 %v717
        %v1329 = vpop.f32.mrb[0].mxu0
        %v1330 = vadd.f32 %v503, %v1329
        %v1331 = vpop.f32.mrb[0].mxu0
        %v1332 = vadd.f32 %v507, %v1331
        %v1333 = vpop.f32.mrb[0].mxu0
        %v1334 = vadd.f32 %v503, %v1333
        %v1335 = vpop.f32.mrb[0].mxu0
        %v1336 = vadd.f32 %v507, %v1335
        %1337 = vmatprep.mubr.bf16.mxu0 %v721
        %1338 = vmatmul.mubr.bf16.gmra.mrb[0].mxu0 %v720
        %v1339 = vpop.f32.mrb[0].mxu0
        %v1340 = vadd.f32 %v503, %v1339
        %v1341 = vpop.f32.mrb[0].mxu0
        %v1342 = vadd.f32 %v507, %v1341
        %v1343 = vpop.f32.mrb[0].mxu0
        %v1344 = vadd.f32 %v503, %v1343
        %v1345 = vpop.f32.mrb[0].mxu0
        %v1346 = vadd.f32 %v507, %v1345
        %1347 = vdwg.mxu0
        %1348 = vmatprep.subr.bf16.mxu0 %v1060
        %1349 = vmatpush1.bf16.msra.mxu0 %v1059
        %1350 = vmatprep.subr.bf16.mxu0 %v1063
        %1351 = vmatpush1.bf16.msra.mxu0 %v1062
        %1352 = vmatprep.subr.bf16.mxu0 %v1066
        %1353 = vmatpush1.bf16.msra.mxu0 %v1065
        %1354 = vmatprep.subr.bf16.mxu0 %v1069
        %1355 = vmatpush1.bf16.msra.mxu0 %v1068
        %1356 = vmatprep.subr.bf16.mxu0 %v1072
        %1357 = vmatpush1.bf16.msra.mxu0 %v1071
        %1358 = vmatprep.subr.bf16.mxu0 %v1075
        %1359 = vmatpush1.bf16.msra.mxu0 %v1074
        %1360 = vmatprep.subr.bf16.mxu0 %v1078
        %1361 = vmatpush1.bf16.msra.mxu0 %v1077
        %1362 = vmatprep.subr.bf16.mxu0 %v1081
        %1363 = vmatpush1.bf16.msra.mxu0 %v1080
        %1364 = vmatprep.subr.bf16.mxu0 0
        %1365 = vmatpush1.bf16.msra.mxu0 0
        %1366 = vmatprep.subr.bf16.mxu0 0
        %1367 = vmatpush1.bf16.msra.mxu0 0
        %1368 = vmatprep.subr.bf16.mxu0 0
        %1369 = vmatpush1.bf16.msra.mxu0 0
        %1370 = vmatprep.subr.bf16.mxu0 0
        %1371 = vmatpush1.bf16.msra.mxu0 0
        %1372 = vmatprep.subr.bf16.mxu0 0
        %1373 = vmatpush1.bf16.msra.mxu0 0
        %1374 = vmatprep.subr.bf16.mxu0 0
        %1375 = vmatpush1.bf16.msra.mxu0 0
        %1376 = vmatprep.subr.bf16.mxu0 0
        %1377 = vmatpush1.bf16.msra.mxu0 0
        %1378 = vmatprep.subr.bf16.mxu0 0
        %1379 = vmatpush1.bf16.msra.mxu0 0
        %1380 = vmatprep.mubr.bf16.mxu0 0
        %1381 = vmatmul.mubr.bf16.gmra.mrb[0].mxu0 %v677
        %v1382 = vpop.f32.mrb[0].mxu0
        %v1383 = vadd.f32 %v1190, %v1382
        %v1384 = vpop.f32.mrb[0].mxu0
        %v1385 = vadd.f32 %v1192, %v1384
        %v1386 = vpop.f32.mrb[0].mxu0
        %v1387 = vadd.f32 %v1194, %v1386
        %v1388 = vpop.f32.mrb[0].mxu0
        %v1389 = vadd.f32 %v1196, %v1388
        %1390 = vmatprep.mubr.bf16.mxu0 0
        %1391 = vmatmul.mubr.bf16.gmra.mrb[0].mxu0 %v680
        %v1392 = vpop.f32.mrb[0].mxu0
        %v1393 = vadd.f32 %v1200, %v1392
        %v1394 = vpop.f32.mrb[0].mxu0
        %v1395 = vadd.f32 %v1202, %v1394
        %v1396 = vpop.f32.mrb[0].mxu0
        %v1397 = vadd.f32 %v1204, %v1396
        %v1398 = vpop.f32.mrb[0].mxu0
        %v1399 = vadd.f32 %v1206, %v1398
        %1400 = vmatprep.mubr.bf16.mxu0 0
        %1401 = vmatmul.mubr.bf16.gmra.mrb[0].mxu0 %v683
        %v1402 = vpop.f32.mrb[0].mxu0
        %v1403 = vadd.f32 %v1210, %v1402
        %v1404 = vpop.f32.mrb[0].mxu0
        %v1405 = vadd.f32 %v1212, %v1404
        %v1406 = vpop.f32.mrb[0].mxu0
        %v1407 = vadd.f32 %v1214, %v1406
        %v1408 = vpop.f32.mrb[0].mxu0
        %v1409 = vadd.f32 %v1216, %v1408
        %1410 = vmatprep.mubr.bf16.mxu0 0
        %1411 = vmatmul.mubr.bf16.gmra.mrb[0].mxu0 %v686
        %v1412 = vpop.f32.mrb[0].mxu0
        %v1413 = vadd.f32 %v1220, %v1412
        %v1414 = vpop.f32.mrb[0].mxu0
        %v1415 = vadd.f32 %v1222, %v1414
        %v1416 = vpop.f32.mrb[0].mxu0
        %v1417 = vadd.f32 %v1224, %v1416
        %v1418 = vpop.f32.mrb[0].mxu0
        %v1419 = vadd.f32 %v1226, %v1418
        %1420 = vmatprep.mubr.bf16.mxu0 0
        %1421 = vmatmul.mubr.bf16.gmra.mrb[0].mxu0 %v689
        %v1422 = vpop.f32.mrb[0].mxu0
        %v1423 = vadd.f32 %v1230, %v1422
        %v1424 = vpop.f32.mrb[0].mxu0
        %v1425 = vadd.f32 %v1232, %v1424
        %v1426 = vpop.f32.mrb[0].mxu0
        %v1427 = vadd.f32 %v1234, %v1426
        %v1428 = vpop.f32.mrb[0].mxu0
        %v1429 = vadd.f32 %v1236, %v1428
        %1430 = vmatprep.mubr.bf16.mxu0 0
        %1431 = vmatmul.mubr.bf16.gmra.mrb[0].mxu0 %v692
        %v1432 = vpop.f32.mrb[0].mxu0
        %v1433 = vadd.f32 %v1240, %v1432
        %v1434 = vpop.f32.mrb[0].mxu0
        %v1435 = vadd.f32 %v1242, %v1434
        %v1436 = vpop.f32.mrb[0].mxu0
        %v1437 = vadd.f32 %v1244, %v1436
        %v1438 = vpop.f32.mrb[0].mxu0
        %v1439 = vadd.f32 %v1246, %v1438
        %1440 = vmatprep.mubr.bf16.mxu0 0
        %1441 = vmatmul.mubr.bf16.gmra.mrb[0].mxu0 %v695
        %v1442 = vpop.f32.mrb[0].mxu0
        %v1443 = vadd.f32 %v1250, %v1442
        %v1444 = vpop.f32.mrb[0].mxu0
        %v1445 = vadd.f32 %v1252, %v1444
        %v1446 = vpop.f32.mrb[0].mxu0
        %v1447 = vadd.f32 %v1254, %v1446
        %v1448 = vpop.f32.mrb[0].mxu0
        %v1449 = vadd.f32 %v1256, %v1448
        %1450 = vmatprep.mubr.bf16.mxu0 0
        %1451 = vmatmul.mubr.bf16.gmra.mrb[0].mxu0 %v698
        %v1452 = vpop.f32.mrb[0].mxu0
        %v1453 = vadd.f32 %v1260, %v1452
        %v1454 = vpop.f32.mrb[0].mxu0
        %v1455 = vadd.f32 %v1262, %v1454
        %v1456 = vpop.f32.mrb[0].mxu0
        %v1457 = vadd.f32 %v1264, %v1456
        %v1458 = vpop.f32.mrb[0].mxu0
        %v1459 = vadd.f32 %v1266, %v1458
        %1460 = vmatprep.mubr.bf16.mxu0 0
        %1461 = vmatmul.mubr.bf16.gmra.mrb[0].mxu0 %v701
        %v1462 = vpop.f32.mrb[0].mxu0
        %v1463 = vadd.f32 %v1270, %v1462
        %v1464 = vpop.f32.mrb[0].mxu0
        %v1465 = vadd.f32 %v1272, %v1464
        %v1466 = vpop.f32.mrb[0].mxu0
        %v1467 = vadd.f32 %v1274, %v1466
        %v1468 = vpop.f32.mrb[0].mxu0
        %v1469 = vadd.f32 %v1276, %v1468
        %1470 = vmatprep.mubr.bf16.mxu0 0
        %1471 = vmatmul.mubr.bf16.gmra.mrb[0].mxu0 %v704
        %v1472 = vpop.f32.mrb[0].mxu0
        %v1473 = vadd.f32 %v1280, %v1472
        %v1474 = vpop.f32.mrb[0].mxu0
        %v1475 = vadd.f32 %v1282, %v1474
        %v1476 = vpop.f32.mrb[0].mxu0
        %v1477 = vadd.f32 %v1284, %v1476
        %v1478 = vpop.f32.mrb[0].mxu0
        %v1479 = vadd.f32 %v1286, %v1478
        %1480 = vmatprep.mubr.bf16.mxu0 0
        %1481 = vmatmul.mubr.bf16.gmra.mrb[0].mxu0 %v707
        %v1482 = vpop.f32.mrb[0].mxu0
        %v1483 = vadd.f32 %v1290, %v1482
        %v1484 = vpop.f32.mrb[0].mxu0
        %v1485 = vadd.f32 %v1292, %v1484
        %v1486 = vpop.f32.mrb[0].mxu0
        %v1487 = vadd.f32 %v1294, %v1486
        %v1488 = vpop.f32.mrb[0].mxu0
        %v1489 = vadd.f32 %v1296, %v1488
        %1490 = vmatprep.mubr.bf16.mxu0 0
        %1491 = vmatmul.mubr.bf16.gmra.mrb[0].mxu0 %v710
        %v1492 = vpop.f32.mrb[0].mxu0
        %v1493 = vadd.f32 %v1300, %v1492
        %v1494 = vpop.f32.mrb[0].mxu0
        %v1495 = vadd.f32 %v1302, %v1494
        %v1496 = vpop.f32.mrb[0].mxu0
        %v1497 = vadd.f32 %v1304, %v1496
        %v1498 = vpop.f32.mrb[0].mxu0
        %v1499 = vadd.f32 %v1306, %v1498
        %1500 = vmatprep.mubr.bf16.mxu0 0
        %1501 = vmatmul.mubr.bf16.gmra.mrb[0].mxu0 %v713
        %v1502 = vpop.f32.mrb[0].mxu0
        %v1503 = vadd.f32 %v1310, %v1502
        %v1504 = vpop.f32.mrb[0].mxu0
        %v1505 = vadd.f32 %v1312, %v1504
        %v1506 = vpop.f32.mrb[0].mxu0
        %v1507 = vadd.f32 %v1314, %v1506
        %v1508 = vpop.f32.mrb[0].mxu0
        %v1509 = vadd.f32 %v1316, %v1508
        %1510 = vmatprep.mubr.bf16.mxu0 0
        %1511 = vmatmul.mubr.bf16.gmra.mrb[0].mxu0 %v716
        %v1512 = vpop.f32.mrb[0].mxu0
        %v1513 = vadd.f32 %v1320, %v1512
        %v1514 = vpop.f32.mrb[0].mxu0
        %v1515 = vadd.f32 %v1322, %v1514
        %v1516 = vpop.f32.mrb[0].mxu0
        %v1517 = vadd.f32 %v1324, %v1516
        %v1518 = vpop.f32.mrb[0].mxu0
        %v1519 = vadd.f32 %v1326, %v1518
        %1520 = vmatprep.mubr.bf16.mxu0 0
        %1521 = vmatmul.mubr.bf16.gmra.mrb[0].mxu0 %v719
        %v1522 = vpop.f32.mrb[0].mxu0
        %v1523 = vadd.f32 %v1330, %v1522
        %v1524 = vpop.f32.mrb[0].mxu0
        %v1525 = vadd.f32 %v1332, %v1524
        %v1526 = vpop.f32.mrb[0].mxu0
        %v1527 = vadd.f32 %v1334, %v1526
        %v1528 = vpop.f32.mrb[0].mxu0
        %v1529 = vadd.f32 %v1336, %v1528
        %1530 = vmatprep.mubr.bf16.mxu0 0
        %1531 = vmatmul.mubr.bf16.gmra.mrb[0].mxu0 %v722
        %v1532 = vpop.f32.mrb[0].mxu0
        %v1533 = vadd.f32 %v1340, %v1532
        %v1534 = vpop.f32.mrb[0].mxu0
        %v1535 = vadd.f32 %v1342, %v1534
        %v1536 = vpop.f32.mrb[0].mxu0
        %v1537 = vadd.f32 %v1344, %v1536
        %v1538 = vpop.f32.mrb[0].mxu0
        %v1539 = vadd.f32 %v1346, %v1538
        %1540 = vdwg.mxu0
        %1541 = vmatprep.subr.bf16.mxu0 0
        %1542 = vmatpush1.bf16.msra.mxu0 %v1013
        %1543 = vmatprep.subr.bf16.mxu0 0
        %1544 = vmatpush1.bf16.msra.mxu0 %v1016
        %1545 = vmatprep.subr.bf16.mxu0 0
        %1546 = vmatpush1.bf16.msra.mxu0 %v1019
        %1547 = vmatprep.subr.bf16.mxu0 0
        %1548 = vmatpush1.bf16.msra.mxu0 %v1022
        %1549 = vmatprep.subr.bf16.mxu0 0
        %1550 = vmatpush1.bf16.msra.mxu0 %v1025
        %1551 = vmatprep.subr.bf16.mxu0 0
        %1552 = vmatpush1.bf16.msra.mxu0 %v1028
        %1553 = vmatprep.subr.bf16.mxu0 0
        %1554 = vmatpush1.bf16.msra.mxu0 %v1031
        %1555 = vmatprep.subr.bf16.mxu0 0
        %1556 = vmatpush1.bf16.msra.mxu0 %v1034
        %1557 = vmatprep.subr.bf16.mxu0 0
        %1558 = vmatpush1.bf16.msra.mxu0 %v1037
        %1559 = vmatprep.subr.bf16.mxu0 0
        %1560 = vmatpush1.bf16.msra.mxu0 %v1040
        %1561 = vmatprep.subr.bf16.mxu0 0
        %1562 = vmatpush1.bf16.msra.mxu0 %v1043
        %1563 = vmatprep.subr.bf16.mxu0 0
        %1564 = vmatpush1.bf16.msra.mxu0 %v1046
        %1565 = vmatprep.subr.bf16.mxu0 0
        %1566 = vmatpush1.bf16.msra.mxu0 %v1049
        %1567 = vmatprep.subr.bf16.mxu0 0
        %1568 = vmatpush1.bf16.msra.mxu0 %v1052
        %1569 = vmatprep.subr.bf16.mxu0 0
        %1570 = vmatpush1.bf16.msra.mxu0 %v1055
        %1571 = vmatprep.subr.bf16.mxu0 0
        %1572 = vmatpush1.bf16.msra.mxu0 %v1058
        %1573 = vmatprep.mubr.bf16.mxu0 %v676
        %1574 = vmatmul.mubr.bf16.gmra.mrb[0].mxu0 %v675
        %v1575 = vpop.f32.mrb[0].mxu0
        %v1576 = vadd.f32 %v511, %v1575
        %v1577 = vpop.f32.mrb[0].mxu0
        %v1578 = vpop.f32.mrb[0].mxu0
        %v1579 = vadd.f32 %v511, %v1578
        %v1580 = vpop.f32.mrb[0].mxu0
        %1581 = vmatprep.mubr.bf16.mxu0 %v679
        %1582 = vmatmul.mubr.bf16.gmra.mrb[0].mxu0 %v678
        %v1583 = vpop.f32.mrb[0].mxu0
        %v1584 = vadd.f32 %v511, %v1583
        %v1585 = vpop.f32.mrb[0].mxu0
        %v1586 = vpop.f32.mrb[0].mxu0
        %v1587 = vadd.f32 %v511, %v1586
        %v1588 = vpop.f32.mrb[0].mxu0
        %1589 = vmatprep.mubr.bf16.mxu0 %v682
        %1590 = vmatmul.mubr.bf16.gmra.mrb[0].mxu0 %v681
        %v1591 = vpop.f32.mrb[0].mxu0
        %v1592 = vadd.f32 %v511, %v1591
        %v1593 = vpop.f32.mrb[0].mxu0
        %v1594 = vpop.f32.mrb[0].mxu0
        %v1595 = vadd.f32 %v511, %v1594
        %v1596 = vpop.f32.mrb[0].mxu0
        %1597 = vmatprep.mubr.bf16.mxu0 %v685
        %1598 = vmatmul.mubr.bf16.gmra.mrb[0].mxu0 %v684
        %v1599 = vpop.f32.mrb[0].mxu0
        %v1600 = vadd.f32 %v511, %v1599
        %v1601 = vpop.f32.mrb[0].mxu0
        %v1602 = vpop.f32.mrb[0].mxu0
        %v1603 = vadd.f32 %v511, %v1602
        %v1604 = vpop.f32.mrb[0].mxu0
        %1605 = vmatprep.mubr.bf16.mxu0 %v688
        %1606 = vmatmul.mubr.bf16.gmra.mrb[0].mxu0 %v687
        %v1607 = vpop.f32.mrb[0].mxu0
        %v1608 = vadd.f32 %v511, %v1607
        %v1609 = vpop.f32.mrb[0].mxu0
        %v1610 = vpop.f32.mrb[0].mxu0
        %v1611 = vadd.f32 %v511, %v1610
        %v1612 = vpop.f32.mrb[0].mxu0
        %1613 = vmatprep.mubr.bf16.mxu0 %v691
        %1614 = vmatmul.mubr.bf16.gmra.mrb[0].mxu0 %v690
        %v1615 = vpop.f32.mrb[0].mxu0
        %v1616 = vadd.f32 %v511, %v1615
        %v1617 = vpop.f32.mrb[0].mxu0
        %v1618 = vpop.f32.mrb[0].mxu0
        %v1619 = vadd.f32 %v511, %v1618
        %v1620 = vpop.f32.mrb[0].mxu0
        %1621 = vmatprep.mubr.bf16.mxu0 %v694
        %1622 = vmatmul.mubr.bf16.gmra.mrb[0].mxu0 %v693
        %v1623 = vpop.f32.mrb[0].mxu0
        %v1624 = vadd.f32 %v511, %v1623
        %v1625 = vpop.f32.mrb[0].mxu0
        %v1626 = vpop.f32.mrb[0].mxu0
        %v1627 = vadd.f32 %v511, %v1626
        %v1628 = vpop.f32.mrb[0].mxu0
        %1629 = vmatprep.mubr.bf16.mxu0 %v697
        %1630 = vmatmul.mubr.bf16.gmra.mrb[0].mxu0 %v696
        %v1631 = vpop.f32.mrb[0].mxu0
        %v1632 = vadd.f32 %v511, %v1631
        %v1633 = vpop.f32.mrb[0].mxu0
        %v1634 = vpop.f32.mrb[0].mxu0
        %v1635 = vadd.f32 %v511, %v1634
        %v1636 = vpop.f32.mrb[0].mxu0
        %1637 = vmatprep.mubr.bf16.mxu0 %v700
        %1638 = vmatmul.mubr.bf16.gmra.mrb[0].mxu0 %v699
        %v1639 = vpop.f32.mrb[0].mxu0
        %v1640 = vadd.f32 %v511, %v1639
        %v1641 = vpop.f32.mrb[0].mxu0
        %v1642 = vpop.f32.mrb[0].mxu0
        %v1643 = vadd.f32 %v511, %v1642
        %v1644 = vpop.f32.mrb[0].mxu0
        %1645 = vmatprep.mubr.bf16.mxu0 %v703
        %1646 = vmatmul.mubr.bf16.gmra.mrb[0].mxu0 %v702
        %v1647 = vpop.f32.mrb[0].mxu0
        %v1648 = vadd.f32 %v511, %v1647
        %v1649 = vpop.f32.mrb[0].mxu0
        %v1650 = vpop.f32.mrb[0].mxu0
        %v1651 = vadd.f32 %v511, %v1650
        %v1652 = vpop.f32.mrb[0].mxu0
        %1653 = vmatprep.mubr.bf16.mxu0 %v706
        %1654 = vmatmul.mubr.bf16.gmra.mrb[0].mxu0 %v705
        %v1655 = vpop.f32.mrb[0].mxu0
        %v1656 = vadd.f32 %v511, %v1655
        %v1657 = vpop.f32.mrb[0].mxu0
        %v1658 = vpop.f32.mrb[0].mxu0
        %v1659 = vadd.f32 %v511, %v1658
        %v1660 = vpop.f32.mrb[0].mxu0
        %1661 = vmatprep.mubr.bf16.mxu0 %v709
        %1662 = vmatmul.mubr.bf16.gmra.mrb[0].mxu0 %v708
        %v1663 = vpop.f32.mrb[0].mxu0
        %v1664 = vadd.f32 %v511, %v1663
        %v1665 = vpop.f32.mrb[0].mxu0
        %v1666 = vpop.f32.mrb[0].mxu0
        %v1667 = vadd.f32 %v511, %v1666
        %v1668 = vpop.f32.mrb[0].mxu0
        %1669 = vmatprep.mubr.bf16.mxu0 %v712
        %1670 = vmatmul.mubr.bf16.gmra.mrb[0].mxu0 %v711
        %v1671 = vpop.f32.mrb[0].mxu0
        %v1672 = vadd.f32 %v511, %v1671
        %v1673 = vpop.f32.mrb[0].mxu0
        %v1674 = vpop.f32.mrb[0].mxu0
        %v1675 = vadd.f32 %v511, %v1674
        %v1676 = vpop.f32.mrb[0].mxu0
        %1677 = vmatprep.mubr.bf16.mxu0 %v715
        %1678 = vmatmul.mubr.bf16.gmra.mrb[0].mxu0 %v714
        %v1679 = vpop.f32.mrb[0].mxu0
        %v1680 = vadd.f32 %v511, %v1679
        %v1681 = vpop.f32.mrb[0].mxu0
        %v1682 = vpop.f32.mrb[0].mxu0
        %v1683 = vadd.f32 %v511, %v1682
        %v1684 = vpop.f32.mrb[0].mxu0
        %1685 = vmatprep.mubr.bf16.mxu0 %v718
        %1686 = vmatmul.mubr.bf16.gmra.mrb[0].mxu0 %v717
        %v1687 = vpop.f32.mrb[0].mxu0
        %v1688 = vadd.f32 %v511, %v1687
        %v1689 = vpop.f32.mrb[0].mxu0
        %v1690 = vpop.f32.mrb[0].mxu0
        %v1691 = vadd.f32 %v511, %v1690
        %v1692 = vpop.f32.mrb[0].mxu0
        %1693 = vmatprep.mubr.bf16.mxu0 %v721
        %1694 = vmatmul.mubr.bf16.gmra.mrb[0].mxu0 %v720
        %v1695 = vpop.f32.mrb[0].mxu0
        %v1696 = vadd.f32 %v511, %v1695
        %v1697 = vpop.f32.mrb[0].mxu0
        %v1698 = vpop.f32.mrb[0].mxu0
        %v1699 = vadd.f32 %v511, %v1698
        %v1700 = vpop.f32.mrb[0].mxu0
        %1701 = vdwg.mxu0
        %1702 = vmatprep.subr.bf16.mxu0 0
        %1703 = vmatpush1.bf16.msra.mxu0 %v1061
        %1704 = vmatprep.subr.bf16.mxu0 0
        %1705 = vmatpush1.bf16.msra.mxu0 %v1064
        %1706 = vmatprep.subr.bf16.mxu0 0
        %1707 = vmatpush1.bf16.msra.mxu0 %v1067
        %1708 = vmatprep.subr.bf16.mxu0 0
        %1709 = vmatpush1.bf16.msra.mxu0 %v1070
        %1710 = vmatprep.subr.bf16.mxu0 0
        %1711 = vmatpush1.bf16.msra.mxu0 %v1073
        %1712 = vmatprep.subr.bf16.mxu0 0
        %1713 = vmatpush1.bf16.msra.mxu0 %v1076
        %1714 = vmatprep.subr.bf16.mxu0 0
        %1715 = vmatpush1.bf16.msra.mxu0 %v1079
        %1716 = vmatprep.subr.bf16.mxu0 0
        %1717 = vmatpush1.bf16.msra.mxu0 %v1082
        %1718 = vmatprep.subr.bf16.mxu0 0
        %1719 = vmatpush1.bf16.msra.mxu0 0
        %1720 = vmatprep.subr.bf16.mxu0 0
        %1721 = vmatpush1.bf16.msra.mxu0 0
        %1722 = vmatprep.subr.bf16.mxu0 0
        %1723 = vmatpush1.bf16.msra.mxu0 0
        %1724 = vmatprep.subr.bf16.mxu0 0
        %1725 = vmatpush1.bf16.msra.mxu0 0
        %1726 = vmatprep.subr.bf16.mxu0 0
        %1727 = vmatpush1.bf16.msra.mxu0 0
        %1728 = vmatprep.subr.bf16.mxu0 0
        %1729 = vmatpush1.bf16.msra.mxu0 0
        %1730 = vmatprep.subr.bf16.mxu0 0
        %1731 = vmatpush1.bf16.msra.mxu0 0
        %1732 = vmatprep.subr.bf16.mxu0 0
        %1733 = vmatpush1.bf16.msra.mxu0 0
        %1734 = vmatprep.mubr.bf16.mxu0 0
        %1735 = vmatmul.mubr.bf16.gmra.mrb[0].mxu0 %v677
        %v1736 = vpop.f32.mrb[0].mxu0
        %v1737 = vadd.f32 %v1576, %v1736
        %v1738 = vpop.f32.mrb[0].mxu0
        %v1739 = vpop.f32.mrb[0].mxu0
        %v1740 = vadd.f32 %v1579, %v1739
        %v1741 = vpop.f32.mrb[0].mxu0
        %1742 = vmatprep.mubr.bf16.mxu0 0
        %1743 = vmatmul.mubr.bf16.gmra.mrb[0].mxu0 %v680
        %v1744 = vpop.f32.mrb[0].mxu0
        %v1745 = vadd.f32 %v1584, %v1744
        %v1746 = vpop.f32.mrb[0].mxu0
        %v1747 = vpop.f32.mrb[0].mxu0
        %v1748 = vadd.f32 %v1587, %v1747
        %v1749 = vpop.f32.mrb[0].mxu0
        %1750 = vmatprep.mubr.bf16.mxu0 0
        %1751 = vmatmul.mubr.bf16.gmra.mrb[0].mxu0 %v683
        %v1752 = vpop.f32.mrb[0].mxu0
        %v1753 = vadd.f32 %v1592, %v1752
        %v1754 = vpop.f32.mrb[0].mxu0
        %v1755 = vpop.f32.mrb[0].mxu0
        %v1756 = vadd.f32 %v1595, %v1755
        %v1757 = vpop.f32.mrb[0].mxu0
        %1758 = vmatprep.mubr.bf16.mxu0 0
        %1759 = vmatmul.mubr.bf16.gmra.mrb[0].mxu0 %v686
        %v1760 = vpop.f32.mrb[0].mxu0
        %v1761 = vadd.f32 %v1600, %v1760
        %v1762 = vpop.f32.mrb[0].mxu0
        %v1763 = vpop.f32.mrb[0].mxu0
        %v1764 = vadd.f32 %v1603, %v1763
        %v1765 = vpop.f32.mrb[0].mxu0
        %1766 = vmatprep.mubr.bf16.mxu0 0
        %1767 = vmatmul.mubr.bf16.gmra.mrb[0].mxu0 %v689
        %v1768 = vpop.f32.mrb[0].mxu0
        %v1769 = vadd.f32 %v1608, %v1768
        %v1770 = vpop.f32.mrb[0].mxu0
        %v1771 = vpop.f32.mrb[0].mxu0
        %v1772 = vadd.f32 %v1611, %v1771
        %v1773 = vpop.f32.mrb[0].mxu0
        %1774 = vmatprep.mubr.bf16.mxu0 0
        %1775 = vmatmul.mubr.bf16.gmra.mrb[0].mxu0 %v692
        %v1776 = vpop.f32.mrb[0].mxu0
        %v1777 = vadd.f32 %v1616, %v1776
        %v1778 = vpop.f32.mrb[0].mxu0
        %v1779 = vpop.f32.mrb[0].mxu0
        %v1780 = vadd.f32 %v1619, %v1779
        %v1781 = vpop.f32.mrb[0].mxu0
        %1782 = vmatprep.mubr.bf16.mxu0 0
        %1783 = vmatmul.mubr.bf16.gmra.mrb[0].mxu0 %v695
        %v1784 = vpop.f32.mrb[0].mxu0
        %v1785 = vadd.f32 %v1624, %v1784
        %v1786 = vpop.f32.mrb[0].mxu0
        %v1787 = vpop.f32.mrb[0].mxu0
        %v1788 = vadd.f32 %v1627, %v1787
        %v1789 = vpop.f32.mrb[0].mxu0
        %1790 = vmatprep.mubr.bf16.mxu0 0
        %1791 = vmatmul.mubr.bf16.gmra.mrb[0].mxu0 %v698
        %v1792 = vpop.f32.mrb[0].mxu0
        %v1793 = vadd.f32 %v1632, %v1792
        %v1794 = vpop.f32.mrb[0].mxu0
        %v1795 = vpop.f32.mrb[0].mxu0
        %v1796 = vadd.f32 %v1635, %v1795
        %v1797 = vpop.f32.mrb[0].mxu0
        %1798 = vmatprep.mubr.bf16.mxu0 0
        %1799 = vmatmul.mubr.bf16.gmra.mrb[0].mxu0 %v701
        %v1800 = vpop.f32.mrb[0].mxu0
        %v1801 = vadd.f32 %v1640, %v1800
        %v1802 = vpop.f32.mrb[0].mxu0
        %v1803 = vpop.f32.mrb[0].mxu0
        %v1804 = vadd.f32 %v1643, %v1803
        %v1805 = vpop.f32.mrb[0].mxu0
        %1806 = vmatprep.mubr.bf16.mxu0 0
        %1807 = vmatmul.mubr.bf16.gmra.mrb[0].mxu0 %v704
        %v1808 = vpop.f32.mrb[0].mxu0
        %v1809 = vadd.f32 %v1648, %v1808
        %v1810 = vpop.f32.mrb[0].mxu0
        %v1811 = vpop.f32.mrb[0].mxu0
        %v1812 = vadd.f32 %v1651, %v1811
        %v1813 = vpop.f32.mrb[0].mxu0
        %1814 = vmatprep.mubr.bf16.mxu0 0
        %1815 = vmatmul.mubr.bf16.gmra.mrb[0].mxu0 %v707
        %v1816 = vpop.f32.mrb[0].mxu0
        %v1817 = vadd.f32 %v1656, %v1816
        %v1818 = vpop.f32.mrb[0].mxu0
        %v1819 = vpop.f32.mrb[0].mxu0
        %v1820 = vadd.f32 %v1659, %v1819
        %v1821 = vpop.f32.mrb[0].mxu0
        %1822 = vmatprep.mubr.bf16.mxu0 0
        %1823 = vmatmul.mubr.bf16.gmra.mrb[0].mxu0 %v710
        %v1824 = vpop.f32.mrb[0].mxu0
        %v1825 = vadd.f32 %v1664, %v1824
        %v1826 = vpop.f32.mrb[0].mxu0
        %v1827 = vpop.f32.mrb[0].mxu0
        %v1828 = vadd.f32 %v1667, %v1827
        %v1829 = vpop.f32.mrb[0].mxu0
        %1830 = vmatprep.mubr.bf16.mxu0 0
        %1831 = vmatmul.mubr.bf16.gmra.mrb[0].mxu0 %v713
        %v1832 = vpop.f32.mrb[0].mxu0
        %v1833 = vadd.f32 %v1672, %v1832
        %v1834 = vpop.f32.mrb[0].mxu0
        %v1835 = vpop.f32.mrb[0].mxu0
        %v1836 = vadd.f32 %v1675, %v1835
        %v1837 = vpop.f32.mrb[0].mxu0
        %1838 = vmatprep.mubr.bf16.mxu0 0
        %1839 = vmatmul.mubr.bf16.gmra.mrb[0].mxu0 %v716
        %v1840 = vpop.f32.mrb[0].mxu0
        %v1841 = vadd.f32 %v1680, %v1840
        %v1842 = vpop.f32.mrb[0].mxu0
        %v1843 = vpop.f32.mrb[0].mxu0
        %v1844 = vadd.f32 %v1683, %v1843
        %v1845 = vpop.f32.mrb[0].mxu0
        %1846 = vmatprep.mubr.bf16.mxu0 0
        %1847 = vmatmul.mubr.bf16.gmra.mrb[0].mxu0 %v719
        %v1848 = vpop.f32.mrb[0].mxu0
        %v1849 = vadd.f32 %v1688, %v1848
        %v1850 = vpop.f32.mrb[0].mxu0
        %v1851 = vpop.f32.mrb[0].mxu0
        %v1852 = vadd.f32 %v1691, %v1851
        %v1853 = vpop.f32.mrb[0].mxu0
        %1854 = vmatprep.mubr.bf16.mxu0 0
        %1855 = vmatmul.mubr.bf16.gmra.mrb[0].mxu0 %v722
        %v1856 = vpop.f32.mrb[0].mxu0
        %v1857 = vadd.f32 %v1696, %v1856
        %v1858 = vpop.f32.mrb[0].mxu0
        %v1859 = vpop.f32.mrb[0].mxu0
        %v1860 = vadd.f32 %v1699, %v1859
        %v1861 = vpop.f32.mrb[0].mxu0
        %1862 = vdwg.mxu0
        %v1863 = vmax.f32 %v1383, 0.0
        %v1864 = vmax.f32 %v1387, 0.0
        %v1865 = vmax.f32 %v1393, 0.0
        %v1866 = vmax.f32 %v1397, 0.0
        %v1867 = vmax.f32 %v1403, 0.0
        %v1868 = vmax.f32 %v1407, 0.0
        %v1869 = vmax.f32 %v1413, 0.0
        %v1870 = vmax.f32 %v1417, 0.0
        %v1871 = vmax.f32 %v1423, 0.0
        %v1872 = vmax.f32 %v1427, 0.0
        %v1873 = vmax.f32 %v1433, 0.0
        %v1874 = vmax.f32 %v1437, 0.0
        %v1875 = vmax.f32 %v1443, 0.0
        %v1876 = vmax.f32 %v1447, 0.0
        %v1877 = vmax.f32 %v1453, 0.0
        %v1878 = vmax.f32 %v1457, 0.0
        %v1879 = vmax.f32 %v1463, 0.0
        %v1880 = vmax.f32 %v1467, 0.0
        %v1881 = vmax.f32 %v1473, 0.0
        %v1882 = vmax.f32 %v1477, 0.0
        %v1883 = vmax.f32 %v1483, 0.0
        %v1884 = vmax.f32 %v1487, 0.0
        %v1885 = vmax.f32 %v1493, 0.0
        %v1886 = vmax.f32 %v1497, 0.0
        %v1887 = vmax.f32 %v1503, 0.0
        %v1888 = vmax.f32 %v1507, 0.0
        %v1889 = vmax.f32 %v1513, 0.0
        %v1890 = vmax.f32 %v1517, 0.0
        %v1891 = vmax.f32 %v1523, 0.0
        %v1892 = vmax.f32 %v1527, 0.0
        %v1893 = vmax.f32 %v1533, 0.0
        %v1894 = vmax.f32 %v1537, 0.0
        %v1895 = vpack.c.bf16 %v1864, %v1863
        %v1896 = vpack.c.bf16 %v1866, %v1865
        %v1897 = vpack.c.bf16 %v1868, %v1867
        %v1898 = vpack.c.bf16 %v1870, %v1869
        %v1899 = vpack.c.bf16 %v1872, %v1871
        %v1900 = vpack.c.bf16 %v1874, %v1873
        %v1901 = vpack.c.bf16 %v1876, %v1875
        %v1902 = vpack.c.bf16 %v1878, %v1877
        %v1903 = vpack.c.bf16 %v1880, %v1879
        %v1904 = vpack.c.bf16 %v1882, %v1881
        %v1905 = vpack.c.bf16 %v1884, %v1883
        %v1906 = vpack.c.bf16 %v1886, %v1885
        %v1907 = vpack.c.bf16 %v1888, %v1887
        %v1908 = vpack.c.bf16 %v1890, %v1889
        %v1909 = vpack.c.bf16 %v1892, %v1891
        %v1910 = vpack.c.bf16 %v1894, %v1893
        %v1911 = vmax.f32 %v1385, 0.0
        %v1912 = vmax.f32 %v1389, 0.0
        %v1913 = vmax.f32 %v1395, 0.0
        %v1914 = vmax.f32 %v1399, 0.0
        %v1915 = vmax.f32 %v1405, 0.0
        %v1916 = vmax.f32 %v1409, 0.0
        %v1917 = vmax.f32 %v1415, 0.0
        %v1918 = vmax.f32 %v1419, 0.0
        %v1919 = vmax.f32 %v1425, 0.0
        %v1920 = vmax.f32 %v1429, 0.0
        %v1921 = vmax.f32 %v1435, 0.0
        %v1922 = vmax.f32 %v1439, 0.0
        %v1923 = vmax.f32 %v1445, 0.0
        %v1924 = vmax.f32 %v1449, 0.0
        %v1925 = vmax.f32 %v1455, 0.0
        %v1926 = vmax.f32 %v1459, 0.0
        %v1927 = vmax.f32 %v1465, 0.0
        %v1928 = vmax.f32 %v1469, 0.0
        %v1929 = vmax.f32 %v1475, 0.0
        %v1930 = vmax.f32 %v1479, 0.0
        %v1931 = vmax.f32 %v1485, 0.0
        %v1932 = vmax.f32 %v1489, 0.0
        %v1933 = vmax.f32 %v1495, 0.0
        %v1934 = vmax.f32 %v1499, 0.0
        %v1935 = vmax.f32 %v1505, 0.0
        %v1936 = vmax.f32 %v1509, 0.0
        %v1937 = vmax.f32 %v1515, 0.0
        %v1938 = vmax.f32 %v1519, 0.0
        %v1939 = vmax.f32 %v1525, 0.0
        %v1940 = vmax.f32 %v1529, 0.0
        %v1941 = vmax.f32 %v1535, 0.0
        %v1942 = vmax.f32 %v1539, 0.0
        %v1943 = vpack.c.bf16 %v1912, %v1911
        %v1944 = vpack.c.bf16 %v1914, %v1913
        %v1945 = vpack.c.bf16 %v1916, %v1915
        %v1946 = vpack.c.bf16 %v1918, %v1917
        %v1947 = vpack.c.bf16 %v1920, %v1919
        %v1948 = vpack.c.bf16 %v1922, %v1921
        %v1949 = vpack.c.bf16 %v1924, %v1923
        %v1950 = vpack.c.bf16 %v1926, %v1925
        %v1951 = vpack.c.bf16 %v1928, %v1927
        %v1952 = vpack.c.bf16 %v1930, %v1929
        %v1953 = vpack.c.bf16 %v1932, %v1931
        %v1954 = vpack.c.bf16 %v1934, %v1933
        %v1955 = vpack.c.bf16 %v1936, %v1935
        %v1956 = vpack.c.bf16 %v1938, %v1937
        %v1957 = vpack.c.bf16 %v1940, %v1939
        %v1958 = vpack.c.bf16 %v1942, %v1941
        %v1975 = vunpack.c.l.b16 %v1895
        %v1976 = vunpack.c.h.b16 %v1895
        %v1977 = vunpack.c.l.b16 %v1896
        %v1978 = vunpack.c.h.b16 %v1896
        %v1979 = vunpack.c.l.b16 %v1897
        %v1980 = vunpack.c.h.b16 %v1897
        %v1981 = vunpack.c.l.b16 %v1898
        %v1982 = vunpack.c.h.b16 %v1898
        %v1983 = vunpack.c.l.b16 %v1899
        %v1984 = vunpack.c.h.b16 %v1899
        %v1985 = vunpack.c.l.b16 %v1900
        %v1986 = vunpack.c.h.b16 %v1900
        %v1987 = vunpack.c.l.b16 %v1901
        %v1988 = vunpack.c.h.b16 %v1901
        %v1989 = vunpack.c.l.b16 %v1902
        %v1990 = vunpack.c.h.b16 %v1902
        %v1991 = vunpack.c.l.b16 %v1903
        %v1992 = vunpack.c.h.b16 %v1903
        %v1993 = vunpack.c.l.b16 %v1904
        %v1994 = vunpack.c.h.b16 %v1904
        %v1995 = vunpack.c.l.b16 %v1905
        %v1996 = vunpack.c.h.b16 %v1905
        %v1997 = vunpack.c.l.b16 %v1906
        %v1998 = vunpack.c.h.b16 %v1906
        %v1999 = vunpack.c.l.b16 %v1907
        %v2000 = vunpack.c.h.b16 %v1907
        %v2001 = vunpack.c.l.b16 %v1908
        %v2002 = vunpack.c.h.b16 %v1908
        %v2003 = vunpack.c.l.b16 %v1909
        %v2004 = vunpack.c.h.b16 %v1909
        %v2005 = vunpack.c.l.b16 %v1910
        %v2006 = vunpack.c.h.b16 %v1910
        %2007 = vst [vmem:[#allocation2] sm:$0xf] 0
        %2008 = vst [vmem:[#allocation2 + $0x4] sm:$0x1] 0
        %2009 = vst [vmem:[#allocation2 + $0x50] sm:$0xf] 0
        %2010 = vst [vmem:[#allocation2 + $0x54] sm:$0x1] 0
        %2011 = vst [vmem:[#allocation2 + $0xa0] sm:$0xf] 0
        %2012 = vst [vmem:[#allocation2 + $0xa4] sm:$0x1] 0
        %2013 = vst [vmem:[#allocation2 + $0xf0] sm:$0xf] 0
        %2014 = vst [vmem:[#allocation2 + $0xf4] sm:$0x1] 0
        %s2015 = scalar_lea.vmem [#allocation2], 72
        %2016 = vst [vmem:[%s2015] sm:$0xf] 0
        %2017 = vst [vmem:[%s2015 + $0x4] sm:$0x1] 0
        %2018 = vst [vmem:[%s2015 + $0x50] sm:$0xf] 0
        %2019 = vst [vmem:[%s2015 + $0x54] sm:$0x1] 0
        %2020 = vst [vmem:[%s2015 + $0xa0] sm:$0xf] 0
        %2021 = vst [vmem:[%s2015 + $0xa4] sm:$0x1] 0
        %2022 = vst [vmem:[%s2015 + $0xf0] sm:$0xf] 0
        %2023 = vst [vmem:[%s2015 + $0xf4] sm:$0x1] 0
        %v2024 = vpack.c.b16 %v1975, %v1975
        %v2025 = vpack.c.b16 %v1976, %v1976
        %v2026 = vpack.c.b16 %v1977, %v1977
        %v2027 = vpack.c.b16 %v1978, %v1978
        %v2028 = vpack.c.b16 %v1979, %v1979
        %v2029 = vpack.c.b16 %v1980, %v1980
        %v2030 = vpack.c.b16 %v1981, %v1981
        %v2031 = vpack.c.b16 %v1982, %v1982
        %v2032 = vpack.c.b16 %v1983, %v1983
        %v2033 = vpack.c.b16 %v1984, %v1984
        %v2034 = vpack.c.b16 %v1985, %v1985
        %v2035 = vpack.c.b16 %v1986, %v1986
        %v2036 = vpack.c.b16 %v1987, %v1987
        %v2037 = vpack.c.b16 %v1988, %v1988
        %v2038 = vpack.c.b16 %v1989, %v1989
        %v2039 = vpack.c.b16 %v1990, %v1990
        %v2040 = vpack.c.b16 %v1991, %v1991
        %v2041 = vpack.c.b16 %v1992, %v1992
        %v2042 = vpack.c.b16 %v1993, %v1993
        %v2043 = vpack.c.b16 %v1994, %v1994
        %v2044 = vpack.c.b16 %v1995, %v1995
        %v2045 = vpack.c.b16 %v1996, %v1996
        %v2046 = vpack.c.b16 %v1997, %v1997
        %v2047 = vpack.c.b16 %v1998, %v1998
        %v2048 = vpack.c.b16 %v1999, %v1999
        %v2049 = vpack.c.b16 %v2000, %v2000
        %v2050 = vpack.c.b16 %v2001, %v2001
        %v2051 = vpack.c.b16 %v2002, %v2002
        %v2052 = vpack.c.b16 %v2003, %v2003
        %v2053 = vpack.c.b16 %v2004, %v2004
        %v2054 = vpack.c.b16 %v2005, %v2005
        %v2055 = vpack.c.b16 %v2006, %v2006
        %v2057 = vshrl.u32 %v2024, 16
        %v2059 = vrot.slane %v2057, 7
        %v2060 = vshll.u32 %v2024, 16
        %v2062 = vor.u32 %v2059, %v2060
        %v2064 = vshrl.u32 %v2025, 16
        %v2066 = vrot.slane %v2064, 7
        %v2067 = vshll.u32 %v2025, 16
        %v2069 = vor.u32 %v2066, %v2067
        %v2071 = vshrl.u32 %v2026, 16
        %v2073 = vrot.slane %v2071, 7
        %v2074 = vshll.u32 %v2026, 16
        %v2076 = vor.u32 %v2073, %v2074
        %v2078 = vshrl.u32 %v2027, 16
        %v2080 = vrot.slane %v2078, 7
        %v2081 = vshll.u32 %v2027, 16
        %v2083 = vor.u32 %v2080, %v2081
        %v2085 = vshrl.u32 %v2028, 16
        %v2087 = vrot.slane %v2085, 7
        %v2088 = vshll.u32 %v2028, 16
        %v2090 = vor.u32 %v2087, %v2088
        %v2092 = vshrl.u32 %v2029, 16
        %v2094 = vrot.slane %v2092, 7
        %v2095 = vshll.u32 %v2029, 16
        %v2097 = vor.u32 %v2094, %v2095
        %v2099 = vshrl.u32 %v2030, 16
        %v2101 = vrot.slane %v2099, 7
        %v2102 = vshll.u32 %v2030, 16
        %v2104 = vor.u32 %v2101, %v2102
        %v2106 = vshrl.u32 %v2031, 16
        %v2108 = vrot.slane %v2106, 7
        %v2109 = vshll.u32 %v2031, 16
        %v2111 = vor.u32 %v2108, %v2109
        %v2113 = vshrl.u32 %v2032, 16
        %v2115 = vrot.slane %v2113, 7
        %v2116 = vshll.u32 %v2032, 16
        %v2118 = vor.u32 %v2115, %v2116
        %v2120 = vshrl.u32 %v2033, 16
        %v2122 = vrot.slane %v2120, 7
        %v2123 = vshll.u32 %v2033, 16
        %v2125 = vor.u32 %v2122, %v2123
        %v2127 = vshrl.u32 %v2034, 16
        %v2129 = vrot.slane %v2127, 7
        %v2130 = vshll.u32 %v2034, 16
        %v2132 = vor.u32 %v2129, %v2130
        %v2134 = vshrl.u32 %v2035, 16
        %v2136 = vrot.slane %v2134, 7
        %v2137 = vshll.u32 %v2035, 16
        %v2139 = vor.u32 %v2136, %v2137
        %v2141 = vshrl.u32 %v2036, 16
        %v2143 = vrot.slane %v2141, 7
        %v2144 = vshll.u32 %v2036, 16
        %v2146 = vor.u32 %v2143, %v2144
        %v2148 = vshrl.u32 %v2037, 16
        %v2150 = vrot.slane %v2148, 7
        %v2151 = vshll.u32 %v2037, 16
        %v2153 = vor.u32 %v2150, %v2151
        %v2155 = vshrl.u32 %v2038, 16
        %v2157 = vrot.slane %v2155, 7
        %v2158 = vshll.u32 %v2038, 16
        %v2160 = vor.u32 %v2157, %v2158
        %v2162 = vshrl.u32 %v2039, 16
        %v2164 = vrot.slane %v2162, 7
        %v2165 = vshll.u32 %v2039, 16
        %v2167 = vor.u32 %v2164, %v2165
        %v2169 = vshrl.u32 %v2040, 16
        %v2171 = vrot.slane %v2169, 7
        %v2172 = vshll.u32 %v2040, 16
        %v2174 = vor.u32 %v2171, %v2172
        %v2176 = vshrl.u32 %v2041, 16
        %v2178 = vrot.slane %v2176, 7
        %v2179 = vshll.u32 %v2041, 16
        %v2181 = vor.u32 %v2178, %v2179
        %v2183 = vshrl.u32 %v2042, 16
        %v2185 = vrot.slane %v2183, 7
        %v2186 = vshll.u32 %v2042, 16
        %v2188 = vor.u32 %v2185, %v2186
        %v2190 = vshrl.u32 %v2043, 16
        %v2192 = vrot.slane %v2190, 7
        %v2193 = vshll.u32 %v2043, 16
        %v2195 = vor.u32 %v2192, %v2193
        %v2197 = vshrl.u32 %v2044, 16
        %v2199 = vrot.slane %v2197, 7
        %v2200 = vshll.u32 %v2044, 16
        %v2202 = vor.u32 %v2199, %v2200
        %v2204 = vshrl.u32 %v2045, 16
        %v2206 = vrot.slane %v2204, 7
        %v2207 = vshll.u32 %v2045, 16
        %v2209 = vor.u32 %v2206, %v2207
        %v2211 = vshrl.u32 %v2046, 16
        %v2213 = vrot.slane %v2211, 7
        %v2214 = vshll.u32 %v2046, 16
        %v2216 = vor.u32 %v2213, %v2214
        %v2218 = vshrl.u32 %v2047, 16
        %v2220 = vrot.slane %v2218, 7
        %v2221 = vshll.u32 %v2047, 16
        %v2223 = vor.u32 %v2220, %v2221
        %v2225 = vshrl.u32 %v2048, 16
        %v2227 = vrot.slane %v2225, 7
        %v2228 = vshll.u32 %v2048, 16
        %v2230 = vor.u32 %v2227, %v2228
        %v2232 = vshrl.u32 %v2049, 16
        %v2234 = vrot.slane %v2232, 7
        %v2235 = vshll.u32 %v2049, 16
        %v2237 = vor.u32 %v2234, %v2235
        %v2239 = vshrl.u32 %v2050, 16
        %v2241 = vrot.slane %v2239, 7
        %v2242 = vshll.u32 %v2050, 16
        %v2244 = vor.u32 %v2241, %v2242
        %v2246 = vshrl.u32 %v2051, 16
        %v2248 = vrot.slane %v2246, 7
        %v2249 = vshll.u32 %v2051, 16
        %v2251 = vor.u32 %v2248, %v2249
        %v2253 = vshrl.u32 %v2052, 16
        %v2255 = vrot.slane %v2253, 7
        %v2256 = vshll.u32 %v2052, 16
        %v2258 = vor.u32 %v2255, %v2256
        %v2260 = vshrl.u32 %v2053, 16
        %v2262 = vrot.slane %v2260, 7
        %v2263 = vshll.u32 %v2053, 16
        %v2265 = vor.u32 %v2262, %v2263
        %v2267 = vshrl.u32 %v2054, 16
        %v2269 = vrot.slane %v2267, 7
        %v2270 = vshll.u32 %v2054, 16
        %v2272 = vor.u32 %v2269, %v2270
        %v2274 = vshrl.u32 %v2055, 16
        %v2276 = vrot.slane %v2274, 7
        %v2277 = vshll.u32 %v2055, 16
        %v2279 = vor.u32 %v2276, %v2277
        %vm2312 = vcmask 1040384
        %vm2313 = vsmask.f32 256
        %vm2314 = vmand %vm2312, %vm2313
        %v2315 = vsel %vm2314, 0, %v2062
        %v2316 = vsel %vm2314, 0, %v2069
        %v2317 = vsel %vm2314, 0, %v2076
        %v2318 = vsel %vm2314, 0, %v2083
        %v2319 = vsel %vm2314, 0, %v2090
        %v2320 = vsel %vm2314, 0, %v2097
        %v2321 = vsel %vm2314, 0, %v2104
        %v2322 = vsel %vm2314, 0, %v2111
        %v2323 = vsel %vm2314, 0, %v2118
        %v2324 = vsel %vm2314, 0, %v2125
        %v2325 = vsel %vm2314, 0, %v2132
        %v2326 = vsel %vm2314, 0, %v2139
        %v2327 = vsel %vm2314, 0, %v2146
        %v2328 = vsel %vm2314, 0, %v2153
        %v2329 = vsel %vm2314, 0, %v2160
        %v2330 = vsel %vm2314, 0, %v2167
        %v2331 = vsel %vm2314, 0, %v2174
        %v2332 = vsel %vm2314, 0, %v2181
        %v2333 = vsel %vm2314, 0, %v2188
        %v2334 = vsel %vm2314, 0, %v2195
        %v2335 = vsel %vm2314, 0, %v2202
        %v2336 = vsel %vm2314, 0, %v2209
        %v2337 = vsel %vm2314, 0, %v2216
        %v2338 = vsel %vm2314, 0, %v2223
        %v2339 = vsel %vm2314, 0, %v2230
        %v2340 = vsel %vm2314, 0, %v2237
        %v2341 = vsel %vm2314, 0, %v2244
        %v2342 = vsel %vm2314, 0, %v2251
        %v2343 = vsel %vm2314, 0, %v2258
        %v2344 = vsel %vm2314, 0, %v2265
        %v2345 = vsel %vm2314, 0, %v2272
        %v2346 = vsel %vm2314, 0, %v2279
        %vm2347 = vcmask 1044480
        %vm2348 = vsmask.f32 4352
        %vm2349 = vmand %vm2347, %vm2348
        %v2350 = vsel %vm2349, %v2315, 0
        %v2351 = vsel %vm2349, %v2316, 0
        %v2352 = vsel %vm2349, %v2317, 0
        %v2353 = vsel %vm2349, %v2318, 0
        %v2354 = vsel %vm2349, %v2319, 0
        %v2355 = vsel %vm2349, %v2320, 0
        %v2356 = vsel %vm2349, %v2321, 0
        %v2357 = vsel %vm2349, %v2322, 0
        %v2358 = vsel %vm2349, %v2323, 0
        %v2359 = vsel %vm2349, %v2324, 0
        %v2360 = vsel %vm2349, %v2325, 0
        %v2361 = vsel %vm2349, %v2326, 0
        %v2362 = vsel %vm2349, %v2327, 0
        %v2363 = vsel %vm2349, %v2328, 0
        %v2364 = vsel %vm2349, %v2329, 0
        %v2365 = vsel %vm2349, %v2330, 0
        %v2366 = vsel %vm2349, %v2331, 0
        %v2367 = vsel %vm2349, %v2332, 0
        %v2368 = vsel %vm2349, %v2333, 0
        %v2369 = vsel %vm2349, %v2334, 0
        %v2370 = vsel %vm2349, %v2335, 0
        %v2371 = vsel %vm2349, %v2336, 0
        %v2372 = vsel %vm2349, %v2337, 0
        %v2373 = vsel %vm2349, %v2338, 0
        %v2374 = vsel %vm2349, %v2339, 0
        %v2375 = vsel %vm2349, %v2340, 0
        %v2376 = vsel %vm2349, %v2341, 0
        %v2377 = vsel %vm2349, %v2342, 0
        %v2378 = vsel %vm2349, %v2343, 0
        %v2379 = vsel %vm2349, %v2344, 0
        %v2380 = vsel %vm2349, %v2345, 0
        %v2381 = vsel %vm2349, %v2346, 0
        %v2414 = vunpack.c.l.b16 %v2350
        %v2415 = vunpack.c.h.b16 %v2350
        %v2416 = vunpack.c.l.b16 %v2351
        %v2417 = vunpack.c.h.b16 %v2351
        %v2418 = vunpack.c.l.b16 %v2352
        %v2419 = vunpack.c.h.b16 %v2352
        %v2420 = vunpack.c.l.b16 %v2353
        %v2421 = vunpack.c.h.b16 %v2353
        %v2422 = vunpack.c.l.b16 %v2354
        %v2423 = vunpack.c.h.b16 %v2354
        %v2424 = vunpack.c.l.b16 %v2355
        %v2425 = vunpack.c.h.b16 %v2355
        %v2426 = vunpack.c.l.b16 %v2356
        %v2427 = vunpack.c.h.b16 %v2356
        %v2428 = vunpack.c.l.b16 %v2357
        %v2429 = vunpack.c.h.b16 %v2357
        %v2430 = vunpack.c.l.b16 %v2358
        %v2431 = vunpack.c.h.b16 %v2358
        %v2432 = vunpack.c.l.b16 %v2359
        %v2433 = vunpack.c.h.b16 %v2359
        %v2434 = vunpack.c.l.b16 %v2360
        %v2435 = vunpack.c.h.b16 %v2360
        %v2436 = vunpack.c.l.b16 %v2361
        %v2437 = vunpack.c.h.b16 %v2361
        %v2438 = vunpack.c.l.b16 %v2362
        %v2439 = vunpack.c.h.b16 %v2362
        %v2440 = vunpack.c.l.b16 %v2363
        %v2441 = vunpack.c.h.b16 %v2363
        %v2442 = vunpack.c.l.b16 %v2364
        %v2443 = vunpack.c.h.b16 %v2364
        %v2444 = vunpack.c.l.b16 %v2365
        %v2445 = vunpack.c.h.b16 %v2365
        %v2446 = vunpack.c.l.b16 %v2366
        %v2447 = vunpack.c.h.b16 %v2366
        %v2448 = vunpack.c.l.b16 %v2367
        %v2449 = vunpack.c.h.b16 %v2367
        %v2450 = vunpack.c.l.b16 %v2368
        %v2451 = vunpack.c.h.b16 %v2368
        %v2452 = vunpack.c.l.b16 %v2369
        %v2453 = vunpack.c.h.b16 %v2369
        %v2454 = vunpack.c.l.b16 %v2370
        %v2455 = vunpack.c.h.b16 %v2370
        %v2456 = vunpack.c.l.b16 %v2371
        %v2457 = vunpack.c.h.b16 %v2371
        %v2458 = vunpack.c.l.b16 %v2372
        %v2459 = vunpack.c.h.b16 %v2372
        %v2460 = vunpack.c.l.b16 %v2373
        %v2461 = vunpack.c.h.b16 %v2373
        %v2462 = vunpack.c.l.b16 %v2374
        %v2463 = vunpack.c.h.b16 %v2374
        %v2464 = vunpack.c.l.b16 %v2375
        %v2465 = vunpack.c.h.b16 %v2375
        %v2466 = vunpack.c.l.b16 %v2376
        %v2467 = vunpack.c.h.b16 %v2376
        %v2468 = vunpack.c.l.b16 %v2377
        %v2469 = vunpack.c.h.b16 %v2377
        %v2470 = vunpack.c.l.b16 %v2378
        %v2471 = vunpack.c.h.b16 %v2378
        %v2472 = vunpack.c.l.b16 %v2379
        %v2473 = vunpack.c.h.b16 %v2379
        %v2474 = vunpack.c.l.b16 %v2380
        %v2475 = vunpack.c.h.b16 %v2380
        %v2476 = vunpack.c.l.b16 %v2381
        %v2477 = vunpack.c.h.b16 %v2381
        %v2478 = vpack.c.b16 %v2414, %v2414
        %v2479 = vpack.c.b16 %v2415, %v2415
        %v2480 = vpack.c.b16 %v2416, %v2416
        %v2481 = vpack.c.b16 %v2417, %v2417
        %v2482 = vpack.c.b16 %v2418, %v2418
        %v2483 = vpack.c.b16 %v2419, %v2419
        %v2484 = vpack.c.b16 %v2420, %v2420
        %v2485 = vpack.c.b16 %v2421, %v2421
        %v2486 = vpack.c.b16 %v2422, %v2422
        %v2487 = vpack.c.b16 %v2423, %v2423
        %v2488 = vpack.c.b16 %v2424, %v2424
        %v2489 = vpack.c.b16 %v2425, %v2425
        %v2490 = vpack.c.b16 %v2426, %v2426
        %v2491 = vpack.c.b16 %v2427, %v2427
        %v2492 = vpack.c.b16 %v2428, %v2428
        %v2493 = vpack.c.b16 %v2429, %v2429
        %v2494 = vpack.c.b16 %v2430, %v2430
        %v2495 = vpack.c.b16 %v2431, %v2431
        %v2496 = vpack.c.b16 %v2432, %v2432
        %v2497 = vpack.c.b16 %v2433, %v2433
        %v2498 = vpack.c.b16 %v2434, %v2434
        %v2499 = vpack.c.b16 %v2435, %v2435
        %v2500 = vpack.c.b16 %v2436, %v2436
        %v2501 = vpack.c.b16 %v2437, %v2437
        %v2502 = vpack.c.b16 %v2438, %v2438
        %v2503 = vpack.c.b16 %v2439, %v2439
        %v2504 = vpack.c.b16 %v2440, %v2440
        %v2505 = vpack.c.b16 %v2441, %v2441
        %v2506 = vpack.c.b16 %v2442, %v2442
        %v2507 = vpack.c.b16 %v2443, %v2443
        %v2508 = vpack.c.b16 %v2444, %v2444
        %v2509 = vpack.c.b16 %v2445, %v2445
        %v2510 = vpack.c.b16 %v2446, %v2446
        %v2511 = vpack.c.b16 %v2447, %v2447
        %v2512 = vpack.c.b16 %v2448, %v2448
        %v2513 = vpack.c.b16 %v2449, %v2449
        %v2514 = vpack.c.b16 %v2450, %v2450
        %v2515 = vpack.c.b16 %v2451, %v2451
        %v2516 = vpack.c.b16 %v2452, %v2452
        %v2517 = vpack.c.b16 %v2453, %v2453
        %v2518 = vpack.c.b16 %v2454, %v2454
        %v2519 = vpack.c.b16 %v2455, %v2455
        %v2520 = vpack.c.b16 %v2456, %v2456
        %v2521 = vpack.c.b16 %v2457, %v2457
        %v2522 = vpack.c.b16 %v2458, %v2458
        %v2523 = vpack.c.b16 %v2459, %v2459
        %v2524 = vpack.c.b16 %v2460, %v2460
        %v2525 = vpack.c.b16 %v2461, %v2461
        %v2526 = vpack.c.b16 %v2462, %v2462
        %v2527 = vpack.c.b16 %v2463, %v2463
        %v2528 = vpack.c.b16 %v2464, %v2464
        %v2529 = vpack.c.b16 %v2465, %v2465
        %v2530 = vpack.c.b16 %v2466, %v2466
        %v2531 = vpack.c.b16 %v2467, %v2467
        %v2532 = vpack.c.b16 %v2468, %v2468
        %v2533 = vpack.c.b16 %v2469, %v2469
        %v2534 = vpack.c.b16 %v2470, %v2470
        %v2535 = vpack.c.b16 %v2471, %v2471
        %v2536 = vpack.c.b16 %v2472, %v2472
        %v2537 = vpack.c.b16 %v2473, %v2473
        %v2538 = vpack.c.b16 %v2474, %v2474
        %v2539 = vpack.c.b16 %v2475, %v2475
        %v2540 = vpack.c.b16 %v2476, %v2476
        %v2541 = vpack.c.b16 %v2477, %v2477
        %s2606 = scalar_lea.vmem [#allocation2], 8
        %2607 = vst [vmem:[%s2606] sm:$0xf] %v2478
        %2608 = vst [vmem:[%s2606 + $0x4] sm:$0x1] %v2479
        %2609 = vst [vmem:[%s2606 + $0x8] sm:$0xf] %v2480
        %2610 = vst [vmem:[%s2606 + $0xc] sm:$0x1] %v2481
        %2611 = vst [vmem:[%s2606 + $0x10] sm:$0xf] %v2482
        %2612 = vst [vmem:[%s2606 + $0x14] sm:$0x1] %v2483
        %2613 = vst [vmem:[%s2606 + $0x18] sm:$0xf] %v2484
        %2614 = vst [vmem:[%s2606 + $0x1c] sm:$0x1] %v2485
        %2615 = vst [vmem:[%s2606 + $0x20] sm:$0xf] %v2486
        %2616 = vst [vmem:[%s2606 + $0x24] sm:$0x1] %v2487
        %2617 = vst [vmem:[%s2606 + $0x28] sm:$0xf] %v2488
        %2618 = vst [vmem:[%s2606 + $0x2c] sm:$0x1] %v2489
        %2619 = vst [vmem:[%s2606 + $0x30] sm:$0xf] %v2490
        %2620 = vst [vmem:[%s2606 + $0x34] sm:$0x1] %v2491
        %2621 = vst [vmem:[%s2606 + $0x38] sm:$0xf] %v2492
        %2622 = vst [vmem:[%s2606 + $0x3c] sm:$0x1] %v2493
        %2623 = vst [vmem:[%s2606 + $0x50] sm:$0xf] %v2494
        %2624 = vst [vmem:[%s2606 + $0x54] sm:$0x1] %v2495
        %2625 = vst [vmem:[%s2606 + $0x58] sm:$0xf] %v2496
        %2626 = vst [vmem:[%s2606 + $0x5c] sm:$0x1] %v2497
        %2627 = vst [vmem:[%s2606 + $0x60] sm:$0xf] %v2498
        %2628 = vst [vmem:[%s2606 + $0x64] sm:$0x1] %v2499
        %2629 = vst [vmem:[%s2606 + $0x68] sm:$0xf] %v2500
        %2630 = vst [vmem:[%s2606 + $0x6c] sm:$0x1] %v2501
        %2631 = vst [vmem:[%s2606 + $0x70] sm:$0xf] %v2502
        %2632 = vst [vmem:[%s2606 + $0x74] sm:$0x1] %v2503
        %2633 = vst [vmem:[%s2606 + $0x78] sm:$0xf] %v2504
        %2634 = vst [vmem:[%s2606 + $0x7c] sm:$0x1] %v2505
        %2635 = vst [vmem:[%s2606 + $0x80] sm:$0xf] %v2506
        %2636 = vst [vmem:[%s2606 + $0x84] sm:$0x1] %v2507
        %2637 = vst [vmem:[%s2606 + $0x88] sm:$0xf] %v2508
        %2638 = vst [vmem:[%s2606 + $0x8c] sm:$0x1] %v2509
        %2639 = vst [vmem:[%s2606 + $0xa0] sm:$0xf] %v2510
        %2640 = vst [vmem:[%s2606 + $0xa4] sm:$0x1] %v2511
        %2641 = vst [vmem:[%s2606 + $0xa8] sm:$0xf] %v2512
        %2642 = vst [vmem:[%s2606 + $0xac] sm:$0x1] %v2513
        %2643 = vst [vmem:[%s2606 + $0xb0] sm:$0xf] %v2514
        %2644 = vst [vmem:[%s2606 + $0xb4] sm:$0x1] %v2515
        %2645 = vst [vmem:[%s2606 + $0xb8] sm:$0xf] %v2516
        %2646 = vst [vmem:[%s2606 + $0xbc] sm:$0x1] %v2517
        %2647 = vst [vmem:[%s2606 + $0xc0] sm:$0xf] %v2518
        %2648 = vst [vmem:[%s2606 + $0xc4] sm:$0x1] %v2519
        %2649 = vst [vmem:[%s2606 + $0xc8] sm:$0xf] %v2520
        %2650 = vst [vmem:[%s2606 + $0xcc] sm:$0x1] %v2521
        %2651 = vst [vmem:[%s2606 + $0xd0] sm:$0xf] %v2522
        %2652 = vst [vmem:[%s2606 + $0xd4] sm:$0x1] %v2523
        %2653 = vst [vmem:[%s2606 + $0xd8] sm:$0xf] %v2524
        %2654 = vst [vmem:[%s2606 + $0xdc] sm:$0x1] %v2525
        %2655 = vst [vmem:[%s2606 + $0xf0] sm:$0xf] %v2526
        %2656 = vst [vmem:[%s2606 + $0xf4] sm:$0x1] %v2527
        %2657 = vst [vmem:[%s2606 + $0xf8] sm:$0xf] %v2528
        %2658 = vst [vmem:[%s2606 + $0xfc] sm:$0x1] %v2529
        %2659 = vst [vmem:[%s2606 + $0x100] sm:$0xf] %v2530
        %2660 = vst [vmem:[%s2606 + $0x104] sm:$0x1] %v2531
        %2661 = vst [vmem:[%s2606 + $0x108] sm:$0xf] %v2532
        %2662 = vst [vmem:[%s2606 + $0x10c] sm:$0x1] %v2533
        %2663 = vst [vmem:[%s2606 + $0x110] sm:$0xf] %v2534
        %2664 = vst [vmem:[%s2606 + $0x114] sm:$0x1] %v2535
        %2665 = vst [vmem:[%s2606 + $0x118] sm:$0xf] %v2536
        %2666 = vst [vmem:[%s2606 + $0x11c] sm:$0x1] %v2537
        %2667 = vst [vmem:[%s2606 + $0x120] sm:$0xf] %v2538
        %2668 = vst [vmem:[%s2606 + $0x124] sm:$0x1] %v2539
        %2669 = vst [vmem:[%s2606 + $0x128] sm:$0xf] %v2540
        %2670 = vst [vmem:[%s2606 + $0x12c] sm:$0x1] %v2541
        %v2671 = vld [vmem:[#allocation2] sm:$0xf]
        %v2672 = vld [vmem:[#allocation2 + $0x8] sm:$0xf]
        %v2673 = vld [vmem:[#allocation2 + $0x10] sm:$0xf]
        %v2674 = vld [vmem:[#allocation2 + $0x18] sm:$0xf]
        %v2675 = vld [vmem:[#allocation2 + $0x20] sm:$0xf]
        %v2676 = vld [vmem:[#allocation2 + $0x28] sm:$0xf]
        %v2677 = vld [vmem:[#allocation2 + $0x30] sm:$0xf]
        %v2678 = vld [vmem:[#allocation2 + $0x38] sm:$0xf]
        %v2679 = vld [vmem:[#allocation2 + $0x50] sm:$0xf]
        %v2680 = vld [vmem:[#allocation2 + $0x58] sm:$0xf]
        %v2681 = vld [vmem:[#allocation2 + $0x60] sm:$0xf]
        %v2682 = vld [vmem:[#allocation2 + $0x68] sm:$0xf]
        %v2683 = vld [vmem:[#allocation2 + $0x70] sm:$0xf]
        %v2684 = vld [vmem:[#allocation2 + $0x78] sm:$0xf]
        %v2685 = vld [vmem:[#allocation2 + $0x80] sm:$0xf]
        %v2686 = vld [vmem:[#allocation2 + $0x88] sm:$0xf]
        %v2687 = vld [vmem:[#allocation2 + $0xa0] sm:$0xf]
        %v2688 = vld [vmem:[#allocation2 + $0xa8] sm:$0xf]
        %v2689 = vld [vmem:[#allocation2 + $0xb0] sm:$0xf]
        %v2690 = vld [vmem:[#allocation2 + $0xb8] sm:$0xf]
        %v2691 = vld [vmem:[#allocation2 + $0xc0] sm:$0xf]
        %v2692 = vld [vmem:[#allocation2 + $0xc8] sm:$0xf]
        %v2693 = vld [vmem:[#allocation2 + $0xd0] sm:$0xf]
        %v2694 = vld [vmem:[#allocation2 + $0xd8] sm:$0xf]
        %v2695 = vld [vmem:[#allocation2 + $0xf0] sm:$0xf]
        %v2696 = vld [vmem:[#allocation2 + $0xf8] sm:$0xf]
        %v2697 = vld [vmem:[#allocation2 + $0x100] sm:$0xf]
        %v2698 = vld [vmem:[#allocation2 + $0x108] sm:$0xf]
        %v2699 = vld [vmem:[#allocation2 + $0x110] sm:$0xf]
        %v2700 = vld [vmem:[#allocation2 + $0x118] sm:$0xf]
        %v2701 = vld [vmem:[#allocation2 + $0x120] sm:$0xf]
        %v2702 = vld [vmem:[#allocation2 + $0x128] sm:$0xf]
        %v2703 = vld [vmem:[#allocation2 + $0x4] sm:$0x1]
        %v2704 = vld [vmem:[#allocation2 + $0xc] sm:$0x1]
        %v2705 = vld [vmem:[#allocation2 + $0x14] sm:$0x1]
        %v2706 = vld [vmem:[#allocation2 + $0x1c] sm:$0x1]
        %v2707 = vld [vmem:[#allocation2 + $0x24] sm:$0x1]
        %v2708 = vld [vmem:[#allocation2 + $0x2c] sm:$0x1]
        %v2709 = vld [vmem:[#allocation2 + $0x34] sm:$0x1]
        %v2710 = vld [vmem:[#allocation2 + $0x3c] sm:$0x1]
        %v2711 = vld [vmem:[#allocation2 + $0x54] sm:$0x1]
        %v2712 = vld [vmem:[#allocation2 + $0x5c] sm:$0x1]
        %v2713 = vld [vmem:[#allocation2 + $0x64] sm:$0x1]
        %v2714 = vld [vmem:[#allocation2 + $0x6c] sm:$0x1]
        %v2715 = vld [vmem:[#allocation2 + $0x74] sm:$0x1]
        %v2716 = vld [vmem:[#allocation2 + $0x7c] sm:$0x1]
        %v2717 = vld [vmem:[#allocation2 + $0x84] sm:$0x1]
        %v2718 = vld [vmem:[#allocation2 + $0x8c] sm:$0x1]
        %v2719 = vld [vmem:[#allocation2 + $0xa4] sm:$0x1]
        %v2720 = vld [vmem:[#allocation2 + $0xac] sm:$0x1]
        %v2721 = vld [vmem:[#allocation2 + $0xb4] sm:$0x1]
        %v2722 = vld [vmem:[#allocation2 + $0xbc] sm:$0x1]
        %v2723 = vld [vmem:[#allocation2 + $0xc4] sm:$0x1]
        %v2724 = vld [vmem:[#allocation2 + $0xcc] sm:$0x1]
        %v2725 = vld [vmem:[#allocation2 + $0xd4] sm:$0x1]
        %v2726 = vld [vmem:[#allocation2 + $0xdc] sm:$0x1]
        %v2727 = vld [vmem:[#allocation2 + $0xf4] sm:$0x1]
        %v2728 = vld [vmem:[#allocation2 + $0xfc] sm:$0x1]
        %v2729 = vld [vmem:[#allocation2 + $0x104] sm:$0x1]
        %v2730 = vld [vmem:[#allocation2 + $0x10c] sm:$0x1]
        %v2731 = vld [vmem:[#allocation2 + $0x114] sm:$0x1]
        %v2732 = vld [vmem:[#allocation2 + $0x11c] sm:$0x1]
        %v2733 = vld [vmem:[#allocation2 + $0x124] sm:$0x1]
        %v2734 = vld [vmem:[#allocation2 + $0x12c] sm:$0x1]
        %vm2735 = vsmask.f32 3328
        %vm2736 = vsmask.f32 7440
        %vm2737 = vmor %vm2735, %vm2736
        %v2739 = vshrl.u32 %v2671, 16
        %v2741 = vrot.slane %v2739, 4
        %v2742 = vshll.u32 %v2671, 16
        %v2744 = vrot.slane %v2742, 5
        %v2745 = vor.u32 %v2741, %v2744
        %v2746 = vrot.slane %v2745, 4
        %v2748 = vshll.u32 %v2703, 16
        %v2750 = vrot.slane %v2748, 5
        %v2751 = vsel %vm2737, %v2746, %v2750
        %v2753 = vshrl.u32 %v2672, 16
        %v2755 = vrot.slane %v2753, 4
        %v2756 = vshll.u32 %v2672, 16
        %v2758 = vrot.slane %v2756, 5
        %v2759 = vor.u32 %v2755, %v2758
        %v2760 = vrot.slane %v2759, 4
        %v2762 = vshll.u32 %v2704, 16
        %v2764 = vrot.slane %v2762, 5
        %v2765 = vsel %vm2737, %v2760, %v2764
        %v2767 = vshrl.u32 %v2673, 16
        %v2769 = vrot.slane %v2767, 4
        %v2770 = vshll.u32 %v2673, 16
        %v2772 = vrot.slane %v2770, 5
        %v2773 = vor.u32 %v2769, %v2772
        %v2774 = vrot.slane %v2773, 4
        %v2776 = vshll.u32 %v2705, 16
        %v2778 = vrot.slane %v2776, 5
        %v2779 = vsel %vm2737, %v2774, %v2778
        %v2781 = vshrl.u32 %v2674, 16
        %v2783 = vrot.slane %v2781, 4
        %v2784 = vshll.u32 %v2674, 16
        %v2786 = vrot.slane %v2784, 5
        %v2787 = vor.u32 %v2783, %v2786
        %v2788 = vrot.slane %v2787, 4
        %v2790 = vshll.u32 %v2706, 16
        %v2792 = vrot.slane %v2790, 5
        %v2793 = vsel %vm2737, %v2788, %v2792
        %v2795 = vshrl.u32 %v2675, 16
        %v2797 = vrot.slane %v2795, 4
        %v2798 = vshll.u32 %v2675, 16
        %v2800 = vrot.slane %v2798, 5
        %v2801 = vor.u32 %v2797, %v2800
        %v2802 = vrot.slane %v2801, 4
        %v2804 = vshll.u32 %v2707, 16
        %v2806 = vrot.slane %v2804, 5
        %v2807 = vsel %vm2737, %v2802, %v2806
        %v2809 = vshrl.u32 %v2676, 16
        %v2811 = vrot.slane %v2809, 4
        %v2812 = vshll.u32 %v2676, 16
        %v2814 = vrot.slane %v2812, 5
        %v2815 = vor.u32 %v2811, %v2814
        %v2816 = vrot.slane %v2815, 4
        %v2818 = vshll.u32 %v2708, 16
        %v2820 = vrot.slane %v2818, 5
        %v2821 = vsel %vm2737, %v2816, %v2820
        %v2823 = vshrl.u32 %v2677, 16
        %v2825 = vrot.slane %v2823, 4
        %v2826 = vshll.u32 %v2677, 16
        %v2828 = vrot.slane %v2826, 5
        %v2829 = vor.u32 %v2825, %v2828
        %v2830 = vrot.slane %v2829, 4
        %v2832 = vshll.u32 %v2709, 16
        %v2834 = vrot.slane %v2832, 5
        %v2835 = vsel %vm2737, %v2830, %v2834
        %v2837 = vshrl.u32 %v2678, 16
        %v2839 = vrot.slane %v2837, 4
        %v2840 = vshll.u32 %v2678, 16
        %v2842 = vrot.slane %v2840, 5
        %v2843 = vor.u32 %v2839, %v2842
        %v2844 = vrot.slane %v2843, 4
        %v2846 = vshll.u32 %v2710, 16
        %v2848 = vrot.slane %v2846, 5
        %v2849 = vsel %vm2737, %v2844, %v2848
        %v2851 = vshrl.u32 %v2679, 16
        %v2853 = vrot.slane %v2851, 4
        %v2854 = vshll.u32 %v2679, 16
        %v2856 = vrot.slane %v2854, 5
        %v2857 = vor.u32 %v2853, %v2856
        %v2858 = vrot.slane %v2857, 4
        %v2860 = vshll.u32 %v2711, 16
        %v2862 = vrot.slane %v2860, 5
        %v2863 = vsel %vm2737, %v2858, %v2862
        %v2865 = vshrl.u32 %v2680, 16
        %v2867 = vrot.slane %v2865, 4
        %v2868 = vshll.u32 %v2680, 16
        %v2870 = vrot.slane %v2868, 5
        %v2871 = vor.u32 %v2867, %v2870
        %v2872 = vrot.slane %v2871, 4
        %v2874 = vshll.u32 %v2712, 16
        %v2876 = vrot.slane %v2874, 5
        %v2877 = vsel %vm2737, %v2872, %v2876
        %v2879 = vshrl.u32 %v2681, 16
        %v2881 = vrot.slane %v2879, 4
        %v2882 = vshll.u32 %v2681, 16
        %v2884 = vrot.slane %v2882, 5
        %v2885 = vor.u32 %v2881, %v2884
        %v2886 = vrot.slane %v2885, 4
        %v2888 = vshll.u32 %v2713, 16
        %v2890 = vrot.slane %v2888, 5
        %v2891 = vsel %vm2737, %v2886, %v2890
        %v2893 = vshrl.u32 %v2682, 16
        %v2895 = vrot.slane %v2893, 4
        %v2896 = vshll.u32 %v2682, 16
        %v2898 = vrot.slane %v2896, 5
        %v2899 = vor.u32 %v2895, %v2898
        %v2900 = vrot.slane %v2899, 4
        %v2902 = vshll.u32 %v2714, 16
        %v2904 = vrot.slane %v2902, 5
        %v2905 = vsel %vm2737, %v2900, %v2904
        %v2907 = vshrl.u32 %v2683, 16
        %v2909 = vrot.slane %v2907, 4
        %v2910 = vshll.u32 %v2683, 16
        %v2912 = vrot.slane %v2910, 5
        %v2913 = vor.u32 %v2909, %v2912
        %v2914 = vrot.slane %v2913, 4
        %v2916 = vshll.u32 %v2715, 16
        %v2918 = vrot.slane %v2916, 5
        %v2919 = vsel %vm2737, %v2914, %v2918
        %v2921 = vshrl.u32 %v2684, 16
        %v2923 = vrot.slane %v2921, 4
        %v2924 = vshll.u32 %v2684, 16
        %v2926 = vrot.slane %v2924, 5
        %v2927 = vor.u32 %v2923, %v2926
        %v2928 = vrot.slane %v2927, 4
        %v2930 = vshll.u32 %v2716, 16
        %v2932 = vrot.slane %v2930, 5
        %v2933 = vsel %vm2737, %v2928, %v2932
        %v2935 = vshrl.u32 %v2685, 16
        %v2937 = vrot.slane %v2935, 4
        %v2938 = vshll.u32 %v2685, 16
        %v2940 = vrot.slane %v2938, 5
        %v2941 = vor.u32 %v2937, %v2940
        %v2942 = vrot.slane %v2941, 4
        %v2944 = vshll.u32 %v2717, 16
        %v2946 = vrot.slane %v2944, 5
        %v2947 = vsel %vm2737, %v2942, %v2946
        %v2949 = vshrl.u32 %v2686, 16
        %v2951 = vrot.slane %v2949, 4
        %v2952 = vshll.u32 %v2686, 16
        %v2954 = vrot.slane %v2952, 5
        %v2955 = vor.u32 %v2951, %v2954
        %v2956 = vrot.slane %v2955, 4
        %v2958 = vshll.u32 %v2718, 16
        %v2960 = vrot.slane %v2958, 5
        %v2961 = vsel %vm2737, %v2956, %v2960
        %v2963 = vshrl.u32 %v2687, 16
        %v2965 = vrot.slane %v2963, 4
        %v2966 = vshll.u32 %v2687, 16
        %v2968 = vrot.slane %v2966, 5
        %v2969 = vor.u32 %v2965, %v2968
        %v2970 = vrot.slane %v2969, 4
        %v2972 = vshll.u32 %v2719, 16
        %v2974 = vrot.slane %v2972, 5
        %v2975 = vsel %vm2737, %v2970, %v2974
        %v2977 = vshrl.u32 %v2688, 16
        %v2979 = vrot.slane %v2977, 4
        %v2980 = vshll.u32 %v2688, 16
        %v2982 = vrot.slane %v2980, 5
        %v2983 = vor.u32 %v2979, %v2982
        %v2984 = vrot.slane %v2983, 4
        %v2986 = vshll.u32 %v2720, 16
        %v2988 = vrot.slane %v2986, 5
        %v2989 = vsel %vm2737, %v2984, %v2988
        %v2991 = vshrl.u32 %v2689, 16
        %v2993 = vrot.slane %v2991, 4
        %v2994 = vshll.u32 %v2689, 16
        %v2996 = vrot.slane %v2994, 5
        %v2997 = vor.u32 %v2993, %v2996
        %v2998 = vrot.slane %v2997, 4
        %v3000 = vshll.u32 %v2721, 16
        %v3002 = vrot.slane %v3000, 5
        %v3003 = vsel %vm2737, %v2998, %v3002
        %v3005 = vshrl.u32 %v2690, 16
        %v3007 = vrot.slane %v3005, 4
        %v3008 = vshll.u32 %v2690, 16
        %v3010 = vrot.slane %v3008, 5
        %v3011 = vor.u32 %v3007, %v3010
        %v3012 = vrot.slane %v3011, 4
        %v3014 = vshll.u32 %v2722, 16
        %v3016 = vrot.slane %v3014, 5
        %v3017 = vsel %vm2737, %v3012, %v3016
        %v3019 = vshrl.u32 %v2691, 16
        %v3021 = vrot.slane %v3019, 4
        %v3022 = vshll.u32 %v2691, 16
        %v3024 = vrot.slane %v3022, 5
        %v3025 = vor.u32 %v3021, %v3024
        %v3026 = vrot.slane %v3025, 4
        %v3028 = vshll.u32 %v2723, 16
        %v3030 = vrot.slane %v3028, 5
        %v3031 = vsel %vm2737, %v3026, %v3030
        %v3033 = vshrl.u32 %v2692, 16
        %v3035 = vrot.slane %v3033, 4
        %v3036 = vshll.u32 %v2692, 16
        %v3038 = vrot.slane %v3036, 5
        %v3039 = vor.u32 %v3035, %v3038
        %v3040 = vrot.slane %v3039, 4
        %v3042 = vshll.u32 %v2724, 16
        %v3044 = vrot.slane %v3042, 5
        %v3045 = vsel %vm2737, %v3040, %v3044
        %v3047 = vshrl.u32 %v2693, 16
        %v3049 = vrot.slane %v3047, 4
        %v3050 = vshll.u32 %v2693, 16
        %v3052 = vrot.slane %v3050, 5
        %v3053 = vor.u32 %v3049, %v3052
        %v3054 = vrot.slane %v3053, 4
        %v3056 = vshll.u32 %v2725, 16
        %v3058 = vrot.slane %v3056, 5
        %v3059 = vsel %vm2737, %v3054, %v3058
        %v3061 = vshrl.u32 %v2694, 16
        %v3063 = vrot.slane %v3061, 4
        %v3064 = vshll.u32 %v2694, 16
        %v3066 = vrot.slane %v3064, 5
        %v3067 = vor.u32 %v3063, %v3066
        %v3068 = vrot.slane %v3067, 4
        %v3070 = vshll.u32 %v2726, 16
        %v3072 = vrot.slane %v3070, 5
        %v3073 = vsel %vm2737, %v3068, %v3072
        %v3075 = vshrl.u32 %v2695, 16
        %v3077 = vrot.slane %v3075, 4
        %v3078 = vshll.u32 %v2695, 16
        %v3080 = vrot.slane %v3078, 5
        %v3081 = vor.u32 %v3077, %v3080
        %v3082 = vrot.slane %v3081, 4
        %v3084 = vshll.u32 %v2727, 16
        %v3086 = vrot.slane %v3084, 5
        %v3087 = vsel %vm2737, %v3082, %v3086
        %v3089 = vshrl.u32 %v2696, 16
        %v3091 = vrot.slane %v3089, 4
        %v3092 = vshll.u32 %v2696, 16
        %v3094 = vrot.slane %v3092, 5
        %v3095 = vor.u32 %v3091, %v3094
        %v3096 = vrot.slane %v3095, 4
        %v3098 = vshll.u32 %v2728, 16
        %v3100 = vrot.slane %v3098, 5
        %v3101 = vsel %vm2737, %v3096, %v3100
        %v3103 = vshrl.u32 %v2697, 16
        %v3105 = vrot.slane %v3103, 4
        %v3106 = vshll.u32 %v2697, 16
        %v3108 = vrot.slane %v3106, 5
        %v3109 = vor.u32 %v3105, %v3108
        %v3110 = vrot.slane %v3109, 4
        %v3112 = vshll.u32 %v2729, 16
        %v3114 = vrot.slane %v3112, 5
        %v3115 = vsel %vm2737, %v3110, %v3114
        %v3117 = vshrl.u32 %v2698, 16
        %v3119 = vrot.slane %v3117, 4
        %v3120 = vshll.u32 %v2698, 16
        %v3122 = vrot.slane %v3120, 5
        %v3123 = vor.u32 %v3119, %v3122
        %v3124 = vrot.slane %v3123, 4
        %v3126 = vshll.u32 %v2730, 16
        %v3128 = vrot.slane %v3126, 5
        %v3129 = vsel %vm2737, %v3124, %v3128
        %v3131 = vshrl.u32 %v2699, 16
        %v3133 = vrot.slane %v3131, 4
        %v3134 = vshll.u32 %v2699, 16
        %v3136 = vrot.slane %v3134, 5
        %v3137 = vor.u32 %v3133, %v3136
        %v3138 = vrot.slane %v3137, 4
        %v3140 = vshll.u32 %v2731, 16
        %v3142 = vrot.slane %v3140, 5
        %v3143 = vsel %vm2737, %v3138, %v3142
        %v3145 = vshrl.u32 %v2700, 16
        %v3147 = vrot.slane %v3145, 4
        %v3148 = vshll.u32 %v2700, 16
        %v3150 = vrot.slane %v3148, 5
        %v3151 = vor.u32 %v3147, %v3150
        %v3152 = vrot.slane %v3151, 4
        %v3154 = vshll.u32 %v2732, 16
        %v3156 = vrot.slane %v3154, 5
        %v3157 = vsel %vm2737, %v3152, %v3156
        %v3159 = vshrl.u32 %v2701, 16
        %v3161 = vrot.slane %v3159, 4
        %v3162 = vshll.u32 %v2701, 16
        %v3164 = vrot.slane %v3162, 5
        %v3165 = vor.u32 %v3161, %v3164
        %v3166 = vrot.slane %v3165, 4
        %v3168 = vshll.u32 %v2733, 16
        %v3170 = vrot.slane %v3168, 5
        %v3171 = vsel %vm2737, %v3166, %v3170
        %v3173 = vshrl.u32 %v2702, 16
        %v3175 = vrot.slane %v3173, 4
        %v3176 = vshll.u32 %v2702, 16
        %v3178 = vrot.slane %v3176, 5
        %v3179 = vor.u32 %v3175, %v3178
        %v3180 = vrot.slane %v3179, 4
        %v3182 = vshll.u32 %v2734, 16
        %v3184 = vrot.slane %v3182, 5
        %v3185 = vsel %vm2737, %v3180, %v3184
        %v3186 = vld [vmem:[#allocation2] sm:$0xe]
        %v3187 = vld [vmem:[#allocation2 + $0x8] sm:$0xe]
        %v3188 = vld [vmem:[#allocation2 + $0x10] sm:$0xe]
        %v3189 = vld [vmem:[#allocation2 + $0x18] sm:$0xe]
        %v3190 = vld [vmem:[#allocation2 + $0x20] sm:$0xe]
        %v3191 = vld [vmem:[#allocation2 + $0x28] sm:$0xe]
        %v3192 = vld [vmem:[#allocation2 + $0x30] sm:$0xe]
        %v3193 = vld [vmem:[#allocation2 + $0x38] sm:$0xe]
        %v3194 = vld [vmem:[#allocation2 + $0x50] sm:$0xe]
        %v3195 = vld [vmem:[#allocation2 + $0x58] sm:$0xe]
        %v3196 = vld [vmem:[#allocation2 + $0x60] sm:$0xe]
        %v3197 = vld [vmem:[#allocation2 + $0x68] sm:$0xe]
        %v3198 = vld [vmem:[#allocation2 + $0x70] sm:$0xe]
        %v3199 = vld [vmem:[#allocation2 + $0x78] sm:$0xe]
        %v3200 = vld [vmem:[#allocation2 + $0x80] sm:$0xe]
        %v3201 = vld [vmem:[#allocation2 + $0x88] sm:$0xe]
        %v3202 = vld [vmem:[#allocation2 + $0xa0] sm:$0xe]
        %v3203 = vld [vmem:[#allocation2 + $0xa8] sm:$0xe]
        %v3204 = vld [vmem:[#allocation2 + $0xb0] sm:$0xe]
        %v3205 = vld [vmem:[#allocation2 + $0xb8] sm:$0xe]
        %v3206 = vld [vmem:[#allocation2 + $0xc0] sm:$0xe]
        %v3207 = vld [vmem:[#allocation2 + $0xc8] sm:$0xe]
        %v3208 = vld [vmem:[#allocation2 + $0xd0] sm:$0xe]
        %v3209 = vld [vmem:[#allocation2 + $0xd8] sm:$0xe]
        %v3210 = vld [vmem:[#allocation2 + $0xf0] sm:$0xe]
        %v3211 = vld [vmem:[#allocation2 + $0xf8] sm:$0xe]
        %v3212 = vld [vmem:[#allocation2 + $0x100] sm:$0xe]
        %v3213 = vld [vmem:[#allocation2 + $0x108] sm:$0xe]
        %v3214 = vld [vmem:[#allocation2 + $0x110] sm:$0xe]
        %v3215 = vld [vmem:[#allocation2 + $0x118] sm:$0xe]
        %v3216 = vld [vmem:[#allocation2 + $0x120] sm:$0xe]
        %v3217 = vld [vmem:[#allocation2 + $0x128] sm:$0xe]
        %vm3282 = vcmask 1042432
        %vm3283 = vcmask 1046532
        %vm3284 = vmor %vm3282, %vm3283
        %v3285 = vrot.slane %v3186, 5
        %v3286 = vrot.slane %v3285, 4
        %v3287 = vrot.slane %v2703, 5
        %v3288 = vsel %vm3284, %v3286, %v3287
        %v3289 = vrot.slane %v3187, 5
        %v3290 = vrot.slane %v3289, 4
        %v3291 = vrot.slane %v2704, 5
        %v3292 = vsel %vm3284, %v3290, %v3291
        %v3293 = vrot.slane %v3188, 5
        %v3294 = vrot.slane %v3293, 4
        %v3295 = vrot.slane %v2705, 5
        %v3296 = vsel %vm3284, %v3294, %v3295
        %v3297 = vrot.slane %v3189, 5
        %v3298 = vrot.slane %v3297, 4
        %v3299 = vrot.slane %v2706, 5
        %v3300 = vsel %vm3284, %v3298, %v3299
        %v3301 = vrot.slane %v3190, 5
        %v3302 = vrot.slane %v3301, 4
        %v3303 = vrot.slane %v2707, 5
        %v3304 = vsel %vm3284, %v3302, %v3303
        %v3305 = vrot.slane %v3191, 5
        %v3306 = vrot.slane %v3305, 4
        %v3307 = vrot.slane %v2708, 5
        %v3308 = vsel %vm3284, %v3306, %v3307
        %v3309 = vrot.slane %v3192, 5
        %v3310 = vrot.slane %v3309, 4
        %v3311 = vrot.slane %v2709, 5
        %v3312 = vsel %vm3284, %v3310, %v3311
        %v3313 = vrot.slane %v3193, 5
        %v3314 = vrot.slane %v3313, 4
        %v3315 = vrot.slane %v2710, 5
        %v3316 = vsel %vm3284, %v3314, %v3315
        %v3317 = vrot.slane %v3194, 5
        %v3318 = vrot.slane %v3317, 4
        %v3319 = vrot.slane %v2711, 5
        %v3320 = vsel %vm3284, %v3318, %v3319
        %v3321 = vrot.slane %v3195, 5
        %v3322 = vrot.slane %v3321, 4
        %v3323 = vrot.slane %v2712, 5
        %v3324 = vsel %vm3284, %v3322, %v3323
        %v3325 = vrot.slane %v3196, 5
        %v3326 = vrot.slane %v3325, 4
        %v3327 = vrot.slane %v2713, 5
        %v3328 = vsel %vm3284, %v3326, %v3327
        %v3329 = vrot.slane %v3197, 5
        %v3330 = vrot.slane %v3329, 4
        %v3331 = vrot.slane %v2714, 5
        %v3332 = vsel %vm3284, %v3330, %v3331
        %v3333 = vrot.slane %v3198, 5
        %v3334 = vrot.slane %v3333, 4
        %v3335 = vrot.slane %v2715, 5
        %v3336 = vsel %vm3284, %v3334, %v3335
        %v3337 = vrot.slane %v3199, 5
        %v3338 = vrot.slane %v3337, 4
        %v3339 = vrot.slane %v2716, 5
        %v3340 = vsel %vm3284, %v3338, %v3339
        %v3341 = vrot.slane %v3200, 5
        %v3342 = vrot.slane %v3341, 4
        %v3343 = vrot.slane %v2717, 5
        %v3344 = vsel %vm3284, %v3342, %v3343
        %v3345 = vrot.slane %v3201, 5
        %v3346 = vrot.slane %v3345, 4
        %v3347 = vrot.slane %v2718, 5
        %v3348 = vsel %vm3284, %v3346, %v3347
        %v3349 = vrot.slane %v3202, 5
        %v3350 = vrot.slane %v3349, 4
        %v3351 = vrot.slane %v2719, 5
        %v3352 = vsel %vm3284, %v3350, %v3351
        %v3353 = vrot.slane %v3203, 5
        %v3354 = vrot.slane %v3353, 4
        %v3355 = vrot.slane %v2720, 5
        %v3356 = vsel %vm3284, %v3354, %v3355
        %v3357 = vrot.slane %v3204, 5
        %v3358 = vrot.slane %v3357, 4
        %v3359 = vrot.slane %v2721, 5
        %v3360 = vsel %vm3284, %v3358, %v3359
        %v3361 = vrot.slane %v3205, 5
        %v3362 = vrot.slane %v3361, 4
        %v3363 = vrot.slane %v2722, 5
        %v3364 = vsel %vm3284, %v3362, %v3363
        %v3365 = vrot.slane %v3206, 5
        %v3366 = vrot.slane %v3365, 4
        %v3367 = vrot.slane %v2723, 5
        %v3368 = vsel %vm3284, %v3366, %v3367
        %v3369 = vrot.slane %v3207, 5
        %v3370 = vrot.slane %v3369, 4
        %v3371 = vrot.slane %v2724, 5
        %v3372 = vsel %vm3284, %v3370, %v3371
        %v3373 = vrot.slane %v3208, 5
        %v3374 = vrot.slane %v3373, 4
        %v3375 = vrot.slane %v2725, 5
        %v3376 = vsel %vm3284, %v3374, %v3375
        %v3377 = vrot.slane %v3209, 5
        %v3378 = vrot.slane %v3377, 4
        %v3379 = vrot.slane %v2726, 5
        %v3380 = vsel %vm3284, %v3378, %v3379
        %v3381 = vrot.slane %v3210, 5
        %v3382 = vrot.slane %v3381, 4
        %v3383 = vrot.slane %v2727, 5
        %v3384 = vsel %vm3284, %v3382, %v3383
        %v3385 = vrot.slane %v3211, 5
        %v3386 = vrot.slane %v3385, 4
        %v3387 = vrot.slane %v2728, 5
        %v3388 = vsel %vm3284, %v3386, %v3387
        %v3389 = vrot.slane %v3212, 5
        %v3390 = vrot.slane %v3389, 4
        %v3391 = vrot.slane %v2729, 5
        %v3392 = vsel %vm3284, %v3390, %v3391
        %v3393 = vrot.slane %v3213, 5
        %v3394 = vrot.slane %v3393, 4
        %v3395 = vrot.slane %v2730, 5
        %v3396 = vsel %vm3284, %v3394, %v3395
        %v3397 = vrot.slane %v3214, 5
        %v3398 = vrot.slane %v3397, 4
        %v3399 = vrot.slane %v2731, 5
        %v3400 = vsel %vm3284, %v3398, %v3399
        %v3401 = vrot.slane %v3215, 5
        %v3402 = vrot.slane %v3401, 4
        %v3403 = vrot.slane %v2732, 5
        %v3404 = vsel %vm3284, %v3402, %v3403
        %v3405 = vrot.slane %v3216, 5
        %v3406 = vrot.slane %v3405, 4
        %v3407 = vrot.slane %v2733, 5
        %v3408 = vsel %vm3284, %v3406, %v3407
        %v3409 = vrot.slane %v3217, 5
        %v3410 = vrot.slane %v3409, 4
        %v3411 = vrot.slane %v2734, 5
        %v3412 = vsel %vm3284, %v3410, %v3411
        %v3413 = vld [vmem:[%s2606] sm:$0xf]
        %v3414 = vld [vmem:[%s2606 + $0x8] sm:$0xf]
        %v3415 = vld [vmem:[%s2606 + $0x10] sm:$0xf]
        %v3416 = vld [vmem:[%s2606 + $0x18] sm:$0xf]
        %v3417 = vld [vmem:[%s2606 + $0x20] sm:$0xf]
        %v3418 = vld [vmem:[%s2606 + $0x28] sm:$0xf]
        %v3419 = vld [vmem:[%s2606 + $0x30] sm:$0xf]
        %v3420 = vld [vmem:[%s2606 + $0x38] sm:$0xf]
        %v3421 = vld [vmem:[%s2606 + $0x50] sm:$0xf]
        %v3422 = vld [vmem:[%s2606 + $0x58] sm:$0xf]
        %v3423 = vld [vmem:[%s2606 + $0x60] sm:$0xf]
        %v3424 = vld [vmem:[%s2606 + $0x68] sm:$0xf]
        %v3425 = vld [vmem:[%s2606 + $0x70] sm:$0xf]
        %v3426 = vld [vmem:[%s2606 + $0x78] sm:$0xf]
        %v3427 = vld [vmem:[%s2606 + $0x80] sm:$0xf]
        %v3428 = vld [vmem:[%s2606 + $0x88] sm:$0xf]
        %v3429 = vld [vmem:[%s2606 + $0xa0] sm:$0xf]
        %v3430 = vld [vmem:[%s2606 + $0xa8] sm:$0xf]
        %v3431 = vld [vmem:[%s2606 + $0xb0] sm:$0xf]
        %v3432 = vld [vmem:[%s2606 + $0xb8] sm:$0xf]
        %v3433 = vld [vmem:[%s2606 + $0xc0] sm:$0xf]
        %v3434 = vld [vmem:[%s2606 + $0xc8] sm:$0xf]
        %v3435 = vld [vmem:[%s2606 + $0xd0] sm:$0xf]
        %v3436 = vld [vmem:[%s2606 + $0xd8] sm:$0xf]
        %v3437 = vld [vmem:[%s2606 + $0xf0] sm:$0xf]
        %v3438 = vld [vmem:[%s2606 + $0xf8] sm:$0xf]
        %v3439 = vld [vmem:[%s2606 + $0x100] sm:$0xf]
        %v3440 = vld [vmem:[%s2606 + $0x108] sm:$0xf]
        %v3441 = vld [vmem:[%s2606 + $0x110] sm:$0xf]
        %v3442 = vld [vmem:[%s2606 + $0x118] sm:$0xf]
        %v3443 = vld [vmem:[%s2606 + $0x120] sm:$0xf]
        %v3444 = vld [vmem:[%s2606 + $0x128] sm:$0xf]
        %v3445 = vld [vmem:[%s2606 + $0x4] sm:$0x1]
        %v3446 = vld [vmem:[%s2606 + $0xc] sm:$0x1]
        %v3447 = vld [vmem:[%s2606 + $0x14] sm:$0x1]
        %v3448 = vld [vmem:[%s2606 + $0x1c] sm:$0x1]
        %v3449 = vld [vmem:[%s2606 + $0x24] sm:$0x1]
        %v3450 = vld [vmem:[%s2606 + $0x2c] sm:$0x1]
        %v3451 = vld [vmem:[%s2606 + $0x34] sm:$0x1]
        %v3452 = vld [vmem:[%s2606 + $0x3c] sm:$0x1]
        %v3453 = vld [vmem:[%s2606 + $0x54] sm:$0x1]
        %v3454 = vld [vmem:[%s2606 + $0x5c] sm:$0x1]
        %v3455 = vld [vmem:[%s2606 + $0x64] sm:$0x1]
        %v3456 = vld [vmem:[%s2606 + $0x6c] sm:$0x1]
        %v3457 = vld [vmem:[%s2606 + $0x74] sm:$0x1]
        %v3458 = vld [vmem:[%s2606 + $0x7c] sm:$0x1]
        %v3459 = vld [vmem:[%s2606 + $0x84] sm:$0x1]
        %v3460 = vld [vmem:[%s2606 + $0x8c] sm:$0x1]
        %v3461 = vld [vmem:[%s2606 + $0xa4] sm:$0x1]
        %v3462 = vld [vmem:[%s2606 + $0xac] sm:$0x1]
        %v3463 = vld [vmem:[%s2606 + $0xb4] sm:$0x1]
        %v3464 = vld [vmem:[%s2606 + $0xbc] sm:$0x1]
        %v3465 = vld [vmem:[%s2606 + $0xc4] sm:$0x1]
        %v3466 = vld [vmem:[%s2606 + $0xcc] sm:$0x1]
        %v3467 = vld [vmem:[%s2606 + $0xd4] sm:$0x1]
        %v3468 = vld [vmem:[%s2606 + $0xdc] sm:$0x1]
        %v3469 = vld [vmem:[%s2606 + $0xf4] sm:$0x1]
        %v3470 = vld [vmem:[%s2606 + $0xfc] sm:$0x1]
        %v3471 = vld [vmem:[%s2606 + $0x104] sm:$0x1]
        %v3472 = vld [vmem:[%s2606 + $0x10c] sm:$0x1]
        %v3473 = vld [vmem:[%s2606 + $0x114] sm:$0x1]
        %v3474 = vld [vmem:[%s2606 + $0x11c] sm:$0x1]
        %v3475 = vld [vmem:[%s2606 + $0x124] sm:$0x1]
        %v3476 = vld [vmem:[%s2606 + $0x12c] sm:$0x1]
        %v3478 = vshrl.u32 %v3413, 16
        %v3480 = vrot.slane %v3478, 4
        %v3481 = vshll.u32 %v3413, 16
        %v3483 = vrot.slane %v3481, 5
        %v3484 = vor.u32 %v3480, %v3483
        %v3485 = vrot.slane %v3484, 4
        %v3487 = vshll.u32 %v3445, 16
        %v3489 = vrot.slane %v3487, 5
        %v3490 = vsel %vm2737, %v3485, %v3489
        %v3492 = vshrl.u32 %v3414, 16
        %v3494 = vrot.slane %v3492, 4
        %v3495 = vshll.u32 %v3414, 16
        %v3497 = vrot.slane %v3495, 5
        %v3498 = vor.u32 %v3494, %v3497
        %v3499 = vrot.slane %v3498, 4
        %v3501 = vshll.u32 %v3446, 16
        %v3503 = vrot.slane %v3501, 5
        %v3504 = vsel %vm2737, %v3499, %v3503
        %v3506 = vshrl.u32 %v3415, 16
        %v3508 = vrot.slane %v3506, 4
        %v3509 = vshll.u32 %v3415, 16
        %v3511 = vrot.slane %v3509, 5
        %v3512 = vor.u32 %v3508, %v3511
        %v3513 = vrot.slane %v3512, 4
        %v3515 = vshll.u32 %v3447, 16
        %v3517 = vrot.slane %v3515, 5
        %v3518 = vsel %vm2737, %v3513, %v3517
        %v3520 = vshrl.u32 %v3416, 16
        %v3522 = vrot.slane %v3520, 4
        %v3523 = vshll.u32 %v3416, 16
        %v3525 = vrot.slane %v3523, 5
        %v3526 = vor.u32 %v3522, %v3525
        %v3527 = vrot.slane %v3526, 4
        %v3529 = vshll.u32 %v3448, 16
        %v3531 = vrot.slane %v3529, 5
        %v3532 = vsel %vm2737, %v3527, %v3531
        %v3534 = vshrl.u32 %v3417, 16
        %v3536 = vrot.slane %v3534, 4
        %v3537 = vshll.u32 %v3417, 16
        %v3539 = vrot.slane %v3537, 5
        %v3540 = vor.u32 %v3536, %v3539
        %v3541 = vrot.slane %v3540, 4
        %v3543 = vshll.u32 %v3449, 16
        %v3545 = vrot.slane %v3543, 5
        %v3546 = vsel %vm2737, %v3541, %v3545
        %v3548 = vshrl.u32 %v3418, 16
        %v3550 = vrot.slane %v3548, 4
        %v3551 = vshll.u32 %v3418, 16
        %v3553 = vrot.slane %v3551, 5
        %v3554 = vor.u32 %v3550, %v3553
        %v3555 = vrot.slane %v3554, 4
        %v3557 = vshll.u32 %v3450, 16
        %v3559 = vrot.slane %v3557, 5
        %v3560 = vsel %vm2737, %v3555, %v3559
        %v3562 = vshrl.u32 %v3419, 16
        %v3564 = vrot.slane %v3562, 4
        %v3565 = vshll.u32 %v3419, 16
        %v3567 = vrot.slane %v3565, 5
        %v3568 = vor.u32 %v3564, %v3567
        %v3569 = vrot.slane %v3568, 4
        %v3571 = vshll.u32 %v3451, 16
        %v3573 = vrot.slane %v3571, 5
        %v3574 = vsel %vm2737, %v3569, %v3573
        %v3576 = vshrl.u32 %v3420, 16
        %v3578 = vrot.slane %v3576, 4
        %v3579 = vshll.u32 %v3420, 16
        %v3581 = vrot.slane %v3579, 5
        %v3582 = vor.u32 %v3578, %v3581
        %v3583 = vrot.slane %v3582, 4
        %v3585 = vshll.u32 %v3452, 16
        %v3587 = vrot.slane %v3585, 5
        %v3588 = vsel %vm2737, %v3583, %v3587
        %v3590 = vshrl.u32 %v3421, 16
        %v3592 = vrot.slane %v3590, 4
        %v3593 = vshll.u32 %v3421, 16
        %v3595 = vrot.slane %v3593, 5
        %v3596 = vor.u32 %v3592, %v3595
        %v3597 = vrot.slane %v3596, 4
        %v3599 = vshll.u32 %v3453, 16
        %v3601 = vrot.slane %v3599, 5
        %v3602 = vsel %vm2737, %v3597, %v3601
        %v3604 = vshrl.u32 %v3422, 16
        %v3606 = vrot.slane %v3604, 4
        %v3607 = vshll.u32 %v3422, 16
        %v3609 = vrot.slane %v3607, 5
        %v3610 = vor.u32 %v3606, %v3609
        %v3611 = vrot.slane %v3610, 4
        %v3613 = vshll.u32 %v3454, 16
        %v3615 = vrot.slane %v3613, 5
        %v3616 = vsel %vm2737, %v3611, %v3615
        %v3618 = vshrl.u32 %v3423, 16
        %v3620 = vrot.slane %v3618, 4
        %v3621 = vshll.u32 %v3423, 16
        %v3623 = vrot.slane %v3621, 5
        %v3624 = vor.u32 %v3620, %v3623
        %v3625 = vrot.slane %v3624, 4
        %v3627 = vshll.u32 %v3455, 16
        %v3629 = vrot.slane %v3627, 5
        %v3630 = vsel %vm2737, %v3625, %v3629
        %v3632 = vshrl.u32 %v3424, 16
        %v3634 = vrot.slane %v3632, 4
        %v3635 = vshll.u32 %v3424, 16
        %v3637 = vrot.slane %v3635, 5
        %v3638 = vor.u32 %v3634, %v3637
        %v3639 = vrot.slane %v3638, 4
        %v3641 = vshll.u32 %v3456, 16
        %v3643 = vrot.slane %v3641, 5
        %v3644 = vsel %vm2737, %v3639, %v3643
        %v3646 = vshrl.u32 %v3425, 16
        %v3648 = vrot.slane %v3646, 4
        %v3649 = vshll.u32 %v3425, 16
        %v3651 = vrot.slane %v3649, 5
        %v3652 = vor.u32 %v3648, %v3651
        %v3653 = vrot.slane %v3652, 4
        %v3655 = vshll.u32 %v3457, 16
        %v3657 = vrot.slane %v3655, 5
        %v3658 = vsel %vm2737, %v3653, %v3657
        %v3660 = vshrl.u32 %v3426, 16
        %v3662 = vrot.slane %v3660, 4
        %v3663 = vshll.u32 %v3426, 16
        %v3665 = vrot.slane %v3663, 5
        %v3666 = vor.u32 %v3662, %v3665
        %v3667 = vrot.slane %v3666, 4
        %v3669 = vshll.u32 %v3458, 16
        %v3671 = vrot.slane %v3669, 5
        %v3672 = vsel %vm2737, %v3667, %v3671
        %v3674 = vshrl.u32 %v3427, 16
        %v3676 = vrot.slane %v3674, 4
        %v3677 = vshll.u32 %v3427, 16
        %v3679 = vrot.slane %v3677, 5
        %v3680 = vor.u32 %v3676, %v3679
        %v3681 = vrot.slane %v3680, 4
        %v3683 = vshll.u32 %v3459, 16
        %v3685 = vrot.slane %v3683, 5
        %v3686 = vsel %vm2737, %v3681, %v3685
        %v3688 = vshrl.u32 %v3428, 16
        %v3690 = vrot.slane %v3688, 4
        %v3691 = vshll.u32 %v3428, 16
        %v3693 = vrot.slane %v3691, 5
        %v3694 = vor.u32 %v3690, %v3693
        %v3695 = vrot.slane %v3694, 4
        %v3697 = vshll.u32 %v3460, 16
        %v3699 = vrot.slane %v3697, 5
        %v3700 = vsel %vm2737, %v3695, %v3699
        %v3702 = vshrl.u32 %v3429, 16
        %v3704 = vrot.slane %v3702, 4
        %v3705 = vshll.u32 %v3429, 16
        %v3707 = vrot.slane %v3705, 5
        %v3708 = vor.u32 %v3704, %v3707
        %v3709 = vrot.slane %v3708, 4
        %v3711 = vshll.u32 %v3461, 16
        %v3713 = vrot.slane %v3711, 5
        %v3714 = vsel %vm2737, %v3709, %v3713
        %v3716 = vshrl.u32 %v3430, 16
        %v3718 = vrot.slane %v3716, 4
        %v3719 = vshll.u32 %v3430, 16
        %v3721 = vrot.slane %v3719, 5
        %v3722 = vor.u32 %v3718, %v3721
        %v3723 = vrot.slane %v3722, 4
        %v3725 = vshll.u32 %v3462, 16
        %v3727 = vrot.slane %v3725, 5
        %v3728 = vsel %vm2737, %v3723, %v3727
        %v3730 = vshrl.u32 %v3431, 16
        %v3732 = vrot.slane %v3730, 4
        %v3733 = vshll.u32 %v3431, 16
        %v3735 = vrot.slane %v3733, 5
        %v3736 = vor.u32 %v3732, %v3735
        %v3737 = vrot.slane %v3736, 4
        %v3739 = vshll.u32 %v3463, 16
        %v3741 = vrot.slane %v3739, 5
        %v3742 = vsel %vm2737, %v3737, %v3741
        %v3744 = vshrl.u32 %v3432, 16
        %v3746 = vrot.slane %v3744, 4
        %v3747 = vshll.u32 %v3432, 16
        %v3749 = vrot.slane %v3747, 5
        %v3750 = vor.u32 %v3746, %v3749
        %v3751 = vrot.slane %v3750, 4
        %v3753 = vshll.u32 %v3464, 16
        %v3755 = vrot.slane %v3753, 5
        %v3756 = vsel %vm2737, %v3751, %v3755
        %v3758 = vshrl.u32 %v3433, 16
        %v3760 = vrot.slane %v3758, 4
        %v3761 = vshll.u32 %v3433, 16
        %v3763 = vrot.slane %v3761, 5
        %v3764 = vor.u32 %v3760, %v3763
        %v3765 = vrot.slane %v3764, 4
        %v3767 = vshll.u32 %v3465, 16
        %v3769 = vrot.slane %v3767, 5
        %v3770 = vsel %vm2737, %v3765, %v3769
        %v3772 = vshrl.u32 %v3434, 16
        %v3774 = vrot.slane %v3772, 4
        %v3775 = vshll.u32 %v3434, 16
        %v3777 = vrot.slane %v3775, 5
        %v3778 = vor.u32 %v3774, %v3777
        %v3779 = vrot.slane %v3778, 4
        %v3781 = vshll.u32 %v3466, 16
        %v3783 = vrot.slane %v3781, 5
        %v3784 = vsel %vm2737, %v3779, %v3783
        %v3786 = vshrl.u32 %v3435, 16
        %v3788 = vrot.slane %v3786, 4
        %v3789 = vshll.u32 %v3435, 16
        %v3791 = vrot.slane %v3789, 5
        %v3792 = vor.u32 %v3788, %v3791
        %v3793 = vrot.slane %v3792, 4
        %v3795 = vshll.u32 %v3467, 16
        %v3797 = vrot.slane %v3795, 5
        %v3798 = vsel %vm2737, %v3793, %v3797
        %v3800 = vshrl.u32 %v3436, 16
        %v3802 = vrot.slane %v3800, 4
        %v3803 = vshll.u32 %v3436, 16
        %v3805 = vrot.slane %v3803, 5
        %v3806 = vor.u32 %v3802, %v3805
        %v3807 = vrot.slane %v3806, 4
        %v3809 = vshll.u32 %v3468, 16
        %v3811 = vrot.slane %v3809, 5
        %v3812 = vsel %vm2737, %v3807, %v3811
        %v3814 = vshrl.u32 %v3437, 16
        %v3816 = vrot.slane %v3814, 4
        %v3817 = vshll.u32 %v3437, 16
        %v3819 = vrot.slane %v3817, 5
        %v3820 = vor.u32 %v3816, %v3819
        %v3821 = vrot.slane %v3820, 4
        %v3823 = vshll.u32 %v3469, 16
        %v3825 = vrot.slane %v3823, 5
        %v3826 = vsel %vm2737, %v3821, %v3825
        %v3828 = vshrl.u32 %v3438, 16
        %v3830 = vrot.slane %v3828, 4
        %v3831 = vshll.u32 %v3438, 16
        %v3833 = vrot.slane %v3831, 5
        %v3834 = vor.u32 %v3830, %v3833
        %v3835 = vrot.slane %v3834, 4
        %v3837 = vshll.u32 %v3470, 16
        %v3839 = vrot.slane %v3837, 5
        %v3840 = vsel %vm2737, %v3835, %v3839
        %v3842 = vshrl.u32 %v3439, 16
        %v3844 = vrot.slane %v3842, 4
        %v3845 = vshll.u32 %v3439, 16
        %v3847 = vrot.slane %v3845, 5
        %v3848 = vor.u32 %v3844, %v3847
        %v3849 = vrot.slane %v3848, 4
        %v3851 = vshll.u32 %v3471, 16
        %v3853 = vrot.slane %v3851, 5
        %v3854 = vsel %vm2737, %v3849, %v3853
        %v3856 = vshrl.u32 %v3440, 16
        %v3858 = vrot.slane %v3856, 4
        %v3859 = vshll.u32 %v3440, 16
        %v3861 = vrot.slane %v3859, 5
        %v3862 = vor.u32 %v3858, %v3861
        %v3863 = vrot.slane %v3862, 4
        %v3865 = vshll.u32 %v3472, 16
        %v3867 = vrot.slane %v3865, 5
        %v3868 = vsel %vm2737, %v3863, %v3867
        %v3870 = vshrl.u32 %v3441, 16
        %v3872 = vrot.slane %v3870, 4
        %v3873 = vshll.u32 %v3441, 16
        %v3875 = vrot.slane %v3873, 5
        %v3876 = vor.u32 %v3872, %v3875
        %v3877 = vrot.slane %v3876, 4
        %v3879 = vshll.u32 %v3473, 16
        %v3881 = vrot.slane %v3879, 5
        %v3882 = vsel %vm2737, %v3877, %v3881
        %v3884 = vshrl.u32 %v3442, 16
        %v3886 = vrot.slane %v3884, 4
        %v3887 = vshll.u32 %v3442, 16
        %v3889 = vrot.slane %v3887, 5
        %v3890 = vor.u32 %v3886, %v3889
        %v3891 = vrot.slane %v3890, 4
        %v3893 = vshll.u32 %v3474, 16
        %v3895 = vrot.slane %v3893, 5
        %v3896 = vsel %vm2737, %v3891, %v3895
        %v3898 = vshrl.u32 %v3443, 16
        %v3900 = vrot.slane %v3898, 4
        %v3901 = vshll.u32 %v3443, 16
        %v3903 = vrot.slane %v3901, 5
        %v3904 = vor.u32 %v3900, %v3903
        %v3905 = vrot.slane %v3904, 4
        %v3907 = vshll.u32 %v3475, 16
        %v3909 = vrot.slane %v3907, 5
        %v3910 = vsel %vm2737, %v3905, %v3909
        %v3912 = vshrl.u32 %v3444, 16
        %v3914 = vrot.slane %v3912, 4
        %v3915 = vshll.u32 %v3444, 16
        %v3917 = vrot.slane %v3915, 5
        %v3918 = vor.u32 %v3914, %v3917
        %v3919 = vrot.slane %v3918, 4
        %v3921 = vshll.u32 %v3476, 16
        %v3923 = vrot.slane %v3921, 5
        %v3924 = vsel %vm2737, %v3919, %v3923
        %v3925 = vld [vmem:[%s2606] sm:$0xe]
        %v3926 = vld [vmem:[%s2606 + $0x8] sm:$0xe]
        %v3927 = vld [vmem:[%s2606 + $0x10] sm:$0xe]
        %v3928 = vld [vmem:[%s2606 + $0x18] sm:$0xe]
        %v3929 = vld [vmem:[%s2606 + $0x20] sm:$0xe]
        %v3930 = vld [vmem:[%s2606 + $0x28] sm:$0xe]
        %v3931 = vld [vmem:[%s2606 + $0x30] sm:$0xe]
        %v3932 = vld [vmem:[%s2606 + $0x38] sm:$0xe]
        %v3933 = vld [vmem:[%s2606 + $0x50] sm:$0xe]
        %v3934 = vld [vmem:[%s2606 + $0x58] sm:$0xe]
        %v3935 = vld [vmem:[%s2606 + $0x60] sm:$0xe]
        %v3936 = vld [vmem:[%s2606 + $0x68] sm:$0xe]
        %v3937 = vld [vmem:[%s2606 + $0x70] sm:$0xe]
        %v3938 = vld [vmem:[%s2606 + $0x78] sm:$0xe]
        %v3939 = vld [vmem:[%s2606 + $0x80] sm:$0xe]
        %v3940 = vld [vmem:[%s2606 + $0x88] sm:$0xe]
        %v3941 = vld [vmem:[%s2606 + $0xa0] sm:$0xe]
        %v3942 = vld [vmem:[%s2606 + $0xa8] sm:$0xe]
        %v3943 = vld [vmem:[%s2606 + $0xb0] sm:$0xe]
        %v3944 = vld [vmem:[%s2606 + $0xb8] sm:$0xe]
        %v3945 = vld [vmem:[%s2606 + $0xc0] sm:$0xe]
        %v3946 = vld [vmem:[%s2606 + $0xc8] sm:$0xe]
        %v3947 = vld [vmem:[%s2606 + $0xd0] sm:$0xe]
        %v3948 = vld [vmem:[%s2606 + $0xd8] sm:$0xe]
        %v3949 = vld [vmem:[%s2606 + $0xf0] sm:$0xe]
        %v3950 = vld [vmem:[%s2606 + $0xf8] sm:$0xe]
        %v3951 = vld [vmem:[%s2606 + $0x100] sm:$0xe]
        %v3952 = vld [vmem:[%s2606 + $0x108] sm:$0xe]
        %v3953 = vld [vmem:[%s2606 + $0x110] sm:$0xe]
        %v3954 = vld [vmem:[%s2606 + $0x118] sm:$0xe]
        %v3955 = vld [vmem:[%s2606 + $0x120] sm:$0xe]
        %v3956 = vld [vmem:[%s2606 + $0x128] sm:$0xe]
        %v4021 = vrot.slane %v3925, 5
        %v4022 = vrot.slane %v4021, 4
        %v4023 = vrot.slane %v3445, 5
        %v4024 = vsel %vm3284, %v4022, %v4023
        %v4025 = vrot.slane %v3926, 5
        %v4026 = vrot.slane %v4025, 4
        %v4027 = vrot.slane %v3446, 5
        %v4028 = vsel %vm3284, %v4026, %v4027
        %v4029 = vrot.slane %v3927, 5
        %v4030 = vrot.slane %v4029, 4
        %v4031 = vrot.slane %v3447, 5
        %v4032 = vsel %vm3284, %v4030, %v4031
        %v4033 = vrot.slane %v3928, 5
        %v4034 = vrot.slane %v4033, 4
        %v4035 = vrot.slane %v3448, 5
        %v4036 = vsel %vm3284, %v4034, %v4035
        %v4037 = vrot.slane %v3929, 5
        %v4038 = vrot.slane %v4037, 4
        %v4039 = vrot.slane %v3449, 5
        %v4040 = vsel %vm3284, %v4038, %v4039
        %v4041 = vrot.slane %v3930, 5
        %v4042 = vrot.slane %v4041, 4
        %v4043 = vrot.slane %v3450, 5
        %v4044 = vsel %vm3284, %v4042, %v4043
        %v4045 = vrot.slane %v3931, 5
        %v4046 = vrot.slane %v4045, 4
        %v4047 = vrot.slane %v3451, 5
        %v4048 = vsel %vm3284, %v4046, %v4047
        %v4049 = vrot.slane %v3932, 5
        %v4050 = vrot.slane %v4049, 4
        %v4051 = vrot.slane %v3452, 5
        %v4052 = vsel %vm3284, %v4050, %v4051
        %v4053 = vrot.slane %v3933, 5
        %v4054 = vrot.slane %v4053, 4
        %v4055 = vrot.slane %v3453, 5
        %v4056 = vsel %vm3284, %v4054, %v4055
        %v4057 = vrot.slane %v3934, 5
        %v4058 = vrot.slane %v4057, 4
        %v4059 = vrot.slane %v3454, 5
        %v4060 = vsel %vm3284, %v4058, %v4059
        %v4061 = vrot.slane %v3935, 5
        %v4062 = vrot.slane %v4061, 4
        %v4063 = vrot.slane %v3455, 5
        %v4064 = vsel %vm3284, %v4062, %v4063
        %v4065 = vrot.slane %v3936, 5
        %v4066 = vrot.slane %v4065, 4
        %v4067 = vrot.slane %v3456, 5
        %v4068 = vsel %vm3284, %v4066, %v4067
        %v4069 = vrot.slane %v3937, 5
        %v4070 = vrot.slane %v4069, 4
        %v4071 = vrot.slane %v3457, 5
        %v4072 = vsel %vm3284, %v4070, %v4071
        %v4073 = vrot.slane %v3938, 5
        %v4074 = vrot.slane %v4073, 4
        %v4075 = vrot.slane %v3458, 5
        %v4076 = vsel %vm3284, %v4074, %v4075
        %v4077 = vrot.slane %v3939, 5
        %v4078 = vrot.slane %v4077, 4
        %v4079 = vrot.slane %v3459, 5
        %v4080 = vsel %vm3284, %v4078, %v4079
        %v4081 = vrot.slane %v3940, 5
        %v4082 = vrot.slane %v4081, 4
        %v4083 = vrot.slane %v3460, 5
        %v4084 = vsel %vm3284, %v4082, %v4083
        %v4085 = vrot.slane %v3941, 5
        %v4086 = vrot.slane %v4085, 4
        %v4087 = vrot.slane %v3461, 5
        %v4088 = vsel %vm3284, %v4086, %v4087
        %v4089 = vrot.slane %v3942, 5
        %v4090 = vrot.slane %v4089, 4
        %v4091 = vrot.slane %v3462, 5
        %v4092 = vsel %vm3284, %v4090, %v4091
        %v4093 = vrot.slane %v3943, 5
        %v4094 = vrot.slane %v4093, 4
        %v4095 = vrot.slane %v3463, 5
        %v4096 = vsel %vm3284, %v4094, %v4095
        %v4097 = vrot.slane %v3944, 5
        %v4098 = vrot.slane %v4097, 4
        %v4099 = vrot.slane %v3464, 5
        %v4100 = vsel %vm3284, %v4098, %v4099
        %v4101 = vrot.slane %v3945, 5
        %v4102 = vrot.slane %v4101, 4
        %v4103 = vrot.slane %v3465, 5
        %v4104 = vsel %vm3284, %v4102, %v4103
        %v4105 = vrot.slane %v3946, 5
        %v4106 = vrot.slane %v4105, 4
        %v4107 = vrot.slane %v3466, 5
        %v4108 = vsel %vm3284, %v4106, %v4107
        %v4109 = vrot.slane %v3947, 5
        %v4110 = vrot.slane %v4109, 4
        %v4111 = vrot.slane %v3467, 5
        %v4112 = vsel %vm3284, %v4110, %v4111
        %v4113 = vrot.slane %v3948, 5
        %v4114 = vrot.slane %v4113, 4
        %v4115 = vrot.slane %v3468, 5
        %v4116 = vsel %vm3284, %v4114, %v4115
        %v4117 = vrot.slane %v3949, 5
        %v4118 = vrot.slane %v4117, 4
        %v4119 = vrot.slane %v3469, 5
        %v4120 = vsel %vm3284, %v4118, %v4119
        %v4121 = vrot.slane %v3950, 5
        %v4122 = vrot.slane %v4121, 4
        %v4123 = vrot.slane %v3470, 5
        %v4124 = vsel %vm3284, %v4122, %v4123
        %v4125 = vrot.slane %v3951, 5
        %v4126 = vrot.slane %v4125, 4
        %v4127 = vrot.slane %v3471, 5
        %v4128 = vsel %vm3284, %v4126, %v4127
        %v4129 = vrot.slane %v3952, 5
        %v4130 = vrot.slane %v4129, 4
        %v4131 = vrot.slane %v3472, 5
        %v4132 = vsel %vm3284, %v4130, %v4131
        %v4133 = vrot.slane %v3953, 5
        %v4134 = vrot.slane %v4133, 4
        %v4135 = vrot.slane %v3473, 5
        %v4136 = vsel %vm3284, %v4134, %v4135
        %v4137 = vrot.slane %v3954, 5
        %v4138 = vrot.slane %v4137, 4
        %v4139 = vrot.slane %v3474, 5
        %v4140 = vsel %vm3284, %v4138, %v4139
        %v4141 = vrot.slane %v3955, 5
        %v4142 = vrot.slane %v4141, 4
        %v4143 = vrot.slane %v3475, 5
        %v4144 = vsel %vm3284, %v4142, %v4143
        %v4145 = vrot.slane %v3956, 5
        %v4146 = vrot.slane %v4145, 4
        %v4147 = vrot.slane %v3476, 5
        %v4148 = vsel %vm3284, %v4146, %v4147
        %s4149 = scalar_lea.vmem [#allocation2], 16
        %v4150 = vld [vmem:[%s4149] sm:$0xf]
        %v4151 = vld [vmem:[%s4149 + $0x8] sm:$0xf]
        %v4152 = vld [vmem:[%s4149 + $0x10] sm:$0xf]
        %v4153 = vld [vmem:[%s4149 + $0x18] sm:$0xf]
        %v4154 = vld [vmem:[%s4149 + $0x20] sm:$0xf]
        %v4155 = vld [vmem:[%s4149 + $0x28] sm:$0xf]
        %v4156 = vld [vmem:[%s4149 + $0x30] sm:$0xf]
        %v4157 = vld [vmem:[%s4149 + $0x38] sm:$0xf]
        %v4158 = vld [vmem:[%s4149 + $0x50] sm:$0xf]
        %v4159 = vld [vmem:[%s4149 + $0x58] sm:$0xf]
        %v4160 = vld [vmem:[%s4149 + $0x60] sm:$0xf]
        %v4161 = vld [vmem:[%s4149 + $0x68] sm:$0xf]
        %v4162 = vld [vmem:[%s4149 + $0x70] sm:$0xf]
        %v4163 = vld [vmem:[%s4149 + $0x78] sm:$0xf]
        %v4164 = vld [vmem:[%s4149 + $0x80] sm:$0xf]
        %v4165 = vld [vmem:[%s4149 + $0x88] sm:$0xf]
        %v4166 = vld [vmem:[%s4149 + $0xa0] sm:$0xf]
        %v4167 = vld [vmem:[%s4149 + $0xa8] sm:$0xf]
        %v4168 = vld [vmem:[%s4149 + $0xb0] sm:$0xf]
        %v4169 = vld [vmem:[%s4149 + $0xb8] sm:$0xf]
        %v4170 = vld [vmem:[%s4149 + $0xc0] sm:$0xf]
        %v4171 = vld [vmem:[%s4149 + $0xc8] sm:$0xf]
        %v4172 = vld [vmem:[%s4149 + $0xd0] sm:$0xf]
        %v4173 = vld [vmem:[%s4149 + $0xd8] sm:$0xf]
        %v4174 = vld [vmem:[%s4149 + $0xf0] sm:$0xf]
        %v4175 = vld [vmem:[%s4149 + $0xf8] sm:$0xf]
        %v4176 = vld [vmem:[%s4149 + $0x100] sm:$0xf]
        %v4177 = vld [vmem:[%s4149 + $0x108] sm:$0xf]
        %v4178 = vld [vmem:[%s4149 + $0x110] sm:$0xf]
        %v4179 = vld [vmem:[%s4149 + $0x118] sm:$0xf]
        %v4180 = vld [vmem:[%s4149 + $0x120] sm:$0xf]
        %v4181 = vld [vmem:[%s4149 + $0x128] sm:$0xf]
        %v4182 = vld [vmem:[%s4149 + $0x4] sm:$0x1]
        %v4183 = vld [vmem:[%s4149 + $0xc] sm:$0x1]
        %v4184 = vld [vmem:[%s4149 + $0x14] sm:$0x1]
        %v4185 = vld [vmem:[%s4149 + $0x1c] sm:$0x1]
        %v4186 = vld [vmem:[%s4149 + $0x24] sm:$0x1]
        %v4187 = vld [vmem:[%s4149 + $0x2c] sm:$0x1]
        %v4188 = vld [vmem:[%s4149 + $0x34] sm:$0x1]
        %v4189 = vld [vmem:[%s4149 + $0x3c] sm:$0x1]
        %v4190 = vld [vmem:[%s4149 + $0x54] sm:$0x1]
        %v4191 = vld [vmem:[%s4149 + $0x5c] sm:$0x1]
        %v4192 = vld [vmem:[%s4149 + $0x64] sm:$0x1]
        %v4193 = vld [vmem:[%s4149 + $0x6c] sm:$0x1]
        %v4194 = vld [vmem:[%s4149 + $0x74] sm:$0x1]
        %v4195 = vld [vmem:[%s4149 + $0x7c] sm:$0x1]
        %v4196 = vld [vmem:[%s4149 + $0x84] sm:$0x1]
        %v4197 = vld [vmem:[%s4149 + $0x8c] sm:$0x1]
        %v4198 = vld [vmem:[%s4149 + $0xa4] sm:$0x1]
        %v4199 = vld [vmem:[%s4149 + $0xac] sm:$0x1]
        %v4200 = vld [vmem:[%s4149 + $0xb4] sm:$0x1]
        %v4201 = vld [vmem:[%s4149 + $0xbc] sm:$0x1]
        %v4202 = vld [vmem:[%s4149 + $0xc4] sm:$0x1]
        %v4203 = vld [vmem:[%s4149 + $0xcc] sm:$0x1]
        %v4204 = vld [vmem:[%s4149 + $0xd4] sm:$0x1]
        %v4205 = vld [vmem:[%s4149 + $0xdc] sm:$0x1]
        %v4206 = vld [vmem:[%s4149 + $0xf4] sm:$0x1]
        %v4207 = vld [vmem:[%s4149 + $0xfc] sm:$0x1]
        %v4208 = vld [vmem:[%s4149 + $0x104] sm:$0x1]
        %v4209 = vld [vmem:[%s4149 + $0x10c] sm:$0x1]
        %v4210 = vld [vmem:[%s4149 + $0x114] sm:$0x1]
        %v4211 = vld [vmem:[%s4149 + $0x11c] sm:$0x1]
        %v4212 = vld [vmem:[%s4149 + $0x124] sm:$0x1]
        %v4213 = vld [vmem:[%s4149 + $0x12c] sm:$0x1]
        %v4215 = vshrl.u32 %v4150, 16
        %v4217 = vrot.slane %v4215, 4
        %v4218 = vshll.u32 %v4150, 16
        %v4220 = vrot.slane %v4218, 5
        %v4221 = vor.u32 %v4217, %v4220
        %v4222 = vrot.slane %v4221, 4
        %v4224 = vshll.u32 %v4182, 16
        %v4226 = vrot.slane %v4224, 5
        %v4227 = vsel %vm2737, %v4222, %v4226
        %v4229 = vshrl.u32 %v4151, 16
        %v4231 = vrot.slane %v4229, 4
        %v4232 = vshll.u32 %v4151, 16
        %v4234 = vrot.slane %v4232, 5
        %v4235 = vor.u32 %v4231, %v4234
        %v4236 = vrot.slane %v4235, 4
        %v4238 = vshll.u32 %v4183, 16
        %v4240 = vrot.slane %v4238, 5
        %v4241 = vsel %vm2737, %v4236, %v4240
        %v4243 = vshrl.u32 %v4152, 16
        %v4245 = vrot.slane %v4243, 4
        %v4246 = vshll.u32 %v4152, 16
        %v4248 = vrot.slane %v4246, 5
        %v4249 = vor.u32 %v4245, %v4248
        %v4250 = vrot.slane %v4249, 4
        %v4252 = vshll.u32 %v4184, 16
        %v4254 = vrot.slane %v4252, 5
        %v4255 = vsel %vm2737, %v4250, %v4254
        %v4257 = vshrl.u32 %v4153, 16
        %v4259 = vrot.slane %v4257, 4
        %v4260 = vshll.u32 %v4153, 16
        %v4262 = vrot.slane %v4260, 5
        %v4263 = vor.u32 %v4259, %v4262
        %v4264 = vrot.slane %v4263, 4
        %v4266 = vshll.u32 %v4185, 16
        %v4268 = vrot.slane %v4266, 5
        %v4269 = vsel %vm2737, %v4264, %v4268
        %v4271 = vshrl.u32 %v4154, 16
        %v4273 = vrot.slane %v4271, 4
        %v4274 = vshll.u32 %v4154, 16
        %v4276 = vrot.slane %v4274, 5
        %v4277 = vor.u32 %v4273, %v4276
        %v4278 = vrot.slane %v4277, 4
        %v4280 = vshll.u32 %v4186, 16
        %v4282 = vrot.slane %v4280, 5
        %v4283 = vsel %vm2737, %v4278, %v4282
        %v4285 = vshrl.u32 %v4155, 16
        %v4287 = vrot.slane %v4285, 4
        %v4288 = vshll.u32 %v4155, 16
        %v4290 = vrot.slane %v4288, 5
        %v4291 = vor.u32 %v4287, %v4290
        %v4292 = vrot.slane %v4291, 4
        %v4294 = vshll.u32 %v4187, 16
        %v4296 = vrot.slane %v4294, 5
        %v4297 = vsel %vm2737, %v4292, %v4296
        %v4299 = vshrl.u32 %v4156, 16
        %v4301 = vrot.slane %v4299, 4
        %v4302 = vshll.u32 %v4156, 16
        %v4304 = vrot.slane %v4302, 5
        %v4305 = vor.u32 %v4301, %v4304
        %v4306 = vrot.slane %v4305, 4
        %v4308 = vshll.u32 %v4188, 16
        %v4310 = vrot.slane %v4308, 5
        %v4311 = vsel %vm2737, %v4306, %v4310
        %v4313 = vshrl.u32 %v4157, 16
        %v4315 = vrot.slane %v4313, 4
        %v4316 = vshll.u32 %v4157, 16
        %v4318 = vrot.slane %v4316, 5
        %v4319 = vor.u32 %v4315, %v4318
        %v4320 = vrot.slane %v4319, 4
        %v4322 = vshll.u32 %v4189, 16
        %v4324 = vrot.slane %v4322, 5
        %v4325 = vsel %vm2737, %v4320, %v4324
        %v4327 = vshrl.u32 %v4158, 16
        %v4329 = vrot.slane %v4327, 4
        %v4330 = vshll.u32 %v4158, 16
        %v4332 = vrot.slane %v4330, 5
        %v4333 = vor.u32 %v4329, %v4332
        %v4334 = vrot.slane %v4333, 4
        %v4336 = vshll.u32 %v4190, 16
        %v4338 = vrot.slane %v4336, 5
        %v4339 = vsel %vm2737, %v4334, %v4338
        %v4341 = vshrl.u32 %v4159, 16
        %v4343 = vrot.slane %v4341, 4
        %v4344 = vshll.u32 %v4159, 16
        %v4346 = vrot.slane %v4344, 5
        %v4347 = vor.u32 %v4343, %v4346
        %v4348 = vrot.slane %v4347, 4
        %v4350 = vshll.u32 %v4191, 16
        %v4352 = vrot.slane %v4350, 5
        %v4353 = vsel %vm2737, %v4348, %v4352
        %v4355 = vshrl.u32 %v4160, 16
        %v4357 = vrot.slane %v4355, 4
        %v4358 = vshll.u32 %v4160, 16
        %v4360 = vrot.slane %v4358, 5
        %v4361 = vor.u32 %v4357, %v4360
        %v4362 = vrot.slane %v4361, 4
        %v4364 = vshll.u32 %v4192, 16
        %v4366 = vrot.slane %v4364, 5
        %v4367 = vsel %vm2737, %v4362, %v4366
        %v4369 = vshrl.u32 %v4161, 16
        %v4371 = vrot.slane %v4369, 4
        %v4372 = vshll.u32 %v4161, 16
        %v4374 = vrot.slane %v4372, 5
        %v4375 = vor.u32 %v4371, %v4374
        %v4376 = vrot.slane %v4375, 4
        %v4378 = vshll.u32 %v4193, 16
        %v4380 = vrot.slane %v4378, 5
        %v4381 = vsel %vm2737, %v4376, %v4380
        %v4383 = vshrl.u32 %v4162, 16
        %v4385 = vrot.slane %v4383, 4
        %v4386 = vshll.u32 %v4162, 16
        %v4388 = vrot.slane %v4386, 5
        %v4389 = vor.u32 %v4385, %v4388
        %v4390 = vrot.slane %v4389, 4
        %v4392 = vshll.u32 %v4194, 16
        %v4394 = vrot.slane %v4392, 5
        %v4395 = vsel %vm2737, %v4390, %v4394
        %v4397 = vshrl.u32 %v4163, 16
        %v4399 = vrot.slane %v4397, 4
        %v4400 = vshll.u32 %v4163, 16
        %v4402 = vrot.slane %v4400, 5
        %v4403 = vor.u32 %v4399, %v4402
        %v4404 = vrot.slane %v4403, 4
        %v4406 = vshll.u32 %v4195, 16
        %v4408 = vrot.slane %v4406, 5
        %v4409 = vsel %vm2737, %v4404, %v4408
        %v4411 = vshrl.u32 %v4164, 16
        %v4413 = vrot.slane %v4411, 4
        %v4414 = vshll.u32 %v4164, 16
        %v4416 = vrot.slane %v4414, 5
        %v4417 = vor.u32 %v4413, %v4416
        %v4418 = vrot.slane %v4417, 4
        %v4420 = vshll.u32 %v4196, 16
        %v4422 = vrot.slane %v4420, 5
        %v4423 = vsel %vm2737, %v4418, %v4422
        %v4425 = vshrl.u32 %v4165, 16
        %v4427 = vrot.slane %v4425, 4
        %v4428 = vshll.u32 %v4165, 16
        %v4430 = vrot.slane %v4428, 5
        %v4431 = vor.u32 %v4427, %v4430
        %v4432 = vrot.slane %v4431, 4
        %v4434 = vshll.u32 %v4197, 16
        %v4436 = vrot.slane %v4434, 5
        %v4437 = vsel %vm2737, %v4432, %v4436
        %v4439 = vshrl.u32 %v4166, 16
        %v4441 = vrot.slane %v4439, 4
        %v4442 = vshll.u32 %v4166, 16
        %v4444 = vrot.slane %v4442, 5
        %v4445 = vor.u32 %v4441, %v4444
        %v4446 = vrot.slane %v4445, 4
        %v4448 = vshll.u32 %v4198, 16
        %v4450 = vrot.slane %v4448, 5
        %v4451 = vsel %vm2737, %v4446, %v4450
        %v4453 = vshrl.u32 %v4167, 16
        %v4455 = vrot.slane %v4453, 4
        %v4456 = vshll.u32 %v4167, 16
        %v4458 = vrot.slane %v4456, 5
        %v4459 = vor.u32 %v4455, %v4458
        %v4460 = vrot.slane %v4459, 4
        %v4462 = vshll.u32 %v4199, 16
        %v4464 = vrot.slane %v4462, 5
        %v4465 = vsel %vm2737, %v4460, %v4464
        %v4467 = vshrl.u32 %v4168, 16
        %v4469 = vrot.slane %v4467, 4
        %v4470 = vshll.u32 %v4168, 16
        %v4472 = vrot.slane %v4470, 5
        %v4473 = vor.u32 %v4469, %v4472
        %v4474 = vrot.slane %v4473, 4
        %v4476 = vshll.u32 %v4200, 16
        %v4478 = vrot.slane %v4476, 5
        %v4479 = vsel %vm2737, %v4474, %v4478
        %v4481 = vshrl.u32 %v4169, 16
        %v4483 = vrot.slane %v4481, 4
        %v4484 = vshll.u32 %v4169, 16
        %v4486 = vrot.slane %v4484, 5
        %v4487 = vor.u32 %v4483, %v4486
        %v4488 = vrot.slane %v4487, 4
        %v4490 = vshll.u32 %v4201, 16
        %v4492 = vrot.slane %v4490, 5
        %v4493 = vsel %vm2737, %v4488, %v4492
        %v4495 = vshrl.u32 %v4170, 16
        %v4497 = vrot.slane %v4495, 4
        %v4498 = vshll.u32 %v4170, 16
        %v4500 = vrot.slane %v4498, 5
        %v4501 = vor.u32 %v4497, %v4500
        %v4502 = vrot.slane %v4501, 4
        %v4504 = vshll.u32 %v4202, 16
        %v4506 = vrot.slane %v4504, 5
        %v4507 = vsel %vm2737, %v4502, %v4506
        %v4509 = vshrl.u32 %v4171, 16
        %v4511 = vrot.slane %v4509, 4
        %v4512 = vshll.u32 %v4171, 16
        %v4514 = vrot.slane %v4512, 5
        %v4515 = vor.u32 %v4511, %v4514
        %v4516 = vrot.slane %v4515, 4
        %v4518 = vshll.u32 %v4203, 16
        %v4520 = vrot.slane %v4518, 5
        %v4521 = vsel %vm2737, %v4516, %v4520
        %v4523 = vshrl.u32 %v4172, 16
        %v4525 = vrot.slane %v4523, 4
        %v4526 = vshll.u32 %v4172, 16
        %v4528 = vrot.slane %v4526, 5
        %v4529 = vor.u32 %v4525, %v4528
        %v4530 = vrot.slane %v4529, 4
        %v4532 = vshll.u32 %v4204, 16
        %v4534 = vrot.slane %v4532, 5
        %v4535 = vsel %vm2737, %v4530, %v4534
        %v4537 = vshrl.u32 %v4173, 16
        %v4539 = vrot.slane %v4537, 4
        %v4540 = vshll.u32 %v4173, 16
        %v4542 = vrot.slane %v4540, 5
        %v4543 = vor.u32 %v4539, %v4542
        %v4544 = vrot.slane %v4543, 4
        %v4546 = vshll.u32 %v4205, 16
        %v4548 = vrot.slane %v4546, 5
        %v4549 = vsel %vm2737, %v4544, %v4548
        %v4551 = vshrl.u32 %v4174, 16
        %v4553 = vrot.slane %v4551, 4
        %v4554 = vshll.u32 %v4174, 16
        %v4556 = vrot.slane %v4554, 5
        %v4557 = vor.u32 %v4553, %v4556
        %v4558 = vrot.slane %v4557, 4
        %v4560 = vshll.u32 %v4206, 16
        %v4562 = vrot.slane %v4560, 5
        %v4563 = vsel %vm2737, %v4558, %v4562
        %v4565 = vshrl.u32 %v4175, 16
        %v4567 = vrot.slane %v4565, 4
        %v4568 = vshll.u32 %v4175, 16
        %v4570 = vrot.slane %v4568, 5
        %v4571 = vor.u32 %v4567, %v4570
        %v4572 = vrot.slane %v4571, 4
        %v4574 = vshll.u32 %v4207, 16
        %v4576 = vrot.slane %v4574, 5
        %v4577 = vsel %vm2737, %v4572, %v4576
        %v4579 = vshrl.u32 %v4176, 16
        %v4581 = vrot.slane %v4579, 4
        %v4582 = vshll.u32 %v4176, 16
        %v4584 = vrot.slane %v4582, 5
        %v4585 = vor.u32 %v4581, %v4584
        %v4586 = vrot.slane %v4585, 4
        %v4588 = vshll.u32 %v4208, 16
        %v4590 = vrot.slane %v4588, 5
        %v4591 = vsel %vm2737, %v4586, %v4590
        %v4593 = vshrl.u32 %v4177, 16
        %v4595 = vrot.slane %v4593, 4
        %v4596 = vshll.u32 %v4177, 16
        %v4598 = vrot.slane %v4596, 5
        %v4599 = vor.u32 %v4595, %v4598
        %v4600 = vrot.slane %v4599, 4
        %v4602 = vshll.u32 %v4209, 16
        %v4604 = vrot.slane %v4602, 5
        %v4605 = vsel %vm2737, %v4600, %v4604
        %v4607 = vshrl.u32 %v4178, 16
        %v4609 = vrot.slane %v4607, 4
        %v4610 = vshll.u32 %v4178, 16
        %v4612 = vrot.slane %v4610, 5
        %v4613 = vor.u32 %v4609, %v4612
        %v4614 = vrot.slane %v4613, 4
        %v4616 = vshll.u32 %v4210, 16
        %v4618 = vrot.slane %v4616, 5
        %v4619 = vsel %vm2737, %v4614, %v4618
        %v4621 = vshrl.u32 %v4179, 16
        %v4623 = vrot.slane %v4621, 4
        %v4624 = vshll.u32 %v4179, 16
        %v4626 = vrot.slane %v4624, 5
        %v4627 = vor.u32 %v4623, %v4626
        %v4628 = vrot.slane %v4627, 4
        %v4630 = vshll.u32 %v4211, 16
        %v4632 = vrot.slane %v4630, 5
        %v4633 = vsel %vm2737, %v4628, %v4632
        %v4635 = vshrl.u32 %v4180, 16
        %v4637 = vrot.slane %v4635, 4
        %v4638 = vshll.u32 %v4180, 16
        %v4640 = vrot.slane %v4638, 5
        %v4641 = vor.u32 %v4637, %v4640
        %v4642 = vrot.slane %v4641, 4
        %v4644 = vshll.u32 %v4212, 16
        %v4646 = vrot.slane %v4644, 5
        %v4647 = vsel %vm2737, %v4642, %v4646
        %v4649 = vshrl.u32 %v4181, 16
        %v4651 = vrot.slane %v4649, 4
        %v4652 = vshll.u32 %v4181, 16
        %v4654 = vrot.slane %v4652, 5
        %v4655 = vor.u32 %v4651, %v4654
        %v4656 = vrot.slane %v4655, 4
        %v4658 = vshll.u32 %v4213, 16
        %v4660 = vrot.slane %v4658, 5
        %v4661 = vsel %vm2737, %v4656, %v4660
        %v4662 = vld [vmem:[%s4149] sm:$0xe]
        %v4663 = vld [vmem:[%s4149 + $0x8] sm:$0xe]
        %v4664 = vld [vmem:[%s4149 + $0x10] sm:$0xe]
        %v4665 = vld [vmem:[%s4149 + $0x18] sm:$0xe]
        %v4666 = vld [vmem:[%s4149 + $0x20] sm:$0xe]
        %v4667 = vld [vmem:[%s4149 + $0x28] sm:$0xe]
        %v4668 = vld [vmem:[%s4149 + $0x30] sm:$0xe]
        %v4669 = vld [vmem:[%s4149 + $0x38] sm:$0xe]
        %v4670 = vld [vmem:[%s4149 + $0x50] sm:$0xe]
        %v4671 = vld [vmem:[%s4149 + $0x58] sm:$0xe]
        %v4672 = vld [vmem:[%s4149 + $0x60] sm:$0xe]
        %v4673 = vld [vmem:[%s4149 + $0x68] sm:$0xe]
        %v4674 = vld [vmem:[%s4149 + $0x70] sm:$0xe]
        %v4675 = vld [vmem:[%s4149 + $0x78] sm:$0xe]
        %v4676 = vld [vmem:[%s4149 + $0x80] sm:$0xe]
        %v4677 = vld [vmem:[%s4149 + $0x88] sm:$0xe]
        %v4678 = vld [vmem:[%s4149 + $0xa0] sm:$0xe]
        %v4679 = vld [vmem:[%s4149 + $0xa8] sm:$0xe]
        %v4680 = vld [vmem:[%s4149 + $0xb0] sm:$0xe]
        %v4681 = vld [vmem:[%s4149 + $0xb8] sm:$0xe]
        %v4682 = vld [vmem:[%s4149 + $0xc0] sm:$0xe]
        %v4683 = vld [vmem:[%s4149 + $0xc8] sm:$0xe]
        %v4684 = vld [vmem:[%s4149 + $0xd0] sm:$0xe]
        %v4685 = vld [vmem:[%s4149 + $0xd8] sm:$0xe]
        %v4686 = vld [vmem:[%s4149 + $0xf0] sm:$0xe]
        %v4687 = vld [vmem:[%s4149 + $0xf8] sm:$0xe]
        %v4688 = vld [vmem:[%s4149 + $0x100] sm:$0xe]
        %v4689 = vld [vmem:[%s4149 + $0x108] sm:$0xe]
        %v4690 = vld [vmem:[%s4149 + $0x110] sm:$0xe]
        %v4691 = vld [vmem:[%s4149 + $0x118] sm:$0xe]
        %v4692 = vld [vmem:[%s4149 + $0x120] sm:$0xe]
        %v4693 = vld [vmem:[%s4149 + $0x128] sm:$0xe]
        %v4758 = vrot.slane %v4662, 5
        %v4759 = vrot.slane %v4758, 4
        %v4760 = vrot.slane %v4182, 5
        %v4761 = vsel %vm3284, %v4759, %v4760
        %v4762 = vrot.slane %v4663, 5
        %v4763 = vrot.slane %v4762, 4
        %v4764 = vrot.slane %v4183, 5
        %v4765 = vsel %vm3284, %v4763, %v4764
        %v4766 = vrot.slane %v4664, 5
        %v4767 = vrot.slane %v4766, 4
        %v4768 = vrot.slane %v4184, 5
        %v4769 = vsel %vm3284, %v4767, %v4768
        %v4770 = vrot.slane %v4665, 5
        %v4771 = vrot.slane %v4770, 4
        %v4772 = vrot.slane %v4185, 5
        %v4773 = vsel %vm3284, %v4771, %v4772
        %v4774 = vrot.slane %v4666, 5
        %v4775 = vrot.slane %v4774, 4
        %v4776 = vrot.slane %v4186, 5
        %v4777 = vsel %vm3284, %v4775, %v4776
        %v4778 = vrot.slane %v4667, 5
        %v4779 = vrot.slane %v4778, 4
        %v4780 = vrot.slane %v4187, 5
        %v4781 = vsel %vm3284, %v4779, %v4780
        %v4782 = vrot.slane %v4668, 5
        %v4783 = vrot.slane %v4782, 4
        %v4784 = vrot.slane %v4188, 5
        %v4785 = vsel %vm3284, %v4783, %v4784
        %v4786 = vrot.slane %v4669, 5
        %v4787 = vrot.slane %v4786, 4
        %v4788 = vrot.slane %v4189, 5
        %v4789 = vsel %vm3284, %v4787, %v4788
        %v4790 = vrot.slane %v4670, 5
        %v4791 = vrot.slane %v4790, 4
        %v4792 = vrot.slane %v4190, 5
        %v4793 = vsel %vm3284, %v4791, %v4792
        %v4794 = vrot.slane %v4671, 5
        %v4795 = vrot.slane %v4794, 4
        %v4796 = vrot.slane %v4191, 5
        %v4797 = vsel %vm3284, %v4795, %v4796
        %v4798 = vrot.slane %v4672, 5
        %v4799 = vrot.slane %v4798, 4
        %v4800 = vrot.slane %v4192, 5
        %v4801 = vsel %vm3284, %v4799, %v4800
        %v4802 = vrot.slane %v4673, 5
        %v4803 = vrot.slane %v4802, 4
        %v4804 = vrot.slane %v4193, 5
        %v4805 = vsel %vm3284, %v4803, %v4804
        %v4806 = vrot.slane %v4674, 5
        %v4807 = vrot.slane %v4806, 4
        %v4808 = vrot.slane %v4194, 5
        %v4809 = vsel %vm3284, %v4807, %v4808
        %v4810 = vrot.slane %v4675, 5
        %v4811 = vrot.slane %v4810, 4
        %v4812 = vrot.slane %v4195, 5
        %v4813 = vsel %vm3284, %v4811, %v4812
        %v4814 = vrot.slane %v4676, 5
        %v4815 = vrot.slane %v4814, 4
        %v4816 = vrot.slane %v4196, 5
        %v4817 = vsel %vm3284, %v4815, %v4816
        %v4818 = vrot.slane %v4677, 5
        %v4819 = vrot.slane %v4818, 4
        %v4820 = vrot.slane %v4197, 5
        %v4821 = vsel %vm3284, %v4819, %v4820
        %v4822 = vrot.slane %v4678, 5
        %v4823 = vrot.slane %v4822, 4
        %v4824 = vrot.slane %v4198, 5
        %v4825 = vsel %vm3284, %v4823, %v4824
        %v4826 = vrot.slane %v4679, 5
        %v4827 = vrot.slane %v4826, 4
        %v4828 = vrot.slane %v4199, 5
        %v4829 = vsel %vm3284, %v4827, %v4828
        %v4830 = vrot.slane %v4680, 5
        %v4831 = vrot.slane %v4830, 4
        %v4832 = vrot.slane %v4200, 5
        %v4833 = vsel %vm3284, %v4831, %v4832
        %v4834 = vrot.slane %v4681, 5
        %v4835 = vrot.slane %v4834, 4
        %v4836 = vrot.slane %v4201, 5
        %v4837 = vsel %vm3284, %v4835, %v4836
        %v4838 = vrot.slane %v4682, 5
        %v4839 = vrot.slane %v4838, 4
        %v4840 = vrot.slane %v4202, 5
        %v4841 = vsel %vm3284, %v4839, %v4840
        %v4842 = vrot.slane %v4683, 5
        %v4843 = vrot.slane %v4842, 4
        %v4844 = vrot.slane %v4203, 5
        %v4845 = vsel %vm3284, %v4843, %v4844
        %v4846 = vrot.slane %v4684, 5
        %v4847 = vrot.slane %v4846, 4
        %v4848 = vrot.slane %v4204, 5
        %v4849 = vsel %vm3284, %v4847, %v4848
        %v4850 = vrot.slane %v4685, 5
        %v4851 = vrot.slane %v4850, 4
        %v4852 = vrot.slane %v4205, 5
        %v4853 = vsel %vm3284, %v4851, %v4852
        %v4854 = vrot.slane %v4686, 5
        %v4855 = vrot.slane %v4854, 4
        %v4856 = vrot.slane %v4206, 5
        %v4857 = vsel %vm3284, %v4855, %v4856
        %v4858 = vrot.slane %v4687, 5
        %v4859 = vrot.slane %v4858, 4
        %v4860 = vrot.slane %v4207, 5
        %v4861 = vsel %vm3284, %v4859, %v4860
        %v4862 = vrot.slane %v4688, 5
        %v4863 = vrot.slane %v4862, 4
        %v4864 = vrot.slane %v4208, 5
        %v4865 = vsel %vm3284, %v4863, %v4864
        %v4866 = vrot.slane %v4689, 5
        %v4867 = vrot.slane %v4866, 4
        %v4868 = vrot.slane %v4209, 5
        %v4869 = vsel %vm3284, %v4867, %v4868
        %v4870 = vrot.slane %v4690, 5
        %v4871 = vrot.slane %v4870, 4
        %v4872 = vrot.slane %v4210, 5
        %v4873 = vsel %vm3284, %v4871, %v4872
        %v4874 = vrot.slane %v4691, 5
        %v4875 = vrot.slane %v4874, 4
        %v4876 = vrot.slane %v4211, 5
        %v4877 = vsel %vm3284, %v4875, %v4876
        %v4878 = vrot.slane %v4692, 5
        %v4879 = vrot.slane %v4878, 4
        %v4880 = vrot.slane %v4212, 5
        %v4881 = vsel %vm3284, %v4879, %v4880
        %v4882 = vrot.slane %v4693, 5
        %v4883 = vrot.slane %v4882, 4
        %v4884 = vrot.slane %v4213, 5
        %v4885 = vsel %vm3284, %v4883, %v4884
        %v4918 = vunpack.c.l.b16 %v2671
        %v4919 = vunpack.c.l.b16 %v2672
        %v4920 = vunpack.c.l.b16 %v2673
        %v4921 = vunpack.c.l.b16 %v2674
        %v4922 = vunpack.c.l.b16 %v2675
        %v4923 = vunpack.c.l.b16 %v2676
        %v4924 = vunpack.c.l.b16 %v2677
        %v4925 = vunpack.c.l.b16 %v2678
        %v4926 = vunpack.c.l.b16 %v2679
        %v4927 = vunpack.c.l.b16 %v2680
        %v4928 = vunpack.c.l.b16 %v2681
        %v4929 = vunpack.c.l.b16 %v2682
        %v4930 = vunpack.c.l.b16 %v2683
        %v4931 = vunpack.c.l.b16 %v2684
        %v4932 = vunpack.c.l.b16 %v2685
        %v4933 = vunpack.c.l.b16 %v2686
        %v4934 = vunpack.c.l.b16 %v2687
        %v4935 = vunpack.c.l.b16 %v2688
        %v4936 = vunpack.c.l.b16 %v2689
        %v4937 = vunpack.c.l.b16 %v2690
        %v4938 = vunpack.c.l.b16 %v2691
        %v4939 = vunpack.c.l.b16 %v2692
        %v4940 = vunpack.c.l.b16 %v2693
        %v4941 = vunpack.c.l.b16 %v2694
        %v4942 = vunpack.c.l.b16 %v2695
        %v4943 = vunpack.c.l.b16 %v2696
        %v4944 = vunpack.c.l.b16 %v2697
        %v4945 = vunpack.c.l.b16 %v2698
        %v4946 = vunpack.c.l.b16 %v2699
        %v4947 = vunpack.c.l.b16 %v2700
        %v4948 = vunpack.c.l.b16 %v2701
        %v4949 = vunpack.c.l.b16 %v2702
        %v4950 = vpack.c.b16 %v4919, %v4918
        %v4951 = vpack.c.b16 %v4921, %v4920
        %v4952 = vpack.c.b16 %v4923, %v4922
        %v4953 = vpack.c.b16 %v4925, %v4924
        %v4954 = vpack.c.b16 %v4927, %v4926
        %v4955 = vpack.c.b16 %v4929, %v4928
        %v4956 = vpack.c.b16 %v4931, %v4930
        %v4957 = vpack.c.b16 %v4933, %v4932
        %v4958 = vpack.c.b16 %v4935, %v4934
        %v4959 = vpack.c.b16 %v4937, %v4936
        %v4960 = vpack.c.b16 %v4939, %v4938
        %v4961 = vpack.c.b16 %v4941, %v4940
        %v4962 = vpack.c.b16 %v4943, %v4942
        %v4963 = vpack.c.b16 %v4945, %v4944
        %v4964 = vpack.c.b16 %v4947, %v4946
        %v4965 = vpack.c.b16 %v4949, %v4948
        %v4982 = vunpack.c.l.b16 %v2751
        %v4983 = vunpack.c.l.b16 %v2765
        %v4984 = vunpack.c.l.b16 %v2779
        %v4985 = vunpack.c.l.b16 %v2793
        %v4986 = vunpack.c.l.b16 %v2807
        %v4987 = vunpack.c.l.b16 %v2821
        %v4988 = vunpack.c.l.b16 %v2835
        %v4989 = vunpack.c.l.b16 %v2849
        %v4990 = vunpack.c.l.b16 %v2863
        %v4991 = vunpack.c.l.b16 %v2877
        %v4992 = vunpack.c.l.b16 %v2891
        %v4993 = vunpack.c.l.b16 %v2905
        %v4994 = vunpack.c.l.b16 %v2919
        %v4995 = vunpack.c.l.b16 %v2933
        %v4996 = vunpack.c.l.b16 %v2947
        %v4997 = vunpack.c.l.b16 %v2961
        %v4998 = vunpack.c.l.b16 %v2975
        %v4999 = vunpack.c.l.b16 %v2989
        %v5000 = vunpack.c.l.b16 %v3003
        %v5001 = vunpack.c.l.b16 %v3017
        %v5002 = vunpack.c.l.b16 %v3031
        %v5003 = vunpack.c.l.b16 %v3045
        %v5004 = vunpack.c.l.b16 %v3059
        %v5005 = vunpack.c.l.b16 %v3073
        %v5006 = vunpack.c.l.b16 %v3087
        %v5007 = vunpack.c.l.b16 %v3101
        %v5008 = vunpack.c.l.b16 %v3115
        %v5009 = vunpack.c.l.b16 %v3129
        %v5010 = vunpack.c.l.b16 %v3143
        %v5011 = vunpack.c.l.b16 %v3157
        %v5012 = vunpack.c.l.b16 %v3171
        %v5013 = vunpack.c.l.b16 %v3185
        %v5014 = vpack.c.b16 %v4983, %v4982
        %v5015 = vpack.c.b16 %v4985, %v4984
        %v5016 = vpack.c.b16 %v4987, %v4986
        %v5017 = vpack.c.b16 %v4989, %v4988
        %v5018 = vpack.c.b16 %v4991, %v4990
        %v5019 = vpack.c.b16 %v4993, %v4992
        %v5020 = vpack.c.b16 %v4995, %v4994
        %v5021 = vpack.c.b16 %v4997, %v4996
        %v5022 = vpack.c.b16 %v4999, %v4998
        %v5023 = vpack.c.b16 %v5001, %v5000
        %v5024 = vpack.c.b16 %v5003, %v5002
        %v5025 = vpack.c.b16 %v5005, %v5004
        %v5026 = vpack.c.b16 %v5007, %v5006
        %v5027 = vpack.c.b16 %v5009, %v5008
        %v5028 = vpack.c.b16 %v5011, %v5010
        %v5029 = vpack.c.b16 %v5013, %v5012
        %v5046 = vunpack.c.l.b16 %v3288
        %v5047 = vunpack.c.l.b16 %v3292
        %v5048 = vunpack.c.l.b16 %v3296
        %v5049 = vunpack.c.l.b16 %v3300
        %v5050 = vunpack.c.l.b16 %v3304
        %v5051 = vunpack.c.l.b16 %v3308
        %v5052 = vunpack.c.l.b16 %v3312
        %v5053 = vunpack.c.l.b16 %v3316
        %v5054 = vunpack.c.l.b16 %v3320
        %v5055 = vunpack.c.l.b16 %v3324
        %v5056 = vunpack.c.l.b16 %v3328
        %v5057 = vunpack.c.l.b16 %v3332
        %v5058 = vunpack.c.l.b16 %v3336
        %v5059 = vunpack.c.l.b16 %v3340
        %v5060 = vunpack.c.l.b16 %v3344
        %v5061 = vunpack.c.l.b16 %v3348
        %v5062 = vunpack.c.l.b16 %v3352
        %v5063 = vunpack.c.l.b16 %v3356
        %v5064 = vunpack.c.l.b16 %v3360
        %v5065 = vunpack.c.l.b16 %v3364
        %v5066 = vunpack.c.l.b16 %v3368
        %v5067 = vunpack.c.l.b16 %v3372
        %v5068 = vunpack.c.l.b16 %v3376
        %v5069 = vunpack.c.l.b16 %v3380
        %v5070 = vunpack.c.l.b16 %v3384
        %v5071 = vunpack.c.l.b16 %v3388
        %v5072 = vunpack.c.l.b16 %v3392
        %v5073 = vunpack.c.l.b16 %v3396
        %v5074 = vunpack.c.l.b16 %v3400
        %v5075 = vunpack.c.l.b16 %v3404
        %v5076 = vunpack.c.l.b16 %v3408
        %v5077 = vunpack.c.l.b16 %v3412
        %v5078 = vpack.c.b16 %v5047, %v5046
        %v5079 = vpack.c.b16 %v5049, %v5048
        %v5080 = vpack.c.b16 %v5051, %v5050
        %v5081 = vpack.c.b16 %v5053, %v5052
        %v5082 = vpack.c.b16 %v5055, %v5054
        %v5083 = vpack.c.b16 %v5057, %v5056
        %v5084 = vpack.c.b16 %v5059, %v5058
        %v5085 = vpack.c.b16 %v5061, %v5060
        %v5086 = vpack.c.b16 %v5063, %v5062
        %v5087 = vpack.c.b16 %v5065, %v5064
        %v5088 = vpack.c.b16 %v5067, %v5066
        %v5089 = vpack.c.b16 %v5069, %v5068
        %v5090 = vpack.c.b16 %v5071, %v5070
        %v5091 = vpack.c.b16 %v5073, %v5072
        %v5092 = vpack.c.b16 %v5075, %v5074
        %v5093 = vpack.c.b16 %v5077, %v5076
        %v5142 = vunpack.c.l.b16 %v3413
        %v5143 = vunpack.c.l.b16 %v3414
        %v5144 = vunpack.c.l.b16 %v3415
        %v5145 = vunpack.c.l.b16 %v3416
        %v5146 = vunpack.c.l.b16 %v3417
        %v5147 = vunpack.c.l.b16 %v3418
        %v5148 = vunpack.c.l.b16 %v3419
        %v5149 = vunpack.c.l.b16 %v3420
        %v5150 = vunpack.c.l.b16 %v3421
        %v5151 = vunpack.c.l.b16 %v3422
        %v5152 = vunpack.c.l.b16 %v3423
        %v5153 = vunpack.c.l.b16 %v3424
        %v5154 = vunpack.c.l.b16 %v3425
        %v5155 = vunpack.c.l.b16 %v3426
        %v5156 = vunpack.c.l.b16 %v3427
        %v5157 = vunpack.c.l.b16 %v3428
        %v5158 = vunpack.c.l.b16 %v3429
        %v5159 = vunpack.c.l.b16 %v3430
        %v5160 = vunpack.c.l.b16 %v3431
        %v5161 = vunpack.c.l.b16 %v3432
        %v5162 = vunpack.c.l.b16 %v3433
        %v5163 = vunpack.c.l.b16 %v3434
        %v5164 = vunpack.c.l.b16 %v3435
        %v5165 = vunpack.c.l.b16 %v3436
        %v5166 = vunpack.c.l.b16 %v3437
        %v5167 = vunpack.c.l.b16 %v3438
        %v5168 = vunpack.c.l.b16 %v3439
        %v5169 = vunpack.c.l.b16 %v3440
        %v5170 = vunpack.c.l.b16 %v3441
        %v5171 = vunpack.c.l.b16 %v3442
        %v5172 = vunpack.c.l.b16 %v3443
        %v5173 = vunpack.c.l.b16 %v3444
        %v5174 = vpack.c.b16 %v5143, %v5142
        %v5175 = vpack.c.b16 %v5145, %v5144
        %v5176 = vpack.c.b16 %v5147, %v5146
        %v5177 = vpack.c.b16 %v5149, %v5148
        %v5178 = vpack.c.b16 %v5151, %v5150
        %v5179 = vpack.c.b16 %v5153, %v5152
        %v5180 = vpack.c.b16 %v5155, %v5154
        %v5181 = vpack.c.b16 %v5157, %v5156
        %v5182 = vpack.c.b16 %v5159, %v5158
        %v5183 = vpack.c.b16 %v5161, %v5160
        %v5184 = vpack.c.b16 %v5163, %v5162
        %v5185 = vpack.c.b16 %v5165, %v5164
        %v5186 = vpack.c.b16 %v5167, %v5166
        %v5187 = vpack.c.b16 %v5169, %v5168
        %v5188 = vpack.c.b16 %v5171, %v5170
        %v5189 = vpack.c.b16 %v5173, %v5172
        %v5206 = vunpack.c.l.b16 %v3490
        %v5207 = vunpack.c.l.b16 %v3504
        %v5208 = vunpack.c.l.b16 %v3518
        %v5209 = vunpack.c.l.b16 %v3532
        %v5210 = vunpack.c.l.b16 %v3546
        %v5211 = vunpack.c.l.b16 %v3560
        %v5212 = vunpack.c.l.b16 %v3574
        %v5213 = vunpack.c.l.b16 %v3588
        %v5214 = vunpack.c.l.b16 %v3602
        %v5215 = vunpack.c.l.b16 %v3616
        %v5216 = vunpack.c.l.b16 %v3630
        %v5217 = vunpack.c.l.b16 %v3644
        %v5218 = vunpack.c.l.b16 %v3658
        %v5219 = vunpack.c.l.b16 %v3672
        %v5220 = vunpack.c.l.b16 %v3686
        %v5221 = vunpack.c.l.b16 %v3700
        %v5222 = vunpack.c.l.b16 %v3714
        %v5223 = vunpack.c.l.b16 %v3728
        %v5224 = vunpack.c.l.b16 %v3742
        %v5225 = vunpack.c.l.b16 %v3756
        %v5226 = vunpack.c.l.b16 %v3770
        %v5227 = vunpack.c.l.b16 %v3784
        %v5228 = vunpack.c.l.b16 %v3798
        %v5229 = vunpack.c.l.b16 %v3812
        %v5230 = vunpack.c.l.b16 %v3826
        %v5231 = vunpack.c.l.b16 %v3840
        %v5232 = vunpack.c.l.b16 %v3854
        %v5233 = vunpack.c.l.b16 %v3868
        %v5234 = vunpack.c.l.b16 %v3882
        %v5235 = vunpack.c.l.b16 %v3896
        %v5236 = vunpack.c.l.b16 %v3910
        %v5237 = vunpack.c.l.b16 %v3924
        %v5238 = vpack.c.b16 %v5207, %v5206
        %v5239 = vpack.c.b16 %v5209, %v5208
        %v5240 = vpack.c.b16 %v5211, %v5210
        %v5241 = vpack.c.b16 %v5213, %v5212
        %v5242 = vpack.c.b16 %v5215, %v5214
        %v5243 = vpack.c.b16 %v5217, %v5216
        %v5244 = vpack.c.b16 %v5219, %v5218
        %v5245 = vpack.c.b16 %v5221, %v5220
        %v5246 = vpack.c.b16 %v5223, %v5222
        %v5247 = vpack.c.b16 %v5225, %v5224
        %v5248 = vpack.c.b16 %v5227, %v5226
        %v5249 = vpack.c.b16 %v5229, %v5228
        %v5250 = vpack.c.b16 %v5231, %v5230
        %v5251 = vpack.c.b16 %v5233, %v5232
        %v5252 = vpack.c.b16 %v5235, %v5234
        %v5253 = vpack.c.b16 %v5237, %v5236
        %v5270 = vunpack.c.l.b16 %v4024
        %v5271 = vunpack.c.l.b16 %v4028
        %v5272 = vunpack.c.l.b16 %v4032
        %v5273 = vunpack.c.l.b16 %v4036
        %v5274 = vunpack.c.l.b16 %v4040
        %v5275 = vunpack.c.l.b16 %v4044
        %v5276 = vunpack.c.l.b16 %v4048
        %v5277 = vunpack.c.l.b16 %v4052
        %v5278 = vunpack.c.l.b16 %v4056
        %v5279 = vunpack.c.l.b16 %v4060
        %v5280 = vunpack.c.l.b16 %v4064
        %v5281 = vunpack.c.l.b16 %v4068
        %v5282 = vunpack.c.l.b16 %v4072
        %v5283 = vunpack.c.l.b16 %v4076
        %v5284 = vunpack.c.l.b16 %v4080
        %v5285 = vunpack.c.l.b16 %v4084
        %v5286 = vunpack.c.l.b16 %v4088
        %v5287 = vunpack.c.l.b16 %v4092
        %v5288 = vunpack.c.l.b16 %v4096
        %v5289 = vunpack.c.l.b16 %v4100
        %v5290 = vunpack.c.l.b16 %v4104
        %v5291 = vunpack.c.l.b16 %v4108
        %v5292 = vunpack.c.l.b16 %v4112
        %v5293 = vunpack.c.l.b16 %v4116
        %v5294 = vunpack.c.l.b16 %v4120
        %v5295 = vunpack.c.l.b16 %v4124
        %v5296 = vunpack.c.l.b16 %v4128
        %v5297 = vunpack.c.l.b16 %v4132
        %v5298 = vunpack.c.l.b16 %v4136
        %v5299 = vunpack.c.l.b16 %v4140
        %v5300 = vunpack.c.l.b16 %v4144
        %v5301 = vunpack.c.l.b16 %v4148
        %v5302 = vpack.c.b16 %v5271, %v5270
        %v5303 = vpack.c.b16 %v5273, %v5272
        %v5304 = vpack.c.b16 %v5275, %v5274
        %v5305 = vpack.c.b16 %v5277, %v5276
        %v5306 = vpack.c.b16 %v5279, %v5278
        %v5307 = vpack.c.b16 %v5281, %v5280
        %v5308 = vpack.c.b16 %v5283, %v5282
        %v5309 = vpack.c.b16 %v5285, %v5284
        %v5310 = vpack.c.b16 %v5287, %v5286
        %v5311 = vpack.c.b16 %v5289, %v5288
        %v5312 = vpack.c.b16 %v5291, %v5290
        %v5313 = vpack.c.b16 %v5293, %v5292
        %v5314 = vpack.c.b16 %v5295, %v5294
        %v5315 = vpack.c.b16 %v5297, %v5296
        %v5316 = vpack.c.b16 %v5299, %v5298
        %v5317 = vpack.c.b16 %v5301, %v5300
        %v5366 = vunpack.c.l.b16 %v4150
        %v5367 = vunpack.c.l.b16 %v4151
        %v5368 = vunpack.c.l.b16 %v4152
        %v5369 = vunpack.c.l.b16 %v4153
        %v5370 = vunpack.c.l.b16 %v4154
        %v5371 = vunpack.c.l.b16 %v4155
        %v5372 = vunpack.c.l.b16 %v4156
        %v5373 = vunpack.c.l.b16 %v4157
        %v5374 = vunpack.c.l.b16 %v4158
        %v5375 = vunpack.c.l.b16 %v4159
        %v5376 = vunpack.c.l.b16 %v4160
        %v5377 = vunpack.c.l.b16 %v4161
        %v5378 = vunpack.c.l.b16 %v4162
        %v5379 = vunpack.c.l.b16 %v4163
        %v5380 = vunpack.c.l.b16 %v4164
        %v5381 = vunpack.c.l.b16 %v4165
        %v5382 = vunpack.c.l.b16 %v4166
        %v5383 = vunpack.c.l.b16 %v4167
        %v5384 = vunpack.c.l.b16 %v4168
        %v5385 = vunpack.c.l.b16 %v4169
        %v5386 = vunpack.c.l.b16 %v4170
        %v5387 = vunpack.c.l.b16 %v4171
        %v5388 = vunpack.c.l.b16 %v4172
        %v5389 = vunpack.c.l.b16 %v4173
        %v5390 = vunpack.c.l.b16 %v4174
        %v5391 = vunpack.c.l.b16 %v4175
        %v5392 = vunpack.c.l.b16 %v4176
        %v5393 = vunpack.c.l.b16 %v4177
        %v5394 = vunpack.c.l.b16 %v4178
        %v5395 = vunpack.c.l.b16 %v4179
        %v5396 = vunpack.c.l.b16 %v4180
        %v5397 = vunpack.c.l.b16 %v4181
        %v5398 = vpack.c.b16 %v5367, %v5366
        %v5399 = vpack.c.b16 %v5369, %v5368
        %v5400 = vpack.c.b16 %v5371, %v5370
        %v5401 = vpack.c.b16 %v5373, %v5372
        %v5402 = vpack.c.b16 %v5375, %v5374
        %v5403 = vpack.c.b16 %v5377, %v5376
        %v5404 = vpack.c.b16 %v5379, %v5378
        %v5405 = vpack.c.b16 %v5381, %v5380
        %v5406 = vpack.c.b16 %v5383, %v5382
        %v5407 = vpack.c.b16 %v5385, %v5384
        %v5408 = vpack.c.b16 %v5387, %v5386
        %v5409 = vpack.c.b16 %v5389, %v5388
        %v5410 = vpack.c.b16 %v5391, %v5390
        %v5411 = vpack.c.b16 %v5393, %v5392
        %v5412 = vpack.c.b16 %v5395, %v5394
        %v5413 = vpack.c.b16 %v5397, %v5396
        %v5430 = vunpack.c.l.b16 %v4227
        %v5431 = vunpack.c.l.b16 %v4241
        %v5432 = vunpack.c.l.b16 %v4255
        %v5433 = vunpack.c.l.b16 %v4269
        %v5434 = vunpack.c.l.b16 %v4283
        %v5435 = vunpack.c.l.b16 %v4297
        %v5436 = vunpack.c.l.b16 %v4311
        %v5437 = vunpack.c.l.b16 %v4325
        %v5438 = vunpack.c.l.b16 %v4339
        %v5439 = vunpack.c.l.b16 %v4353
        %v5440 = vunpack.c.l.b16 %v4367
        %v5441 = vunpack.c.l.b16 %v4381
        %v5442 = vunpack.c.l.b16 %v4395
        %v5443 = vunpack.c.l.b16 %v4409
        %v5444 = vunpack.c.l.b16 %v4423
        %v5445 = vunpack.c.l.b16 %v4437
        %v5446 = vunpack.c.l.b16 %v4451
        %v5447 = vunpack.c.l.b16 %v4465
        %v5448 = vunpack.c.l.b16 %v4479
        %v5449 = vunpack.c.l.b16 %v4493
        %v5450 = vunpack.c.l.b16 %v4507
        %v5451 = vunpack.c.l.b16 %v4521
        %v5452 = vunpack.c.l.b16 %v4535
        %v5453 = vunpack.c.l.b16 %v4549
        %v5454 = vunpack.c.l.b16 %v4563
        %v5455 = vunpack.c.l.b16 %v4577
        %v5456 = vunpack.c.l.b16 %v4591
        %v5457 = vunpack.c.l.b16 %v4605
        %v5458 = vunpack.c.l.b16 %v4619
        %v5459 = vunpack.c.l.b16 %v4633
        %v5460 = vunpack.c.l.b16 %v4647
        %v5461 = vunpack.c.l.b16 %v4661
        %v5462 = vpack.c.b16 %v5431, %v5430
        %v5463 = vpack.c.b16 %v5433, %v5432
        %v5464 = vpack.c.b16 %v5435, %v5434
        %v5465 = vpack.c.b16 %v5437, %v5436
        %v5466 = vpack.c.b16 %v5439, %v5438
        %v5467 = vpack.c.b16 %v5441, %v5440
        %v5468 = vpack.c.b16 %v5443, %v5442
        %v5469 = vpack.c.b16 %v5445, %v5444
        %v5470 = vpack.c.b16 %v5447, %v5446
        %v5471 = vpack.c.b16 %v5449, %v5448
        %v5472 = vpack.c.b16 %v5451, %v5450
        %v5473 = vpack.c.b16 %v5453, %v5452
        %v5474 = vpack.c.b16 %v5455, %v5454
        %v5475 = vpack.c.b16 %v5457, %v5456
        %v5476 = vpack.c.b16 %v5459, %v5458
        %v5477 = vpack.c.b16 %v5461, %v5460
        %v5494 = vunpack.c.l.b16 %v4761
        %v5495 = vunpack.c.l.b16 %v4765
        %v5496 = vunpack.c.l.b16 %v4769
        %v5497 = vunpack.c.l.b16 %v4773
        %v5498 = vunpack.c.l.b16 %v4777
        %v5499 = vunpack.c.l.b16 %v4781
        %v5500 = vunpack.c.l.b16 %v4785
        %v5501 = vunpack.c.l.b16 %v4789
        %v5502 = vunpack.c.l.b16 %v4793
        %v5503 = vunpack.c.l.b16 %v4797
        %v5504 = vunpack.c.l.b16 %v4801
        %v5505 = vunpack.c.l.b16 %v4805
        %v5506 = vunpack.c.l.b16 %v4809
        %v5507 = vunpack.c.l.b16 %v4813
        %v5508 = vunpack.c.l.b16 %v4817
        %v5509 = vunpack.c.l.b16 %v4821
        %v5510 = vunpack.c.l.b16 %v4825
        %v5511 = vunpack.c.l.b16 %v4829
        %v5512 = vunpack.c.l.b16 %v4833
        %v5513 = vunpack.c.l.b16 %v4837
        %v5514 = vunpack.c.l.b16 %v4841
        %v5515 = vunpack.c.l.b16 %v4845
        %v5516 = vunpack.c.l.b16 %v4849
        %v5517 = vunpack.c.l.b16 %v4853
        %v5518 = vunpack.c.l.b16 %v4857
        %v5519 = vunpack.c.l.b16 %v4861
        %v5520 = vunpack.c.l.b16 %v4865
        %v5521 = vunpack.c.l.b16 %v4869
        %v5522 = vunpack.c.l.b16 %v4873
        %v5523 = vunpack.c.l.b16 %v4877
        %v5524 = vunpack.c.l.b16 %v4881
        %v5525 = vunpack.c.l.b16 %v4885
        %v5526 = vpack.c.b16 %v5495, %v5494
        %v5527 = vpack.c.b16 %v5497, %v5496
        %v5528 = vpack.c.b16 %v5499, %v5498
        %v5529 = vpack.c.b16 %v5501, %v5500
        %v5530 = vpack.c.b16 %v5503, %v5502
        %v5531 = vpack.c.b16 %v5505, %v5504
        %v5532 = vpack.c.b16 %v5507, %v5506
        %v5533 = vpack.c.b16 %v5509, %v5508
        %v5534 = vpack.c.b16 %v5511, %v5510
        %v5535 = vpack.c.b16 %v5513, %v5512
        %v5536 = vpack.c.b16 %v5515, %v5514
        %v5537 = vpack.c.b16 %v5517, %v5516
        %v5538 = vpack.c.b16 %v5519, %v5518
        %v5539 = vpack.c.b16 %v5521, %v5520
        %v5540 = vpack.c.b16 %v5523, %v5522
        %v5541 = vpack.c.b16 %v5525, %v5524
        %v5558 = vld [vmem:[%s3] sm:$0xff]
        %v5559 = vld [vmem:[%s3 + $0x8] sm:$0xff]
        %v5560 = vld [vmem:[%s3 + $0x10] sm:$0xff]
        %v5561 = vld [vmem:[%s3 + $0x18] sm:$0xff]
        %v5562 = vld [vmem:[%s3 + $0x20] sm:$0xff]
        %v5563 = vld [vmem:[%s3 + $0x28] sm:$0xff]
        %v5564 = vld [vmem:[%s3 + $0x30] sm:$0xff]
        %v5565 = vld [vmem:[%s3 + $0x38] sm:$0xff]
        %v5566 = vld [vmem:[%s3 + $0x40] sm:$0xff]
        %v5567 = vld [vmem:[%s3 + $0x48] sm:$0xff]
        %v5568 = vld [vmem:[%s3 + $0x50] sm:$0xff]
        %v5569 = vld [vmem:[%s3 + $0x58] sm:$0xff]
        %v5570 = vld [vmem:[%s3 + $0x60] sm:$0xff]
        %v5571 = vld [vmem:[%s3 + $0x68] sm:$0xff]
        %v5572 = vld [vmem:[%s3 + $0x70] sm:$0xff]
        %v5573 = vld [vmem:[%s3 + $0x78] sm:$0xff]
        %v5574 = vld [vmem:[%s3 + $0x80] sm:$0xff]
        %v5575 = vld [vmem:[%s3 + $0x88] sm:$0xff]
        %v5576 = vld [vmem:[%s3 + $0x90] sm:$0xff]
        %v5577 = vld [vmem:[%s3 + $0x98] sm:$0xff]
        %v5578 = vld [vmem:[%s3 + $0xa0] sm:$0xff]
        %v5579 = vld [vmem:[%s3 + $0xa8] sm:$0xff]
        %v5580 = vld [vmem:[%s3 + $0xb0] sm:$0xff]
        %v5581 = vld [vmem:[%s3 + $0xb8] sm:$0xff]
        %v5582 = vld [vmem:[%s3 + $0xc0] sm:$0xff]
        %v5583 = vld [vmem:[%s3 + $0xc8] sm:$0xff]
        %v5584 = vld [vmem:[%s3 + $0xd0] sm:$0xff]
        %v5585 = vld [vmem:[%s3 + $0xd8] sm:$0xff]
        %v5586 = vld [vmem:[%s3 + $0xe0] sm:$0xff]
        %v5587 = vld [vmem:[%s3 + $0xe8] sm:$0xff]
        %v5588 = vld [vmem:[%s3 + $0xf0] sm:$0xff]
        %v5589 = vld [vmem:[%s3 + $0xf8] sm:$0xff]
        %v5590 = vld [vmem:[%s3 + $0x100] sm:$0xff]
        %v5591 = vld [vmem:[%s3 + $0x108] sm:$0xff]
        %v5592 = vld [vmem:[%s3 + $0x110] sm:$0xff]
        %v5593 = vld [vmem:[%s3 + $0x118] sm:$0xff]
        %v5594 = vld [vmem:[%s3 + $0x120] sm:$0xff]
        %v5595 = vld [vmem:[%s3 + $0x128] sm:$0xff]
        %v5596 = vld [vmem:[%s3 + $0x130] sm:$0xff]
        %v5597 = vld [vmem:[%s3 + $0x138] sm:$0xff]
        %v5598 = vld [vmem:[%s3 + $0x140] sm:$0xff]
        %v5599 = vld [vmem:[%s3 + $0x148] sm:$0xff]
        %v5600 = vld [vmem:[%s3 + $0x150] sm:$0xff]
        %v5601 = vld [vmem:[%s3 + $0x158] sm:$0xff]
        %v5602 = vld [vmem:[%s3 + $0x160] sm:$0xff]
        %v5603 = vld [vmem:[%s3 + $0x168] sm:$0xff]
        %v5604 = vld [vmem:[%s3 + $0x170] sm:$0xff]
        %v5605 = vld [vmem:[%s3 + $0x178] sm:$0xff]
        %v5606 = vld [vmem:[%s3 + $0x180] sm:$0xff]
        %v5607 = vld [vmem:[%s3 + $0x188] sm:$0xff]
        %v5608 = vld [vmem:[%s3 + $0x190] sm:$0xff]
        %v5609 = vld [vmem:[%s3 + $0x198] sm:$0xff]
        %v5610 = vld [vmem:[%s3 + $0x1a0] sm:$0xff]
        %v5611 = vld [vmem:[%s3 + $0x1a8] sm:$0xff]
        %v5612 = vld [vmem:[%s3 + $0x1b0] sm:$0xff]
        %v5613 = vld [vmem:[%s3 + $0x1b8] sm:$0xff]
        %v5614 = vld [vmem:[%s3 + $0x1c0] sm:$0xff]
        %v5615 = vld [vmem:[%s3 + $0x1c8] sm:$0xff]
        %v5616 = vld [vmem:[%s3 + $0x1d0] sm:$0xff]
        %v5617 = vld [vmem:[%s3 + $0x1d8] sm:$0xff]
        %v5618 = vld [vmem:[%s3 + $0x1e0] sm:$0xff]
        %v5619 = vld [vmem:[%s3 + $0x1e8] sm:$0xff]
        %v5620 = vld [vmem:[%s3 + $0x1f0] sm:$0xff]
        %v5621 = vld [vmem:[%s3 + $0x1f8] sm:$0xff]
        %v5622 = vld [vmem:[%s3 + $0x200] sm:$0xff]
        %v5623 = vld [vmem:[%s3 + $0x208] sm:$0xff]
        %v5624 = vld [vmem:[%s3 + $0x210] sm:$0xff]
        %v5625 = vld [vmem:[%s3 + $0x218] sm:$0xff]
        %v5626 = vld [vmem:[%s3 + $0x220] sm:$0xff]
        %v5627 = vld [vmem:[%s3 + $0x228] sm:$0xff]
        %v5628 = vld [vmem:[%s3 + $0x230] sm:$0xff]
        %v5629 = vld [vmem:[%s3 + $0x238] sm:$0xff]
        %v5630 = vld [vmem:[%s3 + $0x240] sm:$0xff]
        %v5631 = vld [vmem:[%s3 + $0x248] sm:$0xff]
        %v5632 = vld [vmem:[%s3 + $0x250] sm:$0xff]
        %v5633 = vld [vmem:[%s3 + $0x258] sm:$0xff]
        %v5634 = vld [vmem:[%s3 + $0x260] sm:$0xff]
        %v5635 = vld [vmem:[%s3 + $0x268] sm:$0xff]
        %v5636 = vld [vmem:[%s3 + $0x270] sm:$0xff]
        %v5637 = vld [vmem:[%s3 + $0x278] sm:$0xff]
        %v5638 = vld [vmem:[%s3 + $0x280] sm:$0xff]
        %v5639 = vld [vmem:[%s3 + $0x288] sm:$0xff]
        %v5640 = vld [vmem:[%s3 + $0x290] sm:$0xff]
        %v5641 = vld [vmem:[%s3 + $0x298] sm:$0xff]
        %v5642 = vld [vmem:[%s3 + $0x2a0] sm:$0xff]
        %v5643 = vld [vmem:[%s3 + $0x2a8] sm:$0xff]
        %v5644 = vld [vmem:[%s3 + $0x2b0] sm:$0xff]
        %v5645 = vld [vmem:[%s3 + $0x2b8] sm:$0xff]
        %v5646 = vld [vmem:[%s3 + $0x2c0] sm:$0xff]
        %v5647 = vld [vmem:[%s3 + $0x2c8] sm:$0xff]
        %v5648 = vld [vmem:[%s3 + $0x2d0] sm:$0xff]
        %v5649 = vld [vmem:[%s3 + $0x2d8] sm:$0xff]
        %v5650 = vld [vmem:[%s3 + $0x2e0] sm:$0xff]
        %v5651 = vld [vmem:[%s3 + $0x2e8] sm:$0xff]
        %v5652 = vld [vmem:[%s3 + $0x2f0] sm:$0xff]
        %v5653 = vld [vmem:[%s3 + $0x2f8] sm:$0xff]
        %v5654 = vld [vmem:[%s3 + $0x300] sm:$0xff]
        %v5655 = vld [vmem:[%s3 + $0x308] sm:$0xff]
        %v5656 = vld [vmem:[%s3 + $0x310] sm:$0xff]
        %v5657 = vld [vmem:[%s3 + $0x318] sm:$0xff]
        %v5658 = vld [vmem:[%s3 + $0x320] sm:$0xff]
        %v5659 = vld [vmem:[%s3 + $0x328] sm:$0xff]
        %v5660 = vld [vmem:[%s3 + $0x330] sm:$0xff]
        %v5661 = vld [vmem:[%s3 + $0x338] sm:$0xff]
        %v5662 = vld [vmem:[%s3 + $0x340] sm:$0xff]
        %v5663 = vld [vmem:[%s3 + $0x348] sm:$0xff]
        %v5664 = vld [vmem:[%s3 + $0x350] sm:$0xff]
        %v5665 = vld [vmem:[%s3 + $0x358] sm:$0xff]
        %v5666 = vld [vmem:[%s3 + $0x360] sm:$0xff]
        %v5667 = vld [vmem:[%s3 + $0x368] sm:$0xff]
        %v5668 = vld [vmem:[%s3 + $0x370] sm:$0xff]
        %v5669 = vld [vmem:[%s3 + $0x378] sm:$0xff]
        %v5670 = vld [vmem:[%s3 + $0x380] sm:$0xff]
        %v5671 = vld [vmem:[%s3 + $0x388] sm:$0xff]
        %v5672 = vld [vmem:[%s3 + $0x390] sm:$0xff]
        %v5673 = vld [vmem:[%s3 + $0x398] sm:$0xff]
        %v5674 = vld [vmem:[%s3 + $0x3a0] sm:$0xff]
        %v5675 = vld [vmem:[%s3 + $0x3a8] sm:$0xff]
        %v5676 = vld [vmem:[%s3 + $0x3b0] sm:$0xff]
        %v5677 = vld [vmem:[%s3 + $0x3b8] sm:$0xff]
        %v5678 = vld [vmem:[%s3 + $0x3c0] sm:$0xff]
        %v5679 = vld [vmem:[%s3 + $0x3c8] sm:$0xff]
        %v5680 = vld [vmem:[%s3 + $0x3d0] sm:$0xff]
        %v5681 = vld [vmem:[%s3 + $0x3d8] sm:$0xff]
        %v5682 = vld [vmem:[%s3 + $0x3e0] sm:$0xff]
        %v5683 = vld [vmem:[%s3 + $0x3e8] sm:$0xff]
        %v5684 = vld [vmem:[%s3 + $0x3f0] sm:$0xff]
        %v5685 = vld [vmem:[%s3 + $0x3f8] sm:$0xff]
        %v5686 = vld [vmem:[%s3 + $0x400] sm:$0xff]
        %v5687 = vld [vmem:[%s3 + $0x408] sm:$0xff]
        %v5688 = vld [vmem:[%s3 + $0x410] sm:$0xff]
        %v5689 = vld [vmem:[%s3 + $0x418] sm:$0xff]
        %v5690 = vld [vmem:[%s3 + $0x420] sm:$0xff]
        %v5691 = vld [vmem:[%s3 + $0x428] sm:$0xff]
        %v5692 = vld [vmem:[%s3 + $0x430] sm:$0xff]
        %v5693 = vld [vmem:[%s3 + $0x438] sm:$0xff]
        %v5694 = vld [vmem:[%s3 + $0x440] sm:$0xff]
        %v5695 = vld [vmem:[%s3 + $0x448] sm:$0xff]
        %v5696 = vld [vmem:[%s3 + $0x450] sm:$0xff]
        %v5697 = vld [vmem:[%s3 + $0x458] sm:$0xff]
        %v5698 = vld [vmem:[%s3 + $0x460] sm:$0xff]
        %v5699 = vld [vmem:[%s3 + $0x468] sm:$0xff]
        %v5700 = vld [vmem:[%s3 + $0x470] sm:$0xff]
        %v5701 = vld [vmem:[%s3 + $0x478] sm:$0xff]
        %v5702 = vld [vmem:[%s4] sm:$0x3]
        %v5704 = vlaneseq
        %v5705 = vshrl.u32 %v5704, 7
        %v5706 = vsub.s32 0, %v5705
        %v5707 = vrot.slane %v5702, %v5706
        %v5708 = vlaneseq
        %v5709 = vshrl.u32 %v5708, 7
        %v5710 = vsub.s32 1, %v5709
        %v5711 = vrot.slane %v5702, %v5710
        %v5858 = vunpack.c.l.b16 %v5558
        %v5859 = vunpack.c.h.b16 %v5558
        %v5860 = vunpack.c.l.b16 %v5559
        %v5861 = vunpack.c.h.b16 %v5559
        %v5862 = vunpack.c.l.b16 %v5560
        %v5863 = vunpack.c.h.b16 %v5560
        %v5864 = vunpack.c.l.b16 %v5561
        %v5865 = vunpack.c.h.b16 %v5561
        %v5866 = vunpack.c.l.b16 %v5562
        %v5867 = vunpack.c.h.b16 %v5562
        %v5868 = vunpack.c.l.b16 %v5563
        %v5869 = vunpack.c.h.b16 %v5563
        %v5870 = vunpack.c.l.b16 %v5564
        %v5871 = vunpack.c.h.b16 %v5564
        %v5872 = vunpack.c.l.b16 %v5565
        %v5873 = vunpack.c.h.b16 %v5565
        %v5874 = vunpack.c.l.b16 %v5566
        %v5875 = vunpack.c.h.b16 %v5566
        %v5876 = vunpack.c.l.b16 %v5567
        %v5877 = vunpack.c.h.b16 %v5567
        %v5878 = vunpack.c.l.b16 %v5568
        %v5879 = vunpack.c.h.b16 %v5568
        %v5880 = vunpack.c.l.b16 %v5569
        %v5881 = vunpack.c.h.b16 %v5569
        %v5882 = vunpack.c.l.b16 %v5570
        %v5883 = vunpack.c.h.b16 %v5570
        %v5884 = vunpack.c.l.b16 %v5571
        %v5885 = vunpack.c.h.b16 %v5571
        %v5886 = vunpack.c.l.b16 %v5572
        %v5887 = vunpack.c.h.b16 %v5572
        %v5888 = vunpack.c.l.b16 %v5573
        %v5889 = vunpack.c.h.b16 %v5573
        %v5890 = vunpack.c.l.b16 %v5574
        %v5891 = vunpack.c.h.b16 %v5574
        %v5892 = vunpack.c.l.b16 %v5575
        %v5893 = vunpack.c.h.b16 %v5575
        %v5894 = vunpack.c.l.b16 %v5576
        %v5895 = vunpack.c.h.b16 %v5576
        %v5896 = vunpack.c.l.b16 %v5577
        %v5897 = vunpack.c.h.b16 %v5577
        %v5898 = vunpack.c.l.b16 %v5578
        %v5899 = vunpack.c.h.b16 %v5578
        %v5900 = vunpack.c.l.b16 %v5579
        %v5901 = vunpack.c.h.b16 %v5579
        %v5902 = vunpack.c.l.b16 %v5580
        %v5903 = vunpack.c.h.b16 %v5580
        %v5904 = vunpack.c.l.b16 %v5581
        %v5905 = vunpack.c.h.b16 %v5581
        %v5906 = vunpack.c.l.b16 %v5582
        %v5907 = vunpack.c.h.b16 %v5582
        %v5908 = vunpack.c.l.b16 %v5583
        %v5909 = vunpack.c.h.b16 %v5583
        %v5910 = vunpack.c.l.b16 %v5584
        %v5911 = vunpack.c.h.b16 %v5584
        %v5912 = vunpack.c.l.b16 %v5585
        %v5913 = vunpack.c.h.b16 %v5585
        %v5914 = vunpack.c.l.b16 %v5586
        %v5915 = vunpack.c.h.b16 %v5586
        %v5916 = vunpack.c.l.b16 %v5587
        %v5917 = vunpack.c.h.b16 %v5587
        %v5918 = vunpack.c.l.b16 %v5588
        %v5919 = vunpack.c.h.b16 %v5588
        %v5920 = vunpack.c.l.b16 %v5589
        %v5921 = vunpack.c.h.b16 %v5589
        %v5922 = vunpack.c.l.b16 %v5590
        %v5923 = vunpack.c.h.b16 %v5590
        %v5924 = vunpack.c.l.b16 %v5591
        %v5925 = vunpack.c.h.b16 %v5591
        %v5926 = vunpack.c.l.b16 %v5592
        %v5927 = vunpack.c.h.b16 %v5592
        %v5928 = vunpack.c.l.b16 %v5593
        %v5929 = vunpack.c.h.b16 %v5593
        %v5930 = vunpack.c.l.b16 %v5594
        %v5931 = vunpack.c.h.b16 %v5594
        %v5932 = vunpack.c.l.b16 %v5595
        %v5933 = vunpack.c.h.b16 %v5595
        %v5934 = vunpack.c.l.b16 %v5596
        %v5935 = vunpack.c.h.b16 %v5596
        %v5936 = vunpack.c.l.b16 %v5597
        %v5937 = vunpack.c.h.b16 %v5597
        %v5938 = vunpack.c.l.b16 %v5598
        %v5939 = vunpack.c.h.b16 %v5598
        %v5940 = vunpack.c.l.b16 %v5599
        %v5941 = vunpack.c.h.b16 %v5599
        %v5942 = vunpack.c.l.b16 %v5600
        %v5943 = vunpack.c.h.b16 %v5600
        %v5944 = vunpack.c.l.b16 %v5601
        %v5945 = vunpack.c.h.b16 %v5601
        %v5946 = vunpack.c.l.b16 %v5602
        %v5947 = vunpack.c.h.b16 %v5602
        %v5948 = vunpack.c.l.b16 %v5603
        %v5949 = vunpack.c.h.b16 %v5603
        %v5950 = vunpack.c.l.b16 %v5604
        %v5951 = vunpack.c.h.b16 %v5604
        %v5952 = vunpack.c.l.b16 %v5605
        %v5953 = vunpack.c.h.b16 %v5605
        %v5954 = vunpack.c.l.b16 %v5606
        %v5955 = vunpack.c.h.b16 %v5606
        %v5956 = vunpack.c.l.b16 %v5607
        %v5957 = vunpack.c.h.b16 %v5607
        %v5958 = vunpack.c.l.b16 %v5608
        %v5959 = vunpack.c.h.b16 %v5608
        %v5960 = vunpack.c.l.b16 %v5609
        %v5961 = vunpack.c.h.b16 %v5609
        %v5962 = vunpack.c.l.b16 %v5610
        %v5963 = vunpack.c.h.b16 %v5610
        %v5964 = vunpack.c.l.b16 %v5611
        %v5965 = vunpack.c.h.b16 %v5611
        %v5966 = vunpack.c.l.b16 %v5612
        %v5967 = vunpack.c.h.b16 %v5612
        %v5968 = vunpack.c.l.b16 %v5613
        %v5969 = vunpack.c.h.b16 %v5613
        %v5970 = vunpack.c.l.b16 %v5614
        %v5971 = vunpack.c.h.b16 %v5614
        %v5972 = vunpack.c.l.b16 %v5615
        %v5973 = vunpack.c.h.b16 %v5615
        %v5974 = vunpack.c.l.b16 %v5616
        %v5975 = vunpack.c.h.b16 %v5616
        %v5976 = vunpack.c.l.b16 %v5617
        %v5977 = vunpack.c.h.b16 %v5617
        %v5978 = vunpack.c.l.b16 %v5618
        %v5979 = vunpack.c.h.b16 %v5618
        %v5980 = vunpack.c.l.b16 %v5619
        %v5981 = vunpack.c.h.b16 %v5619
        %v5982 = vunpack.c.l.b16 %v5620
        %v5983 = vunpack.c.h.b16 %v5620
        %v5984 = vunpack.c.l.b16 %v5621
        %v5985 = vunpack.c.h.b16 %v5621
        %v5986 = vunpack.c.l.b16 %v5622
        %v5987 = vunpack.c.h.b16 %v5622
        %v5988 = vunpack.c.l.b16 %v5623
        %v5989 = vunpack.c.h.b16 %v5623
        %v5990 = vunpack.c.l.b16 %v5624
        %v5991 = vunpack.c.h.b16 %v5624
        %v5992 = vunpack.c.l.b16 %v5625
        %v5993 = vunpack.c.h.b16 %v5625
        %v5994 = vunpack.c.l.b16 %v5626
        %v5995 = vunpack.c.h.b16 %v5626
        %v5996 = vunpack.c.l.b16 %v5627
        %v5997 = vunpack.c.h.b16 %v5627
        %v5998 = vunpack.c.l.b16 %v5628
        %v5999 = vunpack.c.h.b16 %v5628
        %v6000 = vunpack.c.l.b16 %v5629
        %v6001 = vunpack.c.h.b16 %v5629
        %v6002 = vunpack.c.l.b16 %v5630
        %v6003 = vunpack.c.h.b16 %v5630
        %v6004 = vunpack.c.l.b16 %v5631
        %v6005 = vunpack.c.h.b16 %v5631
        %v6006 = vunpack.c.l.b16 %v5632
        %v6007 = vunpack.c.h.b16 %v5632
        %v6008 = vunpack.c.l.b16 %v5633
        %v6009 = vunpack.c.h.b16 %v5633
        %v6010 = vunpack.c.l.b16 %v5634
        %v6011 = vunpack.c.h.b16 %v5634
        %v6012 = vunpack.c.l.b16 %v5635
        %v6013 = vunpack.c.h.b16 %v5635
        %v6014 = vunpack.c.l.b16 %v5636
        %v6015 = vunpack.c.h.b16 %v5636
        %v6016 = vunpack.c.l.b16 %v5637
        %v6017 = vunpack.c.h.b16 %v5637
        %v6018 = vunpack.c.l.b16 %v5638
        %v6019 = vunpack.c.h.b16 %v5638
        %v6020 = vunpack.c.l.b16 %v5639
        %v6021 = vunpack.c.h.b16 %v5639
        %v6022 = vunpack.c.l.b16 %v5640
        %v6023 = vunpack.c.h.b16 %v5640
        %v6024 = vunpack.c.l.b16 %v5641
        %v6025 = vunpack.c.h.b16 %v5641
        %v6026 = vunpack.c.l.b16 %v5642
        %v6027 = vunpack.c.h.b16 %v5642
        %v6028 = vunpack.c.l.b16 %v5643
        %v6029 = vunpack.c.h.b16 %v5643
        %v6030 = vunpack.c.l.b16 %v5644
        %v6031 = vunpack.c.h.b16 %v5644
        %v6032 = vunpack.c.l.b16 %v5645
        %v6033 = vunpack.c.h.b16 %v5645
        %v6034 = vunpack.c.l.b16 %v5646
        %v6035 = vunpack.c.h.b16 %v5646
        %v6036 = vunpack.c.l.b16 %v5647
        %v6037 = vunpack.c.h.b16 %v5647
        %v6038 = vunpack.c.l.b16 %v5648
        %v6039 = vunpack.c.h.b16 %v5648
        %v6040 = vunpack.c.l.b16 %v5649
        %v6041 = vunpack.c.h.b16 %v5649
        %v6042 = vunpack.c.l.b16 %v5650
        %v6043 = vunpack.c.h.b16 %v5650
        %v6044 = vunpack.c.l.b16 %v5651
        %v6045 = vunpack.c.h.b16 %v5651
        %v6046 = vunpack.c.l.b16 %v5652
        %v6047 = vunpack.c.h.b16 %v5652
        %v6048 = vunpack.c.l.b16 %v5653
        %v6049 = vunpack.c.h.b16 %v5653
        %v6050 = vunpack.c.l.b16 %v5654
        %v6051 = vunpack.c.h.b16 %v5654
        %v6052 = vunpack.c.l.b16 %v5655
        %v6053 = vunpack.c.h.b16 %v5655
        %v6054 = vunpack.c.l.b16 %v5656
        %v6055 = vunpack.c.h.b16 %v5656
        %v6056 = vunpack.c.l.b16 %v5657
        %v6057 = vunpack.c.h.b16 %v5657
        %v6058 = vunpack.c.l.b16 %v5658
        %v6059 = vunpack.c.h.b16 %v5658
        %v6060 = vunpack.c.l.b16 %v5659
        %v6061 = vunpack.c.h.b16 %v5659
        %v6062 = vunpack.c.l.b16 %v5660
        %v6063 = vunpack.c.h.b16 %v5660
        %v6064 = vunpack.c.l.b16 %v5661
        %v6065 = vunpack.c.h.b16 %v5661
        %v6066 = vunpack.c.l.b16 %v5662
        %v6067 = vunpack.c.h.b16 %v5662
        %v6068 = vunpack.c.l.b16 %v5663
        %v6069 = vunpack.c.h.b16 %v5663
        %v6070 = vunpack.c.l.b16 %v5664
        %v6071 = vunpack.c.h.b16 %v5664
        %v6072 = vunpack.c.l.b16 %v5665
        %v6073 = vunpack.c.h.b16 %v5665
        %v6074 = vunpack.c.l.b16 %v5666
        %v6075 = vunpack.c.h.b16 %v5666
        %v6076 = vunpack.c.l.b16 %v5667
        %v6077 = vunpack.c.h.b16 %v5667
        %v6078 = vunpack.c.l.b16 %v5668
        %v6079 = vunpack.c.h.b16 %v5668
        %v6080 = vunpack.c.l.b16 %v5669
        %v6081 = vunpack.c.h.b16 %v5669
        %v6082 = vunpack.c.l.b16 %v5670
        %v6083 = vunpack.c.h.b16 %v5670
        %v6084 = vunpack.c.l.b16 %v5671
        %v6085 = vunpack.c.h.b16 %v5671
        %v6086 = vunpack.c.l.b16 %v5672
        %v6087 = vunpack.c.h.b16 %v5672
        %v6088 = vunpack.c.l.b16 %v5673
        %v6089 = vunpack.c.h.b16 %v5673
        %v6090 = vunpack.c.l.b16 %v5674
        %v6091 = vunpack.c.h.b16 %v5674
        %v6092 = vunpack.c.l.b16 %v5675
        %v6093 = vunpack.c.h.b16 %v5675
        %v6094 = vunpack.c.l.b16 %v5676
        %v6095 = vunpack.c.h.b16 %v5676
        %v6096 = vunpack.c.l.b16 %v5677
        %v6097 = vunpack.c.h.b16 %v5677
        %v6098 = vunpack.c.l.b16 %v5678
        %v6099 = vunpack.c.h.b16 %v5678
        %v6100 = vunpack.c.l.b16 %v5679
        %v6101 = vunpack.c.h.b16 %v5679
        %v6102 = vunpack.c.l.b16 %v5680
        %v6103 = vunpack.c.h.b16 %v5680
        %v6104 = vunpack.c.l.b16 %v5681
        %v6105 = vunpack.c.h.b16 %v5681
        %v6106 = vunpack.c.l.b16 %v5682
        %v6107 = vunpack.c.h.b16 %v5682
        %v6108 = vunpack.c.l.b16 %v5683
        %v6109 = vunpack.c.h.b16 %v5683
        %v6110 = vunpack.c.l.b16 %v5684
        %v6111 = vunpack.c.h.b16 %v5684
        %v6112 = vunpack.c.l.b16 %v5685
        %v6113 = vunpack.c.h.b16 %v5685
        %v6114 = vunpack.c.l.b16 %v5686
        %v6115 = vunpack.c.h.b16 %v5686
        %v6116 = vunpack.c.l.b16 %v5687
        %v6117 = vunpack.c.h.b16 %v5687
        %v6118 = vunpack.c.l.b16 %v5688
        %v6119 = vunpack.c.h.b16 %v5688
        %v6120 = vunpack.c.l.b16 %v5689
        %v6121 = vunpack.c.h.b16 %v5689
        %v6122 = vunpack.c.l.b16 %v5690
        %v6123 = vunpack.c.h.b16 %v5690
        %v6124 = vunpack.c.l.b16 %v5691
        %v6125 = vunpack.c.h.b16 %v5691
        %v6126 = vunpack.c.l.b16 %v5692
        %v6127 = vunpack.c.h.b16 %v5692
        %v6128 = vunpack.c.l.b16 %v5693
        %v6129 = vunpack.c.h.b16 %v5693
        %v6130 = vunpack.c.l.b16 %v5694
        %v6131 = vunpack.c.h.b16 %v5694
        %v6132 = vunpack.c.l.b16 %v5695
        %v6133 = vunpack.c.h.b16 %v5695
        %v6134 = vunpack.c.l.b16 %v5696
        %v6135 = vunpack.c.h.b16 %v5696
        %v6136 = vunpack.c.l.b16 %v5697
        %v6137 = vunpack.c.h.b16 %v5697
        %v6138 = vunpack.c.l.b16 %v5698
        %v6139 = vunpack.c.h.b16 %v5698
        %v6140 = vunpack.c.l.b16 %v5699
        %v6141 = vunpack.c.h.b16 %v5699
        %v6142 = vunpack.c.l.b16 %v5700
        %v6143 = vunpack.c.h.b16 %v5700
        %v6144 = vunpack.c.l.b16 %v5701
        %v6145 = vunpack.c.h.b16 %v5701
        %v6146 = vpack.c.b16 %v5860, %v5858
        %v6147 = vpack.c.b16 %v5861, %v5859
        %v6148 = vpack.c.b16 %v5864, %v5862
        %v6149 = vpack.c.b16 %v5865, %v5863
        %v6150 = vpack.c.b16 %v5868, %v5866
        %v6151 = vpack.c.b16 %v5869, %v5867
        %v6152 = vpack.c.b16 %v5872, %v5870
        %v6153 = vpack.c.b16 %v5873, %v5871
        %v6154 = vpack.c.b16 %v5876, %v5874
        %v6155 = vpack.c.b16 %v5877, %v5875
        %v6156 = vpack.c.b16 %v5880, %v5878
        %v6157 = vpack.c.b16 %v5881, %v5879
        %v6158 = vpack.c.b16 %v5884, %v5882
        %v6159 = vpack.c.b16 %v5885, %v5883
        %v6160 = vpack.c.b16 %v5888, %v5886
        %v6161 = vpack.c.b16 %v5889, %v5887
        %v6162 = vpack.c.b16 %v5892, %v5890
        %v6163 = vpack.c.b16 %v5893, %v5891
        %v6164 = vpack.c.b16 %v5896, %v5894
        %v6165 = vpack.c.b16 %v5897, %v5895
        %v6166 = vpack.c.b16 %v5900, %v5898
        %v6167 = vpack.c.b16 %v5901, %v5899
        %v6168 = vpack.c.b16 %v5904, %v5902
        %v6169 = vpack.c.b16 %v5905, %v5903
        %v6170 = vpack.c.b16 %v5908, %v5906
        %v6171 = vpack.c.b16 %v5909, %v5907
        %v6172 = vpack.c.b16 %v5912, %v5910
        %v6173 = vpack.c.b16 %v5913, %v5911
        %v6174 = vpack.c.b16 %v5916, %v5914
        %v6175 = vpack.c.b16 %v5917, %v5915
        %v6176 = vpack.c.b16 %v5920, %v5918
        %v6177 = vpack.c.b16 %v5921, %v5919
        %v6178 = vpack.c.b16 %v5924, %v5922
        %v6179 = vpack.c.b16 %v5925, %v5923
        %v6180 = vpack.c.b16 %v5928, %v5926
        %v6181 = vpack.c.b16 %v5929, %v5927
        %v6182 = vpack.c.b16 %v5932, %v5930
        %v6183 = vpack.c.b16 %v5933, %v5931
        %v6184 = vpack.c.b16 %v5936, %v5934
        %v6185 = vpack.c.b16 %v5937, %v5935
        %v6186 = vpack.c.b16 %v5940, %v5938
        %v6187 = vpack.c.b16 %v5941, %v5939
        %v6188 = vpack.c.b16 %v5944, %v5942
        %v6189 = vpack.c.b16 %v5945, %v5943
        %v6190 = vpack.c.b16 %v5948, %v5946
        %v6191 = vpack.c.b16 %v5949, %v5947
        %v6192 = vpack.c.b16 %v5952, %v5950
        %v6193 = vpack.c.b16 %v5953, %v5951
        %v6194 = vpack.c.b16 %v5956, %v5954
        %v6195 = vpack.c.b16 %v5957, %v5955
        %v6196 = vpack.c.b16 %v5960, %v5958
        %v6197 = vpack.c.b16 %v5961, %v5959
        %v6198 = vpack.c.b16 %v5964, %v5962
        %v6199 = vpack.c.b16 %v5965, %v5963
        %v6200 = vpack.c.b16 %v5968, %v5966
        %v6201 = vpack.c.b16 %v5969, %v5967
        %v6202 = vpack.c.b16 %v5972, %v5970
        %v6203 = vpack.c.b16 %v5973, %v5971
        %v6204 = vpack.c.b16 %v5976, %v5974
        %v6205 = vpack.c.b16 %v5977, %v5975
        %v6206 = vpack.c.b16 %v5980, %v5978
        %v6207 = vpack.c.b16 %v5981, %v5979
        %v6208 = vpack.c.b16 %v5984, %v5982
        %v6209 = vpack.c.b16 %v5985, %v5983
        %v6210 = vpack.c.b16 %v5988, %v5986
        %v6211 = vpack.c.b16 %v5989, %v5987
        %v6212 = vpack.c.b16 %v5992, %v5990
        %v6213 = vpack.c.b16 %v5993, %v5991
        %v6214 = vpack.c.b16 %v5996, %v5994
        %v6215 = vpack.c.b16 %v5997, %v5995
        %v6216 = vpack.c.b16 %v6000, %v5998
        %v6217 = vpack.c.b16 %v6001, %v5999
        %v6218 = vpack.c.b16 %v6004, %v6002
        %v6219 = vpack.c.b16 %v6005, %v6003
        %v6220 = vpack.c.b16 %v6008, %v6006
        %v6221 = vpack.c.b16 %v6009, %v6007
        %v6222 = vpack.c.b16 %v6012, %v6010
        %v6223 = vpack.c.b16 %v6013, %v6011
        %v6224 = vpack.c.b16 %v6016, %v6014
        %v6225 = vpack.c.b16 %v6017, %v6015
        %v6226 = vpack.c.b16 %v6020, %v6018
        %v6227 = vpack.c.b16 %v6021, %v6019
        %v6228 = vpack.c.b16 %v6024, %v6022
        %v6229 = vpack.c.b16 %v6025, %v6023
        %v6230 = vpack.c.b16 %v6028, %v6026
        %v6231 = vpack.c.b16 %v6029, %v6027
        %v6232 = vpack.c.b16 %v6032, %v6030
        %v6233 = vpack.c.b16 %v6033, %v6031
        %v6234 = vpack.c.b16 %v6036, %v6034
        %v6235 = vpack.c.b16 %v6037, %v6035
        %v6236 = vpack.c.b16 %v6040, %v6038
        %v6237 = vpack.c.b16 %v6041, %v6039
        %v6238 = vpack.c.b16 %v6044, %v6042
        %v6239 = vpack.c.b16 %v6045, %v6043
        %v6240 = vpack.c.b16 %v6048, %v6046
        %v6241 = vpack.c.b16 %v6049, %v6047
        %v6242 = vpack.c.b16 %v6052, %v6050
        %v6243 = vpack.c.b16 %v6053, %v6051
        %v6244 = vpack.c.b16 %v6056, %v6054
        %v6245 = vpack.c.b16 %v6057, %v6055
        %v6246 = vpack.c.b16 %v6060, %v6058
        %v6247 = vpack.c.b16 %v6061, %v6059
        %v6248 = vpack.c.b16 %v6064, %v6062
        %v6249 = vpack.c.b16 %v6065, %v6063
        %v6250 = vpack.c.b16 %v6068, %v6066
        %v6251 = vpack.c.b16 %v6069, %v6067
        %v6252 = vpack.c.b16 %v6072, %v6070
        %v6253 = vpack.c.b16 %v6073, %v6071
        %v6254 = vpack.c.b16 %v6076, %v6074
        %v6255 = vpack.c.b16 %v6077, %v6075
        %v6256 = vpack.c.b16 %v6080, %v6078
        %v6257 = vpack.c.b16 %v6081, %v6079
        %v6258 = vpack.c.b16 %v6084, %v6082
        %v6259 = vpack.c.b16 %v6085, %v6083
        %v6260 = vpack.c.b16 %v6088, %v6086
        %v6261 = vpack.c.b16 %v6089, %v6087
        %v6262 = vpack.c.b16 %v6092, %v6090
        %v6263 = vpack.c.b16 %v6093, %v6091
        %v6264 = vpack.c.b16 %v6096, %v6094
        %v6265 = vpack.c.b16 %v6097, %v6095
        %v6266 = vpack.c.b16 %v6100, %v6098
        %v6267 = vpack.c.b16 %v6101, %v6099
        %v6268 = vpack.c.b16 %v6104, %v6102
        %v6269 = vpack.c.b16 %v6105, %v6103
        %v6270 = vpack.c.b16 %v6108, %v6106
        %v6271 = vpack.c.b16 %v6109, %v6107
        %v6272 = vpack.c.b16 %v6112, %v6110
        %v6273 = vpack.c.b16 %v6113, %v6111
        %v6274 = vpack.c.b16 %v6116, %v6114
        %v6275 = vpack.c.b16 %v6117, %v6115
        %v6276 = vpack.c.b16 %v6120, %v6118
        %v6277 = vpack.c.b16 %v6121, %v6119
        %v6278 = vpack.c.b16 %v6124, %v6122
        %v6279 = vpack.c.b16 %v6125, %v6123
        %v6280 = vpack.c.b16 %v6128, %v6126
        %v6281 = vpack.c.b16 %v6129, %v6127
        %v6282 = vpack.c.b16 %v6132, %v6130
        %v6283 = vpack.c.b16 %v6133, %v6131
        %v6284 = vpack.c.b16 %v6136, %v6134
        %v6285 = vpack.c.b16 %v6137, %v6135
        %v6286 = vpack.c.b16 %v6140, %v6138
        %v6287 = vpack.c.b16 %v6141, %v6139
        %v6288 = vpack.c.b16 %v6144, %v6142
        %v6289 = vpack.c.b16 %v6145, %v6143
        %6434 = vmatprep.subr.bf16.mxu0 %v6147
        %6435 = vmatpush1.bf16.msra.mxu0 %v6146
        %6436 = vmatprep.subr.bf16.mxu0 %v6149
        %6437 = vmatpush1.bf16.msra.mxu0 %v6148
        %6438 = vmatprep.subr.bf16.mxu0 %v6151
        %6439 = vmatpush1.bf16.msra.mxu0 %v6150
        %6440 = vmatprep.subr.bf16.mxu0 %v6153
        %6441 = vmatpush1.bf16.msra.mxu0 %v6152
        %6442 = vmatprep.subr.bf16.mxu0 %v6155
        %6443 = vmatpush1.bf16.msra.mxu0 %v6154
        %6444 = vmatprep.subr.bf16.mxu0 %v6157
        %6445 = vmatpush1.bf16.msra.mxu0 %v6156
        %6446 = vmatprep.subr.bf16.mxu0 %v6159
        %6447 = vmatpush1.bf16.msra.mxu0 %v6158
        %6448 = vmatprep.subr.bf16.mxu0 %v6161
        %6449 = vmatpush1.bf16.msra.mxu0 %v6160
        %6450 = vmatprep.subr.bf16.mxu0 %v6163
        %6451 = vmatpush1.bf16.msra.mxu0 %v6162
        %6452 = vmatprep.subr.bf16.mxu0 %v6165
        %6453 = vmatpush1.bf16.msra.mxu0 %v6164
        %6454 = vmatprep.subr.bf16.mxu0 %v6167
        %6455 = vmatpush1.bf16.msra.mxu0 %v6166
        %6456 = vmatprep.subr.bf16.mxu0 %v6169
        %6457 = vmatpush1.bf16.msra.mxu0 %v6168
        %6458 = vmatprep.subr.bf16.mxu0 %v6171
        %6459 = vmatpush1.bf16.msra.mxu0 %v6170
        %6460 = vmatprep.subr.bf16.mxu0 %v6173
        %6461 = vmatpush1.bf16.msra.mxu0 %v6172
        %6462 = vmatprep.subr.bf16.mxu0 %v6175
        %6463 = vmatpush1.bf16.msra.mxu0 %v6174
        %6464 = vmatprep.subr.bf16.mxu0 %v6177
        %6465 = vmatpush1.bf16.msra.mxu0 %v6176
        %6466 = vmatprep.mubr.bf16.mxu0 %v5014
        %6467 = vmatmul.mubr.bf16.gmra.mrb[0].mxu0 %v4950
        %v6468 = vpop.f32.mrb[0].mxu0
        %v6469 = vadd.f32 %v5707, %v6468
        %v6470 = vpop.f32.mrb[0].mxu0
        %v6471 = vadd.f32 %v5711, %v6470
        %v6472 = vpop.f32.mrb[0].mxu0
        %v6473 = vadd.f32 %v5707, %v6472
        %v6474 = vpop.f32.mrb[0].mxu0
        %v6475 = vadd.f32 %v5711, %v6474
        %6476 = vmatprep.mubr.bf16.mxu0 %v5015
        %6477 = vmatmul.mubr.bf16.gmra.mrb[0].mxu0 %v4951
        %v6478 = vpop.f32.mrb[0].mxu0
        %v6479 = vadd.f32 %v5707, %v6478
        %v6480 = vpop.f32.mrb[0].mxu0
        %v6481 = vadd.f32 %v5711, %v6480
        %v6482 = vpop.f32.mrb[0].mxu0
        %v6483 = vadd.f32 %v5707, %v6482
        %v6484 = vpop.f32.mrb[0].mxu0
        %v6485 = vadd.f32 %v5711, %v6484
        %6486 = vmatprep.mubr.bf16.mxu0 %v5016
        %6487 = vmatmul.mubr.bf16.gmra.mrb[0].mxu0 %v4952
        %v6488 = vpop.f32.mrb[0].mxu0
        %v6489 = vadd.f32 %v5707, %v6488
        %v6490 = vpop.f32.mrb[0].mxu0
        %v6491 = vadd.f32 %v5711, %v6490
        %v6492 = vpop.f32.mrb[0].mxu0
        %v6493 = vadd.f32 %v5707, %v6492
        %v6494 = vpop.f32.mrb[0].mxu0
        %v6495 = vadd.f32 %v5711, %v6494
        %6496 = vmatprep.mubr.bf16.mxu0 %v5017
        %6497 = vmatmul.mubr.bf16.gmra.mrb[0].mxu0 %v4953
        %v6498 = vpop.f32.mrb[0].mxu0
        %v6499 = vadd.f32 %v5707, %v6498
        %v6500 = vpop.f32.mrb[0].mxu0
        %v6501 = vadd.f32 %v5711, %v6500
        %v6502 = vpop.f32.mrb[0].mxu0
        %v6503 = vadd.f32 %v5707, %v6502
        %v6504 = vpop.f32.mrb[0].mxu0
        %v6505 = vadd.f32 %v5711, %v6504
        %6506 = vmatprep.mubr.bf16.mxu0 %v5018
        %6507 = vmatmul.mubr.bf16.gmra.mrb[0].mxu0 %v4954
        %v6508 = vpop.f32.mrb[0].mxu0
        %v6509 = vadd.f32 %v5707, %v6508
        %v6510 = vpop.f32.mrb[0].mxu0
        %v6511 = vadd.f32 %v5711, %v6510
        %v6512 = vpop.f32.mrb[0].mxu0
        %v6513 = vadd.f32 %v5707, %v6512
        %v6514 = vpop.f32.mrb[0].mxu0
        %v6515 = vadd.f32 %v5711, %v6514
        %6516 = vmatprep.mubr.bf16.mxu0 %v5019
        %6517 = vmatmul.mubr.bf16.gmra.mrb[0].mxu0 %v4955
        %v6518 = vpop.f32.mrb[0].mxu0
        %v6519 = vadd.f32 %v5707, %v6518
        %v6520 = vpop.f32.mrb[0].mxu0
        %v6521 = vadd.f32 %v5711, %v6520
        %v6522 = vpop.f32.mrb[0].mxu0
        %v6523 = vadd.f32 %v5707, %v6522
        %v6524 = vpop.f32.mrb[0].mxu0
        %v6525 = vadd.f32 %v5711, %v6524
        %6526 = vmatprep.mubr.bf16.mxu0 %v5020
        %6527 = vmatmul.mubr.bf16.gmra.mrb[0].mxu0 %v4956
        %v6528 = vpop.f32.mrb[0].mxu0
        %v6529 = vadd.f32 %v5707, %v6528
        %v6530 = vpop.f32.mrb[0].mxu0
        %v6531 = vadd.f32 %v5711, %v6530
        %v6532 = vpop.f32.mrb[0].mxu0
        %v6533 = vadd.f32 %v5707, %v6532
        %v6534 = vpop.f32.mrb[0].mxu0
        %v6535 = vadd.f32 %v5711, %v6534
        %6536 = vmatprep.mubr.bf16.mxu0 %v5021
        %6537 = vmatmul.mubr.bf16.gmra.mrb[0].mxu0 %v4957
        %v6538 = vpop.f32.mrb[0].mxu0
        %v6539 = vadd.f32 %v5707, %v6538
        %v6540 = vpop.f32.mrb[0].mxu0
        %v6541 = vadd.f32 %v5711, %v6540
        %v6542 = vpop.f32.mrb[0].mxu0
        %v6543 = vadd.f32 %v5707, %v6542
        %v6544 = vpop.f32.mrb[0].mxu0
        %v6545 = vadd.f32 %v5711, %v6544
        %6546 = vmatprep.mubr.bf16.mxu0 %v5022
        %6547 = vmatmul.mubr.bf16.gmra.mrb[0].mxu0 %v4958
        %v6548 = vpop.f32.mrb[0].mxu0
        %v6549 = vadd.f32 %v5707, %v6548
        %v6550 = vpop.f32.mrb[0].mxu0
        %v6551 = vadd.f32 %v5711, %v6550
        %v6552 = vpop.f32.mrb[0].mxu0
        %v6553 = vadd.f32 %v5707, %v6552
        %v6554 = vpop.f32.mrb[0].mxu0
        %v6555 = vadd.f32 %v5711, %v6554
        %6556 = vmatprep.mubr.bf16.mxu0 %v5023
        %6557 = vmatmul.mubr.bf16.gmra.mrb[0].mxu0 %v4959
        %v6558 = vpop.f32.mrb[0].mxu0
        %v6559 = vadd.f32 %v5707, %v6558
        %v6560 = vpop.f32.mrb[0].mxu0
        %v6561 = vadd.f32 %v5711, %v6560
        %v6562 = vpop.f32.mrb[0].mxu0
        %v6563 = vadd.f32 %v5707, %v6562
        %v6564 = vpop.f32.mrb[0].mxu0
        %v6565 = vadd.f32 %v5711, %v6564
        %6566 = vmatprep.mubr.bf16.mxu0 %v5024
        %6567 = vmatmul.mubr.bf16.gmra.mrb[0].mxu0 %v4960
        %v6568 = vpop.f32.mrb[0].mxu0
        %v6569 = vadd.f32 %v5707, %v6568
        %v6570 = vpop.f32.mrb[0].mxu0
        %v6571 = vadd.f32 %v5711, %v6570
        %v6572 = vpop.f32.mrb[0].mxu0
        %v6573 = vadd.f32 %v5707, %v6572
        %v6574 = vpop.f32.mrb[0].mxu0
        %v6575 = vadd.f32 %v5711, %v6574
        %6576 = vmatprep.mubr.bf16.mxu0 %v5025
        %6577 = vmatmul.mubr.bf16.gmra.mrb[0].mxu0 %v4961
        %v6578 = vpop.f32.mrb[0].mxu0
        %v6579 = vadd.f32 %v5707, %v6578
        %v6580 = vpop.f32.mrb[0].mxu0
        %v6581 = vadd.f32 %v5711, %v6580
        %v6582 = vpop.f32.mrb[0].mxu0
        %v6583 = vadd.f32 %v5707, %v6582
        %v6584 = vpop.f32.mrb[0].mxu0
        %v6585 = vadd.f32 %v5711, %v6584
        %6586 = vmatprep.mubr.bf16.mxu0 %v5026
        %6587 = vmatmul.mubr.bf16.gmra.mrb[0].mxu0 %v4962
        %v6588 = vpop.f32.mrb[0].mxu0
        %v6589 = vadd.f32 %v5707, %v6588
        %v6590 = vpop.f32.mrb[0].mxu0
        %v6591 = vadd.f32 %v5711, %v6590
        %v6592 = vpop.f32.mrb[0].mxu0
        %v6593 = vadd.f32 %v5707, %v6592
        %v6594 = vpop.f32.mrb[0].mxu0
        %v6595 = vadd.f32 %v5711, %v6594
        %6596 = vmatprep.mubr.bf16.mxu0 %v5027
        %6597 = vmatmul.mubr.bf16.gmra.mrb[0].mxu0 %v4963
        %v6598 = vpop.f32.mrb[0].mxu0
        %v6599 = vadd.f32 %v5707, %v6598
        %v6600 = vpop.f32.mrb[0].mxu0
        %v6601 = vadd.f32 %v5711, %v6600
        %v6602 = vpop.f32.mrb[0].mxu0
        %v6603 = vadd.f32 %v5707, %v6602
        %v6604 = vpop.f32.mrb[0].mxu0
        %v6605 = vadd.f32 %v5711, %v6604
        %6606 = vmatprep.mubr.bf16.mxu0 %v5028
        %6607 = vmatmul.mubr.bf16.gmra.mrb[0].mxu0 %v4964
        %v6608 = vpop.f32.mrb[0].mxu0
        %v6609 = vadd.f32 %v5707, %v6608
        %v6610 = vpop.f32.mrb[0].mxu0
        %v6611 = vadd.f32 %v5711, %v6610
        %v6612 = vpop.f32.mrb[0].mxu0
        %v6613 = vadd.f32 %v5707, %v6612
        %v6614 = vpop.f32.mrb[0].mxu0
        %v6615 = vadd.f32 %v5711, %v6614
        %6616 = vmatprep.mubr.bf16.mxu0 %v5029
        %6617 = vmatmul.mubr.bf16.gmra.mrb[0].mxu0 %v4965
        %v6618 = vpop.f32.mrb[0].mxu0
        %v6619 = vadd.f32 %v5707, %v6618
        %v6620 = vpop.f32.mrb[0].mxu0
        %v6621 = vadd.f32 %v5711, %v6620
        %v6622 = vpop.f32.mrb[0].mxu0
        %v6623 = vadd.f32 %v5707, %v6622
        %v6624 = vpop.f32.mrb[0].mxu0
        %v6625 = vadd.f32 %v5711, %v6624
        %6626 = vdwg.mxu0
        %6627 = vmatprep.subr.bf16.mxu0 %v6179
        %6628 = vmatpush1.bf16.msra.mxu0 %v6178
        %6629 = vmatprep.subr.bf16.mxu0 %v6181
        %6630 = vmatpush1.bf16.msra.mxu0 %v6180
        %6631 = vmatprep.subr.bf16.mxu0 %v6183
        %6632 = vmatpush1.bf16.msra.mxu0 %v6182
        %6633 = vmatprep.subr.bf16.mxu0 %v6185
        %6634 = vmatpush1.bf16.msra.mxu0 %v6184
        %6635 = vmatprep.subr.bf16.mxu0 %v6187
        %6636 = vmatpush1.bf16.msra.mxu0 %v6186
        %6637 = vmatprep.subr.bf16.mxu0 %v6189
        %6638 = vmatpush1.bf16.msra.mxu0 %v6188
        %6639 = vmatprep.subr.bf16.mxu0 %v6191
        %6640 = vmatpush1.bf16.msra.mxu0 %v6190
        %6641 = vmatprep.subr.bf16.mxu0 %v6193
        %6642 = vmatpush1.bf16.msra.mxu0 %v6192
        %6643 = vmatprep.subr.bf16.mxu0 %v6195
        %6644 = vmatpush1.bf16.msra.mxu0 %v6194
        %6645 = vmatprep.subr.bf16.mxu0 %v6197
        %6646 = vmatpush1.bf16.msra.mxu0 %v6196
        %6647 = vmatprep.subr.bf16.mxu0 %v6199
        %6648 = vmatpush1.bf16.msra.mxu0 %v6198
        %6649 = vmatprep.subr.bf16.mxu0 %v6201
        %6650 = vmatpush1.bf16.msra.mxu0 %v6200
        %6651 = vmatprep.subr.bf16.mxu0 %v6203
        %6652 = vmatpush1.bf16.msra.mxu0 %v6202
        %6653 = vmatprep.subr.bf16.mxu0 %v6205
        %6654 = vmatpush1.bf16.msra.mxu0 %v6204
        %6655 = vmatprep.subr.bf16.mxu0 %v6207
        %6656 = vmatpush1.bf16.msra.mxu0 %v6206
        %6657 = vmatprep.subr.bf16.mxu0 %v6209
        %6658 = vmatpush1.bf16.msra.mxu0 %v6208
        %6659 = vmatprep.mubr.bf16.mxu0 %v5174
        %6660 = vmatmul.mubr.bf16.gmra.mrb[0].mxu0 %v5078
        %v6661 = vpop.f32.mrb[0].mxu0
        %v6662 = vadd.f32 %v6469, %v6661
        %v6663 = vpop.f32.mrb[0].mxu0
        %v6664 = vadd.f32 %v6471, %v6663
        %v6665 = vpop.f32.mrb[0].mxu0
        %v6666 = vadd.f32 %v6473, %v6665
        %v6667 = vpop.f32.mrb[0].mxu0
        %v6668 = vadd.f32 %v6475, %v6667
        %6669 = vmatprep.mubr.bf16.mxu0 %v5175
        %6670 = vmatmul.mubr.bf16.gmra.mrb[0].mxu0 %v5079
        %v6671 = vpop.f32.mrb[0].mxu0
        %v6672 = vadd.f32 %v6479, %v6671
        %v6673 = vpop.f32.mrb[0].mxu0
        %v6674 = vadd.f32 %v6481, %v6673
        %v6675 = vpop.f32.mrb[0].mxu0
        %v6676 = vadd.f32 %v6483, %v6675
        %v6677 = vpop.f32.mrb[0].mxu0
        %v6678 = vadd.f32 %v6485, %v6677
        %6679 = vmatprep.mubr.bf16.mxu0 %v5176
        %6680 = vmatmul.mubr.bf16.gmra.mrb[0].mxu0 %v5080
        %v6681 = vpop.f32.mrb[0].mxu0
        %v6682 = vadd.f32 %v6489, %v6681
        %v6683 = vpop.f32.mrb[0].mxu0
        %v6684 = vadd.f32 %v6491, %v6683
        %v6685 = vpop.f32.mrb[0].mxu0
        %v6686 = vadd.f32 %v6493, %v6685
        %v6687 = vpop.f32.mrb[0].mxu0
        %v6688 = vadd.f32 %v6495, %v6687
        %6689 = vmatprep.mubr.bf16.mxu0 %v5177
        %6690 = vmatmul.mubr.bf16.gmra.mrb[0].mxu0 %v5081
        %v6691 = vpop.f32.mrb[0].mxu0
        %v6692 = vadd.f32 %v6499, %v6691
        %v6693 = vpop.f32.mrb[0].mxu0
        %v6694 = vadd.f32 %v6501, %v6693
        %v6695 = vpop.f32.mrb[0].mxu0
        %v6696 = vadd.f32 %v6503, %v6695
        %v6697 = vpop.f32.mrb[0].mxu0
        %v6698 = vadd.f32 %v6505, %v6697
        %6699 = vmatprep.mubr.bf16.mxu0 %v5178
        %6700 = vmatmul.mubr.bf16.gmra.mrb[0].mxu0 %v5082
        %v6701 = vpop.f32.mrb[0].mxu0
        %v6702 = vadd.f32 %v6509, %v6701
        %v6703 = vpop.f32.mrb[0].mxu0
        %v6704 = vadd.f32 %v6511, %v6703
        %v6705 = vpop.f32.mrb[0].mxu0
        %v6706 = vadd.f32 %v6513, %v6705
        %v6707 = vpop.f32.mrb[0].mxu0
        %v6708 = vadd.f32 %v6515, %v6707
        %6709 = vmatprep.mubr.bf16.mxu0 %v5179
        %6710 = vmatmul.mubr.bf16.gmra.mrb[0].mxu0 %v5083
        %v6711 = vpop.f32.mrb[0].mxu0
        %v6712 = vadd.f32 %v6519, %v6711
        %v6713 = vpop.f32.mrb[0].mxu0
        %v6714 = vadd.f32 %v6521, %v6713
        %v6715 = vpop.f32.mrb[0].mxu0
        %v6716 = vadd.f32 %v6523, %v6715
        %v6717 = vpop.f32.mrb[0].mxu0
        %v6718 = vadd.f32 %v6525, %v6717
        %6719 = vmatprep.mubr.bf16.mxu0 %v5180
        %6720 = vmatmul.mubr.bf16.gmra.mrb[0].mxu0 %v5084
        %v6721 = vpop.f32.mrb[0].mxu0
        %v6722 = vadd.f32 %v6529, %v6721
        %v6723 = vpop.f32.mrb[0].mxu0
        %v6724 = vadd.f32 %v6531, %v6723
        %v6725 = vpop.f32.mrb[0].mxu0
        %v6726 = vadd.f32 %v6533, %v6725
        %v6727 = vpop.f32.mrb[0].mxu0
        %v6728 = vadd.f32 %v6535, %v6727
        %6729 = vmatprep.mubr.bf16.mxu0 %v5181
        %6730 = vmatmul.mubr.bf16.gmra.mrb[0].mxu0 %v5085
        %v6731 = vpop.f32.mrb[0].mxu0
        %v6732 = vadd.f32 %v6539, %v6731
        %v6733 = vpop.f32.mrb[0].mxu0
        %v6734 = vadd.f32 %v6541, %v6733
        %v6735 = vpop.f32.mrb[0].mxu0
        %v6736 = vadd.f32 %v6543, %v6735
        %v6737 = vpop.f32.mrb[0].mxu0
        %v6738 = vadd.f32 %v6545, %v6737
        %6739 = vmatprep.mubr.bf16.mxu0 %v5182
        %6740 = vmatmul.mubr.bf16.gmra.mrb[0].mxu0 %v5086
        %v6741 = vpop.f32.mrb[0].mxu0
        %v6742 = vadd.f32 %v6549, %v6741
        %v6743 = vpop.f32.mrb[0].mxu0
        %v6744 = vadd.f32 %v6551, %v6743
        %v6745 = vpop.f32.mrb[0].mxu0
        %v6746 = vadd.f32 %v6553, %v6745
        %v6747 = vpop.f32.mrb[0].mxu0
        %v6748 = vadd.f32 %v6555, %v6747
        %6749 = vmatprep.mubr.bf16.mxu0 %v5183
        %6750 = vmatmul.mubr.bf16.gmra.mrb[0].mxu0 %v5087
        %v6751 = vpop.f32.mrb[0].mxu0
        %v6752 = vadd.f32 %v6559, %v6751
        %v6753 = vpop.f32.mrb[0].mxu0
        %v6754 = vadd.f32 %v6561, %v6753
        %v6755 = vpop.f32.mrb[0].mxu0
        %v6756 = vadd.f32 %v6563, %v6755
        %v6757 = vpop.f32.mrb[0].mxu0
        %v6758 = vadd.f32 %v6565, %v6757
        %6759 = vmatprep.mubr.bf16.mxu0 %v5184
        %6760 = vmatmul.mubr.bf16.gmra.mrb[0].mxu0 %v5088
        %v6761 = vpop.f32.mrb[0].mxu0
        %v6762 = vadd.f32 %v6569, %v6761
        %v6763 = vpop.f32.mrb[0].mxu0
        %v6764 = vadd.f32 %v6571, %v6763
        %v6765 = vpop.f32.mrb[0].mxu0
        %v6766 = vadd.f32 %v6573, %v6765
        %v6767 = vpop.f32.mrb[0].mxu0
        %v6768 = vadd.f32 %v6575, %v6767
        %6769 = vmatprep.mubr.bf16.mxu0 %v5185
        %6770 = vmatmul.mubr.bf16.gmra.mrb[0].mxu0 %v5089
        %v6771 = vpop.f32.mrb[0].mxu0
        %v6772 = vadd.f32 %v6579, %v6771
        %v6773 = vpop.f32.mrb[0].mxu0
        %v6774 = vadd.f32 %v6581, %v6773
        %v6775 = vpop.f32.mrb[0].mxu0
        %v6776 = vadd.f32 %v6583, %v6775
        %v6777 = vpop.f32.mrb[0].mxu0
        %v6778 = vadd.f32 %v6585, %v6777
        %6779 = vmatprep.mubr.bf16.mxu0 %v5186
        %6780 = vmatmul.mubr.bf16.gmra.mrb[0].mxu0 %v5090
        %v6781 = vpop.f32.mrb[0].mxu0
        %v6782 = vadd.f32 %v6589, %v6781
        %v6783 = vpop.f32.mrb[0].mxu0
        %v6784 = vadd.f32 %v6591, %v6783
        %v6785 = vpop.f32.mrb[0].mxu0
        %v6786 = vadd.f32 %v6593, %v6785
        %v6787 = vpop.f32.mrb[0].mxu0
        %v6788 = vadd.f32 %v6595, %v6787
        %6789 = vmatprep.mubr.bf16.mxu0 %v5187
        %6790 = vmatmul.mubr.bf16.gmra.mrb[0].mxu0 %v5091
        %v6791 = vpop.f32.mrb[0].mxu0
        %v6792 = vadd.f32 %v6599, %v6791
        %v6793 = vpop.f32.mrb[0].mxu0
        %v6794 = vadd.f32 %v6601, %v6793
        %v6795 = vpop.f32.mrb[0].mxu0
        %v6796 = vadd.f32 %v6603, %v6795
        %v6797 = vpop.f32.mrb[0].mxu0
        %v6798 = vadd.f32 %v6605, %v6797
        %6799 = vmatprep.mubr.bf16.mxu0 %v5188
        %6800 = vmatmul.mubr.bf16.gmra.mrb[0].mxu0 %v5092
        %v6801 = vpop.f32.mrb[0].mxu0
        %v6802 = vadd.f32 %v6609, %v6801
        %v6803 = vpop.f32.mrb[0].mxu0
        %v6804 = vadd.f32 %v6611, %v6803
        %v6805 = vpop.f32.mrb[0].mxu0
        %v6806 = vadd.f32 %v6613, %v6805
        %v6807 = vpop.f32.mrb[0].mxu0
        %v6808 = vadd.f32 %v6615, %v6807
        %6809 = vmatprep.mubr.bf16.mxu0 %v5189
        %6810 = vmatmul.mubr.bf16.gmra.mrb[0].mxu0 %v5093
        %v6811 = vpop.f32.mrb[0].mxu0
        %v6812 = vadd.f32 %v6619, %v6811
        %v6813 = vpop.f32.mrb[0].mxu0
        %v6814 = vadd.f32 %v6621, %v6813
        %v6815 = vpop.f32.mrb[0].mxu0
        %v6816 = vadd.f32 %v6623, %v6815
        %v6817 = vpop.f32.mrb[0].mxu0
        %v6818 = vadd.f32 %v6625, %v6817
        %6819 = vdwg.mxu0
        %6820 = vmatprep.subr.bf16.mxu0 %v6211
        %6821 = vmatpush1.bf16.msra.mxu0 %v6210
        %6822 = vmatprep.subr.bf16.mxu0 %v6213
        %6823 = vmatpush1.bf16.msra.mxu0 %v6212
        %6824 = vmatprep.subr.bf16.mxu0 %v6215
        %6825 = vmatpush1.bf16.msra.mxu0 %v6214
        %6826 = vmatprep.subr.bf16.mxu0 %v6217
        %6827 = vmatpush1.bf16.msra.mxu0 %v6216
        %6828 = vmatprep.subr.bf16.mxu0 %v6219
        %6829 = vmatpush1.bf16.msra.mxu0 %v6218
        %6830 = vmatprep.subr.bf16.mxu0 %v6221
        %6831 = vmatpush1.bf16.msra.mxu0 %v6220
        %6832 = vmatprep.subr.bf16.mxu0 %v6223
        %6833 = vmatpush1.bf16.msra.mxu0 %v6222
        %6834 = vmatprep.subr.bf16.mxu0 %v6225
        %6835 = vmatpush1.bf16.msra.mxu0 %v6224
        %6836 = vmatprep.subr.bf16.mxu0 %v6227
        %6837 = vmatpush1.bf16.msra.mxu0 %v6226
        %6838 = vmatprep.subr.bf16.mxu0 %v6229
        %6839 = vmatpush1.bf16.msra.mxu0 %v6228
        %6840 = vmatprep.subr.bf16.mxu0 %v6231
        %6841 = vmatpush1.bf16.msra.mxu0 %v6230
        %6842 = vmatprep.subr.bf16.mxu0 %v6233
        %6843 = vmatpush1.bf16.msra.mxu0 %v6232
        %6844 = vmatprep.subr.bf16.mxu0 %v6235
        %6845 = vmatpush1.bf16.msra.mxu0 %v6234
        %6846 = vmatprep.subr.bf16.mxu0 %v6237
        %6847 = vmatpush1.bf16.msra.mxu0 %v6236
        %6848 = vmatprep.subr.bf16.mxu0 %v6239
        %6849 = vmatpush1.bf16.msra.mxu0 %v6238
        %6850 = vmatprep.subr.bf16.mxu0 %v6241
        %6851 = vmatpush1.bf16.msra.mxu0 %v6240
        %6852 = vmatprep.mubr.bf16.mxu0 %v5302
        %6853 = vmatmul.mubr.bf16.gmra.mrb[0].mxu0 %v5238
        %v6854 = vpop.f32.mrb[0].mxu0
        %v6855 = vadd.f32 %v6662, %v6854
        %v6856 = vpop.f32.mrb[0].mxu0
        %v6857 = vadd.f32 %v6664, %v6856
        %v6858 = vpop.f32.mrb[0].mxu0
        %v6859 = vadd.f32 %v6666, %v6858
        %v6860 = vpop.f32.mrb[0].mxu0
        %v6861 = vadd.f32 %v6668, %v6860
        %6862 = vmatprep.mubr.bf16.mxu0 %v5303
        %6863 = vmatmul.mubr.bf16.gmra.mrb[0].mxu0 %v5239
        %v6864 = vpop.f32.mrb[0].mxu0
        %v6865 = vadd.f32 %v6672, %v6864
        %v6866 = vpop.f32.mrb[0].mxu0
        %v6867 = vadd.f32 %v6674, %v6866
        %v6868 = vpop.f32.mrb[0].mxu0
        %v6869 = vadd.f32 %v6676, %v6868
        %v6870 = vpop.f32.mrb[0].mxu0
        %v6871 = vadd.f32 %v6678, %v6870
        %6872 = vmatprep.mubr.bf16.mxu0 %v5304
        %6873 = vmatmul.mubr.bf16.gmra.mrb[0].mxu0 %v5240
        %v6874 = vpop.f32.mrb[0].mxu0
        %v6875 = vadd.f32 %v6682, %v6874
        %v6876 = vpop.f32.mrb[0].mxu0
        %v6877 = vadd.f32 %v6684, %v6876
        %v6878 = vpop.f32.mrb[0].mxu0
        %v6879 = vadd.f32 %v6686, %v6878
        %v6880 = vpop.f32.mrb[0].mxu0
        %v6881 = vadd.f32 %v6688, %v6880
        %6882 = vmatprep.mubr.bf16.mxu0 %v5305
        %6883 = vmatmul.mubr.bf16.gmra.mrb[0].mxu0 %v5241
        %v6884 = vpop.f32.mrb[0].mxu0
        %v6885 = vadd.f32 %v6692, %v6884
        %v6886 = vpop.f32.mrb[0].mxu0
        %v6887 = vadd.f32 %v6694, %v6886
        %v6888 = vpop.f32.mrb[0].mxu0
        %v6889 = vadd.f32 %v6696, %v6888
        %v6890 = vpop.f32.mrb[0].mxu0
        %v6891 = vadd.f32 %v6698, %v6890
        %6892 = vmatprep.mubr.bf16.mxu0 %v5306
        %6893 = vmatmul.mubr.bf16.gmra.mrb[0].mxu0 %v5242
        %v6894 = vpop.f32.mrb[0].mxu0
        %v6895 = vadd.f32 %v6702, %v6894
        %v6896 = vpop.f32.mrb[0].mxu0
        %v6897 = vadd.f32 %v6704, %v6896
        %v6898 = vpop.f32.mrb[0].mxu0
        %v6899 = vadd.f32 %v6706, %v6898
        %v6900 = vpop.f32.mrb[0].mxu0
        %v6901 = vadd.f32 %v6708, %v6900
        %6902 = vmatprep.mubr.bf16.mxu0 %v5307
        %6903 = vmatmul.mubr.bf16.gmra.mrb[0].mxu0 %v5243
        %v6904 = vpop.f32.mrb[0].mxu0
        %v6905 = vadd.f32 %v6712, %v6904
        %v6906 = vpop.f32.mrb[0].mxu0
        %v6907 = vadd.f32 %v6714, %v6906
        %v6908 = vpop.f32.mrb[0].mxu0
        %v6909 = vadd.f32 %v6716, %v6908
        %v6910 = vpop.f32.mrb[0].mxu0
        %v6911 = vadd.f32 %v6718, %v6910
        %6912 = vmatprep.mubr.bf16.mxu0 %v5308
        %6913 = vmatmul.mubr.bf16.gmra.mrb[0].mxu0 %v5244
        %v6914 = vpop.f32.mrb[0].mxu0
        %v6915 = vadd.f32 %v6722, %v6914
        %v6916 = vpop.f32.mrb[0].mxu0
        %v6917 = vadd.f32 %v6724, %v6916
        %v6918 = vpop.f32.mrb[0].mxu0
        %v6919 = vadd.f32 %v6726, %v6918
        %v6920 = vpop.f32.mrb[0].mxu0
        %v6921 = vadd.f32 %v6728, %v6920
        %6922 = vmatprep.mubr.bf16.mxu0 %v5309
        %6923 = vmatmul.mubr.bf16.gmra.mrb[0].mxu0 %v5245
        %v6924 = vpop.f32.mrb[0].mxu0
        %v6925 = vadd.f32 %v6732, %v6924
        %v6926 = vpop.f32.mrb[0].mxu0
        %v6927 = vadd.f32 %v6734, %v6926
        %v6928 = vpop.f32.mrb[0].mxu0
        %v6929 = vadd.f32 %v6736, %v6928
        %v6930 = vpop.f32.mrb[0].mxu0
        %v6931 = vadd.f32 %v6738, %v6930
        %6932 = vmatprep.mubr.bf16.mxu0 %v5310
        %6933 = vmatmul.mubr.bf16.gmra.mrb[0].mxu0 %v5246
        %v6934 = vpop.f32.mrb[0].mxu0
        %v6935 = vadd.f32 %v6742, %v6934
        %v6936 = vpop.f32.mrb[0].mxu0
        %v6937 = vadd.f32 %v6744, %v6936
        %v6938 = vpop.f32.mrb[0].mxu0
        %v6939 = vadd.f32 %v6746, %v6938
        %v6940 = vpop.f32.mrb[0].mxu0
        %v6941 = vadd.f32 %v6748, %v6940
        %6942 = vmatprep.mubr.bf16.mxu0 %v5311
        %6943 = vmatmul.mubr.bf16.gmra.mrb[0].mxu0 %v5247
        %v6944 = vpop.f32.mrb[0].mxu0
        %v6945 = vadd.f32 %v6752, %v6944
        %v6946 = vpop.f32.mrb[0].mxu0
        %v6947 = vadd.f32 %v6754, %v6946
        %v6948 = vpop.f32.mrb[0].mxu0
        %v6949 = vadd.f32 %v6756, %v6948
        %v6950 = vpop.f32.mrb[0].mxu0
        %v6951 = vadd.f32 %v6758, %v6950
        %6952 = vmatprep.mubr.bf16.mxu0 %v5312
        %6953 = vmatmul.mubr.bf16.gmra.mrb[0].mxu0 %v5248
        %v6954 = vpop.f32.mrb[0].mxu0
        %v6955 = vadd.f32 %v6762, %v6954
        %v6956 = vpop.f32.mrb[0].mxu0
        %v6957 = vadd.f32 %v6764, %v6956
        %v6958 = vpop.f32.mrb[0].mxu0
        %v6959 = vadd.f32 %v6766, %v6958
        %v6960 = vpop.f32.mrb[0].mxu0
        %v6961 = vadd.f32 %v6768, %v6960
        %6962 = vmatprep.mubr.bf16.mxu0 %v5313
        %6963 = vmatmul.mubr.bf16.gmra.mrb[0].mxu0 %v5249
        %v6964 = vpop.f32.mrb[0].mxu0
        %v6965 = vadd.f32 %v6772, %v6964
        %v6966 = vpop.f32.mrb[0].mxu0
        %v6967 = vadd.f32 %v6774, %v6966
        %v6968 = vpop.f32.mrb[0].mxu0
        %v6969 = vadd.f32 %v6776, %v6968
        %v6970 = vpop.f32.mrb[0].mxu0
        %v6971 = vadd.f32 %v6778, %v6970
        %6972 = vmatprep.mubr.bf16.mxu0 %v5314
        %6973 = vmatmul.mubr.bf16.gmra.mrb[0].mxu0 %v5250
        %v6974 = vpop.f32.mrb[0].mxu0
        %v6975 = vadd.f32 %v6782, %v6974
        %v6976 = vpop.f32.mrb[0].mxu0
        %v6977 = vadd.f32 %v6784, %v6976
        %v6978 = vpop.f32.mrb[0].mxu0
        %v6979 = vadd.f32 %v6786, %v6978
        %v6980 = vpop.f32.mrb[0].mxu0
        %v6981 = vadd.f32 %v6788, %v6980
        %6982 = vmatprep.mubr.bf16.mxu0 %v5315
        %6983 = vmatmul.mubr.bf16.gmra.mrb[0].mxu0 %v5251
        %v6984 = vpop.f32.mrb[0].mxu0
        %v6985 = vadd.f32 %v6792, %v6984
        %v6986 = vpop.f32.mrb[0].mxu0
        %v6987 = vadd.f32 %v6794, %v6986
        %v6988 = vpop.f32.mrb[0].mxu0
        %v6989 = vadd.f32 %v6796, %v6988
        %v6990 = vpop.f32.mrb[0].mxu0
        %v6991 = vadd.f32 %v6798, %v6990
        %6992 = vmatprep.mubr.bf16.mxu0 %v5316
        %6993 = vmatmul.mubr.bf16.gmra.mrb[0].mxu0 %v5252
        %v6994 = vpop.f32.mrb[0].mxu0
        %v6995 = vadd.f32 %v6802, %v6994
        %v6996 = vpop.f32.mrb[0].mxu0
        %v6997 = vadd.f32 %v6804, %v6996
        %v6998 = vpop.f32.mrb[0].mxu0
        %v6999 = vadd.f32 %v6806, %v6998
        %v7000 = vpop.f32.mrb[0].mxu0
        %v7001 = vadd.f32 %v6808, %v7000
        %7002 = vmatprep.mubr.bf16.mxu0 %v5317
        %7003 = vmatmul.mubr.bf16.gmra.mrb[0].mxu0 %v5253
        %v7004 = vpop.f32.mrb[0].mxu0
        %v7005 = vadd.f32 %v6812, %v7004
        %v7006 = vpop.f32.mrb[0].mxu0
        %v7007 = vadd.f32 %v6814, %v7006
        %v7008 = vpop.f32.mrb[0].mxu0
        %v7009 = vadd.f32 %v6816, %v7008
        %v7010 = vpop.f32.mrb[0].mxu0
        %v7011 = vadd.f32 %v6818, %v7010
        %7012 = vdwg.mxu0
        %7013 = vmatprep.subr.bf16.mxu0 %v6243
        %7014 = vmatpush1.bf16.msra.mxu0 %v6242
        %7015 = vmatprep.subr.bf16.mxu0 %v6245
        %7016 = vmatpush1.bf16.msra.mxu0 %v6244
        %7017 = vmatprep.subr.bf16.mxu0 %v6247
        %7018 = vmatpush1.bf16.msra.mxu0 %v6246
        %7019 = vmatprep.subr.bf16.mxu0 %v6249
        %7020 = vmatpush1.bf16.msra.mxu0 %v6248
        %7021 = vmatprep.subr.bf16.mxu0 %v6251
        %7022 = vmatpush1.bf16.msra.mxu0 %v6250
        %7023 = vmatprep.subr.bf16.mxu0 %v6253
        %7024 = vmatpush1.bf16.msra.mxu0 %v6252
        %7025 = vmatprep.subr.bf16.mxu0 %v6255
        %7026 = vmatpush1.bf16.msra.mxu0 %v6254
        %7027 = vmatprep.subr.bf16.mxu0 %v6257
        %7028 = vmatpush1.bf16.msra.mxu0 %v6256
        %7029 = vmatprep.subr.bf16.mxu0 %v6259
        %7030 = vmatpush1.bf16.msra.mxu0 %v6258
        %7031 = vmatprep.subr.bf16.mxu0 %v6261
        %7032 = vmatpush1.bf16.msra.mxu0 %v6260
        %7033 = vmatprep.subr.bf16.mxu0 %v6263
        %7034 = vmatpush1.bf16.msra.mxu0 %v6262
        %7035 = vmatprep.subr.bf16.mxu0 %v6265
        %7036 = vmatpush1.bf16.msra.mxu0 %v6264
        %7037 = vmatprep.subr.bf16.mxu0 %v6267
        %7038 = vmatpush1.bf16.msra.mxu0 %v6266
        %7039 = vmatprep.subr.bf16.mxu0 %v6269
        %7040 = vmatpush1.bf16.msra.mxu0 %v6268
        %7041 = vmatprep.subr.bf16.mxu0 %v6271
        %7042 = vmatpush1.bf16.msra.mxu0 %v6270
        %7043 = vmatprep.subr.bf16.mxu0 %v6273
        %7044 = vmatpush1.bf16.msra.mxu0 %v6272
        %7045 = vmatprep.mubr.bf16.mxu0 %v5462
        %7046 = vmatmul.mubr.bf16.gmra.mrb[0].mxu0 %v5398
        %v7047 = vpop.f32.mrb[0].mxu0
        %v7048 = vadd.f32 %v6855, %v7047
        %v7049 = vpop.f32.mrb[0].mxu0
        %v7050 = vadd.f32 %v6857, %v7049
        %v7051 = vpop.f32.mrb[0].mxu0
        %v7052 = vadd.f32 %v6859, %v7051
        %v7053 = vpop.f32.mrb[0].mxu0
        %v7054 = vadd.f32 %v6861, %v7053
        %7055 = vmatprep.mubr.bf16.mxu0 %v5463
        %7056 = vmatmul.mubr.bf16.gmra.mrb[0].mxu0 %v5399
        %v7057 = vpop.f32.mrb[0].mxu0
        %v7058 = vadd.f32 %v6865, %v7057
        %v7059 = vpop.f32.mrb[0].mxu0
        %v7060 = vadd.f32 %v6867, %v7059
        %v7061 = vpop.f32.mrb[0].mxu0
        %v7062 = vadd.f32 %v6869, %v7061
        %v7063 = vpop.f32.mrb[0].mxu0
        %v7064 = vadd.f32 %v6871, %v7063
        %7065 = vmatprep.mubr.bf16.mxu0 %v5464
        %7066 = vmatmul.mubr.bf16.gmra.mrb[0].mxu0 %v5400
        %v7067 = vpop.f32.mrb[0].mxu0
        %v7068 = vadd.f32 %v6875, %v7067
        %v7069 = vpop.f32.mrb[0].mxu0
        %v7070 = vadd.f32 %v6877, %v7069
        %v7071 = vpop.f32.mrb[0].mxu0
        %v7072 = vadd.f32 %v6879, %v7071
        %v7073 = vpop.f32.mrb[0].mxu0
        %v7074 = vadd.f32 %v6881, %v7073
        %7075 = vmatprep.mubr.bf16.mxu0 %v5465
        %7076 = vmatmul.mubr.bf16.gmra.mrb[0].mxu0 %v5401
        %v7077 = vpop.f32.mrb[0].mxu0
        %v7078 = vadd.f32 %v6885, %v7077
        %v7079 = vpop.f32.mrb[0].mxu0
        %v7080 = vadd.f32 %v6887, %v7079
        %v7081 = vpop.f32.mrb[0].mxu0
        %v7082 = vadd.f32 %v6889, %v7081
        %v7083 = vpop.f32.mrb[0].mxu0
        %v7084 = vadd.f32 %v6891, %v7083
        %7085 = vmatprep.mubr.bf16.mxu0 %v5466
        %7086 = vmatmul.mubr.bf16.gmra.mrb[0].mxu0 %v5402
        %v7087 = vpop.f32.mrb[0].mxu0
        %v7088 = vadd.f32 %v6895, %v7087
        %v7089 = vpop.f32.mrb[0].mxu0
        %v7090 = vadd.f32 %v6897, %v7089
        %v7091 = vpop.f32.mrb[0].mxu0
        %v7092 = vadd.f32 %v6899, %v7091
        %v7093 = vpop.f32.mrb[0].mxu0
        %v7094 = vadd.f32 %v6901, %v7093
        %7095 = vmatprep.mubr.bf16.mxu0 %v5467
        %7096 = vmatmul.mubr.bf16.gmra.mrb[0].mxu0 %v5403
        %v7097 = vpop.f32.mrb[0].mxu0
        %v7098 = vadd.f32 %v6905, %v7097
        %v7099 = vpop.f32.mrb[0].mxu0
        %v7100 = vadd.f32 %v6907, %v7099
        %v7101 = vpop.f32.mrb[0].mxu0
        %v7102 = vadd.f32 %v6909, %v7101
        %v7103 = vpop.f32.mrb[0].mxu0
        %v7104 = vadd.f32 %v6911, %v7103
        %7105 = vmatprep.mubr.bf16.mxu0 %v5468
        %7106 = vmatmul.mubr.bf16.gmra.mrb[0].mxu0 %v5404
        %v7107 = vpop.f32.mrb[0].mxu0
        %v7108 = vadd.f32 %v6915, %v7107
        %v7109 = vpop.f32.mrb[0].mxu0
        %v7110 = vadd.f32 %v6917, %v7109
        %v7111 = vpop.f32.mrb[0].mxu0
        %v7112 = vadd.f32 %v6919, %v7111
        %v7113 = vpop.f32.mrb[0].mxu0
        %v7114 = vadd.f32 %v6921, %v7113
        %7115 = vmatprep.mubr.bf16.mxu0 %v5469
        %7116 = vmatmul.mubr.bf16.gmra.mrb[0].mxu0 %v5405
        %v7117 = vpop.f32.mrb[0].mxu0
        %v7118 = vadd.f32 %v6925, %v7117
        %v7119 = vpop.f32.mrb[0].mxu0
        %v7120 = vadd.f32 %v6927, %v7119
        %v7121 = vpop.f32.mrb[0].mxu0
        %v7122 = vadd.f32 %v6929, %v7121
        %v7123 = vpop.f32.mrb[0].mxu0
        %v7124 = vadd.f32 %v6931, %v7123
        %7125 = vmatprep.mubr.bf16.mxu0 %v5470
        %7126 = vmatmul.mubr.bf16.gmra.mrb[0].mxu0 %v5406
        %v7127 = vpop.f32.mrb[0].mxu0
        %v7128 = vadd.f32 %v6935, %v7127
        %v7129 = vpop.f32.mrb[0].mxu0
        %v7130 = vadd.f32 %v6937, %v7129
        %v7131 = vpop.f32.mrb[0].mxu0
        %v7132 = vadd.f32 %v6939, %v7131
        %v7133 = vpop.f32.mrb[0].mxu0
        %v7134 = vadd.f32 %v6941, %v7133
        %7135 = vmatprep.mubr.bf16.mxu0 %v5471
        %7136 = vmatmul.mubr.bf16.gmra.mrb[0].mxu0 %v5407
        %v7137 = vpop.f32.mrb[0].mxu0
        %v7138 = vadd.f32 %v6945, %v7137
        %v7139 = vpop.f32.mrb[0].mxu0
        %v7140 = vadd.f32 %v6947, %v7139
        %v7141 = vpop.f32.mrb[0].mxu0
        %v7142 = vadd.f32 %v6949, %v7141
        %v7143 = vpop.f32.mrb[0].mxu0
        %v7144 = vadd.f32 %v6951, %v7143
        %7145 = vmatprep.mubr.bf16.mxu0 %v5472
        %7146 = vmatmul.mubr.bf16.gmra.mrb[0].mxu0 %v5408
        %v7147 = vpop.f32.mrb[0].mxu0
        %v7148 = vadd.f32 %v6955, %v7147
        %v7149 = vpop.f32.mrb[0].mxu0
        %v7150 = vadd.f32 %v6957, %v7149
        %v7151 = vpop.f32.mrb[0].mxu0
        %v7152 = vadd.f32 %v6959, %v7151
        %v7153 = vpop.f32.mrb[0].mxu0
        %v7154 = vadd.f32 %v6961, %v7153
        %7155 = vmatprep.mubr.bf16.mxu0 %v5473
        %7156 = vmatmul.mubr.bf16.gmra.mrb[0].mxu0 %v5409
        %v7157 = vpop.f32.mrb[0].mxu0
        %v7158 = vadd.f32 %v6965, %v7157
        %v7159 = vpop.f32.mrb[0].mxu0
        %v7160 = vadd.f32 %v6967, %v7159
        %v7161 = vpop.f32.mrb[0].mxu0
        %v7162 = vadd.f32 %v6969, %v7161
        %v7163 = vpop.f32.mrb[0].mxu0
        %v7164 = vadd.f32 %v6971, %v7163
        %7165 = vmatprep.mubr.bf16.mxu0 %v5474
        %7166 = vmatmul.mubr.bf16.gmra.mrb[0].mxu0 %v5410
        %v7167 = vpop.f32.mrb[0].mxu0
        %v7168 = vadd.f32 %v6975, %v7167
        %v7169 = vpop.f32.mrb[0].mxu0
        %v7170 = vadd.f32 %v6977, %v7169
        %v7171 = vpop.f32.mrb[0].mxu0
        %v7172 = vadd.f32 %v6979, %v7171
        %v7173 = vpop.f32.mrb[0].mxu0
        %v7174 = vadd.f32 %v6981, %v7173
        %7175 = vmatprep.mubr.bf16.mxu0 %v5475
        %7176 = vmatmul.mubr.bf16.gmra.mrb[0].mxu0 %v5411
        %v7177 = vpop.f32.mrb[0].mxu0
        %v7178 = vadd.f32 %v6985, %v7177
        %v7179 = vpop.f32.mrb[0].mxu0
        %v7180 = vadd.f32 %v6987, %v7179
        %v7181 = vpop.f32.mrb[0].mxu0
        %v7182 = vadd.f32 %v6989, %v7181
        %v7183 = vpop.f32.mrb[0].mxu0
        %v7184 = vadd.f32 %v6991, %v7183
        %7185 = vmatprep.mubr.bf16.mxu0 %v5476
        %7186 = vmatmul.mubr.bf16.gmra.mrb[0].mxu0 %v5412
        %v7187 = vpop.f32.mrb[0].mxu0
        %v7188 = vadd.f32 %v6995, %v7187
        %v7189 = vpop.f32.mrb[0].mxu0
        %v7190 = vadd.f32 %v6997, %v7189
        %v7191 = vpop.f32.mrb[0].mxu0
        %v7192 = vadd.f32 %v6999, %v7191
        %v7193 = vpop.f32.mrb[0].mxu0
        %v7194 = vadd.f32 %v7001, %v7193
        %7195 = vmatprep.mubr.bf16.mxu0 %v5477
        %7196 = vmatmul.mubr.bf16.gmra.mrb[0].mxu0 %v5413
        %v7197 = vpop.f32.mrb[0].mxu0
        %v7198 = vadd.f32 %v7005, %v7197
        %v7199 = vpop.f32.mrb[0].mxu0
        %v7200 = vadd.f32 %v7007, %v7199
        %v7201 = vpop.f32.mrb[0].mxu0
        %v7202 = vadd.f32 %v7009, %v7201
        %v7203 = vpop.f32.mrb[0].mxu0
        %v7204 = vadd.f32 %v7011, %v7203
        %7205 = vdwg.mxu0
        %7206 = vmatprep.subr.bf16.mxu0 %v6275
        %7207 = vmatpush1.bf16.msra.mxu0 %v6274
        %7208 = vmatprep.subr.bf16.mxu0 %v6277
        %7209 = vmatpush1.bf16.msra.mxu0 %v6276
        %7210 = vmatprep.subr.bf16.mxu0 %v6279
        %7211 = vmatpush1.bf16.msra.mxu0 %v6278
        %7212 = vmatprep.subr.bf16.mxu0 %v6281
        %7213 = vmatpush1.bf16.msra.mxu0 %v6280
        %7214 = vmatprep.subr.bf16.mxu0 %v6283
        %7215 = vmatpush1.bf16.msra.mxu0 %v6282
        %7216 = vmatprep.subr.bf16.mxu0 %v6285
        %7217 = vmatpush1.bf16.msra.mxu0 %v6284
        %7218 = vmatprep.subr.bf16.mxu0 %v6287
        %7219 = vmatpush1.bf16.msra.mxu0 %v6286
        %7220 = vmatprep.subr.bf16.mxu0 %v6289
        %7221 = vmatpush1.bf16.msra.mxu0 %v6288
        %7222 = vmatprep.subr.bf16.mxu0 0
        %7223 = vmatpush1.bf16.msra.mxu0 0
        %7224 = vmatprep.subr.bf16.mxu0 0
        %7225 = vmatpush1.bf16.msra.mxu0 0
        %7226 = vmatprep.subr.bf16.mxu0 0
        %7227 = vmatpush1.bf16.msra.mxu0 0
        %7228 = vmatprep.subr.bf16.mxu0 0
        %7229 = vmatpush1.bf16.msra.mxu0 0
        %7230 = vmatprep.subr.bf16.mxu0 0
        %7231 = vmatpush1.bf16.msra.mxu0 0
        %7232 = vmatprep.subr.bf16.mxu0 0
        %7233 = vmatpush1.bf16.msra.mxu0 0
        %7234 = vmatprep.subr.bf16.mxu0 0
        %7235 = vmatpush1.bf16.msra.mxu0 0
        %7236 = vmatprep.subr.bf16.mxu0 0
        %7237 = vmatpush1.bf16.msra.mxu0 0
        %7238 = vmatprep.mubr.bf16.mxu0 0
        %7239 = vmatmul.mubr.bf16.gmra.mrb[0].mxu0 %v5526
        %v7240 = vpop.f32.mrb[0].mxu0
        %v7241 = vadd.f32 %v7048, %v7240
        %v7242 = vpop.f32.mrb[0].mxu0
        %v7243 = vadd.f32 %v7050, %v7242
        %v7244 = vpop.f32.mrb[0].mxu0
        %v7245 = vadd.f32 %v7052, %v7244
        %v7246 = vpop.f32.mrb[0].mxu0
        %v7247 = vadd.f32 %v7054, %v7246
        %7248 = vmatprep.mubr.bf16.mxu0 0
        %7249 = vmatmul.mubr.bf16.gmra.mrb[0].mxu0 %v5527
        %v7250 = vpop.f32.mrb[0].mxu0
        %v7251 = vadd.f32 %v7058, %v7250
        %v7252 = vpop.f32.mrb[0].mxu0
        %v7253 = vadd.f32 %v7060, %v7252
        %v7254 = vpop.f32.mrb[0].mxu0
        %v7255 = vadd.f32 %v7062, %v7254
        %v7256 = vpop.f32.mrb[0].mxu0
        %v7257 = vadd.f32 %v7064, %v7256
        %7258 = vmatprep.mubr.bf16.mxu0 0
        %7259 = vmatmul.mubr.bf16.gmra.mrb[0].mxu0 %v5528
        %v7260 = vpop.f32.mrb[0].mxu0
        %v7261 = vadd.f32 %v7068, %v7260
        %v7262 = vpop.f32.mrb[0].mxu0
        %v7263 = vadd.f32 %v7070, %v7262
        %v7264 = vpop.f32.mrb[0].mxu0
        %v7265 = vadd.f32 %v7072, %v7264
        %v7266 = vpop.f32.mrb[0].mxu0
        %v7267 = vadd.f32 %v7074, %v7266
        %7268 = vmatprep.mubr.bf16.mxu0 0
        %7269 = vmatmul.mubr.bf16.gmra.mrb[0].mxu0 %v5529
        %v7270 = vpop.f32.mrb[0].mxu0
        %v7271 = vadd.f32 %v7078, %v7270
        %v7272 = vpop.f32.mrb[0].mxu0
        %v7273 = vadd.f32 %v7080, %v7272
        %v7274 = vpop.f32.mrb[0].mxu0
        %v7275 = vadd.f32 %v7082, %v7274
        %v7276 = vpop.f32.mrb[0].mxu0
        %v7277 = vadd.f32 %v7084, %v7276
        %7278 = vmatprep.mubr.bf16.mxu0 0
        %7279 = vmatmul.mubr.bf16.gmra.mrb[0].mxu0 %v5530
        %v7280 = vpop.f32.mrb[0].mxu0
        %v7281 = vadd.f32 %v7088, %v7280
        %v7282 = vpop.f32.mrb[0].mxu0
        %v7283 = vadd.f32 %v7090, %v7282
        %v7284 = vpop.f32.mrb[0].mxu0
        %v7285 = vadd.f32 %v7092, %v7284
        %v7286 = vpop.f32.mrb[0].mxu0
        %v7287 = vadd.f32 %v7094, %v7286
        %7288 = vmatprep.mubr.bf16.mxu0 0
        %7289 = vmatmul.mubr.bf16.gmra.mrb[0].mxu0 %v5531
        %v7290 = vpop.f32.mrb[0].mxu0
        %v7291 = vadd.f32 %v7098, %v7290
        %v7292 = vpop.f32.mrb[0].mxu0
        %v7293 = vadd.f32 %v7100, %v7292
        %v7294 = vpop.f32.mrb[0].mxu0
        %v7295 = vadd.f32 %v7102, %v7294
        %v7296 = vpop.f32.mrb[0].mxu0
        %v7297 = vadd.f32 %v7104, %v7296
        %7298 = vmatprep.mubr.bf16.mxu0 0
        %7299 = vmatmul.mubr.bf16.gmra.mrb[0].mxu0 %v5532
        %v7300 = vpop.f32.mrb[0].mxu0
        %v7301 = vadd.f32 %v7108, %v7300
        %v7302 = vpop.f32.mrb[0].mxu0
        %v7303 = vadd.f32 %v7110, %v7302
        %v7304 = vpop.f32.mrb[0].mxu0
        %v7305 = vadd.f32 %v7112, %v7304
        %v7306 = vpop.f32.mrb[0].mxu0
        %v7307 = vadd.f32 %v7114, %v7306
        %7308 = vmatprep.mubr.bf16.mxu0 0
        %7309 = vmatmul.mubr.bf16.gmra.mrb[0].mxu0 %v5533
        %v7310 = vpop.f32.mrb[0].mxu0
        %v7311 = vadd.f32 %v7118, %v7310
        %v7312 = vpop.f32.mrb[0].mxu0
        %v7313 = vadd.f32 %v7120, %v7312
        %v7314 = vpop.f32.mrb[0].mxu0
        %v7315 = vadd.f32 %v7122, %v7314
        %v7316 = vpop.f32.mrb[0].mxu0
        %v7317 = vadd.f32 %v7124, %v7316
        %7318 = vmatprep.mubr.bf16.mxu0 0
        %7319 = vmatmul.mubr.bf16.gmra.mrb[0].mxu0 %v5534
        %v7320 = vpop.f32.mrb[0].mxu0
        %v7321 = vadd.f32 %v7128, %v7320
        %v7322 = vpop.f32.mrb[0].mxu0
        %v7323 = vadd.f32 %v7130, %v7322
        %v7324 = vpop.f32.mrb[0].mxu0
        %v7325 = vadd.f32 %v7132, %v7324
        %v7326 = vpop.f32.mrb[0].mxu0
        %v7327 = vadd.f32 %v7134, %v7326
        %7328 = vmatprep.mubr.bf16.mxu0 0
        %7329 = vmatmul.mubr.bf16.gmra.mrb[0].mxu0 %v5535
        %v7330 = vpop.f32.mrb[0].mxu0
        %v7331 = vadd.f32 %v7138, %v7330
        %v7332 = vpop.f32.mrb[0].mxu0
        %v7333 = vadd.f32 %v7140, %v7332
        %v7334 = vpop.f32.mrb[0].mxu0
        %v7335 = vadd.f32 %v7142, %v7334
        %v7336 = vpop.f32.mrb[0].mxu0
        %v7337 = vadd.f32 %v7144, %v7336
        %7338 = vmatprep.mubr.bf16.mxu0 0
        %7339 = vmatmul.mubr.bf16.gmra.mrb[0].mxu0 %v5536
        %v7340 = vpop.f32.mrb[0].mxu0
        %v7341 = vadd.f32 %v7148, %v7340
        %v7342 = vpop.f32.mrb[0].mxu0
        %v7343 = vadd.f32 %v7150, %v7342
        %v7344 = vpop.f32.mrb[0].mxu0
        %v7345 = vadd.f32 %v7152, %v7344
        %v7346 = vpop.f32.mrb[0].mxu0
        %v7347 = vadd.f32 %v7154, %v7346
        %7348 = vmatprep.mubr.bf16.mxu0 0
        %7349 = vmatmul.mubr.bf16.gmra.mrb[0].mxu0 %v5537
        %v7350 = vpop.f32.mrb[0].mxu0
        %v7351 = vadd.f32 %v7158, %v7350
        %v7352 = vpop.f32.mrb[0].mxu0
        %v7353 = vadd.f32 %v7160, %v7352
        %v7354 = vpop.f32.mrb[0].mxu0
        %v7355 = vadd.f32 %v7162, %v7354
        %v7356 = vpop.f32.mrb[0].mxu0
        %v7357 = vadd.f32 %v7164, %v7356
        %7358 = vmatprep.mubr.bf16.mxu0 0
        %7359 = vmatmul.mubr.bf16.gmra.mrb[0].mxu0 %v5538
        %v7360 = vpop.f32.mrb[0].mxu0
        %v7361 = vadd.f32 %v7168, %v7360
        %v7362 = vpop.f32.mrb[0].mxu0
        %v7363 = vadd.f32 %v7170, %v7362
        %v7364 = vpop.f32.mrb[0].mxu0
        %v7365 = vadd.f32 %v7172, %v7364
        %v7366 = vpop.f32.mrb[0].mxu0
        %v7367 = vadd.f32 %v7174, %v7366
        %7368 = vmatprep.mubr.bf16.mxu0 0
        %7369 = vmatmul.mubr.bf16.gmra.mrb[0].mxu0 %v5539
        %v7370 = vpop.f32.mrb[0].mxu0
        %v7371 = vadd.f32 %v7178, %v7370
        %v7372 = vpop.f32.mrb[0].mxu0
        %v7373 = vadd.f32 %v7180, %v7372
        %v7374 = vpop.f32.mrb[0].mxu0
        %v7375 = vadd.f32 %v7182, %v7374
        %v7376 = vpop.f32.mrb[0].mxu0
        %v7377 = vadd.f32 %v7184, %v7376
        %7378 = vmatprep.mubr.bf16.mxu0 0
        %7379 = vmatmul.mubr.bf16.gmra.mrb[0].mxu0 %v5540
        %v7380 = vpop.f32.mrb[0].mxu0
        %v7381 = vadd.f32 %v7188, %v7380
        %v7382 = vpop.f32.mrb[0].mxu0
        %v7383 = vadd.f32 %v7190, %v7382
        %v7384 = vpop.f32.mrb[0].mxu0
        %v7385 = vadd.f32 %v7192, %v7384
        %v7386 = vpop.f32.mrb[0].mxu0
        %v7387 = vadd.f32 %v7194, %v7386
        %7388 = vmatprep.mubr.bf16.mxu0 0
        %7389 = vmatmul.mubr.bf16.gmra.mrb[0].mxu0 %v5541
        %v7390 = vpop.f32.mrb[0].mxu0
        %v7391 = vadd.f32 %v7198, %v7390
        %v7392 = vpop.f32.mrb[0].mxu0
        %v7393 = vadd.f32 %v7200, %v7392
        %v7394 = vpop.f32.mrb[0].mxu0
        %v7395 = vadd.f32 %v7202, %v7394
        %v7396 = vpop.f32.mrb[0].mxu0
        %v7397 = vadd.f32 %v7204, %v7396
        %7398 = vdwg.mxu0
        %v7399 = vmax.f32 %v7241, 0.0
        %v7400 = vmax.f32 %v7243, 0.0
        %v7401 = vmax.f32 %v7245, 0.0
        %v7402 = vmax.f32 %v7247, 0.0
        %v7403 = vmax.f32 %v7251, 0.0
        %v7404 = vmax.f32 %v7253, 0.0
        %v7405 = vmax.f32 %v7255, 0.0
        %v7406 = vmax.f32 %v7257, 0.0
        %v7407 = vmax.f32 %v7261, 0.0
        %v7408 = vmax.f32 %v7263, 0.0
        %v7409 = vmax.f32 %v7265, 0.0
        %v7410 = vmax.f32 %v7267, 0.0
        %v7411 = vmax.f32 %v7271, 0.0
        %v7412 = vmax.f32 %v7273, 0.0
        %v7413 = vmax.f32 %v7275, 0.0
        %v7414 = vmax.f32 %v7277, 0.0
        %v7415 = vmax.f32 %v7281, 0.0
        %v7416 = vmax.f32 %v7283, 0.0
        %v7417 = vmax.f32 %v7285, 0.0
        %v7418 = vmax.f32 %v7287, 0.0
        %v7419 = vmax.f32 %v7291, 0.0
        %v7420 = vmax.f32 %v7293, 0.0
        %v7421 = vmax.f32 %v7295, 0.0
        %v7422 = vmax.f32 %v7297, 0.0
        %v7423 = vmax.f32 %v7301, 0.0
        %v7424 = vmax.f32 %v7303, 0.0
        %v7425 = vmax.f32 %v7305, 0.0
        %v7426 = vmax.f32 %v7307, 0.0
        %v7427 = vmax.f32 %v7311, 0.0
        %v7428 = vmax.f32 %v7313, 0.0
        %v7429 = vmax.f32 %v7315, 0.0
        %v7430 = vmax.f32 %v7317, 0.0
        %v7431 = vmax.f32 %v7321, 0.0
        %v7432 = vmax.f32 %v7323, 0.0
        %v7433 = vmax.f32 %v7325, 0.0
        %v7434 = vmax.f32 %v7327, 0.0
        %v7435 = vmax.f32 %v7331, 0.0
        %v7436 = vmax.f32 %v7333, 0.0
        %v7437 = vmax.f32 %v7335, 0.0
        %v7438 = vmax.f32 %v7337, 0.0
        %v7439 = vmax.f32 %v7341, 0.0
        %v7440 = vmax.f32 %v7343, 0.0
        %v7441 = vmax.f32 %v7345, 0.0
        %v7442 = vmax.f32 %v7347, 0.0
        %v7443 = vmax.f32 %v7351, 0.0
        %v7444 = vmax.f32 %v7353, 0.0
        %v7445 = vmax.f32 %v7355, 0.0
        %v7446 = vmax.f32 %v7357, 0.0
        %v7447 = vmax.f32 %v7361, 0.0
        %v7448 = vmax.f32 %v7363, 0.0
        %v7449 = vmax.f32 %v7365, 0.0
        %v7450 = vmax.f32 %v7367, 0.0
        %v7451 = vmax.f32 %v7371, 0.0
        %v7452 = vmax.f32 %v7373, 0.0
        %v7453 = vmax.f32 %v7375, 0.0
        %v7454 = vmax.f32 %v7377, 0.0
        %v7455 = vmax.f32 %v7381, 0.0
        %v7456 = vmax.f32 %v7383, 0.0
        %v7457 = vmax.f32 %v7385, 0.0
        %v7458 = vmax.f32 %v7387, 0.0
        %v7459 = vmax.f32 %v7391, 0.0
        %v7460 = vmax.f32 %v7393, 0.0
        %v7461 = vmax.f32 %v7395, 0.0
        %v7462 = vmax.f32 %v7397, 0.0
        %v7463 = vpack.c.bf16 %v7401, %v7399
        %v7464 = vpack.c.bf16 %v7405, %v7403
        %v7465 = vpack.c.bf16 %v7409, %v7407
        %v7466 = vpack.c.bf16 %v7413, %v7411
        %v7467 = vpack.c.bf16 %v7417, %v7415
        %v7468 = vpack.c.bf16 %v7421, %v7419
        %v7469 = vpack.c.bf16 %v7425, %v7423
        %v7470 = vpack.c.bf16 %v7429, %v7427
        %v7471 = vpack.c.bf16 %v7433, %v7431
        %v7472 = vpack.c.bf16 %v7437, %v7435
        %v7473 = vpack.c.bf16 %v7441, %v7439
        %v7474 = vpack.c.bf16 %v7445, %v7443
        %v7475 = vpack.c.bf16 %v7449, %v7447
        %v7476 = vpack.c.bf16 %v7453, %v7451
        %v7477 = vpack.c.bf16 %v7457, %v7455
        %v7478 = vpack.c.bf16 %v7461, %v7459
        %v7479 = vpack.c.bf16 %v7402, %v7400
        %v7480 = vpack.c.bf16 %v7406, %v7404
        %v7481 = vpack.c.bf16 %v7410, %v7408
        %v7482 = vpack.c.bf16 %v7414, %v7412
        %v7483 = vpack.c.bf16 %v7418, %v7416
        %v7484 = vpack.c.bf16 %v7422, %v7420
        %v7485 = vpack.c.bf16 %v7426, %v7424
        %v7486 = vpack.c.bf16 %v7430, %v7428
        %v7487 = vpack.c.bf16 %v7434, %v7432
        %v7488 = vpack.c.bf16 %v7438, %v7436
        %v7489 = vpack.c.bf16 %v7442, %v7440
        %v7490 = vpack.c.bf16 %v7446, %v7444
        %v7491 = vpack.c.bf16 %v7450, %v7448
        %v7492 = vpack.c.bf16 %v7454, %v7452
        %v7493 = vpack.c.bf16 %v7458, %v7456
        %v7494 = vpack.c.bf16 %v7462, %v7460
        %v7511 = vunpack.c.l.b16 %v7479
        %v7512 = vunpack.c.h.b16 %v7479
        %v7513 = vunpack.c.l.b16 %v7480
        %v7514 = vunpack.c.h.b16 %v7480
        %v7515 = vunpack.c.l.b16 %v7481
        %v7516 = vunpack.c.h.b16 %v7481
        %v7517 = vunpack.c.l.b16 %v7482
        %v7518 = vunpack.c.h.b16 %v7482
        %v7519 = vunpack.c.l.b16 %v7483
        %v7520 = vunpack.c.h.b16 %v7483
        %v7521 = vunpack.c.l.b16 %v7484
        %v7522 = vunpack.c.h.b16 %v7484
        %v7523 = vunpack.c.l.b16 %v7485
        %v7524 = vunpack.c.h.b16 %v7485
        %v7525 = vunpack.c.l.b16 %v7486
        %v7526 = vunpack.c.h.b16 %v7486
        %v7527 = vunpack.c.l.b16 %v7487
        %v7528 = vunpack.c.h.b16 %v7487
        %v7529 = vunpack.c.l.b16 %v7488
        %v7530 = vunpack.c.h.b16 %v7488
        %v7531 = vunpack.c.l.b16 %v7489
        %v7532 = vunpack.c.h.b16 %v7489
        %v7533 = vunpack.c.l.b16 %v7490
        %v7534 = vunpack.c.h.b16 %v7490
        %v7535 = vunpack.c.l.b16 %v7491
        %v7536 = vunpack.c.h.b16 %v7491
        %v7537 = vunpack.c.l.b16 %v7492
        %v7538 = vunpack.c.h.b16 %v7492
        %v7539 = vunpack.c.l.b16 %v7493
        %v7540 = vunpack.c.h.b16 %v7493
        %v7541 = vunpack.c.l.b16 %v7494
        %v7542 = vunpack.c.h.b16 %v7494
        %7543 = vst [vmem:[#allocation3] sm:$0xf] 0
        %7544 = vst [vmem:[#allocation3 + $0x4] sm:$0x1] 0
        %7545 = vst [vmem:[#allocation3 + $0x50] sm:$0xf] 0
        %7546 = vst [vmem:[#allocation3 + $0x54] sm:$0x1] 0
        %7547 = vst [vmem:[#allocation3 + $0xa0] sm:$0xf] 0
        %7548 = vst [vmem:[#allocation3 + $0xa4] sm:$0x1] 0
        %7549 = vst [vmem:[#allocation3 + $0xf0] sm:$0xf] 0
        %7550 = vst [vmem:[#allocation3 + $0xf4] sm:$0x1] 0
        %s7551 = scalar_lea.vmem [#allocation3], 72
        %7552 = vst [vmem:[%s7551] sm:$0xf] 0
        %7553 = vst [vmem:[%s7551 + $0x4] sm:$0x1] 0
        %7554 = vst [vmem:[%s7551 + $0x50] sm:$0xf] 0
        %7555 = vst [vmem:[%s7551 + $0x54] sm:$0x1] 0
        %7556 = vst [vmem:[%s7551 + $0xa0] sm:$0xf] 0
        %7557 = vst [vmem:[%s7551 + $0xa4] sm:$0x1] 0
        %7558 = vst [vmem:[%s7551 + $0xf0] sm:$0xf] 0
        %7559 = vst [vmem:[%s7551 + $0xf4] sm:$0x1] 0
        %v7560 = vpack.c.b16 %v7511, %v7511
        %v7561 = vpack.c.b16 %v7512, %v7512
        %v7562 = vpack.c.b16 %v7513, %v7513
        %v7563 = vpack.c.b16 %v7514, %v7514
        %v7564 = vpack.c.b16 %v7515, %v7515
        %v7565 = vpack.c.b16 %v7516, %v7516
        %v7566 = vpack.c.b16 %v7517, %v7517
        %v7567 = vpack.c.b16 %v7518, %v7518
        %v7568 = vpack.c.b16 %v7519, %v7519
        %v7569 = vpack.c.b16 %v7520, %v7520
        %v7570 = vpack.c.b16 %v7521, %v7521
        %v7571 = vpack.c.b16 %v7522, %v7522
        %v7572 = vpack.c.b16 %v7523, %v7523
        %v7573 = vpack.c.b16 %v7524, %v7524
        %v7574 = vpack.c.b16 %v7525, %v7525
        %v7575 = vpack.c.b16 %v7526, %v7526
        %v7576 = vpack.c.b16 %v7527, %v7527
        %v7577 = vpack.c.b16 %v7528, %v7528
        %v7578 = vpack.c.b16 %v7529, %v7529
        %v7579 = vpack.c.b16 %v7530, %v7530
        %v7580 = vpack.c.b16 %v7531, %v7531
        %v7581 = vpack.c.b16 %v7532, %v7532
        %v7582 = vpack.c.b16 %v7533, %v7533
        %v7583 = vpack.c.b16 %v7534, %v7534
        %v7584 = vpack.c.b16 %v7535, %v7535
        %v7585 = vpack.c.b16 %v7536, %v7536
        %v7586 = vpack.c.b16 %v7537, %v7537
        %v7587 = vpack.c.b16 %v7538, %v7538
        %v7588 = vpack.c.b16 %v7539, %v7539
        %v7589 = vpack.c.b16 %v7540, %v7540
        %v7590 = vpack.c.b16 %v7541, %v7541
        %v7591 = vpack.c.b16 %v7542, %v7542
        %v7593 = vshrl.u32 %v7560, 16
        %v7595 = vrot.slane %v7593, 7
        %v7596 = vshll.u32 %v7560, 16
        %v7598 = vor.u32 %v7595, %v7596
        %v7600 = vshrl.u32 %v7561, 16
        %v7602 = vrot.slane %v7600, 7
        %v7603 = vshll.u32 %v7561, 16
        %v7605 = vor.u32 %v7602, %v7603
        %v7607 = vshrl.u32 %v7562, 16
        %v7609 = vrot.slane %v7607, 7
        %v7610 = vshll.u32 %v7562, 16
        %v7612 = vor.u32 %v7609, %v7610
        %v7614 = vshrl.u32 %v7563, 16
        %v7616 = vrot.slane %v7614, 7
        %v7617 = vshll.u32 %v7563, 16
        %v7619 = vor.u32 %v7616, %v7617
        %v7621 = vshrl.u32 %v7564, 16
        %v7623 = vrot.slane %v7621, 7
        %v7624 = vshll.u32 %v7564, 16
        %v7626 = vor.u32 %v7623, %v7624
        %v7628 = vshrl.u32 %v7565, 16
        %v7630 = vrot.slane %v7628, 7
        %v7631 = vshll.u32 %v7565, 16
        %v7633 = vor.u32 %v7630, %v7631
        %v7635 = vshrl.u32 %v7566, 16
        %v7637 = vrot.slane %v7635, 7
        %v7638 = vshll.u32 %v7566, 16
        %v7640 = vor.u32 %v7637, %v7638
        %v7642 = vshrl.u32 %v7567, 16
        %v7644 = vrot.slane %v7642, 7
        %v7645 = vshll.u32 %v7567, 16
        %v7647 = vor.u32 %v7644, %v7645
        %v7649 = vshrl.u32 %v7568, 16
        %v7651 = vrot.slane %v7649, 7
        %v7652 = vshll.u32 %v7568, 16
        %v7654 = vor.u32 %v7651, %v7652
        %v7656 = vshrl.u32 %v7569, 16
        %v7658 = vrot.slane %v7656, 7
        %v7659 = vshll.u32 %v7569, 16
        %v7661 = vor.u32 %v7658, %v7659
        %v7663 = vshrl.u32 %v7570, 16
        %v7665 = vrot.slane %v7663, 7
        %v7666 = vshll.u32 %v7570, 16
        %v7668 = vor.u32 %v7665, %v7666
        %v7670 = vshrl.u32 %v7571, 16
        %v7672 = vrot.slane %v7670, 7
        %v7673 = vshll.u32 %v7571, 16
        %v7675 = vor.u32 %v7672, %v7673
        %v7677 = vshrl.u32 %v7572, 16
        %v7679 = vrot.slane %v7677, 7
        %v7680 = vshll.u32 %v7572, 16
        %v7682 = vor.u32 %v7679, %v7680
        %v7684 = vshrl.u32 %v7573, 16
        %v7686 = vrot.slane %v7684, 7
        %v7687 = vshll.u32 %v7573, 16
        %v7689 = vor.u32 %v7686, %v7687
        %v7691 = vshrl.u32 %v7574, 16
        %v7693 = vrot.slane %v7691, 7
        %v7694 = vshll.u32 %v7574, 16
        %v7696 = vor.u32 %v7693, %v7694
        %v7698 = vshrl.u32 %v7575, 16
        %v7700 = vrot.slane %v7698, 7
        %v7701 = vshll.u32 %v7575, 16
        %v7703 = vor.u32 %v7700, %v7701
        %v7705 = vshrl.u32 %v7576, 16
        %v7707 = vrot.slane %v7705, 7
        %v7708 = vshll.u32 %v7576, 16
        %v7710 = vor.u32 %v7707, %v7708
        %v7712 = vshrl.u32 %v7577, 16
        %v7714 = vrot.slane %v7712, 7
        %v7715 = vshll.u32 %v7577, 16
        %v7717 = vor.u32 %v7714, %v7715
        %v7719 = vshrl.u32 %v7578, 16
        %v7721 = vrot.slane %v7719, 7
        %v7722 = vshll.u32 %v7578, 16
        %v7724 = vor.u32 %v7721, %v7722
        %v7726 = vshrl.u32 %v7579, 16
        %v7728 = vrot.slane %v7726, 7
        %v7729 = vshll.u32 %v7579, 16
        %v7731 = vor.u32 %v7728, %v7729
        %v7733 = vshrl.u32 %v7580, 16
        %v7735 = vrot.slane %v7733, 7
        %v7736 = vshll.u32 %v7580, 16
        %v7738 = vor.u32 %v7735, %v7736
        %v7740 = vshrl.u32 %v7581, 16
        %v7742 = vrot.slane %v7740, 7
        %v7743 = vshll.u32 %v7581, 16
        %v7745 = vor.u32 %v7742, %v7743
        %v7747 = vshrl.u32 %v7582, 16
        %v7749 = vrot.slane %v7747, 7
        %v7750 = vshll.u32 %v7582, 16
        %v7752 = vor.u32 %v7749, %v7750
        %v7754 = vshrl.u32 %v7583, 16
        %v7756 = vrot.slane %v7754, 7
        %v7757 = vshll.u32 %v7583, 16
        %v7759 = vor.u32 %v7756, %v7757
        %v7761 = vshrl.u32 %v7584, 16
        %v7763 = vrot.slane %v7761, 7
        %v7764 = vshll.u32 %v7584, 16
        %v7766 = vor.u32 %v7763, %v7764
        %v7768 = vshrl.u32 %v7585, 16
        %v7770 = vrot.slane %v7768, 7
        %v7771 = vshll.u32 %v7585, 16
        %v7773 = vor.u32 %v7770, %v7771
        %v7775 = vshrl.u32 %v7586, 16
        %v7777 = vrot.slane %v7775, 7
        %v7778 = vshll.u32 %v7586, 16
        %v7780 = vor.u32 %v7777, %v7778
        %v7782 = vshrl.u32 %v7587, 16
        %v7784 = vrot.slane %v7782, 7
        %v7785 = vshll.u32 %v7587, 16
        %v7787 = vor.u32 %v7784, %v7785
        %v7789 = vshrl.u32 %v7588, 16
        %v7791 = vrot.slane %v7789, 7
        %v7792 = vshll.u32 %v7588, 16
        %v7794 = vor.u32 %v7791, %v7792
        %v7796 = vshrl.u32 %v7589, 16
        %v7798 = vrot.slane %v7796, 7
        %v7799 = vshll.u32 %v7589, 16
        %v7801 = vor.u32 %v7798, %v7799
        %v7803 = vshrl.u32 %v7590, 16
        %v7805 = vrot.slane %v7803, 7
        %v7806 = vshll.u32 %v7590, 16
        %v7808 = vor.u32 %v7805, %v7806
        %v7810 = vshrl.u32 %v7591, 16
        %v7812 = vrot.slane %v7810, 7
        %v7813 = vshll.u32 %v7591, 16
        %v7815 = vor.u32 %v7812, %v7813
        %v7848 = vsel %vm2314, 0, %v7598
        %v7849 = vsel %vm2314, 0, %v7605
        %v7850 = vsel %vm2314, 0, %v7612
        %v7851 = vsel %vm2314, 0, %v7619
        %v7852 = vsel %vm2314, 0, %v7626
        %v7853 = vsel %vm2314, 0, %v7633
        %v7854 = vsel %vm2314, 0, %v7640
        %v7855 = vsel %vm2314, 0, %v7647
        %v7856 = vsel %vm2314, 0, %v7654
        %v7857 = vsel %vm2314, 0, %v7661
        %v7858 = vsel %vm2314, 0, %v7668
        %v7859 = vsel %vm2314, 0, %v7675
        %v7860 = vsel %vm2314, 0, %v7682
        %v7861 = vsel %vm2314, 0, %v7689
        %v7862 = vsel %vm2314, 0, %v7696
        %v7863 = vsel %vm2314, 0, %v7703
        %v7864 = vsel %vm2314, 0, %v7710
        %v7865 = vsel %vm2314, 0, %v7717
        %v7866 = vsel %vm2314, 0, %v7724
        %v7867 = vsel %vm2314, 0, %v7731
        %v7868 = vsel %vm2314, 0, %v7738
        %v7869 = vsel %vm2314, 0, %v7745
        %v7870 = vsel %vm2314, 0, %v7752
        %v7871 = vsel %vm2314, 0, %v7759
        %v7872 = vsel %vm2314, 0, %v7766
        %v7873 = vsel %vm2314, 0, %v7773
        %v7874 = vsel %vm2314, 0, %v7780
        %v7875 = vsel %vm2314, 0, %v7787
        %v7876 = vsel %vm2314, 0, %v7794
        %v7877 = vsel %vm2314, 0, %v7801
        %v7878 = vsel %vm2314, 0, %v7808
        %v7879 = vsel %vm2314, 0, %v7815
        %v7880 = vsel %vm2349, %v7848, 0
        %v7881 = vsel %vm2349, %v7849, 0
        %v7882 = vsel %vm2349, %v7850, 0
        %v7883 = vsel %vm2349, %v7851, 0
        %v7884 = vsel %vm2349, %v7852, 0
        %v7885 = vsel %vm2349, %v7853, 0
        %v7886 = vsel %vm2349, %v7854, 0
        %v7887 = vsel %vm2349, %v7855, 0
        %v7888 = vsel %vm2349, %v7856, 0
        %v7889 = vsel %vm2349, %v7857, 0
        %v7890 = vsel %vm2349, %v7858, 0
        %v7891 = vsel %vm2349, %v7859, 0
        %v7892 = vsel %vm2349, %v7860, 0
        %v7893 = vsel %vm2349, %v7861, 0
        %v7894 = vsel %vm2349, %v7862, 0
        %v7895 = vsel %vm2349, %v7863, 0
        %v7896 = vsel %vm2349, %v7864, 0
        %v7897 = vsel %vm2349, %v7865, 0
        %v7898 = vsel %vm2349, %v7866, 0
        %v7899 = vsel %vm2349, %v7867, 0
        %v7900 = vsel %vm2349, %v7868, 0
        %v7901 = vsel %vm2349, %v7869, 0
        %v7902 = vsel %vm2349, %v7870, 0
        %v7903 = vsel %vm2349, %v7871, 0
        %v7904 = vsel %vm2349, %v7872, 0
        %v7905 = vsel %vm2349, %v7873, 0
        %v7906 = vsel %vm2349, %v7874, 0
        %v7907 = vsel %vm2349, %v7875, 0
        %v7908 = vsel %vm2349, %v7876, 0
        %v7909 = vsel %vm2349, %v7877, 0
        %v7910 = vsel %vm2349, %v7878, 0
        %v7911 = vsel %vm2349, %v7879, 0
        %v7944 = vunpack.c.l.b16 %v7880
        %v7945 = vunpack.c.h.b16 %v7880
        %v7946 = vunpack.c.l.b16 %v7881
        %v7947 = vunpack.c.h.b16 %v7881
        %v7948 = vunpack.c.l.b16 %v7882
        %v7949 = vunpack.c.h.b16 %v7882
        %v7950 = vunpack.c.l.b16 %v7883
        %v7951 = vunpack.c.h.b16 %v7883
        %v7952 = vunpack.c.l.b16 %v7884
        %v7953 = vunpack.c.h.b16 %v7884
        %v7954 = vunpack.c.l.b16 %v7885
        %v7955 = vunpack.c.h.b16 %v7885
        %v7956 = vunpack.c.l.b16 %v7886
        %v7957 = vunpack.c.h.b16 %v7886
        %v7958 = vunpack.c.l.b16 %v7887
        %v7959 = vunpack.c.h.b16 %v7887
        %v7960 = vunpack.c.l.b16 %v7888
        %v7961 = vunpack.c.h.b16 %v7888
        %v7962 = vunpack.c.l.b16 %v7889
        %v7963 = vunpack.c.h.b16 %v7889
        %v7964 = vunpack.c.l.b16 %v7890
        %v7965 = vunpack.c.h.b16 %v7890
        %v7966 = vunpack.c.l.b16 %v7891
        %v7967 = vunpack.c.h.b16 %v7891
        %v7968 = vunpack.c.l.b16 %v7892
        %v7969 = vunpack.c.h.b16 %v7892
        %v7970 = vunpack.c.l.b16 %v7893
        %v7971 = vunpack.c.h.b16 %v7893
        %v7972 = vunpack.c.l.b16 %v7894
        %v7973 = vunpack.c.h.b16 %v7894
        %v7974 = vunpack.c.l.b16 %v7895
        %v7975 = vunpack.c.h.b16 %v7895
        %v7976 = vunpack.c.l.b16 %v7896
        %v7977 = vunpack.c.h.b16 %v7896
        %v7978 = vunpack.c.l.b16 %v7897
        %v7979 = vunpack.c.h.b16 %v7897
        %v7980 = vunpack.c.l.b16 %v7898
        %v7981 = vunpack.c.h.b16 %v7898
        %v7982 = vunpack.c.l.b16 %v7899
        %v7983 = vunpack.c.h.b16 %v7899
        %v7984 = vunpack.c.l.b16 %v7900
        %v7985 = vunpack.c.h.b16 %v7900
        %v7986 = vunpack.c.l.b16 %v7901
        %v7987 = vunpack.c.h.b16 %v7901
        %v7988 = vunpack.c.l.b16 %v7902
        %v7989 = vunpack.c.h.b16 %v7902
        %v7990 = vunpack.c.l.b16 %v7903
        %v7991 = vunpack.c.h.b16 %v7903
        %v7992 = vunpack.c.l.b16 %v7904
        %v7993 = vunpack.c.h.b16 %v7904
        %v7994 = vunpack.c.l.b16 %v7905
        %v7995 = vunpack.c.h.b16 %v7905
        %v7996 = vunpack.c.l.b16 %v7906
        %v7997 = vunpack.c.h.b16 %v7906
        %v7998 = vunpack.c.l.b16 %v7907
        %v7999 = vunpack.c.h.b16 %v7907
        %v8000 = vunpack.c.l.b16 %v7908
        %v8001 = vunpack.c.h.b16 %v7908
        %v8002 = vunpack.c.l.b16 %v7909
        %v8003 = vunpack.c.h.b16 %v7909
        %v8004 = vunpack.c.l.b16 %v7910
        %v8005 = vunpack.c.h.b16 %v7910
        %v8006 = vunpack.c.l.b16 %v7911
        %v8007 = vunpack.c.h.b16 %v7911
        %v8008 = vpack.c.b16 %v7944, %v7944
        %v8009 = vpack.c.b16 %v7945, %v7945
        %v8010 = vpack.c.b16 %v7946, %v7946
        %v8011 = vpack.c.b16 %v7947, %v7947
        %v8012 = vpack.c.b16 %v7948, %v7948
        %v8013 = vpack.c.b16 %v7949, %v7949
        %v8014 = vpack.c.b16 %v7950, %v7950
        %v8015 = vpack.c.b16 %v7951, %v7951
        %v8016 = vpack.c.b16 %v7952, %v7952
        %v8017 = vpack.c.b16 %v7953, %v7953
        %v8018 = vpack.c.b16 %v7954, %v7954
        %v8019 = vpack.c.b16 %v7955, %v7955
        %v8020 = vpack.c.b16 %v7956, %v7956
        %v8021 = vpack.c.b16 %v7957, %v7957
        %v8022 = vpack.c.b16 %v7958, %v7958
        %v8023 = vpack.c.b16 %v7959, %v7959
        %v8024 = vpack.c.b16 %v7960, %v7960
        %v8025 = vpack.c.b16 %v7961, %v7961
        %v8026 = vpack.c.b16 %v7962, %v7962
        %v8027 = vpack.c.b16 %v7963, %v7963
        %v8028 = vpack.c.b16 %v7964, %v7964
        %v8029 = vpack.c.b16 %v7965, %v7965
        %v8030 = vpack.c.b16 %v7966, %v7966
        %v8031 = vpack.c.b16 %v7967, %v7967
        %v8032 = vpack.c.b16 %v7968, %v7968
        %v8033 = vpack.c.b16 %v7969, %v7969
        %v8034 = vpack.c.b16 %v7970, %v7970
        %v8035 = vpack.c.b16 %v7971, %v7971
        %v8036 = vpack.c.b16 %v7972, %v7972
        %v8037 = vpack.c.b16 %v7973, %v7973
        %v8038 = vpack.c.b16 %v7974, %v7974
        %v8039 = vpack.c.b16 %v7975, %v7975
        %v8040 = vpack.c.b16 %v7976, %v7976
        %v8041 = vpack.c.b16 %v7977, %v7977
        %v8042 = vpack.c.b16 %v7978, %v7978
        %v8043 = vpack.c.b16 %v7979, %v7979
        %v8044 = vpack.c.b16 %v7980, %v7980
        %v8045 = vpack.c.b16 %v7981, %v7981
        %v8046 = vpack.c.b16 %v7982, %v7982
        %v8047 = vpack.c.b16 %v7983, %v7983
        %v8048 = vpack.c.b16 %v7984, %v7984
        %v8049 = vpack.c.b16 %v7985, %v7985
        %v8050 = vpack.c.b16 %v7986, %v7986
        %v8051 = vpack.c.b16 %v7987, %v7987
        %v8052 = vpack.c.b16 %v7988, %v7988
        %v8053 = vpack.c.b16 %v7989, %v7989
        %v8054 = vpack.c.b16 %v7990, %v7990
        %v8055 = vpack.c.b16 %v7991, %v7991
        %v8056 = vpack.c.b16 %v7992, %v7992
        %v8057 = vpack.c.b16 %v7993, %v7993
        %v8058 = vpack.c.b16 %v7994, %v7994
        %v8059 = vpack.c.b16 %v7995, %v7995
        %v8060 = vpack.c.b16 %v7996, %v7996
        %v8061 = vpack.c.b16 %v7997, %v7997
        %v8062 = vpack.c.b16 %v7998, %v7998
        %v8063 = vpack.c.b16 %v7999, %v7999
        %v8064 = vpack.c.b16 %v8000, %v8000
        %v8065 = vpack.c.b16 %v8001, %v8001
        %v8066 = vpack.c.b16 %v8002, %v8002
        %v8067 = vpack.c.b16 %v8003, %v8003
        %v8068 = vpack.c.b16 %v8004, %v8004
        %v8069 = vpack.c.b16 %v8005, %v8005
        %v8070 = vpack.c.b16 %v8006, %v8006
        %v8071 = vpack.c.b16 %v8007, %v8007
        %s8136 = scalar_lea.vmem [#allocation3], 8
        %8137 = vst [vmem:[%s8136] sm:$0xf] %v8008
        %8138 = vst [vmem:[%s8136 + $0x4] sm:$0x1] %v8009
        %8139 = vst [vmem:[%s8136 + $0x8] sm:$0xf] %v8010
        %8140 = vst [vmem:[%s8136 + $0xc] sm:$0x1] %v8011
        %8141 = vst [vmem:[%s8136 + $0x10] sm:$0xf] %v8012
        %8142 = vst [vmem:[%s8136 + $0x14] sm:$0x1] %v8013
        %8143 = vst [vmem:[%s8136 + $0x18] sm:$0xf] %v8014
        %8144 = vst [vmem:[%s8136 + $0x1c] sm:$0x1] %v8015
        %8145 = vst [vmem:[%s8136 + $0x20] sm:$0xf] %v8016
        %8146 = vst [vmem:[%s8136 + $0x24] sm:$0x1] %v8017
        %8147 = vst [vmem:[%s8136 + $0x28] sm:$0xf] %v8018
        %8148 = vst [vmem:[%s8136 + $0x2c] sm:$0x1] %v8019
        %8149 = vst [vmem:[%s8136 + $0x30] sm:$0xf] %v8020
        %8150 = vst [vmem:[%s8136 + $0x34] sm:$0x1] %v8021
        %8151 = vst [vmem:[%s8136 + $0x38] sm:$0xf] %v8022
        %8152 = vst [vmem:[%s8136 + $0x3c] sm:$0x1] %v8023
        %8153 = vst [vmem:[%s8136 + $0x50] sm:$0xf] %v8024
        %8154 = vst [vmem:[%s8136 + $0x54] sm:$0x1] %v8025
        %8155 = vst [vmem:[%s8136 + $0x58] sm:$0xf] %v8026
        %8156 = vst [vmem:[%s8136 + $0x5c] sm:$0x1] %v8027
        %8157 = vst [vmem:[%s8136 + $0x60] sm:$0xf] %v8028
        %8158 = vst [vmem:[%s8136 + $0x64] sm:$0x1] %v8029
        %8159 = vst [vmem:[%s8136 + $0x68] sm:$0xf] %v8030
        %8160 = vst [vmem:[%s8136 + $0x6c] sm:$0x1] %v8031
        %8161 = vst [vmem:[%s8136 + $0x70] sm:$0xf] %v8032
        %8162 = vst [vmem:[%s8136 + $0x74] sm:$0x1] %v8033
        %8163 = vst [vmem:[%s8136 + $0x78] sm:$0xf] %v8034
        %8164 = vst [vmem:[%s8136 + $0x7c] sm:$0x1] %v8035
        %8165 = vst [vmem:[%s8136 + $0x80] sm:$0xf] %v8036
        %8166 = vst [vmem:[%s8136 + $0x84] sm:$0x1] %v8037
        %8167 = vst [vmem:[%s8136 + $0x88] sm:$0xf] %v8038
        %8168 = vst [vmem:[%s8136 + $0x8c] sm:$0x1] %v8039
        %8169 = vst [vmem:[%s8136 + $0xa0] sm:$0xf] %v8040
        %8170 = vst [vmem:[%s8136 + $0xa4] sm:$0x1] %v8041
        %8171 = vst [vmem:[%s8136 + $0xa8] sm:$0xf] %v8042
        %8172 = vst [vmem:[%s8136 + $0xac] sm:$0x1] %v8043
        %8173 = vst [vmem:[%s8136 + $0xb0] sm:$0xf] %v8044
        %8174 = vst [vmem:[%s8136 + $0xb4] sm:$0x1] %v8045
        %8175 = vst [vmem:[%s8136 + $0xb8] sm:$0xf] %v8046
        %8176 = vst [vmem:[%s8136 + $0xbc] sm:$0x1] %v8047
        %8177 = vst [vmem:[%s8136 + $0xc0] sm:$0xf] %v8048
        %8178 = vst [vmem:[%s8136 + $0xc4] sm:$0x1] %v8049
        %8179 = vst [vmem:[%s8136 + $0xc8] sm:$0xf] %v8050
        %8180 = vst [vmem:[%s8136 + $0xcc] sm:$0x1] %v8051
        %8181 = vst [vmem:[%s8136 + $0xd0] sm:$0xf] %v8052
        %8182 = vst [vmem:[%s8136 + $0xd4] sm:$0x1] %v8053
        %8183 = vst [vmem:[%s8136 + $0xd8] sm:$0xf] %v8054
        %8184 = vst [vmem:[%s8136 + $0xdc] sm:$0x1] %v8055
        %8185 = vst [vmem:[%s8136 + $0xf0] sm:$0xf] %v8056
        %8186 = vst [vmem:[%s8136 + $0xf4] sm:$0x1] %v8057
        %8187 = vst [vmem:[%s8136 + $0xf8] sm:$0xf] %v8058
        %8188 = vst [vmem:[%s8136 + $0xfc] sm:$0x1] %v8059
        %8189 = vst [vmem:[%s8136 + $0x100] sm:$0xf] %v8060
        %8190 = vst [vmem:[%s8136 + $0x104] sm:$0x1] %v8061
        %8191 = vst [vmem:[%s8136 + $0x108] sm:$0xf] %v8062
        %8192 = vst [vmem:[%s8136 + $0x10c] sm:$0x1] %v8063
        %8193 = vst [vmem:[%s8136 + $0x110] sm:$0xf] %v8064
        %8194 = vst [vmem:[%s8136 + $0x114] sm:$0x1] %v8065
        %8195 = vst [vmem:[%s8136 + $0x118] sm:$0xf] %v8066
        %8196 = vst [vmem:[%s8136 + $0x11c] sm:$0x1] %v8067
        %8197 = vst [vmem:[%s8136 + $0x120] sm:$0xf] %v8068
        %8198 = vst [vmem:[%s8136 + $0x124] sm:$0x1] %v8069
        %8199 = vst [vmem:[%s8136 + $0x128] sm:$0xf] %v8070
        %8200 = vst [vmem:[%s8136 + $0x12c] sm:$0x1] %v8071
        %v8201 = vld [vmem:[#allocation3] sm:$0xf]
        %v8202 = vld [vmem:[#allocation3 + $0x8] sm:$0xf]
        %v8203 = vld [vmem:[#allocation3 + $0x10] sm:$0xf]
        %v8204 = vld [vmem:[#allocation3 + $0x18] sm:$0xf]
        %v8205 = vld [vmem:[#allocation3 + $0x20] sm:$0xf]
        %v8206 = vld [vmem:[#allocation3 + $0x28] sm:$0xf]
        %v8207 = vld [vmem:[#allocation3 + $0x30] sm:$0xf]
        %v8208 = vld [vmem:[#allocation3 + $0x38] sm:$0xf]
        %v8209 = vld [vmem:[#allocation3 + $0x50] sm:$0xf]
        %v8210 = vld [vmem:[#allocation3 + $0x58] sm:$0xf]
        %v8211 = vld [vmem:[#allocation3 + $0x60] sm:$0xf]
        %v8212 = vld [vmem:[#allocation3 + $0x68] sm:$0xf]
        %v8213 = vld [vmem:[#allocation3 + $0x70] sm:$0xf]
        %v8214 = vld [vmem:[#allocation3 + $0x78] sm:$0xf]
        %v8215 = vld [vmem:[#allocation3 + $0x80] sm:$0xf]
        %v8216 = vld [vmem:[#allocation3 + $0x88] sm:$0xf]
        %v8217 = vld [vmem:[#allocation3 + $0xa0] sm:$0xf]
        %v8218 = vld [vmem:[#allocation3 + $0xa8] sm:$0xf]
        %v8219 = vld [vmem:[#allocation3 + $0xb0] sm:$0xf]
        %v8220 = vld [vmem:[#allocation3 + $0xb8] sm:$0xf]
        %v8221 = vld [vmem:[#allocation3 + $0xc0] sm:$0xf]
        %v8222 = vld [vmem:[#allocation3 + $0xc8] sm:$0xf]
        %v8223 = vld [vmem:[#allocation3 + $0xd0] sm:$0xf]
        %v8224 = vld [vmem:[#allocation3 + $0xd8] sm:$0xf]
        %v8225 = vld [vmem:[#allocation3 + $0xf0] sm:$0xf]
        %v8226 = vld [vmem:[#allocation3 + $0xf8] sm:$0xf]
        %v8227 = vld [vmem:[#allocation3 + $0x100] sm:$0xf]
        %v8228 = vld [vmem:[#allocation3 + $0x108] sm:$0xf]
        %v8229 = vld [vmem:[#allocation3 + $0x110] sm:$0xf]
        %v8230 = vld [vmem:[#allocation3 + $0x118] sm:$0xf]
        %v8231 = vld [vmem:[#allocation3 + $0x120] sm:$0xf]
        %v8232 = vld [vmem:[#allocation3 + $0x128] sm:$0xf]
        %v8233 = vld [vmem:[#allocation3 + $0x4] sm:$0x1]
        %v8234 = vld [vmem:[#allocation3 + $0xc] sm:$0x1]
        %v8235 = vld [vmem:[#allocation3 + $0x14] sm:$0x1]
        %v8236 = vld [vmem:[#allocation3 + $0x1c] sm:$0x1]
        %v8237 = vld [vmem:[#allocation3 + $0x24] sm:$0x1]
        %v8238 = vld [vmem:[#allocation3 + $0x2c] sm:$0x1]
        %v8239 = vld [vmem:[#allocation3 + $0x34] sm:$0x1]
        %v8240 = vld [vmem:[#allocation3 + $0x3c] sm:$0x1]
        %v8241 = vld [vmem:[#allocation3 + $0x54] sm:$0x1]
        %v8242 = vld [vmem:[#allocation3 + $0x5c] sm:$0x1]
        %v8243 = vld [vmem:[#allocation3 + $0x64] sm:$0x1]
        %v8244 = vld [vmem:[#allocation3 + $0x6c] sm:$0x1]
        %v8245 = vld [vmem:[#allocation3 + $0x74] sm:$0x1]
        %v8246 = vld [vmem:[#allocation3 + $0x7c] sm:$0x1]
        %v8247 = vld [vmem:[#allocation3 + $0x84] sm:$0x1]
        %v8248 = vld [vmem:[#allocation3 + $0x8c] sm:$0x1]
        %v8249 = vld [vmem:[#allocation3 + $0xa4] sm:$0x1]
        %v8250 = vld [vmem:[#allocation3 + $0xac] sm:$0x1]
        %v8251 = vld [vmem:[#allocation3 + $0xb4] sm:$0x1]
        %v8252 = vld [vmem:[#allocation3 + $0xbc] sm:$0x1]
        %v8253 = vld [vmem:[#allocation3 + $0xc4] sm:$0x1]
        %v8254 = vld [vmem:[#allocation3 + $0xcc] sm:$0x1]
        %v8255 = vld [vmem:[#allocation3 + $0xd4] sm:$0x1]
        %v8256 = vld [vmem:[#allocation3 + $0xdc] sm:$0x1]
        %v8257 = vld [vmem:[#allocation3 + $0xf4] sm:$0x1]
        %v8258 = vld [vmem:[#allocation3 + $0xfc] sm:$0x1]
        %v8259 = vld [vmem:[#allocation3 + $0x104] sm:$0x1]
        %v8260 = vld [vmem:[#allocation3 + $0x10c] sm:$0x1]
        %v8261 = vld [vmem:[#allocation3 + $0x114] sm:$0x1]
        %v8262 = vld [vmem:[#allocation3 + $0x11c] sm:$0x1]
        %v8263 = vld [vmem:[#allocation3 + $0x124] sm:$0x1]
        %v8264 = vld [vmem:[#allocation3 + $0x12c] sm:$0x1]
        %v8266 = vshrl.u32 %v8201, 16
        %v8268 = vrot.slane %v8266, 4
        %v8269 = vshll.u32 %v8201, 16
        %v8271 = vrot.slane %v8269, 5
        %v8272 = vor.u32 %v8268, %v8271
        %v8273 = vrot.slane %v8272, 4
        %v8275 = vshll.u32 %v8233, 16
        %v8277 = vrot.slane %v8275, 5
        %v8278 = vsel %vm2737, %v8273, %v8277
        %v8280 = vshrl.u32 %v8202, 16
        %v8282 = vrot.slane %v8280, 4
        %v8283 = vshll.u32 %v8202, 16
        %v8285 = vrot.slane %v8283, 5
        %v8286 = vor.u32 %v8282, %v8285
        %v8287 = vrot.slane %v8286, 4
        %v8289 = vshll.u32 %v8234, 16
        %v8291 = vrot.slane %v8289, 5
        %v8292 = vsel %vm2737, %v8287, %v8291
        %v8294 = vshrl.u32 %v8203, 16
        %v8296 = vrot.slane %v8294, 4
        %v8297 = vshll.u32 %v8203, 16
        %v8299 = vrot.slane %v8297, 5
        %v8300 = vor.u32 %v8296, %v8299
        %v8301 = vrot.slane %v8300, 4
        %v8303 = vshll.u32 %v8235, 16
        %v8305 = vrot.slane %v8303, 5
        %v8306 = vsel %vm2737, %v8301, %v8305
        %v8308 = vshrl.u32 %v8204, 16
        %v8310 = vrot.slane %v8308, 4
        %v8311 = vshll.u32 %v8204, 16
        %v8313 = vrot.slane %v8311, 5
        %v8314 = vor.u32 %v8310, %v8313
        %v8315 = vrot.slane %v8314, 4
        %v8317 = vshll.u32 %v8236, 16
        %v8319 = vrot.slane %v8317, 5
        %v8320 = vsel %vm2737, %v8315, %v8319
        %v8322 = vshrl.u32 %v8205, 16
        %v8324 = vrot.slane %v8322, 4
        %v8325 = vshll.u32 %v8205, 16
        %v8327 = vrot.slane %v8325, 5
        %v8328 = vor.u32 %v8324, %v8327
        %v8329 = vrot.slane %v8328, 4
        %v8331 = vshll.u32 %v8237, 16
        %v8333 = vrot.slane %v8331, 5
        %v8334 = vsel %vm2737, %v8329, %v8333
        %v8336 = vshrl.u32 %v8206, 16
        %v8338 = vrot.slane %v8336, 4
        %v8339 = vshll.u32 %v8206, 16
        %v8341 = vrot.slane %v8339, 5
        %v8342 = vor.u32 %v8338, %v8341
        %v8343 = vrot.slane %v8342, 4
        %v8345 = vshll.u32 %v8238, 16
        %v8347 = vrot.slane %v8345, 5
        %v8348 = vsel %vm2737, %v8343, %v8347
        %v8350 = vshrl.u32 %v8207, 16
        %v8352 = vrot.slane %v8350, 4
        %v8353 = vshll.u32 %v8207, 16
        %v8355 = vrot.slane %v8353, 5
        %v8356 = vor.u32 %v8352, %v8355
        %v8357 = vrot.slane %v8356, 4
        %v8359 = vshll.u32 %v8239, 16
        %v8361 = vrot.slane %v8359, 5
        %v8362 = vsel %vm2737, %v8357, %v8361
        %v8364 = vshrl.u32 %v8208, 16
        %v8366 = vrot.slane %v8364, 4
        %v8367 = vshll.u32 %v8208, 16
        %v8369 = vrot.slane %v8367, 5
        %v8370 = vor.u32 %v8366, %v8369
        %v8371 = vrot.slane %v8370, 4
        %v8373 = vshll.u32 %v8240, 16
        %v8375 = vrot.slane %v8373, 5
        %v8376 = vsel %vm2737, %v8371, %v8375
        %v8378 = vshrl.u32 %v8209, 16
        %v8380 = vrot.slane %v8378, 4
        %v8381 = vshll.u32 %v8209, 16
        %v8383 = vrot.slane %v8381, 5
        %v8384 = vor.u32 %v8380, %v8383
        %v8385 = vrot.slane %v8384, 4
        %v8387 = vshll.u32 %v8241, 16
        %v8389 = vrot.slane %v8387, 5
        %v8390 = vsel %vm2737, %v8385, %v8389
        %v8392 = vshrl.u32 %v8210, 16
        %v8394 = vrot.slane %v8392, 4
        %v8395 = vshll.u32 %v8210, 16
        %v8397 = vrot.slane %v8395, 5
        %v8398 = vor.u32 %v8394, %v8397
        %v8399 = vrot.slane %v8398, 4
        %v8401 = vshll.u32 %v8242, 16
        %v8403 = vrot.slane %v8401, 5
        %v8404 = vsel %vm2737, %v8399, %v8403
        %v8406 = vshrl.u32 %v8211, 16
        %v8408 = vrot.slane %v8406, 4
        %v8409 = vshll.u32 %v8211, 16
        %v8411 = vrot.slane %v8409, 5
        %v8412 = vor.u32 %v8408, %v8411
        %v8413 = vrot.slane %v8412, 4
        %v8415 = vshll.u32 %v8243, 16
        %v8417 = vrot.slane %v8415, 5
        %v8418 = vsel %vm2737, %v8413, %v8417
        %v8420 = vshrl.u32 %v8212, 16
        %v8422 = vrot.slane %v8420, 4
        %v8423 = vshll.u32 %v8212, 16
        %v8425 = vrot.slane %v8423, 5
        %v8426 = vor.u32 %v8422, %v8425
        %v8427 = vrot.slane %v8426, 4
        %v8429 = vshll.u32 %v8244, 16
        %v8431 = vrot.slane %v8429, 5
        %v8432 = vsel %vm2737, %v8427, %v8431
        %v8434 = vshrl.u32 %v8213, 16
        %v8436 = vrot.slane %v8434, 4
        %v8437 = vshll.u32 %v8213, 16
        %v8439 = vrot.slane %v8437, 5
        %v8440 = vor.u32 %v8436, %v8439
        %v8441 = vrot.slane %v8440, 4
        %v8443 = vshll.u32 %v8245, 16
        %v8445 = vrot.slane %v8443, 5
        %v8446 = vsel %vm2737, %v8441, %v8445
        %v8448 = vshrl.u32 %v8214, 16
        %v8450 = vrot.slane %v8448, 4
        %v8451 = vshll.u32 %v8214, 16
        %v8453 = vrot.slane %v8451, 5
        %v8454 = vor.u32 %v8450, %v8453
        %v8455 = vrot.slane %v8454, 4
        %v8457 = vshll.u32 %v8246, 16
        %v8459 = vrot.slane %v8457, 5
        %v8460 = vsel %vm2737, %v8455, %v8459
        %v8462 = vshrl.u32 %v8215, 16
        %v8464 = vrot.slane %v8462, 4
        %v8465 = vshll.u32 %v8215, 16
        %v8467 = vrot.slane %v8465, 5
        %v8468 = vor.u32 %v8464, %v8467
        %v8469 = vrot.slane %v8468, 4
        %v8471 = vshll.u32 %v8247, 16
        %v8473 = vrot.slane %v8471, 5
        %v8474 = vsel %vm2737, %v8469, %v8473
        %v8476 = vshrl.u32 %v8216, 16
        %v8478 = vrot.slane %v8476, 4
        %v8479 = vshll.u32 %v8216, 16
        %v8481 = vrot.slane %v8479, 5
        %v8482 = vor.u32 %v8478, %v8481
        %v8483 = vrot.slane %v8482, 4
        %v8485 = vshll.u32 %v8248, 16
        %v8487 = vrot.slane %v8485, 5
        %v8488 = vsel %vm2737, %v8483, %v8487
        %v8490 = vshrl.u32 %v8217, 16
        %v8492 = vrot.slane %v8490, 4
        %v8493 = vshll.u32 %v8217, 16
        %v8495 = vrot.slane %v8493, 5
        %v8496 = vor.u32 %v8492, %v8495
        %v8497 = vrot.slane %v8496, 4
        %v8499 = vshll.u32 %v8249, 16
        %v8501 = vrot.slane %v8499, 5
        %v8502 = vsel %vm2737, %v8497, %v8501
        %v8504 = vshrl.u32 %v8218, 16
        %v8506 = vrot.slane %v8504, 4
        %v8507 = vshll.u32 %v8218, 16
        %v8509 = vrot.slane %v8507, 5
        %v8510 = vor.u32 %v8506, %v8509
        %v8511 = vrot.slane %v8510, 4
        %v8513 = vshll.u32 %v8250, 16
        %v8515 = vrot.slane %v8513, 5
        %v8516 = vsel %vm2737, %v8511, %v8515
        %v8518 = vshrl.u32 %v8219, 16
        %v8520 = vrot.slane %v8518, 4
        %v8521 = vshll.u32 %v8219, 16
        %v8523 = vrot.slane %v8521, 5
        %v8524 = vor.u32 %v8520, %v8523
        %v8525 = vrot.slane %v8524, 4
        %v8527 = vshll.u32 %v8251, 16
        %v8529 = vrot.slane %v8527, 5
        %v8530 = vsel %vm2737, %v8525, %v8529
        %v8532 = vshrl.u32 %v8220, 16
        %v8534 = vrot.slane %v8532, 4
        %v8535 = vshll.u32 %v8220, 16
        %v8537 = vrot.slane %v8535, 5
        %v8538 = vor.u32 %v8534, %v8537
        %v8539 = vrot.slane %v8538, 4
        %v8541 = vshll.u32 %v8252, 16
        %v8543 = vrot.slane %v8541, 5
        %v8544 = vsel %vm2737, %v8539, %v8543
        %v8546 = vshrl.u32 %v8221, 16
        %v8548 = vrot.slane %v8546, 4
        %v8549 = vshll.u32 %v8221, 16
        %v8551 = vrot.slane %v8549, 5
        %v8552 = vor.u32 %v8548, %v8551
        %v8553 = vrot.slane %v8552, 4
        %v8555 = vshll.u32 %v8253, 16
        %v8557 = vrot.slane %v8555, 5
        %v8558 = vsel %vm2737, %v8553, %v8557
        %v8560 = vshrl.u32 %v8222, 16
        %v8562 = vrot.slane %v8560, 4
        %v8563 = vshll.u32 %v8222, 16
        %v8565 = vrot.slane %v8563, 5
        %v8566 = vor.u32 %v8562, %v8565
        %v8567 = vrot.slane %v8566, 4
        %v8569 = vshll.u32 %v8254, 16
        %v8571 = vrot.slane %v8569, 5
        %v8572 = vsel %vm2737, %v8567, %v8571
        %v8574 = vshrl.u32 %v8223, 16
        %v8576 = vrot.slane %v8574, 4
        %v8577 = vshll.u32 %v8223, 16
        %v8579 = vrot.slane %v8577, 5
        %v8580 = vor.u32 %v8576, %v8579
        %v8581 = vrot.slane %v8580, 4
        %v8583 = vshll.u32 %v8255, 16
        %v8585 = vrot.slane %v8583, 5
        %v8586 = vsel %vm2737, %v8581, %v8585
        %v8588 = vshrl.u32 %v8224, 16
        %v8590 = vrot.slane %v8588, 4
        %v8591 = vshll.u32 %v8224, 16
        %v8593 = vrot.slane %v8591, 5
        %v8594 = vor.u32 %v8590, %v8593
        %v8595 = vrot.slane %v8594, 4
        %v8597 = vshll.u32 %v8256, 16
        %v8599 = vrot.slane %v8597, 5
        %v8600 = vsel %vm2737, %v8595, %v8599
        %v8602 = vshrl.u32 %v8225, 16
        %v8604 = vrot.slane %v8602, 4
        %v8605 = vshll.u32 %v8225, 16
        %v8607 = vrot.slane %v8605, 5
        %v8608 = vor.u32 %v8604, %v8607
        %v8609 = vrot.slane %v8608, 4
        %v8611 = vshll.u32 %v8257, 16
        %v8613 = vrot.slane %v8611, 5
        %v8614 = vsel %vm2737, %v8609, %v8613
        %v8616 = vshrl.u32 %v8226, 16
        %v8618 = vrot.slane %v8616, 4
        %v8619 = vshll.u32 %v8226, 16
        %v8621 = vrot.slane %v8619, 5
        %v8622 = vor.u32 %v8618, %v8621
        %v8623 = vrot.slane %v8622, 4
        %v8625 = vshll.u32 %v8258, 16
        %v8627 = vrot.slane %v8625, 5
        %v8628 = vsel %vm2737, %v8623, %v8627
        %v8630 = vshrl.u32 %v8227, 16
        %v8632 = vrot.slane %v8630, 4
        %v8633 = vshll.u32 %v8227, 16
        %v8635 = vrot.slane %v8633, 5
        %v8636 = vor.u32 %v8632, %v8635
        %v8637 = vrot.slane %v8636, 4
        %v8639 = vshll.u32 %v8259, 16
        %v8641 = vrot.slane %v8639, 5
        %v8642 = vsel %vm2737, %v8637, %v8641
        %v8644 = vshrl.u32 %v8228, 16
        %v8646 = vrot.slane %v8644, 4
        %v8647 = vshll.u32 %v8228, 16
        %v8649 = vrot.slane %v8647, 5
        %v8650 = vor.u32 %v8646, %v8649
        %v8651 = vrot.slane %v8650, 4
        %v8653 = vshll.u32 %v8260, 16
        %v8655 = vrot.slane %v8653, 5
        %v8656 = vsel %vm2737, %v8651, %v8655
        %v8658 = vshrl.u32 %v8229, 16
        %v8660 = vrot.slane %v8658, 4
        %v8661 = vshll.u32 %v8229, 16
        %v8663 = vrot.slane %v8661, 5
        %v8664 = vor.u32 %v8660, %v8663
        %v8665 = vrot.slane %v8664, 4
        %v8667 = vshll.u32 %v8261, 16
        %v8669 = vrot.slane %v8667, 5
        %v8670 = vsel %vm2737, %v8665, %v8669
        %v8672 = vshrl.u32 %v8230, 16
        %v8674 = vrot.slane %v8672, 4
        %v8675 = vshll.u32 %v8230, 16
        %v8677 = vrot.slane %v8675, 5
        %v8678 = vor.u32 %v8674, %v8677
        %v8679 = vrot.slane %v8678, 4
        %v8681 = vshll.u32 %v8262, 16
        %v8683 = vrot.slane %v8681, 5
        %v8684 = vsel %vm2737, %v8679, %v8683
        %v8686 = vshrl.u32 %v8231, 16
        %v8688 = vrot.slane %v8686, 4
        %v8689 = vshll.u32 %v8231, 16
        %v8691 = vrot.slane %v8689, 5
        %v8692 = vor.u32 %v8688, %v8691
        %v8693 = vrot.slane %v8692, 4
        %v8695 = vshll.u32 %v8263, 16
        %v8697 = vrot.slane %v8695, 5
        %v8698 = vsel %vm2737, %v8693, %v8697
        %v8700 = vshrl.u32 %v8232, 16
        %v8702 = vrot.slane %v8700, 4
        %v8703 = vshll.u32 %v8232, 16
        %v8705 = vrot.slane %v8703, 5
        %v8706 = vor.u32 %v8702, %v8705
        %v8707 = vrot.slane %v8706, 4
        %v8709 = vshll.u32 %v8264, 16
        %v8711 = vrot.slane %v8709, 5
        %v8712 = vsel %vm2737, %v8707, %v8711
        %v8713 = vld [vmem:[#allocation3] sm:$0xe]
        %v8714 = vld [vmem:[#allocation3 + $0x8] sm:$0xe]
        %v8715 = vld [vmem:[#allocation3 + $0x10] sm:$0xe]
        %v8716 = vld [vmem:[#allocation3 + $0x18] sm:$0xe]
        %v8717 = vld [vmem:[#allocation3 + $0x20] sm:$0xe]
        %v8718 = vld [vmem:[#allocation3 + $0x28] sm:$0xe]
        %v8719 = vld [vmem:[#allocation3 + $0x30] sm:$0xe]
        %v8720 = vld [vmem:[#allocation3 + $0x38] sm:$0xe]
        %v8721 = vld [vmem:[#allocation3 + $0x50] sm:$0xe]
        %v8722 = vld [vmem:[#allocation3 + $0x58] sm:$0xe]
        %v8723 = vld [vmem:[#allocation3 + $0x60] sm:$0xe]
        %v8724 = vld [vmem:[#allocation3 + $0x68] sm:$0xe]
        %v8725 = vld [vmem:[#allocation3 + $0x70] sm:$0xe]
        %v8726 = vld [vmem:[#allocation3 + $0x78] sm:$0xe]
        %v8727 = vld [vmem:[#allocation3 + $0x80] sm:$0xe]
        %v8728 = vld [vmem:[#allocation3 + $0x88] sm:$0xe]
        %v8729 = vld [vmem:[#allocation3 + $0xa0] sm:$0xe]
        %v8730 = vld [vmem:[#allocation3 + $0xa8] sm:$0xe]
        %v8731 = vld [vmem:[#allocation3 + $0xb0] sm:$0xe]
        %v8732 = vld [vmem:[#allocation3 + $0xb8] sm:$0xe]
        %v8733 = vld [vmem:[#allocation3 + $0xc0] sm:$0xe]
        %v8734 = vld [vmem:[#allocation3 + $0xc8] sm:$0xe]
        %v8735 = vld [vmem:[#allocation3 + $0xd0] sm:$0xe]
        %v8736 = vld [vmem:[#allocation3 + $0xd8] sm:$0xe]
        %v8737 = vld [vmem:[#allocation3 + $0xf0] sm:$0xe]
        %v8738 = vld [vmem:[#allocation3 + $0xf8] sm:$0xe]
        %v8739 = vld [vmem:[#allocation3 + $0x100] sm:$0xe]
        %v8740 = vld [vmem:[#allocation3 + $0x108] sm:$0xe]
        %v8741 = vld [vmem:[#allocation3 + $0x110] sm:$0xe]
        %v8742 = vld [vmem:[#allocation3 + $0x118] sm:$0xe]
        %v8743 = vld [vmem:[#allocation3 + $0x120] sm:$0xe]
        %v8744 = vld [vmem:[#allocation3 + $0x128] sm:$0xe]
        %v8809 = vrot.slane %v8713, 5
        %v8810 = vrot.slane %v8809, 4
        %v8811 = vrot.slane %v8233, 5
        %v8812 = vsel %vm3284, %v8810, %v8811
        %v8813 = vrot.slane %v8714, 5
        %v8814 = vrot.slane %v8813, 4
        %v8815 = vrot.slane %v8234, 5
        %v8816 = vsel %vm3284, %v8814, %v8815
        %v8817 = vrot.slane %v8715, 5
        %v8818 = vrot.slane %v8817, 4
        %v8819 = vrot.slane %v8235, 5
        %v8820 = vsel %vm3284, %v8818, %v8819
        %v8821 = vrot.slane %v8716, 5
        %v8822 = vrot.slane %v8821, 4
        %v8823 = vrot.slane %v8236, 5
        %v8824 = vsel %vm3284, %v8822, %v8823
        %v8825 = vrot.slane %v8717, 5
        %v8826 = vrot.slane %v8825, 4
        %v8827 = vrot.slane %v8237, 5
        %v8828 = vsel %vm3284, %v8826, %v8827
        %v8829 = vrot.slane %v8718, 5
        %v8830 = vrot.slane %v8829, 4
        %v8831 = vrot.slane %v8238, 5
        %v8832 = vsel %vm3284, %v8830, %v8831
        %v8833 = vrot.slane %v8719, 5
        %v8834 = vrot.slane %v8833, 4
        %v8835 = vrot.slane %v8239, 5
        %v8836 = vsel %vm3284, %v8834, %v8835
        %v8837 = vrot.slane %v8720, 5
        %v8838 = vrot.slane %v8837, 4
        %v8839 = vrot.slane %v8240, 5
        %v8840 = vsel %vm3284, %v8838, %v8839
        %v8841 = vrot.slane %v8721, 5
        %v8842 = vrot.slane %v8841, 4
        %v8843 = vrot.slane %v8241, 5
        %v8844 = vsel %vm3284, %v8842, %v8843
        %v8845 = vrot.slane %v8722, 5
        %v8846 = vrot.slane %v8845, 4
        %v8847 = vrot.slane %v8242, 5
        %v8848 = vsel %vm3284, %v8846, %v8847
        %v8849 = vrot.slane %v8723, 5
        %v8850 = vrot.slane %v8849, 4
        %v8851 = vrot.slane %v8243, 5
        %v8852 = vsel %vm3284, %v8850, %v8851
        %v8853 = vrot.slane %v8724, 5
        %v8854 = vrot.slane %v8853, 4
        %v8855 = vrot.slane %v8244, 5
        %v8856 = vsel %vm3284, %v8854, %v8855
        %v8857 = vrot.slane %v8725, 5
        %v8858 = vrot.slane %v8857, 4
        %v8859 = vrot.slane %v8245, 5
        %v8860 = vsel %vm3284, %v8858, %v8859
        %v8861 = vrot.slane %v8726, 5
        %v8862 = vrot.slane %v8861, 4
        %v8863 = vrot.slane %v8246, 5
        %v8864 = vsel %vm3284, %v8862, %v8863
        %v8865 = vrot.slane %v8727, 5
        %v8866 = vrot.slane %v8865, 4
        %v8867 = vrot.slane %v8247, 5
        %v8868 = vsel %vm3284, %v8866, %v8867
        %v8869 = vrot.slane %v8728, 5
        %v8870 = vrot.slane %v8869, 4
        %v8871 = vrot.slane %v8248, 5
        %v8872 = vsel %vm3284, %v8870, %v8871
        %v8873 = vrot.slane %v8729, 5
        %v8874 = vrot.slane %v8873, 4
        %v8875 = vrot.slane %v8249, 5
        %v8876 = vsel %vm3284, %v8874, %v8875
        %v8877 = vrot.slane %v8730, 5
        %v8878 = vrot.slane %v8877, 4
        %v8879 = vrot.slane %v8250, 5
        %v8880 = vsel %vm3284, %v8878, %v8879
        %v8881 = vrot.slane %v8731, 5
        %v8882 = vrot.slane %v8881, 4
        %v8883 = vrot.slane %v8251, 5
        %v8884 = vsel %vm3284, %v8882, %v8883
        %v8885 = vrot.slane %v8732, 5
        %v8886 = vrot.slane %v8885, 4
        %v8887 = vrot.slane %v8252, 5
        %v8888 = vsel %vm3284, %v8886, %v8887
        %v8889 = vrot.slane %v8733, 5
        %v8890 = vrot.slane %v8889, 4
        %v8891 = vrot.slane %v8253, 5
        %v8892 = vsel %vm3284, %v8890, %v8891
        %v8893 = vrot.slane %v8734, 5
        %v8894 = vrot.slane %v8893, 4
        %v8895 = vrot.slane %v8254, 5
        %v8896 = vsel %vm3284, %v8894, %v8895
        %v8897 = vrot.slane %v8735, 5
        %v8898 = vrot.slane %v8897, 4
        %v8899 = vrot.slane %v8255, 5
        %v8900 = vsel %vm3284, %v8898, %v8899
        %v8901 = vrot.slane %v8736, 5
        %v8902 = vrot.slane %v8901, 4
        %v8903 = vrot.slane %v8256, 5
        %v8904 = vsel %vm3284, %v8902, %v8903
        %v8905 = vrot.slane %v8737, 5
        %v8906 = vrot.slane %v8905, 4
        %v8907 = vrot.slane %v8257, 5
        %v8908 = vsel %vm3284, %v8906, %v8907
        %v8909 = vrot.slane %v8738, 5
        %v8910 = vrot.slane %v8909, 4
        %v8911 = vrot.slane %v8258, 5
        %v8912 = vsel %vm3284, %v8910, %v8911
        %v8913 = vrot.slane %v8739, 5
        %v8914 = vrot.slane %v8913, 4
        %v8915 = vrot.slane %v8259, 5
        %v8916 = vsel %vm3284, %v8914, %v8915
        %v8917 = vrot.slane %v8740, 5
        %v8918 = vrot.slane %v8917, 4
        %v8919 = vrot.slane %v8260, 5
        %v8920 = vsel %vm3284, %v8918, %v8919
        %v8921 = vrot.slane %v8741, 5
        %v8922 = vrot.slane %v8921, 4
        %v8923 = vrot.slane %v8261, 5
        %v8924 = vsel %vm3284, %v8922, %v8923
        %v8925 = vrot.slane %v8742, 5
        %v8926 = vrot.slane %v8925, 4
        %v8927 = vrot.slane %v8262, 5
        %v8928 = vsel %vm3284, %v8926, %v8927
        %v8929 = vrot.slane %v8743, 5
        %v8930 = vrot.slane %v8929, 4
        %v8931 = vrot.slane %v8263, 5
        %v8932 = vsel %vm3284, %v8930, %v8931
        %v8933 = vrot.slane %v8744, 5
        %v8934 = vrot.slane %v8933, 4
        %v8935 = vrot.slane %v8264, 5
        %v8936 = vsel %vm3284, %v8934, %v8935
        %v8937 = vld [vmem:[%s8136] sm:$0xf]
        %v8938 = vld [vmem:[%s8136 + $0x8] sm:$0xf]
        %v8939 = vld [vmem:[%s8136 + $0x10] sm:$0xf]
        %v8940 = vld [vmem:[%s8136 + $0x18] sm:$0xf]
        %v8941 = vld [vmem:[%s8136 + $0x20] sm:$0xf]
        %v8942 = vld [vmem:[%s8136 + $0x28] sm:$0xf]
        %v8943 = vld [vmem:[%s8136 + $0x30] sm:$0xf]
        %v8944 = vld [vmem:[%s8136 + $0x38] sm:$0xf]
        %v8945 = vld [vmem:[%s8136 + $0x50] sm:$0xf]
        %v8946 = vld [vmem:[%s8136 + $0x58] sm:$0xf]
        %v8947 = vld [vmem:[%s8136 + $0x60] sm:$0xf]
        %v8948 = vld [vmem:[%s8136 + $0x68] sm:$0xf]
        %v8949 = vld [vmem:[%s8136 + $0x70] sm:$0xf]
        %v8950 = vld [vmem:[%s8136 + $0x78] sm:$0xf]
        %v8951 = vld [vmem:[%s8136 + $0x80] sm:$0xf]
        %v8952 = vld [vmem:[%s8136 + $0x88] sm:$0xf]
        %v8953 = vld [vmem:[%s8136 + $0xa0] sm:$0xf]
        %v8954 = vld [vmem:[%s8136 + $0xa8] sm:$0xf]
        %v8955 = vld [vmem:[%s8136 + $0xb0] sm:$0xf]
        %v8956 = vld [vmem:[%s8136 + $0xb8] sm:$0xf]
        %v8957 = vld [vmem:[%s8136 + $0xc0] sm:$0xf]
        %v8958 = vld [vmem:[%s8136 + $0xc8] sm:$0xf]
        %v8959 = vld [vmem:[%s8136 + $0xd0] sm:$0xf]
        %v8960 = vld [vmem:[%s8136 + $0xd8] sm:$0xf]
        %v8961 = vld [vmem:[%s8136 + $0xf0] sm:$0xf]
        %v8962 = vld [vmem:[%s8136 + $0xf8] sm:$0xf]
        %v8963 = vld [vmem:[%s8136 + $0x100] sm:$0xf]
        %v8964 = vld [vmem:[%s8136 + $0x108] sm:$0xf]
        %v8965 = vld [vmem:[%s8136 + $0x110] sm:$0xf]
        %v8966 = vld [vmem:[%s8136 + $0x118] sm:$0xf]
        %v8967 = vld [vmem:[%s8136 + $0x120] sm:$0xf]
        %v8968 = vld [vmem:[%s8136 + $0x128] sm:$0xf]
        %v8969 = vld [vmem:[%s8136 + $0x4] sm:$0x1]
        %v8970 = vld [vmem:[%s8136 + $0xc] sm:$0x1]
        %v8971 = vld [vmem:[%s8136 + $0x14] sm:$0x1]
        %v8972 = vld [vmem:[%s8136 + $0x1c] sm:$0x1]
        %v8973 = vld [vmem:[%s8136 + $0x24] sm:$0x1]
        %v8974 = vld [vmem:[%s8136 + $0x2c] sm:$0x1]
        %v8975 = vld [vmem:[%s8136 + $0x34] sm:$0x1]
        %v8976 = vld [vmem:[%s8136 + $0x3c] sm:$0x1]
        %v8977 = vld [vmem:[%s8136 + $0x54] sm:$0x1]
        %v8978 = vld [vmem:[%s8136 + $0x5c] sm:$0x1]
        %v8979 = vld [vmem:[%s8136 + $0x64] sm:$0x1]
        %v8980 = vld [vmem:[%s8136 + $0x6c] sm:$0x1]
        %v8981 = vld [vmem:[%s8136 + $0x74] sm:$0x1]
        %v8982 = vld [vmem:[%s8136 + $0x7c] sm:$0x1]
        %v8983 = vld [vmem:[%s8136 + $0x84] sm:$0x1]
        %v8984 = vld [vmem:[%s8136 + $0x8c] sm:$0x1]
        %v8985 = vld [vmem:[%s8136 + $0xa4] sm:$0x1]
        %v8986 = vld [vmem:[%s8136 + $0xac] sm:$0x1]
        %v8987 = vld [vmem:[%s8136 + $0xb4] sm:$0x1]
        %v8988 = vld [vmem:[%s8136 + $0xbc] sm:$0x1]
        %v8989 = vld [vmem:[%s8136 + $0xc4] sm:$0x1]
        %v8990 = vld [vmem:[%s8136 + $0xcc] sm:$0x1]
        %v8991 = vld [vmem:[%s8136 + $0xd4] sm:$0x1]
        %v8992 = vld [vmem:[%s8136 + $0xdc] sm:$0x1]
        %v8993 = vld [vmem:[%s8136 + $0xf4] sm:$0x1]
        %v8994 = vld [vmem:[%s8136 + $0xfc] sm:$0x1]
        %v8995 = vld [vmem:[%s8136 + $0x104] sm:$0x1]
        %v8996 = vld [vmem:[%s8136 + $0x10c] sm:$0x1]
        %v8997 = vld [vmem:[%s8136 + $0x114] sm:$0x1]
        %v8998 = vld [vmem:[%s8136 + $0x11c] sm:$0x1]
        %v8999 = vld [vmem:[%s8136 + $0x124] sm:$0x1]
        %v9000 = vld [vmem:[%s8136 + $0x12c] sm:$0x1]
        %v9002 = vshrl.u32 %v8937, 16
        %v9004 = vrot.slane %v9002, 4
        %v9005 = vshll.u32 %v8937, 16
        %v9007 = vrot.slane %v9005, 5
        %v9008 = vor.u32 %v9004, %v9007
        %v9009 = vrot.slane %v9008, 4
        %v9011 = vshll.u32 %v8969, 16
        %v9013 = vrot.slane %v9011, 5
        %v9014 = vsel %vm2737, %v9009, %v9013
        %v9016 = vshrl.u32 %v8938, 16
        %v9018 = vrot.slane %v9016, 4
        %v9019 = vshll.u32 %v8938, 16
        %v9021 = vrot.slane %v9019, 5
        %v9022 = vor.u32 %v9018, %v9021
        %v9023 = vrot.slane %v9022, 4
        %v9025 = vshll.u32 %v8970, 16
        %v9027 = vrot.slane %v9025, 5
        %v9028 = vsel %vm2737, %v9023, %v9027
        %v9030 = vshrl.u32 %v8939, 16
        %v9032 = vrot.slane %v9030, 4
        %v9033 = vshll.u32 %v8939, 16
        %v9035 = vrot.slane %v9033, 5
        %v9036 = vor.u32 %v9032, %v9035
        %v9037 = vrot.slane %v9036, 4
        %v9039 = vshll.u32 %v8971, 16
        %v9041 = vrot.slane %v9039, 5
        %v9042 = vsel %vm2737, %v9037, %v9041
        %v9044 = vshrl.u32 %v8940, 16
        %v9046 = vrot.slane %v9044, 4
        %v9047 = vshll.u32 %v8940, 16
        %v9049 = vrot.slane %v9047, 5
        %v9050 = vor.u32 %v9046, %v9049
        %v9051 = vrot.slane %v9050, 4
        %v9053 = vshll.u32 %v8972, 16
        %v9055 = vrot.slane %v9053, 5
        %v9056 = vsel %vm2737, %v9051, %v9055
        %v9058 = vshrl.u32 %v8941, 16
        %v9060 = vrot.slane %v9058, 4
        %v9061 = vshll.u32 %v8941, 16
        %v9063 = vrot.slane %v9061, 5
        %v9064 = vor.u32 %v9060, %v9063
        %v9065 = vrot.slane %v9064, 4
        %v9067 = vshll.u32 %v8973, 16
        %v9069 = vrot.slane %v9067, 5
        %v9070 = vsel %vm2737, %v9065, %v9069
        %v9072 = vshrl.u32 %v8942, 16
        %v9074 = vrot.slane %v9072, 4
        %v9075 = vshll.u32 %v8942, 16
        %v9077 = vrot.slane %v9075, 5
        %v9078 = vor.u32 %v9074, %v9077
        %v9079 = vrot.slane %v9078, 4
        %v9081 = vshll.u32 %v8974, 16
        %v9083 = vrot.slane %v9081, 5
        %v9084 = vsel %vm2737, %v9079, %v9083
        %v9086 = vshrl.u32 %v8943, 16
        %v9088 = vrot.slane %v9086, 4
        %v9089 = vshll.u32 %v8943, 16
        %v9091 = vrot.slane %v9089, 5
        %v9092 = vor.u32 %v9088, %v9091
        %v9093 = vrot.slane %v9092, 4
        %v9095 = vshll.u32 %v8975, 16
        %v9097 = vrot.slane %v9095, 5
        %v9098 = vsel %vm2737, %v9093, %v9097
        %v9100 = vshrl.u32 %v8944, 16
        %v9102 = vrot.slane %v9100, 4
        %v9103 = vshll.u32 %v8944, 16
        %v9105 = vrot.slane %v9103, 5
        %v9106 = vor.u32 %v9102, %v9105
        %v9107 = vrot.slane %v9106, 4
        %v9109 = vshll.u32 %v8976, 16
        %v9111 = vrot.slane %v9109, 5
        %v9112 = vsel %vm2737, %v9107, %v9111
        %v9114 = vshrl.u32 %v8945, 16
        %v9116 = vrot.slane %v9114, 4
        %v9117 = vshll.u32 %v8945, 16
        %v9119 = vrot.slane %v9117, 5
        %v9120 = vor.u32 %v9116, %v9119
        %v9121 = vrot.slane %v9120, 4
        %v9123 = vshll.u32 %v8977, 16
        %v9125 = vrot.slane %v9123, 5
        %v9126 = vsel %vm2737, %v9121, %v9125
        %v9128 = vshrl.u32 %v8946, 16
        %v9130 = vrot.slane %v9128, 4
        %v9131 = vshll.u32 %v8946, 16
        %v9133 = vrot.slane %v9131, 5
        %v9134 = vor.u32 %v9130, %v9133
        %v9135 = vrot.slane %v9134, 4
        %v9137 = vshll.u32 %v8978, 16
        %v9139 = vrot.slane %v9137, 5
        %v9140 = vsel %vm2737, %v9135, %v9139
        %v9142 = vshrl.u32 %v8947, 16
        %v9144 = vrot.slane %v9142, 4
        %v9145 = vshll.u32 %v8947, 16
        %v9147 = vrot.slane %v9145, 5
        %v9148 = vor.u32 %v9144, %v9147
        %v9149 = vrot.slane %v9148, 4
        %v9151 = vshll.u32 %v8979, 16
        %v9153 = vrot.slane %v9151, 5
        %v9154 = vsel %vm2737, %v9149, %v9153
        %v9156 = vshrl.u32 %v8948, 16
        %v9158 = vrot.slane %v9156, 4
        %v9159 = vshll.u32 %v8948, 16
        %v9161 = vrot.slane %v9159, 5
        %v9162 = vor.u32 %v9158, %v9161
        %v9163 = vrot.slane %v9162, 4
        %v9165 = vshll.u32 %v8980, 16
        %v9167 = vrot.slane %v9165, 5
        %v9168 = vsel %vm2737, %v9163, %v9167
        %v9170 = vshrl.u32 %v8949, 16
        %v9172 = vrot.slane %v9170, 4
        %v9173 = vshll.u32 %v8949, 16
        %v9175 = vrot.slane %v9173, 5
        %v9176 = vor.u32 %v9172, %v9175
        %v9177 = vrot.slane %v9176, 4
        %v9179 = vshll.u32 %v8981, 16
        %v9181 = vrot.slane %v9179, 5
        %v9182 = vsel %vm2737, %v9177, %v9181
        %v9184 = vshrl.u32 %v8950, 16
        %v9186 = vrot.slane %v9184, 4
        %v9187 = vshll.u32 %v8950, 16
        %v9189 = vrot.slane %v9187, 5
        %v9190 = vor.u32 %v9186, %v9189
        %v9191 = vrot.slane %v9190, 4
        %v9193 = vshll.u32 %v8982, 16
        %v9195 = vrot.slane %v9193, 5
        %v9196 = vsel %vm2737, %v9191, %v9195
        %v9198 = vshrl.u32 %v8951, 16
        %v9200 = vrot.slane %v9198, 4
        %v9201 = vshll.u32 %v8951, 16
        %v9203 = vrot.slane %v9201, 5
        %v9204 = vor.u32 %v9200, %v9203
        %v9205 = vrot.slane %v9204, 4
        %v9207 = vshll.u32 %v8983, 16
        %v9209 = vrot.slane %v9207, 5
        %v9210 = vsel %vm2737, %v9205, %v9209
        %v9212 = vshrl.u32 %v8952, 16
        %v9214 = vrot.slane %v9212, 4
        %v9215 = vshll.u32 %v8952, 16
        %v9217 = vrot.slane %v9215, 5
        %v9218 = vor.u32 %v9214, %v9217
        %v9219 = vrot.slane %v9218, 4
        %v9221 = vshll.u32 %v8984, 16
        %v9223 = vrot.slane %v9221, 5
        %v9224 = vsel %vm2737, %v9219, %v9223
        %v9226 = vshrl.u32 %v8953, 16
        %v9228 = vrot.slane %v9226, 4
        %v9229 = vshll.u32 %v8953, 16
        %v9231 = vrot.slane %v9229, 5
        %v9232 = vor.u32 %v9228, %v9231
        %v9233 = vrot.slane %v9232, 4
        %v9235 = vshll.u32 %v8985, 16
        %v9237 = vrot.slane %v9235, 5
        %v9238 = vsel %vm2737, %v9233, %v9237
        %v9240 = vshrl.u32 %v8954, 16
        %v9242 = vrot.slane %v9240, 4
        %v9243 = vshll.u32 %v8954, 16
        %v9245 = vrot.slane %v9243, 5
        %v9246 = vor.u32 %v9242, %v9245
        %v9247 = vrot.slane %v9246, 4
        %v9249 = vshll.u32 %v8986, 16
        %v9251 = vrot.slane %v9249, 5
        %v9252 = vsel %vm2737, %v9247, %v9251
        %v9254 = vshrl.u32 %v8955, 16
        %v9256 = vrot.slane %v9254, 4
        %v9257 = vshll.u32 %v8955, 16
        %v9259 = vrot.slane %v9257, 5
        %v9260 = vor.u32 %v9256, %v9259
        %v9261 = vrot.slane %v9260, 4
        %v9263 = vshll.u32 %v8987, 16
        %v9265 = vrot.slane %v9263, 5
        %v9266 = vsel %vm2737, %v9261, %v9265
        %v9268 = vshrl.u32 %v8956, 16
        %v9270 = vrot.slane %v9268, 4
        %v9271 = vshll.u32 %v8956, 16
        %v9273 = vrot.slane %v9271, 5
        %v9274 = vor.u32 %v9270, %v9273
        %v9275 = vrot.slane %v9274, 4
        %v9277 = vshll.u32 %v8988, 16
        %v9279 = vrot.slane %v9277, 5
        %v9280 = vsel %vm2737, %v9275, %v9279
        %v9282 = vshrl.u32 %v8957, 16
        %v9284 = vrot.slane %v9282, 4
        %v9285 = vshll.u32 %v8957, 16
        %v9287 = vrot.slane %v9285, 5
        %v9288 = vor.u32 %v9284, %v9287
        %v9289 = vrot.slane %v9288, 4
        %v9291 = vshll.u32 %v8989, 16
        %v9293 = vrot.slane %v9291, 5
        %v9294 = vsel %vm2737, %v9289, %v9293
        %v9296 = vshrl.u32 %v8958, 16
        %v9298 = vrot.slane %v9296, 4
        %v9299 = vshll.u32 %v8958, 16
        %v9301 = vrot.slane %v9299, 5
        %v9302 = vor.u32 %v9298, %v9301
        %v9303 = vrot.slane %v9302, 4
        %v9305 = vshll.u32 %v8990, 16
        %v9307 = vrot.slane %v9305, 5
        %v9308 = vsel %vm2737, %v9303, %v9307
        %v9310 = vshrl.u32 %v8959, 16
        %v9312 = vrot.slane %v9310, 4
        %v9313 = vshll.u32 %v8959, 16
        %v9315 = vrot.slane %v9313, 5
        %v9316 = vor.u32 %v9312, %v9315
        %v9317 = vrot.slane %v9316, 4
        %v9319 = vshll.u32 %v8991, 16
        %v9321 = vrot.slane %v9319, 5
        %v9322 = vsel %vm2737, %v9317, %v9321
        %v9324 = vshrl.u32 %v8960, 16
        %v9326 = vrot.slane %v9324, 4
        %v9327 = vshll.u32 %v8960, 16
        %v9329 = vrot.slane %v9327, 5
        %v9330 = vor.u32 %v9326, %v9329
        %v9331 = vrot.slane %v9330, 4
        %v9333 = vshll.u32 %v8992, 16
        %v9335 = vrot.slane %v9333, 5
        %v9336 = vsel %vm2737, %v9331, %v9335
        %v9338 = vshrl.u32 %v8961, 16
        %v9340 = vrot.slane %v9338, 4
        %v9341 = vshll.u32 %v8961, 16
        %v9343 = vrot.slane %v9341, 5
        %v9344 = vor.u32 %v9340, %v9343
        %v9345 = vrot.slane %v9344, 4
        %v9347 = vshll.u32 %v8993, 16
        %v9349 = vrot.slane %v9347, 5
        %v9350 = vsel %vm2737, %v9345, %v9349
        %v9352 = vshrl.u32 %v8962, 16
        %v9354 = vrot.slane %v9352, 4
        %v9355 = vshll.u32 %v8962, 16
        %v9357 = vrot.slane %v9355, 5
        %v9358 = vor.u32 %v9354, %v9357
        %v9359 = vrot.slane %v9358, 4
        %v9361 = vshll.u32 %v8994, 16
        %v9363 = vrot.slane %v9361, 5
        %v9364 = vsel %vm2737, %v9359, %v9363
        %v9366 = vshrl.u32 %v8963, 16
        %v9368 = vrot.slane %v9366, 4
        %v9369 = vshll.u32 %v8963, 16
        %v9371 = vrot.slane %v9369, 5
        %v9372 = vor.u32 %v9368, %v9371
        %v9373 = vrot.slane %v9372, 4
        %v9375 = vshll.u32 %v8995, 16
        %v9377 = vrot.slane %v9375, 5
        %v9378 = vsel %vm2737, %v9373, %v9377
        %v9380 = vshrl.u32 %v8964, 16
        %v9382 = vrot.slane %v9380, 4
        %v9383 = vshll.u32 %v8964, 16
        %v9385 = vrot.slane %v9383, 5
        %v9386 = vor.u32 %v9382, %v9385
        %v9387 = vrot.slane %v9386, 4
        %v9389 = vshll.u32 %v8996, 16
        %v9391 = vrot.slane %v9389, 5
        %v9392 = vsel %vm2737, %v9387, %v9391
        %v9394 = vshrl.u32 %v8965, 16
        %v9396 = vrot.slane %v9394, 4
        %v9397 = vshll.u32 %v8965, 16
        %v9399 = vrot.slane %v9397, 5
        %v9400 = vor.u32 %v9396, %v9399
        %v9401 = vrot.slane %v9400, 4
        %v9403 = vshll.u32 %v8997, 16
        %v9405 = vrot.slane %v9403, 5
        %v9406 = vsel %vm2737, %v9401, %v9405
        %v9408 = vshrl.u32 %v8966, 16
        %v9410 = vrot.slane %v9408, 4
        %v9411 = vshll.u32 %v8966, 16
        %v9413 = vrot.slane %v9411, 5
        %v9414 = vor.u32 %v9410, %v9413
        %v9415 = vrot.slane %v9414, 4
        %v9417 = vshll.u32 %v8998, 16
        %v9419 = vrot.slane %v9417, 5
        %v9420 = vsel %vm2737, %v9415, %v9419
        %v9422 = vshrl.u32 %v8967, 16
        %v9424 = vrot.slane %v9422, 4
        %v9425 = vshll.u32 %v8967, 16
        %v9427 = vrot.slane %v9425, 5
        %v9428 = vor.u32 %v9424, %v9427
        %v9429 = vrot.slane %v9428, 4
        %v9431 = vshll.u32 %v8999, 16
        %v9433 = vrot.slane %v9431, 5
        %v9434 = vsel %vm2737, %v9429, %v9433
        %v9436 = vshrl.u32 %v8968, 16
        %v9438 = vrot.slane %v9436, 4
        %v9439 = vshll.u32 %v8968, 16
        %v9441 = vrot.slane %v9439, 5
        %v9442 = vor.u32 %v9438, %v9441
        %v9443 = vrot.slane %v9442, 4
        %v9445 = vshll.u32 %v9000, 16
        %v9447 = vrot.slane %v9445, 5
        %v9448 = vsel %vm2737, %v9443, %v9447
        %v9449 = vld [vmem:[%s8136] sm:$0xe]
        %v9450 = vld [vmem:[%s8136 + $0x8] sm:$0xe]
        %v9451 = vld [vmem:[%s8136 + $0x10] sm:$0xe]
        %v9452 = vld [vmem:[%s8136 + $0x18] sm:$0xe]
        %v9453 = vld [vmem:[%s8136 + $0x20] sm:$0xe]
        %v9454 = vld [vmem:[%s8136 + $0x28] sm:$0xe]
        %v9455 = vld [vmem:[%s8136 + $0x30] sm:$0xe]
        %v9456 = vld [vmem:[%s8136 + $0x38] sm:$0xe]
        %v9457 = vld [vmem:[%s8136 + $0x50] sm:$0xe]
        %v9458 = vld [vmem:[%s8136 + $0x58] sm:$0xe]
        %v9459 = vld [vmem:[%s8136 + $0x60] sm:$0xe]
        %v9460 = vld [vmem:[%s8136 + $0x68] sm:$0xe]
        %v9461 = vld [vmem:[%s8136 + $0x70] sm:$0xe]
        %v9462 = vld [vmem:[%s8136 + $0x78] sm:$0xe]
        %v9463 = vld [vmem:[%s8136 + $0x80] sm:$0xe]
        %v9464 = vld [vmem:[%s8136 + $0x88] sm:$0xe]
        %v9465 = vld [vmem:[%s8136 + $0xa0] sm:$0xe]
        %v9466 = vld [vmem:[%s8136 + $0xa8] sm:$0xe]
        %v9467 = vld [vmem:[%s8136 + $0xb0] sm:$0xe]
        %v9468 = vld [vmem:[%s8136 + $0xb8] sm:$0xe]
        %v9469 = vld [vmem:[%s8136 + $0xc0] sm:$0xe]
        %v9470 = vld [vmem:[%s8136 + $0xc8] sm:$0xe]
        %v9471 = vld [vmem:[%s8136 + $0xd0] sm:$0xe]
        %v9472 = vld [vmem:[%s8136 + $0xd8] sm:$0xe]
        %v9473 = vld [vmem:[%s8136 + $0xf0] sm:$0xe]
        %v9474 = vld [vmem:[%s8136 + $0xf8] sm:$0xe]
        %v9475 = vld [vmem:[%s8136 + $0x100] sm:$0xe]
        %v9476 = vld [vmem:[%s8136 + $0x108] sm:$0xe]
        %v9477 = vld [vmem:[%s8136 + $0x110] sm:$0xe]
        %v9478 = vld [vmem:[%s8136 + $0x118] sm:$0xe]
        %v9479 = vld [vmem:[%s8136 + $0x120] sm:$0xe]
        %v9480 = vld [vmem:[%s8136 + $0x128] sm:$0xe]
        %v9545 = vrot.slane %v9449, 5
        %v9546 = vrot.slane %v9545, 4
        %v9547 = vrot.slane %v8969, 5
        %v9548 = vsel %vm3284, %v9546, %v9547
        %v9549 = vrot.slane %v9450, 5
        %v9550 = vrot.slane %v9549, 4
        %v9551 = vrot.slane %v8970, 5
        %v9552 = vsel %vm3284, %v9550, %v9551
        %v9553 = vrot.slane %v9451, 5
        %v9554 = vrot.slane %v9553, 4
        %v9555 = vrot.slane %v8971, 5
        %v9556 = vsel %vm3284, %v9554, %v9555
        %v9557 = vrot.slane %v9452, 5
        %v9558 = vrot.slane %v9557, 4
        %v9559 = vrot.slane %v8972, 5
        %v9560 = vsel %vm3284, %v9558, %v9559
        %v9561 = vrot.slane %v9453, 5
        %v9562 = vrot.slane %v9561, 4
        %v9563 = vrot.slane %v8973, 5
        %v9564 = vsel %vm3284, %v9562, %v9563
        %v9565 = vrot.slane %v9454, 5
        %v9566 = vrot.slane %v9565, 4
        %v9567 = vrot.slane %v8974, 5
        %v9568 = vsel %vm3284, %v9566, %v9567
        %v9569 = vrot.slane %v9455, 5
        %v9570 = vrot.slane %v9569, 4
        %v9571 = vrot.slane %v8975, 5
        %v9572 = vsel %vm3284, %v9570, %v9571
        %v9573 = vrot.slane %v9456, 5
        %v9574 = vrot.slane %v9573, 4
        %v9575 = vrot.slane %v8976, 5
        %v9576 = vsel %vm3284, %v9574, %v9575
        %v9577 = vrot.slane %v9457, 5
        %v9578 = vrot.slane %v9577, 4
        %v9579 = vrot.slane %v8977, 5
        %v9580 = vsel %vm3284, %v9578, %v9579
        %v9581 = vrot.slane %v9458, 5
        %v9582 = vrot.slane %v9581, 4
        %v9583 = vrot.slane %v8978, 5
        %v9584 = vsel %vm3284, %v9582, %v9583
        %v9585 = vrot.slane %v9459, 5
        %v9586 = vrot.slane %v9585, 4
        %v9587 = vrot.slane %v8979, 5
        %v9588 = vsel %vm3284, %v9586, %v9587
        %v9589 = vrot.slane %v9460, 5
        %v9590 = vrot.slane %v9589, 4
        %v9591 = vrot.slane %v8980, 5
        %v9592 = vsel %vm3284, %v9590, %v9591
        %v9593 = vrot.slane %v9461, 5
        %v9594 = vrot.slane %v9593, 4
        %v9595 = vrot.slane %v8981, 5
        %v9596 = vsel %vm3284, %v9594, %v9595
        %v9597 = vrot.slane %v9462, 5
        %v9598 = vrot.slane %v9597, 4
        %v9599 = vrot.slane %v8982, 5
        %v9600 = vsel %vm3284, %v9598, %v9599
        %v9601 = vrot.slane %v9463, 5
        %v9602 = vrot.slane %v9601, 4
        %v9603 = vrot.slane %v8983, 5
        %v9604 = vsel %vm3284, %v9602, %v9603
        %v9605 = vrot.slane %v9464, 5
        %v9606 = vrot.slane %v9605, 4
        %v9607 = vrot.slane %v8984, 5
        %v9608 = vsel %vm3284, %v9606, %v9607
        %v9609 = vrot.slane %v9465, 5
        %v9610 = vrot.slane %v9609, 4
        %v9611 = vrot.slane %v8985, 5
        %v9612 = vsel %vm3284, %v9610, %v9611
        %v9613 = vrot.slane %v9466, 5
        %v9614 = vrot.slane %v9613, 4
        %v9615 = vrot.slane %v8986, 5
        %v9616 = vsel %vm3284, %v9614, %v9615
        %v9617 = vrot.slane %v9467, 5
        %v9618 = vrot.slane %v9617, 4
        %v9619 = vrot.slane %v8987, 5
        %v9620 = vsel %vm3284, %v9618, %v9619
        %v9621 = vrot.slane %v9468, 5
        %v9622 = vrot.slane %v9621, 4
        %v9623 = vrot.slane %v8988, 5
        %v9624 = vsel %vm3284, %v9622, %v9623
        %v9625 = vrot.slane %v9469, 5
        %v9626 = vrot.slane %v9625, 4
        %v9627 = vrot.slane %v8989, 5
        %v9628 = vsel %vm3284, %v9626, %v9627
        %v9629 = vrot.slane %v9470, 5
        %v9630 = vrot.slane %v9629, 4
        %v9631 = vrot.slane %v8990, 5
        %v9632 = vsel %vm3284, %v9630, %v9631
        %v9633 = vrot.slane %v9471, 5
        %v9634 = vrot.slane %v9633, 4
        %v9635 = vrot.slane %v8991, 5
        %v9636 = vsel %vm3284, %v9634, %v9635
        %v9637 = vrot.slane %v9472, 5
        %v9638 = vrot.slane %v9637, 4
        %v9639 = vrot.slane %v8992, 5
        %v9640 = vsel %vm3284, %v9638, %v9639
        %v9641 = vrot.slane %v9473, 5
        %v9642 = vrot.slane %v9641, 4
        %v9643 = vrot.slane %v8993, 5
        %v9644 = vsel %vm3284, %v9642, %v9643
        %v9645 = vrot.slane %v9474, 5
        %v9646 = vrot.slane %v9645, 4
        %v9647 = vrot.slane %v8994, 5
        %v9648 = vsel %vm3284, %v9646, %v9647
        %v9649 = vrot.slane %v9475, 5
        %v9650 = vrot.slane %v9649, 4
        %v9651 = vrot.slane %v8995, 5
        %v9652 = vsel %vm3284, %v9650, %v9651
        %v9653 = vrot.slane %v9476, 5
        %v9654 = vrot.slane %v9653, 4
        %v9655 = vrot.slane %v8996, 5
        %v9656 = vsel %vm3284, %v9654, %v9655
        %v9657 = vrot.slane %v9477, 5
        %v9658 = vrot.slane %v9657, 4
        %v9659 = vrot.slane %v8997, 5
        %v9660 = vsel %vm3284, %v9658, %v9659
        %v9661 = vrot.slane %v9478, 5
        %v9662 = vrot.slane %v9661, 4
        %v9663 = vrot.slane %v8998, 5
        %v9664 = vsel %vm3284, %v9662, %v9663
        %v9665 = vrot.slane %v9479, 5
        %v9666 = vrot.slane %v9665, 4
        %v9667 = vrot.slane %v8999, 5
        %v9668 = vsel %vm3284, %v9666, %v9667
        %v9669 = vrot.slane %v9480, 5
        %v9670 = vrot.slane %v9669, 4
        %v9671 = vrot.slane %v9000, 5
        %v9672 = vsel %vm3284, %v9670, %v9671
        %s9673 = scalar_lea.vmem [#allocation3], 16
        %v9674 = vld [vmem:[%s9673] sm:$0xf]
        %v9675 = vld [vmem:[%s9673 + $0x8] sm:$0xf]
        %v9676 = vld [vmem:[%s9673 + $0x10] sm:$0xf]
        %v9677 = vld [vmem:[%s9673 + $0x18] sm:$0xf]
        %v9678 = vld [vmem:[%s9673 + $0x20] sm:$0xf]
        %v9679 = vld [vmem:[%s9673 + $0x28] sm:$0xf]
        %v9680 = vld [vmem:[%s9673 + $0x30] sm:$0xf]
        %v9681 = vld [vmem:[%s9673 + $0x38] sm:$0xf]
        %v9682 = vld [vmem:[%s9673 + $0x50] sm:$0xf]
        %v9683 = vld [vmem:[%s9673 + $0x58] sm:$0xf]
        %v9684 = vld [vmem:[%s9673 + $0x60] sm:$0xf]
        %v9685 = vld [vmem:[%s9673 + $0x68] sm:$0xf]
        %v9686 = vld [vmem:[%s9673 + $0x70] sm:$0xf]
        %v9687 = vld [vmem:[%s9673 + $0x78] sm:$0xf]
        %v9688 = vld [vmem:[%s9673 + $0x80] sm:$0xf]
        %v9689 = vld [vmem:[%s9673 + $0x88] sm:$0xf]
        %v9690 = vld [vmem:[%s9673 + $0xa0] sm:$0xf]
        %v9691 = vld [vmem:[%s9673 + $0xa8] sm:$0xf]
        %v9692 = vld [vmem:[%s9673 + $0xb0] sm:$0xf]
        %v9693 = vld [vmem:[%s9673 + $0xb8] sm:$0xf]
        %v9694 = vld [vmem:[%s9673 + $0xc0] sm:$0xf]
        %v9695 = vld [vmem:[%s9673 + $0xc8] sm:$0xf]
        %v9696 = vld [vmem:[%s9673 + $0xd0] sm:$0xf]
        %v9697 = vld [vmem:[%s9673 + $0xd8] sm:$0xf]
        %v9698 = vld [vmem:[%s9673 + $0xf0] sm:$0xf]
        %v9699 = vld [vmem:[%s9673 + $0xf8] sm:$0xf]
        %v9700 = vld [vmem:[%s9673 + $0x100] sm:$0xf]
        %v9701 = vld [vmem:[%s9673 + $0x108] sm:$0xf]
        %v9702 = vld [vmem:[%s9673 + $0x110] sm:$0xf]
        %v9703 = vld [vmem:[%s9673 + $0x118] sm:$0xf]
        %v9704 = vld [vmem:[%s9673 + $0x120] sm:$0xf]
        %v9705 = vld [vmem:[%s9673 + $0x128] sm:$0xf]
        %v9706 = vld [vmem:[%s9673 + $0x4] sm:$0x1]
        %v9707 = vld [vmem:[%s9673 + $0xc] sm:$0x1]
        %v9708 = vld [vmem:[%s9673 + $0x14] sm:$0x1]
        %v9709 = vld [vmem:[%s9673 + $0x1c] sm:$0x1]
        %v9710 = vld [vmem:[%s9673 + $0x24] sm:$0x1]
        %v9711 = vld [vmem:[%s9673 + $0x2c] sm:$0x1]
        %v9712 = vld [vmem:[%s9673 + $0x34] sm:$0x1]
        %v9713 = vld [vmem:[%s9673 + $0x3c] sm:$0x1]
        %v9714 = vld [vmem:[%s9673 + $0x54] sm:$0x1]
        %v9715 = vld [vmem:[%s9673 + $0x5c] sm:$0x1]
        %v9716 = vld [vmem:[%s9673 + $0x64] sm:$0x1]
        %v9717 = vld [vmem:[%s9673 + $0x6c] sm:$0x1]
        %v9718 = vld [vmem:[%s9673 + $0x74] sm:$0x1]
        %v9719 = vld [vmem:[%s9673 + $0x7c] sm:$0x1]
        %v9720 = vld [vmem:[%s9673 + $0x84] sm:$0x1]
        %v9721 = vld [vmem:[%s9673 + $0x8c] sm:$0x1]
        %v9722 = vld [vmem:[%s9673 + $0xa4] sm:$0x1]
        %v9723 = vld [vmem:[%s9673 + $0xac] sm:$0x1]
        %v9724 = vld [vmem:[%s9673 + $0xb4] sm:$0x1]
        %v9725 = vld [vmem:[%s9673 + $0xbc] sm:$0x1]
        %v9726 = vld [vmem:[%s9673 + $0xc4] sm:$0x1]
        %v9727 = vld [vmem:[%s9673 + $0xcc] sm:$0x1]
        %v9728 = vld [vmem:[%s9673 + $0xd4] sm:$0x1]
        %v9729 = vld [vmem:[%s9673 + $0xdc] sm:$0x1]
        %v9730 = vld [vmem:[%s9673 + $0xf4] sm:$0x1]
        %v9731 = vld [vmem:[%s9673 + $0xfc] sm:$0x1]
        %v9732 = vld [vmem:[%s9673 + $0x104] sm:$0x1]
        %v9733 = vld [vmem:[%s9673 + $0x10c] sm:$0x1]
        %v9734 = vld [vmem:[%s9673 + $0x114] sm:$0x1]
        %v9735 = vld [vmem:[%s9673 + $0x11c] sm:$0x1]
        %v9736 = vld [vmem:[%s9673 + $0x124] sm:$0x1]
        %v9737 = vld [vmem:[%s9673 + $0x12c] sm:$0x1]
        %v9739 = vshrl.u32 %v9674, 16
        %v9741 = vrot.slane %v9739, 4
        %v9742 = vshll.u32 %v9674, 16
        %v9744 = vrot.slane %v9742, 5
        %v9745 = vor.u32 %v9741, %v9744
        %v9746 = vrot.slane %v9745, 4
        %v9748 = vshll.u32 %v9706, 16
        %v9750 = vrot.slane %v9748, 5
        %v9751 = vsel %vm2737, %v9746, %v9750
        %v9753 = vshrl.u32 %v9675, 16
        %v9755 = vrot.slane %v9753, 4
        %v9756 = vshll.u32 %v9675, 16
        %v9758 = vrot.slane %v9756, 5
        %v9759 = vor.u32 %v9755, %v9758
        %v9760 = vrot.slane %v9759, 4
        %v9762 = vshll.u32 %v9707, 16
        %v9764 = vrot.slane %v9762, 5
        %v9765 = vsel %vm2737, %v9760, %v9764
        %v9767 = vshrl.u32 %v9676, 16
        %v9769 = vrot.slane %v9767, 4
        %v9770 = vshll.u32 %v9676, 16
        %v9772 = vrot.slane %v9770, 5
        %v9773 = vor.u32 %v9769, %v9772
        %v9774 = vrot.slane %v9773, 4
        %v9776 = vshll.u32 %v9708, 16
        %v9778 = vrot.slane %v9776, 5
        %v9779 = vsel %vm2737, %v9774, %v9778
        %v9781 = vshrl.u32 %v9677, 16
        %v9783 = vrot.slane %v9781, 4
        %v9784 = vshll.u32 %v9677, 16
        %v9786 = vrot.slane %v9784, 5
        %v9787 = vor.u32 %v9783, %v9786
        %v9788 = vrot.slane %v9787, 4
        %v9790 = vshll.u32 %v9709, 16
        %v9792 = vrot.slane %v9790, 5
        %v9793 = vsel %vm2737, %v9788, %v9792
        %v9795 = vshrl.u32 %v9678, 16
        %v9797 = vrot.slane %v9795, 4
        %v9798 = vshll.u32 %v9678, 16
        %v9800 = vrot.slane %v9798, 5
        %v9801 = vor.u32 %v9797, %v9800
        %v9802 = vrot.slane %v9801, 4
        %v9804 = vshll.u32 %v9710, 16
        %v9806 = vrot.slane %v9804, 5
        %v9807 = vsel %vm2737, %v9802, %v9806
        %v9809 = vshrl.u32 %v9679, 16
        %v9811 = vrot.slane %v9809, 4
        %v9812 = vshll.u32 %v9679, 16
        %v9814 = vrot.slane %v9812, 5
        %v9815 = vor.u32 %v9811, %v9814
        %v9816 = vrot.slane %v9815, 4
        %v9818 = vshll.u32 %v9711, 16
        %v9820 = vrot.slane %v9818, 5
        %v9821 = vsel %vm2737, %v9816, %v9820
        %v9823 = vshrl.u32 %v9680, 16
        %v9825 = vrot.slane %v9823, 4
        %v9826 = vshll.u32 %v9680, 16
        %v9828 = vrot.slane %v9826, 5
        %v9829 = vor.u32 %v9825, %v9828
        %v9830 = vrot.slane %v9829, 4
        %v9832 = vshll.u32 %v9712, 16
        %v9834 = vrot.slane %v9832, 5
        %v9835 = vsel %vm2737, %v9830, %v9834
        %v9837 = vshrl.u32 %v9681, 16
        %v9839 = vrot.slane %v9837, 4
        %v9840 = vshll.u32 %v9681, 16
        %v9842 = vrot.slane %v9840, 5
        %v9843 = vor.u32 %v9839, %v9842
        %v9844 = vrot.slane %v9843, 4
        %v9846 = vshll.u32 %v9713, 16
        %v9848 = vrot.slane %v9846, 5
        %v9849 = vsel %vm2737, %v9844, %v9848
        %v9851 = vshrl.u32 %v9682, 16
        %v9853 = vrot.slane %v9851, 4
        %v9854 = vshll.u32 %v9682, 16
        %v9856 = vrot.slane %v9854, 5
        %v9857 = vor.u32 %v9853, %v9856
        %v9858 = vrot.slane %v9857, 4
        %v9860 = vshll.u32 %v9714, 16
        %v9862 = vrot.slane %v9860, 5
        %v9863 = vsel %vm2737, %v9858, %v9862
        %v9865 = vshrl.u32 %v9683, 16
        %v9867 = vrot.slane %v9865, 4
        %v9868 = vshll.u32 %v9683, 16
        %v9870 = vrot.slane %v9868, 5
        %v9871 = vor.u32 %v9867, %v9870
        %v9872 = vrot.slane %v9871, 4
        %v9874 = vshll.u32 %v9715, 16
        %v9876 = vrot.slane %v9874, 5
        %v9877 = vsel %vm2737, %v9872, %v9876
        %v9879 = vshrl.u32 %v9684, 16
        %v9881 = vrot.slane %v9879, 4
        %v9882 = vshll.u32 %v9684, 16
        %v9884 = vrot.slane %v9882, 5
        %v9885 = vor.u32 %v9881, %v9884
        %v9886 = vrot.slane %v9885, 4
        %v9888 = vshll.u32 %v9716, 16
        %v9890 = vrot.slane %v9888, 5
        %v9891 = vsel %vm2737, %v9886, %v9890
        %v9893 = vshrl.u32 %v9685, 16
        %v9895 = vrot.slane %v9893, 4
        %v9896 = vshll.u32 %v9685, 16
        %v9898 = vrot.slane %v9896, 5
        %v9899 = vor.u32 %v9895, %v9898
        %v9900 = vrot.slane %v9899, 4
        %v9902 = vshll.u32 %v9717, 16
        %v9904 = vrot.slane %v9902, 5
        %v9905 = vsel %vm2737, %v9900, %v9904
        %v9907 = vshrl.u32 %v9686, 16
        %v9909 = vrot.slane %v9907, 4
        %v9910 = vshll.u32 %v9686, 16
        %v9912 = vrot.slane %v9910, 5
        %v9913 = vor.u32 %v9909, %v9912
        %v9914 = vrot.slane %v9913, 4
        %v9916 = vshll.u32 %v9718, 16
        %v9918 = vrot.slane %v9916, 5
        %v9919 = vsel %vm2737, %v9914, %v9918
        %v9921 = vshrl.u32 %v9687, 16
        %v9923 = vrot.slane %v9921, 4
        %v9924 = vshll.u32 %v9687, 16
        %v9926 = vrot.slane %v9924, 5
        %v9927 = vor.u32 %v9923, %v9926
        %v9928 = vrot.slane %v9927, 4
        %v9930 = vshll.u32 %v9719, 16
        %v9932 = vrot.slane %v9930, 5
        %v9933 = vsel %vm2737, %v9928, %v9932
        %v9935 = vshrl.u32 %v9688, 16
        %v9937 = vrot.slane %v9935, 4
        %v9938 = vshll.u32 %v9688, 16
        %v9940 = vrot.slane %v9938, 5
        %v9941 = vor.u32 %v9937, %v9940
        %v9942 = vrot.slane %v9941, 4
        %v9944 = vshll.u32 %v9720, 16
        %v9946 = vrot.slane %v9944, 5
        %v9947 = vsel %vm2737, %v9942, %v9946
        %v9949 = vshrl.u32 %v9689, 16
        %v9951 = vrot.slane %v9949, 4
        %v9952 = vshll.u32 %v9689, 16
        %v9954 = vrot.slane %v9952, 5
        %v9955 = vor.u32 %v9951, %v9954
        %v9956 = vrot.slane %v9955, 4
        %v9958 = vshll.u32 %v9721, 16
        %v9960 = vrot.slane %v9958, 5
        %v9961 = vsel %vm2737, %v9956, %v9960
        %v9963 = vshrl.u32 %v9690, 16
        %v9965 = vrot.slane %v9963, 4
        %v9966 = vshll.u32 %v9690, 16
        %v9968 = vrot.slane %v9966, 5
        %v9969 = vor.u32 %v9965, %v9968
        %v9970 = vrot.slane %v9969, 4
        %v9972 = vshll.u32 %v9722, 16
        %v9974 = vrot.slane %v9972, 5
        %v9975 = vsel %vm2737, %v9970, %v9974
        %v9977 = vshrl.u32 %v9691, 16
        %v9979 = vrot.slane %v9977, 4
        %v9980 = vshll.u32 %v9691, 16
        %v9982 = vrot.slane %v9980, 5
        %v9983 = vor.u32 %v9979, %v9982
        %v9984 = vrot.slane %v9983, 4
        %v9986 = vshll.u32 %v9723, 16
        %v9988 = vrot.slane %v9986, 5
        %v9989 = vsel %vm2737, %v9984, %v9988
        %v9991 = vshrl.u32 %v9692, 16
        %v9993 = vrot.slane %v9991, 4
        %v9994 = vshll.u32 %v9692, 16
        %v9996 = vrot.slane %v9994, 5
        %v9997 = vor.u32 %v9993, %v9996
        %v9998 = vrot.slane %v9997, 4
        %v10000 = vshll.u32 %v9724, 16
        %v10002 = vrot.slane %v10000, 5
        %v10003 = vsel %vm2737, %v9998, %v10002
        %v10005 = vshrl.u32 %v9693, 16
        %v10007 = vrot.slane %v10005, 4
        %v10008 = vshll.u32 %v9693, 16
        %v10010 = vrot.slane %v10008, 5
        %v10011 = vor.u32 %v10007, %v10010
        %v10012 = vrot.slane %v10011, 4
        %v10014 = vshll.u32 %v9725, 16
        %v10016 = vrot.slane %v10014, 5
        %v10017 = vsel %vm2737, %v10012, %v10016
        %v10019 = vshrl.u32 %v9694, 16
        %v10021 = vrot.slane %v10019, 4
        %v10022 = vshll.u32 %v9694, 16
        %v10024 = vrot.slane %v10022, 5
        %v10025 = vor.u32 %v10021, %v10024
        %v10026 = vrot.slane %v10025, 4
        %v10028 = vshll.u32 %v9726, 16
        %v10030 = vrot.slane %v10028, 5
        %v10031 = vsel %vm2737, %v10026, %v10030
        %v10033 = vshrl.u32 %v9695, 16
        %v10035 = vrot.slane %v10033, 4
        %v10036 = vshll.u32 %v9695, 16
        %v10038 = vrot.slane %v10036, 5
        %v10039 = vor.u32 %v10035, %v10038
        %v10040 = vrot.slane %v10039, 4
        %v10042 = vshll.u32 %v9727, 16
        %v10044 = vrot.slane %v10042, 5
        %v10045 = vsel %vm2737, %v10040, %v10044
        %v10047 = vshrl.u32 %v9696, 16
        %v10049 = vrot.slane %v10047, 4
        %v10050 = vshll.u32 %v9696, 16
        %v10052 = vrot.slane %v10050, 5
        %v10053 = vor.u32 %v10049, %v10052
        %v10054 = vrot.slane %v10053, 4
        %v10056 = vshll.u32 %v9728, 16
        %v10058 = vrot.slane %v10056, 5
        %v10059 = vsel %vm2737, %v10054, %v10058
        %v10061 = vshrl.u32 %v9697, 16
        %v10063 = vrot.slane %v10061, 4
        %v10064 = vshll.u32 %v9697, 16
        %v10066 = vrot.slane %v10064, 5
        %v10067 = vor.u32 %v10063, %v10066
        %v10068 = vrot.slane %v10067, 4
        %v10070 = vshll.u32 %v9729, 16
        %v10072 = vrot.slane %v10070, 5
        %v10073 = vsel %vm2737, %v10068, %v10072
        %v10075 = vshrl.u32 %v9698, 16
        %v10077 = vrot.slane %v10075, 4
        %v10078 = vshll.u32 %v9698, 16
        %v10080 = vrot.slane %v10078, 5
        %v10081 = vor.u32 %v10077, %v10080
        %v10082 = vrot.slane %v10081, 4
        %v10084 = vshll.u32 %v9730, 16
        %v10086 = vrot.slane %v10084, 5
        %v10087 = vsel %vm2737, %v10082, %v10086
        %v10089 = vshrl.u32 %v9699, 16
        %v10091 = vrot.slane %v10089, 4
        %v10092 = vshll.u32 %v9699, 16
        %v10094 = vrot.slane %v10092, 5
        %v10095 = vor.u32 %v10091, %v10094
        %v10096 = vrot.slane %v10095, 4
        %v10098 = vshll.u32 %v9731, 16
        %v10100 = vrot.slane %v10098, 5
        %v10101 = vsel %vm2737, %v10096, %v10100
        %v10103 = vshrl.u32 %v9700, 16
        %v10105 = vrot.slane %v10103, 4
        %v10106 = vshll.u32 %v9700, 16
        %v10108 = vrot.slane %v10106, 5
        %v10109 = vor.u32 %v10105, %v10108
        %v10110 = vrot.slane %v10109, 4
        %v10112 = vshll.u32 %v9732, 16
        %v10114 = vrot.slane %v10112, 5
        %v10115 = vsel %vm2737, %v10110, %v10114
        %v10117 = vshrl.u32 %v9701, 16
        %v10119 = vrot.slane %v10117, 4
        %v10120 = vshll.u32 %v9701, 16
        %v10122 = vrot.slane %v10120, 5
        %v10123 = vor.u32 %v10119, %v10122
        %v10124 = vrot.slane %v10123, 4
        %v10126 = vshll.u32 %v9733, 16
        %v10128 = vrot.slane %v10126, 5
        %v10129 = vsel %vm2737, %v10124, %v10128
        %v10131 = vshrl.u32 %v9702, 16
        %v10133 = vrot.slane %v10131, 4
        %v10134 = vshll.u32 %v9702, 16
        %v10136 = vrot.slane %v10134, 5
        %v10137 = vor.u32 %v10133, %v10136
        %v10138 = vrot.slane %v10137, 4
        %v10140 = vshll.u32 %v9734, 16
        %v10142 = vrot.slane %v10140, 5
        %v10143 = vsel %vm2737, %v10138, %v10142
        %v10145 = vshrl.u32 %v9703, 16
        %v10147 = vrot.slane %v10145, 4
        %v10148 = vshll.u32 %v9703, 16
        %v10150 = vrot.slane %v10148, 5
        %v10151 = vor.u32 %v10147, %v10150
        %v10152 = vrot.slane %v10151, 4
        %v10154 = vshll.u32 %v9735, 16
        %v10156 = vrot.slane %v10154, 5
        %v10157 = vsel %vm2737, %v10152, %v10156
        %v10159 = vshrl.u32 %v9704, 16
        %v10161 = vrot.slane %v10159, 4
        %v10162 = vshll.u32 %v9704, 16
        %v10164 = vrot.slane %v10162, 5
        %v10165 = vor.u32 %v10161, %v10164
        %v10166 = vrot.slane %v10165, 4
        %v10168 = vshll.u32 %v9736, 16
        %v10170 = vrot.slane %v10168, 5
        %v10171 = vsel %vm2737, %v10166, %v10170
        %v10173 = vshrl.u32 %v9705, 16
        %v10175 = vrot.slane %v10173, 4
        %v10176 = vshll.u32 %v9705, 16
        %v10178 = vrot.slane %v10176, 5
        %v10179 = vor.u32 %v10175, %v10178
        %v10180 = vrot.slane %v10179, 4
        %v10182 = vshll.u32 %v9737, 16
        %v10184 = vrot.slane %v10182, 5
        %v10185 = vsel %vm2737, %v10180, %v10184
        %v10186 = vld [vmem:[%s9673] sm:$0xe]
        %v10187 = vld [vmem:[%s9673 + $0x8] sm:$0xe]
        %v10188 = vld [vmem:[%s9673 + $0x10] sm:$0xe]
        %v10189 = vld [vmem:[%s9673 + $0x18] sm:$0xe]
        %v10190 = vld [vmem:[%s9673 + $0x20] sm:$0xe]
        %v10191 = vld [vmem:[%s9673 + $0x28] sm:$0xe]
        %v10192 = vld [vmem:[%s9673 + $0x30] sm:$0xe]
        %v10193 = vld [vmem:[%s9673 + $0x38] sm:$0xe]
        %v10194 = vld [vmem:[%s9673 + $0x50] sm:$0xe]
        %v10195 = vld [vmem:[%s9673 + $0x58] sm:$0xe]
        %v10196 = vld [vmem:[%s9673 + $0x60] sm:$0xe]
        %v10197 = vld [vmem:[%s9673 + $0x68] sm:$0xe]
        %v10198 = vld [vmem:[%s9673 + $0x70] sm:$0xe]
        %v10199 = vld [vmem:[%s9673 + $0x78] sm:$0xe]
        %v10200 = vld [vmem:[%s9673 + $0x80] sm:$0xe]
        %v10201 = vld [vmem:[%s9673 + $0x88] sm:$0xe]
        %v10202 = vld [vmem:[%s9673 + $0xa0] sm:$0xe]
        %v10203 = vld [vmem:[%s9673 + $0xa8] sm:$0xe]
        %v10204 = vld [vmem:[%s9673 + $0xb0] sm:$0xe]
        %v10205 = vld [vmem:[%s9673 + $0xb8] sm:$0xe]
        %v10206 = vld [vmem:[%s9673 + $0xc0] sm:$0xe]
        %v10207 = vld [vmem:[%s9673 + $0xc8] sm:$0xe]
        %v10208 = vld [vmem:[%s9673 + $0xd0] sm:$0xe]
        %v10209 = vld [vmem:[%s9673 + $0xd8] sm:$0xe]
        %v10210 = vld [vmem:[%s9673 + $0xf0] sm:$0xe]
        %v10211 = vld [vmem:[%s9673 + $0xf8] sm:$0xe]
        %v10212 = vld [vmem:[%s9673 + $0x100] sm:$0xe]
        %v10213 = vld [vmem:[%s9673 + $0x108] sm:$0xe]
        %v10214 = vld [vmem:[%s9673 + $0x110] sm:$0xe]
        %v10215 = vld [vmem:[%s9673 + $0x118] sm:$0xe]
        %v10216 = vld [vmem:[%s9673 + $0x120] sm:$0xe]
        %v10217 = vld [vmem:[%s9673 + $0x128] sm:$0xe]
        %v10282 = vrot.slane %v10186, 5
        %v10283 = vrot.slane %v10282, 4
        %v10284 = vrot.slane %v9706, 5
        %v10285 = vsel %vm3284, %v10283, %v10284
        %v10286 = vrot.slane %v10187, 5
        %v10287 = vrot.slane %v10286, 4
        %v10288 = vrot.slane %v9707, 5
        %v10289 = vsel %vm3284, %v10287, %v10288
        %v10290 = vrot.slane %v10188, 5
        %v10291 = vrot.slane %v10290, 4
        %v10292 = vrot.slane %v9708, 5
        %v10293 = vsel %vm3284, %v10291, %v10292
        %v10294 = vrot.slane %v10189, 5
        %v10295 = vrot.slane %v10294, 4
        %v10296 = vrot.slane %v9709, 5
        %v10297 = vsel %vm3284, %v10295, %v10296
        %v10298 = vrot.slane %v10190, 5
        %v10299 = vrot.slane %v10298, 4
        %v10300 = vrot.slane %v9710, 5
        %v10301 = vsel %vm3284, %v10299, %v10300
        %v10302 = vrot.slane %v10191, 5
        %v10303 = vrot.slane %v10302, 4
        %v10304 = vrot.slane %v9711, 5
        %v10305 = vsel %vm3284, %v10303, %v10304
        %v10306 = vrot.slane %v10192, 5
        %v10307 = vrot.slane %v10306, 4
        %v10308 = vrot.slane %v9712, 5
        %v10309 = vsel %vm3284, %v10307, %v10308
        %v10310 = vrot.slane %v10193, 5
        %v10311 = vrot.slane %v10310, 4
        %v10312 = vrot.slane %v9713, 5
        %v10313 = vsel %vm3284, %v10311, %v10312
        %v10314 = vrot.slane %v10194, 5
        %v10315 = vrot.slane %v10314, 4
        %v10316 = vrot.slane %v9714, 5
        %v10317 = vsel %vm3284, %v10315, %v10316
        %v10318 = vrot.slane %v10195, 5
        %v10319 = vrot.slane %v10318, 4
        %v10320 = vrot.slane %v9715, 5
        %v10321 = vsel %vm3284, %v10319, %v10320
        %v10322 = vrot.slane %v10196, 5
        %v10323 = vrot.slane %v10322, 4
        %v10324 = vrot.slane %v9716, 5
        %v10325 = vsel %vm3284, %v10323, %v10324
        %v10326 = vrot.slane %v10197, 5
        %v10327 = vrot.slane %v10326, 4
        %v10328 = vrot.slane %v9717, 5
        %v10329 = vsel %vm3284, %v10327, %v10328
        %v10330 = vrot.slane %v10198, 5
        %v10331 = vrot.slane %v10330, 4
        %v10332 = vrot.slane %v9718, 5
        %v10333 = vsel %vm3284, %v10331, %v10332
        %v10334 = vrot.slane %v10199, 5
        %v10335 = vrot.slane %v10334, 4
        %v10336 = vrot.slane %v9719, 5
        %v10337 = vsel %vm3284, %v10335, %v10336
        %v10338 = vrot.slane %v10200, 5
        %v10339 = vrot.slane %v10338, 4
        %v10340 = vrot.slane %v9720, 5
        %v10341 = vsel %vm3284, %v10339, %v10340
        %v10342 = vrot.slane %v10201, 5
        %v10343 = vrot.slane %v10342, 4
        %v10344 = vrot.slane %v9721, 5
        %v10345 = vsel %vm3284, %v10343, %v10344
        %v10346 = vrot.slane %v10202, 5
        %v10347 = vrot.slane %v10346, 4
        %v10348 = vrot.slane %v9722, 5
        %v10349 = vsel %vm3284, %v10347, %v10348
        %v10350 = vrot.slane %v10203, 5
        %v10351 = vrot.slane %v10350, 4
        %v10352 = vrot.slane %v9723, 5
        %v10353 = vsel %vm3284, %v10351, %v10352
        %v10354 = vrot.slane %v10204, 5
        %v10355 = vrot.slane %v10354, 4
        %v10356 = vrot.slane %v9724, 5
        %v10357 = vsel %vm3284, %v10355, %v10356
        %v10358 = vrot.slane %v10205, 5
        %v10359 = vrot.slane %v10358, 4
        %v10360 = vrot.slane %v9725, 5
        %v10361 = vsel %vm3284, %v10359, %v10360
        %v10362 = vrot.slane %v10206, 5
        %v10363 = vrot.slane %v10362, 4
        %v10364 = vrot.slane %v9726, 5
        %v10365 = vsel %vm3284, %v10363, %v10364
        %v10366 = vrot.slane %v10207, 5
        %v10367 = vrot.slane %v10366, 4
        %v10368 = vrot.slane %v9727, 5
        %v10369 = vsel %vm3284, %v10367, %v10368
        %v10370 = vrot.slane %v10208, 5
        %v10371 = vrot.slane %v10370, 4
        %v10372 = vrot.slane %v9728, 5
        %v10373 = vsel %vm3284, %v10371, %v10372
        %v10374 = vrot.slane %v10209, 5
        %v10375 = vrot.slane %v10374, 4
        %v10376 = vrot.slane %v9729, 5
        %v10377 = vsel %vm3284, %v10375, %v10376
        %v10378 = vrot.slane %v10210, 5
        %v10379 = vrot.slane %v10378, 4
        %v10380 = vrot.slane %v9730, 5
        %v10381 = vsel %vm3284, %v10379, %v10380
        %v10382 = vrot.slane %v10211, 5
        %v10383 = vrot.slane %v10382, 4
        %v10384 = vrot.slane %v9731, 5
        %v10385 = vsel %vm3284, %v10383, %v10384
        %v10386 = vrot.slane %v10212, 5
        %v10387 = vrot.slane %v10386, 4
        %v10388 = vrot.slane %v9732, 5
        %v10389 = vsel %vm3284, %v10387, %v10388
        %v10390 = vrot.slane %v10213, 5
        %v10391 = vrot.slane %v10390, 4
        %v10392 = vrot.slane %v9733, 5
        %v10393 = vsel %vm3284, %v10391, %v10392
        %v10394 = vrot.slane %v10214, 5
        %v10395 = vrot.slane %v10394, 4
        %v10396 = vrot.slane %v9734, 5
        %v10397 = vsel %vm3284, %v10395, %v10396
        %v10398 = vrot.slane %v10215, 5
        %v10399 = vrot.slane %v10398, 4
        %v10400 = vrot.slane %v9735, 5
        %v10401 = vsel %vm3284, %v10399, %v10400
        %v10402 = vrot.slane %v10216, 5
        %v10403 = vrot.slane %v10402, 4
        %v10404 = vrot.slane %v9736, 5
        %v10405 = vsel %vm3284, %v10403, %v10404
        %v10406 = vrot.slane %v10217, 5
        %v10407 = vrot.slane %v10406, 4
        %v10408 = vrot.slane %v9737, 5
        %v10409 = vsel %vm3284, %v10407, %v10408
        %v10442 = vunpack.c.l.b16 %v8201
        %v10443 = vunpack.c.l.b16 %v8202
        %v10444 = vunpack.c.l.b16 %v8203
        %v10445 = vunpack.c.l.b16 %v8204
        %v10446 = vunpack.c.l.b16 %v8205
        %v10447 = vunpack.c.l.b16 %v8206
        %v10448 = vunpack.c.l.b16 %v8207
        %v10449 = vunpack.c.l.b16 %v8208
        %v10450 = vunpack.c.l.b16 %v8209
        %v10451 = vunpack.c.l.b16 %v8210
        %v10452 = vunpack.c.l.b16 %v8211
        %v10453 = vunpack.c.l.b16 %v8212
        %v10454 = vunpack.c.l.b16 %v8213
        %v10455 = vunpack.c.l.b16 %v8214
        %v10456 = vunpack.c.l.b16 %v8215
        %v10457 = vunpack.c.l.b16 %v8216
        %v10458 = vunpack.c.l.b16 %v8217
        %v10459 = vunpack.c.l.b16 %v8218
        %v10460 = vunpack.c.l.b16 %v8219
        %v10461 = vunpack.c.l.b16 %v8220
        %v10462 = vunpack.c.l.b16 %v8221
        %v10463 = vunpack.c.l.b16 %v8222
        %v10464 = vunpack.c.l.b16 %v8223
        %v10465 = vunpack.c.l.b16 %v8224
        %v10466 = vunpack.c.l.b16 %v8225
        %v10467 = vunpack.c.l.b16 %v8226
        %v10468 = vunpack.c.l.b16 %v8227
        %v10469 = vunpack.c.l.b16 %v8228
        %v10470 = vunpack.c.l.b16 %v8229
        %v10471 = vunpack.c.l.b16 %v8230
        %v10472 = vunpack.c.l.b16 %v8231
        %v10473 = vunpack.c.l.b16 %v8232
        %v10474 = vpack.c.b16 %v10443, %v10442
        %v10475 = vpack.c.b16 %v10445, %v10444
        %v10476 = vpack.c.b16 %v10447, %v10446
        %v10477 = vpack.c.b16 %v10449, %v10448
        %v10478 = vpack.c.b16 %v10451, %v10450
        %v10479 = vpack.c.b16 %v10453, %v10452
        %v10480 = vpack.c.b16 %v10455, %v10454
        %v10481 = vpack.c.b16 %v10457, %v10456
        %v10482 = vpack.c.b16 %v10459, %v10458
        %v10483 = vpack.c.b16 %v10461, %v10460
        %v10484 = vpack.c.b16 %v10463, %v10462
        %v10485 = vpack.c.b16 %v10465, %v10464
        %v10486 = vpack.c.b16 %v10467, %v10466
        %v10487 = vpack.c.b16 %v10469, %v10468
        %v10488 = vpack.c.b16 %v10471, %v10470
        %v10489 = vpack.c.b16 %v10473, %v10472
        %v10506 = vunpack.c.l.b16 %v8278
        %v10507 = vunpack.c.l.b16 %v8292
        %v10508 = vunpack.c.l.b16 %v8306
        %v10509 = vunpack.c.l.b16 %v8320
        %v10510 = vunpack.c.l.b16 %v8334
        %v10511 = vunpack.c.l.b16 %v8348
        %v10512 = vunpack.c.l.b16 %v8362
        %v10513 = vunpack.c.l.b16 %v8376
        %v10514 = vunpack.c.l.b16 %v8390
        %v10515 = vunpack.c.l.b16 %v8404
        %v10516 = vunpack.c.l.b16 %v8418
        %v10517 = vunpack.c.l.b16 %v8432
        %v10518 = vunpack.c.l.b16 %v8446
        %v10519 = vunpack.c.l.b16 %v8460
        %v10520 = vunpack.c.l.b16 %v8474
        %v10521 = vunpack.c.l.b16 %v8488
        %v10522 = vunpack.c.l.b16 %v8502
        %v10523 = vunpack.c.l.b16 %v8516
        %v10524 = vunpack.c.l.b16 %v8530
        %v10525 = vunpack.c.l.b16 %v8544
        %v10526 = vunpack.c.l.b16 %v8558
        %v10527 = vunpack.c.l.b16 %v8572
        %v10528 = vunpack.c.l.b16 %v8586
        %v10529 = vunpack.c.l.b16 %v8600
        %v10530 = vunpack.c.l.b16 %v8614
        %v10531 = vunpack.c.l.b16 %v8628
        %v10532 = vunpack.c.l.b16 %v8642
        %v10533 = vunpack.c.l.b16 %v8656
        %v10534 = vunpack.c.l.b16 %v8670
        %v10535 = vunpack.c.l.b16 %v8684
        %v10536 = vunpack.c.l.b16 %v8698
        %v10537 = vunpack.c.l.b16 %v8712
        %v10538 = vpack.c.b16 %v10507, %v10506
        %v10539 = vpack.c.b16 %v10509, %v10508
        %v10540 = vpack.c.b16 %v10511, %v10510
        %v10541 = vpack.c.b16 %v10513, %v10512
        %v10542 = vpack.c.b16 %v10515, %v10514
        %v10543 = vpack.c.b16 %v10517, %v10516
        %v10544 = vpack.c.b16 %v10519, %v10518
        %v10545 = vpack.c.b16 %v10521, %v10520
        %v10546 = vpack.c.b16 %v10523, %v10522
        %v10547 = vpack.c.b16 %v10525, %v10524
        %v10548 = vpack.c.b16 %v10527, %v10526
        %v10549 = vpack.c.b16 %v10529, %v10528
        %v10550 = vpack.c.b16 %v10531, %v10530
        %v10551 = vpack.c.b16 %v10533, %v10532
        %v10552 = vpack.c.b16 %v10535, %v10534
        %v10553 = vpack.c.b16 %v10537, %v10536
        %v10570 = vunpack.c.l.b16 %v8812
        %v10571 = vunpack.c.l.b16 %v8816
        %v10572 = vunpack.c.l.b16 %v8820
        %v10573 = vunpack.c.l.b16 %v8824
        %v10574 = vunpack.c.l.b16 %v8828
        %v10575 = vunpack.c.l.b16 %v8832
        %v10576 = vunpack.c.l.b16 %v8836
        %v10577 = vunpack.c.l.b16 %v8840
        %v10578 = vunpack.c.l.b16 %v8844
        %v10579 = vunpack.c.l.b16 %v8848
        %v10580 = vunpack.c.l.b16 %v8852
        %v10581 = vunpack.c.l.b16 %v8856
        %v10582 = vunpack.c.l.b16 %v8860
        %v10583 = vunpack.c.l.b16 %v8864
        %v10584 = vunpack.c.l.b16 %v8868
        %v10585 = vunpack.c.l.b16 %v8872
        %v10586 = vunpack.c.l.b16 %v8876
        %v10587 = vunpack.c.l.b16 %v8880
        %v10588 = vunpack.c.l.b16 %v8884
        %v10589 = vunpack.c.l.b16 %v8888
        %v10590 = vunpack.c.l.b16 %v8892
        %v10591 = vunpack.c.l.b16 %v8896
        %v10592 = vunpack.c.l.b16 %v8900
        %v10593 = vunpack.c.l.b16 %v8904
        %v10594 = vunpack.c.l.b16 %v8908
        %v10595 = vunpack.c.l.b16 %v8912
        %v10596 = vunpack.c.l.b16 %v8916
        %v10597 = vunpack.c.l.b16 %v8920
        %v10598 = vunpack.c.l.b16 %v8924
        %v10599 = vunpack.c.l.b16 %v8928
        %v10600 = vunpack.c.l.b16 %v8932
        %v10601 = vunpack.c.l.b16 %v8936
        %v10602 = vpack.c.b16 %v10571, %v10570
        %v10603 = vpack.c.b16 %v10573, %v10572
        %v10604 = vpack.c.b16 %v10575, %v10574
        %v10605 = vpack.c.b16 %v10577, %v10576
        %v10606 = vpack.c.b16 %v10579, %v10578
        %v10607 = vpack.c.b16 %v10581, %v10580
        %v10608 = vpack.c.b16 %v10583, %v10582
        %v10609 = vpack.c.b16 %v10585, %v10584
        %v10610 = vpack.c.b16 %v10587, %v10586
        %v10611 = vpack.c.b16 %v10589, %v10588
        %v10612 = vpack.c.b16 %v10591, %v10590
        %v10613 = vpack.c.b16 %v10593, %v10592
        %v10614 = vpack.c.b16 %v10595, %v10594
        %v10615 = vpack.c.b16 %v10597, %v10596
        %v10616 = vpack.c.b16 %v10599, %v10598
        %v10617 = vpack.c.b16 %v10601, %v10600
        %v10666 = vunpack.c.l.b16 %v8937
        %v10667 = vunpack.c.l.b16 %v8938
        %v10668 = vunpack.c.l.b16 %v8939
        %v10669 = vunpack.c.l.b16 %v8940
        %v10670 = vunpack.c.l.b16 %v8941
        %v10671 = vunpack.c.l.b16 %v8942
        %v10672 = vunpack.c.l.b16 %v8943
        %v10673 = vunpack.c.l.b16 %v8944
        %v10674 = vunpack.c.l.b16 %v8945
        %v10675 = vunpack.c.l.b16 %v8946
        %v10676 = vunpack.c.l.b16 %v8947
        %v10677 = vunpack.c.l.b16 %v8948
        %v10678 = vunpack.c.l.b16 %v8949
        %v10679 = vunpack.c.l.b16 %v8950
        %v10680 = vunpack.c.l.b16 %v8951
        %v10681 = vunpack.c.l.b16 %v8952
        %v10682 = vunpack.c.l.b16 %v8953
        %v10683 = vunpack.c.l.b16 %v8954
        %v10684 = vunpack.c.l.b16 %v8955
        %v10685 = vunpack.c.l.b16 %v8956
        %v10686 = vunpack.c.l.b16 %v8957
        %v10687 = vunpack.c.l.b16 %v8958
        %v10688 = vunpack.c.l.b16 %v8959
        %v10689 = vunpack.c.l.b16 %v8960
        %v10690 = vunpack.c.l.b16 %v8961
        %v10691 = vunpack.c.l.b16 %v8962
        %v10692 = vunpack.c.l.b16 %v8963
        %v10693 = vunpack.c.l.b16 %v8964
        %v10694 = vunpack.c.l.b16 %v8965
        %v10695 = vunpack.c.l.b16 %v8966
        %v10696 = vunpack.c.l.b16 %v8967
        %v10697 = vunpack.c.l.b16 %v8968
        %v10698 = vpack.c.b16 %v10667, %v10666
        %v10699 = vpack.c.b16 %v10669, %v10668
        %v10700 = vpack.c.b16 %v10671, %v10670
        %v10701 = vpack.c.b16 %v10673, %v10672
        %v10702 = vpack.c.b16 %v10675, %v10674
        %v10703 = vpack.c.b16 %v10677, %v10676
        %v10704 = vpack.c.b16 %v10679, %v10678
        %v10705 = vpack.c.b16 %v10681, %v10680
        %v10706 = vpack.c.b16 %v10683, %v10682
        %v10707 = vpack.c.b16 %v10685, %v10684
        %v10708 = vpack.c.b16 %v10687, %v10686
        %v10709 = vpack.c.b16 %v10689, %v10688
        %v10710 = vpack.c.b16 %v10691, %v10690
        %v10711 = vpack.c.b16 %v10693, %v10692
        %v10712 = vpack.c.b16 %v10695, %v10694
        %v10713 = vpack.c.b16 %v10697, %v10696
        %v10730 = vunpack.c.l.b16 %v9014
        %v10731 = vunpack.c.l.b16 %v9028
        %v10732 = vunpack.c.l.b16 %v9042
        %v10733 = vunpack.c.l.b16 %v9056
        %v10734 = vunpack.c.l.b16 %v9070
        %v10735 = vunpack.c.l.b16 %v9084
        %v10736 = vunpack.c.l.b16 %v9098
        %v10737 = vunpack.c.l.b16 %v9112
        %v10738 = vunpack.c.l.b16 %v9126
        %v10739 = vunpack.c.l.b16 %v9140
        %v10740 = vunpack.c.l.b16 %v9154
        %v10741 = vunpack.c.l.b16 %v9168
        %v10742 = vunpack.c.l.b16 %v9182
        %v10743 = vunpack.c.l.b16 %v9196
        %v10744 = vunpack.c.l.b16 %v9210
        %v10745 = vunpack.c.l.b16 %v9224
        %v10746 = vunpack.c.l.b16 %v9238
        %v10747 = vunpack.c.l.b16 %v9252
        %v10748 = vunpack.c.l.b16 %v9266
        %v10749 = vunpack.c.l.b16 %v9280
        %v10750 = vunpack.c.l.b16 %v9294
        %v10751 = vunpack.c.l.b16 %v9308
        %v10752 = vunpack.c.l.b16 %v9322
        %v10753 = vunpack.c.l.b16 %v9336
        %v10754 = vunpack.c.l.b16 %v9350
        %v10755 = vunpack.c.l.b16 %v9364
        %v10756 = vunpack.c.l.b16 %v9378
        %v10757 = vunpack.c.l.b16 %v9392
        %v10758 = vunpack.c.l.b16 %v9406
        %v10759 = vunpack.c.l.b16 %v9420
        %v10760 = vunpack.c.l.b16 %v9434
        %v10761 = vunpack.c.l.b16 %v9448
        %v10762 = vpack.c.b16 %v10731, %v10730
        %v10763 = vpack.c.b16 %v10733, %v10732
        %v10764 = vpack.c.b16 %v10735, %v10734
        %v10765 = vpack.c.b16 %v10737, %v10736
        %v10766 = vpack.c.b16 %v10739, %v10738
        %v10767 = vpack.c.b16 %v10741, %v10740
        %v10768 = vpack.c.b16 %v10743, %v10742
        %v10769 = vpack.c.b16 %v10745, %v10744
        %v10770 = vpack.c.b16 %v10747, %v10746
        %v10771 = vpack.c.b16 %v10749, %v10748
        %v10772 = vpack.c.b16 %v10751, %v10750
        %v10773 = vpack.c.b16 %v10753, %v10752
        %v10774 = vpack.c.b16 %v10755, %v10754
        %v10775 = vpack.c.b16 %v10757, %v10756
        %v10776 = vpack.c.b16 %v10759, %v10758
        %v10777 = vpack.c.b16 %v10761, %v10760
        %v10794 = vunpack.c.l.b16 %v9548
        %v10795 = vunpack.c.l.b16 %v9552
        %v10796 = vunpack.c.l.b16 %v9556
        %v10797 = vunpack.c.l.b16 %v9560
        %v10798 = vunpack.c.l.b16 %v9564
        %v10799 = vunpack.c.l.b16 %v9568
        %v10800 = vunpack.c.l.b16 %v9572
        %v10801 = vunpack.c.l.b16 %v9576
        %v10802 = vunpack.c.l.b16 %v9580
        %v10803 = vunpack.c.l.b16 %v9584
        %v10804 = vunpack.c.l.b16 %v9588
        %v10805 = vunpack.c.l.b16 %v9592
        %v10806 = vunpack.c.l.b16 %v9596
        %v10807 = vunpack.c.l.b16 %v9600
        %v10808 = vunpack.c.l.b16 %v9604
        %v10809 = vunpack.c.l.b16 %v9608
        %v10810 = vunpack.c.l.b16 %v9612
        %v10811 = vunpack.c.l.b16 %v9616
        %v10812 = vunpack.c.l.b16 %v9620
        %v10813 = vunpack.c.l.b16 %v9624
        %v10814 = vunpack.c.l.b16 %v9628
        %v10815 = vunpack.c.l.b16 %v9632
        %v10816 = vunpack.c.l.b16 %v9636
        %v10817 = vunpack.c.l.b16 %v9640
        %v10818 = vunpack.c.l.b16 %v9644
        %v10819 = vunpack.c.l.b16 %v9648
        %v10820 = vunpack.c.l.b16 %v9652
        %v10821 = vunpack.c.l.b16 %v9656
        %v10822 = vunpack.c.l.b16 %v9660
        %v10823 = vunpack.c.l.b16 %v9664
        %v10824 = vunpack.c.l.b16 %v9668
        %v10825 = vunpack.c.l.b16 %v9672
        %v10826 = vpack.c.b16 %v10795, %v10794
        %v10827 = vpack.c.b16 %v10797, %v10796
        %v10828 = vpack.c.b16 %v10799, %v10798
        %v10829 = vpack.c.b16 %v10801, %v10800
        %v10830 = vpack.c.b16 %v10803, %v10802
        %v10831 = vpack.c.b16 %v10805, %v10804
        %v10832 = vpack.c.b16 %v10807, %v10806
        %v10833 = vpack.c.b16 %v10809, %v10808
        %v10834 = vpack.c.b16 %v10811, %v10810
        %v10835 = vpack.c.b16 %v10813, %v10812
        %v10836 = vpack.c.b16 %v10815, %v10814
        %v10837 = vpack.c.b16 %v10817, %v10816
        %v10838 = vpack.c.b16 %v10819, %v10818
        %v10839 = vpack.c.b16 %v10821, %v10820
        %v10840 = vpack.c.b16 %v10823, %v10822
        %v10841 = vpack.c.b16 %v10825, %v10824
        %v10890 = vunpack.c.l.b16 %v9674
        %v10891 = vunpack.c.l.b16 %v9675
        %v10892 = vunpack.c.l.b16 %v9676
        %v10893 = vunpack.c.l.b16 %v9677
        %v10894 = vunpack.c.l.b16 %v9678
        %v10895 = vunpack.c.l.b16 %v9679
        %v10896 = vunpack.c.l.b16 %v9680
        %v10897 = vunpack.c.l.b16 %v9681
        %v10898 = vunpack.c.l.b16 %v9682
        %v10899 = vunpack.c.l.b16 %v9683
        %v10900 = vunpack.c.l.b16 %v9684
        %v10901 = vunpack.c.l.b16 %v9685
        %v10902 = vunpack.c.l.b16 %v9686
        %v10903 = vunpack.c.l.b16 %v9687
        %v10904 = vunpack.c.l.b16 %v9688
        %v10905 = vunpack.c.l.b16 %v9689
        %v10906 = vunpack.c.l.b16 %v9690
        %v10907 = vunpack.c.l.b16 %v9691
        %v10908 = vunpack.c.l.b16 %v9692
        %v10909 = vunpack.c.l.b16 %v9693
        %v10910 = vunpack.c.l.b16 %v9694
        %v10911 = vunpack.c.l.b16 %v9695
        %v10912 = vunpack.c.l.b16 %v9696
        %v10913 = vunpack.c.l.b16 %v9697
        %v10914 = vunpack.c.l.b16 %v9698
        %v10915 = vunpack.c.l.b16 %v9699
        %v10916 = vunpack.c.l.b16 %v9700
        %v10917 = vunpack.c.l.b16 %v9701
        %v10918 = vunpack.c.l.b16 %v9702
        %v10919 = vunpack.c.l.b16 %v9703
        %v10920 = vunpack.c.l.b16 %v9704
        %v10921 = vunpack.c.l.b16 %v9705
        %v10922 = vpack.c.b16 %v10891, %v10890
        %v10923 = vpack.c.b16 %v10893, %v10892
        %v10924 = vpack.c.b16 %v10895, %v10894
        %v10925 = vpack.c.b16 %v10897, %v10896
        %v10926 = vpack.c.b16 %v10899, %v10898
        %v10927 = vpack.c.b16 %v10901, %v10900
        %v10928 = vpack.c.b16 %v10903, %v10902
        %v10929 = vpack.c.b16 %v10905, %v10904
        %v10930 = vpack.c.b16 %v10907, %v10906
        %v10931 = vpack.c.b16 %v10909, %v10908
        %v10932 = vpack.c.b16 %v10911, %v10910
        %v10933 = vpack.c.b16 %v10913, %v10912
        %v10934 = vpack.c.b16 %v10915, %v10914
        %v10935 = vpack.c.b16 %v10917, %v10916
        %v10936 = vpack.c.b16 %v10919, %v10918
        %v10937 = vpack.c.b16 %v10921, %v10920
        %v10954 = vunpack.c.l.b16 %v9751
        %v10955 = vunpack.c.l.b16 %v9765
        %v10956 = vunpack.c.l.b16 %v9779
        %v10957 = vunpack.c.l.b16 %v9793
        %v10958 = vunpack.c.l.b16 %v9807
        %v10959 = vunpack.c.l.b16 %v9821
        %v10960 = vunpack.c.l.b16 %v9835
        %v10961 = vunpack.c.l.b16 %v9849
        %v10962 = vunpack.c.l.b16 %v9863
        %v10963 = vunpack.c.l.b16 %v9877
        %v10964 = vunpack.c.l.b16 %v9891
        %v10965 = vunpack.c.l.b16 %v9905
        %v10966 = vunpack.c.l.b16 %v9919
        %v10967 = vunpack.c.l.b16 %v9933
        %v10968 = vunpack.c.l.b16 %v9947
        %v10969 = vunpack.c.l.b16 %v9961
        %v10970 = vunpack.c.l.b16 %v9975
        %v10971 = vunpack.c.l.b16 %v9989
        %v10972 = vunpack.c.l.b16 %v10003
        %v10973 = vunpack.c.l.b16 %v10017
        %v10974 = vunpack.c.l.b16 %v10031
        %v10975 = vunpack.c.l.b16 %v10045
        %v10976 = vunpack.c.l.b16 %v10059
        %v10977 = vunpack.c.l.b16 %v10073
        %v10978 = vunpack.c.l.b16 %v10087
        %v10979 = vunpack.c.l.b16 %v10101
        %v10980 = vunpack.c.l.b16 %v10115
        %v10981 = vunpack.c.l.b16 %v10129
        %v10982 = vunpack.c.l.b16 %v10143
        %v10983 = vunpack.c.l.b16 %v10157
        %v10984 = vunpack.c.l.b16 %v10171
        %v10985 = vunpack.c.l.b16 %v10185
        %v10986 = vpack.c.b16 %v10955, %v10954
        %v10987 = vpack.c.b16 %v10957, %v10956
        %v10988 = vpack.c.b16 %v10959, %v10958
        %v10989 = vpack.c.b16 %v10961, %v10960
        %v10990 = vpack.c.b16 %v10963, %v10962
        %v10991 = vpack.c.b16 %v10965, %v10964
        %v10992 = vpack.c.b16 %v10967, %v10966
        %v10993 = vpack.c.b16 %v10969, %v10968
        %v10994 = vpack.c.b16 %v10971, %v10970
        %v10995 = vpack.c.b16 %v10973, %v10972
        %v10996 = vpack.c.b16 %v10975, %v10974
        %v10997 = vpack.c.b16 %v10977, %v10976
        %v10998 = vpack.c.b16 %v10979, %v10978
        %v10999 = vpack.c.b16 %v10981, %v10980
        %v11000 = vpack.c.b16 %v10983, %v10982
        %v11001 = vpack.c.b16 %v10985, %v10984
        %v11018 = vunpack.c.l.b16 %v10285
        %v11019 = vunpack.c.l.b16 %v10289
        %v11020 = vunpack.c.l.b16 %v10293
        %v11021 = vunpack.c.l.b16 %v10297
        %v11022 = vunpack.c.l.b16 %v10301
        %v11023 = vunpack.c.l.b16 %v10305
        %v11024 = vunpack.c.l.b16 %v10309
        %v11025 = vunpack.c.l.b16 %v10313
        %v11026 = vunpack.c.l.b16 %v10317
        %v11027 = vunpack.c.l.b16 %v10321
        %v11028 = vunpack.c.l.b16 %v10325
        %v11029 = vunpack.c.l.b16 %v10329
        %v11030 = vunpack.c.l.b16 %v10333
        %v11031 = vunpack.c.l.b16 %v10337
        %v11032 = vunpack.c.l.b16 %v10341
        %v11033 = vunpack.c.l.b16 %v10345
        %v11034 = vunpack.c.l.b16 %v10349
        %v11035 = vunpack.c.l.b16 %v10353
        %v11036 = vunpack.c.l.b16 %v10357
        %v11037 = vunpack.c.l.b16 %v10361
        %v11038 = vunpack.c.l.b16 %v10365
        %v11039 = vunpack.c.l.b16 %v10369
        %v11040 = vunpack.c.l.b16 %v10373
        %v11041 = vunpack.c.l.b16 %v10377
        %v11042 = vunpack.c.l.b16 %v10381
        %v11043 = vunpack.c.l.b16 %v10385
        %v11044 = vunpack.c.l.b16 %v10389
        %v11045 = vunpack.c.l.b16 %v10393
        %v11046 = vunpack.c.l.b16 %v10397
        %v11047 = vunpack.c.l.b16 %v10401
        %v11048 = vunpack.c.l.b16 %v10405
        %v11049 = vunpack.c.l.b16 %v10409
        %v11050 = vpack.c.b16 %v11019, %v11018
        %v11051 = vpack.c.b16 %v11021, %v11020
        %v11052 = vpack.c.b16 %v11023, %v11022
        %v11053 = vpack.c.b16 %v11025, %v11024
        %v11054 = vpack.c.b16 %v11027, %v11026
        %v11055 = vpack.c.b16 %v11029, %v11028
        %v11056 = vpack.c.b16 %v11031, %v11030
        %v11057 = vpack.c.b16 %v11033, %v11032
        %v11058 = vpack.c.b16 %v11035, %v11034
        %v11059 = vpack.c.b16 %v11037, %v11036
        %v11060 = vpack.c.b16 %v11039, %v11038
        %v11061 = vpack.c.b16 %v11041, %v11040
        %v11062 = vpack.c.b16 %v11043, %v11042
        %v11063 = vpack.c.b16 %v11045, %v11044
        %v11064 = vpack.c.b16 %v11047, %v11046
        %v11065 = vpack.c.b16 %v11049, %v11048
        %v11082 = vld [vmem:[%s5] sm:$0xf]
        %v11083 = vld [vmem:[%s5 + $0x4] sm:$0xf]
        %v11084 = vld [vmem:[%s5 + $0x8] sm:$0xf]
        %v11085 = vld [vmem:[%s5 + $0xc] sm:$0xf]
        %v11086 = vld [vmem:[%s5 + $0x10] sm:$0xf]
        %v11087 = vld [vmem:[%s5 + $0x14] sm:$0xf]
        %v11088 = vld [vmem:[%s5 + $0x18] sm:$0xf]
        %v11089 = vld [vmem:[%s5 + $0x1c] sm:$0xf]
        %v11090 = vld [vmem:[%s5 + $0x20] sm:$0xf]
        %v11091 = vld [vmem:[%s5 + $0x24] sm:$0xf]
        %v11092 = vld [vmem:[%s5 + $0x28] sm:$0xf]
        %v11093 = vld [vmem:[%s5 + $0x2c] sm:$0xf]
        %v11094 = vld [vmem:[%s5 + $0x30] sm:$0xf]
        %v11095 = vld [vmem:[%s5 + $0x34] sm:$0xf]
        %v11096 = vld [vmem:[%s5 + $0x38] sm:$0xf]
        %v11097 = vld [vmem:[%s5 + $0x3c] sm:$0xf]
        %v11098 = vld [vmem:[%s5 + $0x40] sm:$0xf]
        %v11099 = vld [vmem:[%s5 + $0x44] sm:$0xf]
        %v11100 = vld [vmem:[%s5 + $0x48] sm:$0xf]
        %v11101 = vld [vmem:[%s5 + $0x4c] sm:$0xf]
        %v11102 = vld [vmem:[%s5 + $0x50] sm:$0xf]
        %v11103 = vld [vmem:[%s5 + $0x54] sm:$0xf]
        %v11104 = vld [vmem:[%s5 + $0x58] sm:$0xf]
        %v11105 = vld [vmem:[%s5 + $0x5c] sm:$0xf]
        %v11106 = vld [vmem:[%s5 + $0x60] sm:$0xf]
        %v11107 = vld [vmem:[%s5 + $0x64] sm:$0xf]
        %v11108 = vld [vmem:[%s5 + $0x68] sm:$0xf]
        %v11109 = vld [vmem:[%s5 + $0x6c] sm:$0xf]
        %v11110 = vld [vmem:[%s5 + $0x70] sm:$0xf]
        %v11111 = vld [vmem:[%s5 + $0x74] sm:$0xf]
        %v11112 = vld [vmem:[%s5 + $0x78] sm:$0xf]
        %v11113 = vld [vmem:[%s5 + $0x7c] sm:$0xf]
        %v11114 = vld [vmem:[%s5 + $0x80] sm:$0xf]
        %v11115 = vld [vmem:[%s5 + $0x84] sm:$0xf]
        %v11116 = vld [vmem:[%s5 + $0x88] sm:$0xf]
        %v11117 = vld [vmem:[%s5 + $0x8c] sm:$0xf]
        %v11118 = vld [vmem:[%s5 + $0x90] sm:$0xf]
        %v11119 = vld [vmem:[%s5 + $0x94] sm:$0xf]
        %v11120 = vld [vmem:[%s5 + $0x98] sm:$0xf]
        %v11121 = vld [vmem:[%s5 + $0x9c] sm:$0xf]
        %v11122 = vld [vmem:[%s5 + $0xa0] sm:$0xf]
        %v11123 = vld [vmem:[%s5 + $0xa4] sm:$0xf]
        %v11124 = vld [vmem:[%s5 + $0xa8] sm:$0xf]
        %v11125 = vld [vmem:[%s5 + $0xac] sm:$0xf]
        %v11126 = vld [vmem:[%s5 + $0xb0] sm:$0xf]
        %v11127 = vld [vmem:[%s5 + $0xb4] sm:$0xf]
        %v11128 = vld [vmem:[%s5 + $0xb8] sm:$0xf]
        %v11129 = vld [vmem:[%s5 + $0xbc] sm:$0xf]
        %v11130 = vld [vmem:[%s5 + $0xc0] sm:$0xf]
        %v11131 = vld [vmem:[%s5 + $0xc4] sm:$0xf]
        %v11132 = vld [vmem:[%s5 + $0xc8] sm:$0xf]
        %v11133 = vld [vmem:[%s5 + $0xcc] sm:$0xf]
        %v11134 = vld [vmem:[%s5 + $0xd0] sm:$0xf]
        %v11135 = vld [vmem:[%s5 + $0xd4] sm:$0xf]
        %v11136 = vld [vmem:[%s5 + $0xd8] sm:$0xf]
        %v11137 = vld [vmem:[%s5 + $0xdc] sm:$0xf]
        %v11138 = vld [vmem:[%s5 + $0xe0] sm:$0xf]
        %v11139 = vld [vmem:[%s5 + $0xe4] sm:$0xf]
        %v11140 = vld [vmem:[%s5 + $0xe8] sm:$0xf]
        %v11141 = vld [vmem:[%s5 + $0xec] sm:$0xf]
        %v11142 = vld [vmem:[%s5 + $0xf0] sm:$0xf]
        %v11143 = vld [vmem:[%s5 + $0xf4] sm:$0xf]
        %v11144 = vld [vmem:[%s5 + $0xf8] sm:$0xf]
        %v11145 = vld [vmem:[%s5 + $0xfc] sm:$0xf]
        %v11146 = vld [vmem:[%s5 + $0x100] sm:$0xf]
        %v11147 = vld [vmem:[%s5 + $0x104] sm:$0xf]
        %v11148 = vld [vmem:[%s5 + $0x108] sm:$0xf]
        %v11149 = vld [vmem:[%s5 + $0x10c] sm:$0xf]
        %v11150 = vld [vmem:[%s5 + $0x110] sm:$0xf]
        %v11151 = vld [vmem:[%s5 + $0x114] sm:$0xf]
        %v11152 = vld [vmem:[%s5 + $0x118] sm:$0xf]
        %v11153 = vld [vmem:[%s5 + $0x11c] sm:$0xf]
        %v11154 = vld [vmem:[%s5 + $0x120] sm:$0xf]
        %v11155 = vld [vmem:[%s5 + $0x124] sm:$0xf]
        %v11156 = vld [vmem:[%s5 + $0x128] sm:$0xf]
        %v11157 = vld [vmem:[%s5 + $0x12c] sm:$0xf]
        %v11158 = vld [vmem:[%s5 + $0x130] sm:$0xf]
        %v11159 = vld [vmem:[%s5 + $0x134] sm:$0xf]
        %v11160 = vld [vmem:[%s5 + $0x138] sm:$0xf]
        %v11161 = vld [vmem:[%s5 + $0x13c] sm:$0xf]
        %v11162 = vld [vmem:[%s5 + $0x140] sm:$0xf]
        %v11163 = vld [vmem:[%s5 + $0x144] sm:$0xf]
        %v11164 = vld [vmem:[%s5 + $0x148] sm:$0xf]
        %v11165 = vld [vmem:[%s5 + $0x14c] sm:$0xf]
        %v11166 = vld [vmem:[%s5 + $0x150] sm:$0xf]
        %v11167 = vld [vmem:[%s5 + $0x154] sm:$0xf]
        %v11168 = vld [vmem:[%s5 + $0x158] sm:$0xf]
        %v11169 = vld [vmem:[%s5 + $0x15c] sm:$0xf]
        %v11170 = vld [vmem:[%s5 + $0x160] sm:$0xf]
        %v11171 = vld [vmem:[%s5 + $0x164] sm:$0xf]
        %v11172 = vld [vmem:[%s5 + $0x168] sm:$0xf]
        %v11173 = vld [vmem:[%s5 + $0x16c] sm:$0xf]
        %v11174 = vld [vmem:[%s5 + $0x170] sm:$0xf]
        %v11175 = vld [vmem:[%s5 + $0x174] sm:$0xf]
        %v11176 = vld [vmem:[%s5 + $0x178] sm:$0xf]
        %v11177 = vld [vmem:[%s5 + $0x17c] sm:$0xf]
        %v11178 = vld [vmem:[%s5 + $0x180] sm:$0xf]
        %v11179 = vld [vmem:[%s5 + $0x184] sm:$0xf]
        %v11180 = vld [vmem:[%s5 + $0x188] sm:$0xf]
        %v11181 = vld [vmem:[%s5 + $0x18c] sm:$0xf]
        %v11182 = vld [vmem:[%s5 + $0x190] sm:$0xf]
        %v11183 = vld [vmem:[%s5 + $0x194] sm:$0xf]
        %v11184 = vld [vmem:[%s5 + $0x198] sm:$0xf]
        %v11185 = vld [vmem:[%s5 + $0x19c] sm:$0xf]
        %v11186 = vld [vmem:[%s5 + $0x1a0] sm:$0xf]
        %v11187 = vld [vmem:[%s5 + $0x1a4] sm:$0xf]
        %v11188 = vld [vmem:[%s5 + $0x1a8] sm:$0xf]
        %v11189 = vld [vmem:[%s5 + $0x1ac] sm:$0xf]
        %v11190 = vld [vmem:[%s5 + $0x1b0] sm:$0xf]
        %v11191 = vld [vmem:[%s5 + $0x1b4] sm:$0xf]
        %v11192 = vld [vmem:[%s5 + $0x1b8] sm:$0xf]
        %v11193 = vld [vmem:[%s5 + $0x1bc] sm:$0xf]
        %v11194 = vld [vmem:[%s5 + $0x1c0] sm:$0xf]
        %v11195 = vld [vmem:[%s5 + $0x1c4] sm:$0xf]
        %v11196 = vld [vmem:[%s5 + $0x1c8] sm:$0xf]
        %v11197 = vld [vmem:[%s5 + $0x1cc] sm:$0xf]
        %v11198 = vld [vmem:[%s5 + $0x1d0] sm:$0xf]
        %v11199 = vld [vmem:[%s5 + $0x1d4] sm:$0xf]
        %v11200 = vld [vmem:[%s5 + $0x1d8] sm:$0xf]
        %v11201 = vld [vmem:[%s5 + $0x1dc] sm:$0xf]
        %v11202 = vld [vmem:[%s5 + $0x1e0] sm:$0xf]
        %v11203 = vld [vmem:[%s5 + $0x1e4] sm:$0xf]
        %v11204 = vld [vmem:[%s5 + $0x1e8] sm:$0xf]
        %v11205 = vld [vmem:[%s5 + $0x1ec] sm:$0xf]
        %v11206 = vld [vmem:[%s5 + $0x1f0] sm:$0xf]
        %v11207 = vld [vmem:[%s5 + $0x1f4] sm:$0xf]
        %v11208 = vld [vmem:[%s5 + $0x1f8] sm:$0xf]
        %v11209 = vld [vmem:[%s5 + $0x1fc] sm:$0xf]
        %v11210 = vld [vmem:[%s5 + $0x200] sm:$0xf]
        %v11211 = vld [vmem:[%s5 + $0x204] sm:$0xf]
        %v11212 = vld [vmem:[%s5 + $0x208] sm:$0xf]
        %v11213 = vld [vmem:[%s5 + $0x20c] sm:$0xf]
        %v11214 = vld [vmem:[%s5 + $0x210] sm:$0xf]
        %v11215 = vld [vmem:[%s5 + $0x214] sm:$0xf]
        %v11216 = vld [vmem:[%s5 + $0x218] sm:$0xf]
        %v11217 = vld [vmem:[%s5 + $0x21c] sm:$0xf]
        %v11218 = vld [vmem:[%s5 + $0x220] sm:$0xf]
        %v11219 = vld [vmem:[%s5 + $0x224] sm:$0xf]
        %v11220 = vld [vmem:[%s5 + $0x228] sm:$0xf]
        %v11221 = vld [vmem:[%s5 + $0x22c] sm:$0xf]
        %v11222 = vld [vmem:[%s5 + $0x230] sm:$0xf]
        %v11223 = vld [vmem:[%s5 + $0x234] sm:$0xf]
        %v11224 = vld [vmem:[%s5 + $0x238] sm:$0xf]
        %v11225 = vld [vmem:[%s5 + $0x23c] sm:$0xf]
        %v11226 = vld [vmem:[%s6] sm:$0x1]
        %v11228 = vlaneseq
        %v11229 = vshrl.u32 %v11228, 7
        %v11230 = vsub.s32 0, %v11229
        %v11231 = vrot.slane %v11226, %v11230
        %v11377 = vunpack.c.l.b16 %v11082
        %v11378 = vunpack.c.l.b16 %v11083
        %v11379 = vunpack.c.l.b16 %v11084
        %v11380 = vunpack.c.l.b16 %v11085
        %v11381 = vunpack.c.l.b16 %v11086
        %v11382 = vunpack.c.l.b16 %v11087
        %v11383 = vunpack.c.l.b16 %v11088
        %v11384 = vunpack.c.l.b16 %v11089
        %v11385 = vunpack.c.l.b16 %v11090
        %v11386 = vunpack.c.l.b16 %v11091
        %v11387 = vunpack.c.l.b16 %v11092
        %v11388 = vunpack.c.l.b16 %v11093
        %v11389 = vunpack.c.l.b16 %v11094
        %v11390 = vunpack.c.l.b16 %v11095
        %v11391 = vunpack.c.l.b16 %v11096
        %v11392 = vunpack.c.l.b16 %v11097
        %v11393 = vunpack.c.l.b16 %v11098
        %v11394 = vunpack.c.l.b16 %v11099
        %v11395 = vunpack.c.l.b16 %v11100
        %v11396 = vunpack.c.l.b16 %v11101
        %v11397 = vunpack.c.l.b16 %v11102
        %v11398 = vunpack.c.l.b16 %v11103
        %v11399 = vunpack.c.l.b16 %v11104
        %v11400 = vunpack.c.l.b16 %v11105
        %v11401 = vunpack.c.l.b16 %v11106
        %v11402 = vunpack.c.l.b16 %v11107
        %v11403 = vunpack.c.l.b16 %v11108
        %v11404 = vunpack.c.l.b16 %v11109
        %v11405 = vunpack.c.l.b16 %v11110
        %v11406 = vunpack.c.l.b16 %v11111
        %v11407 = vunpack.c.l.b16 %v11112
        %v11408 = vunpack.c.l.b16 %v11113
        %v11409 = vunpack.c.l.b16 %v11114
        %v11410 = vunpack.c.l.b16 %v11115
        %v11411 = vunpack.c.l.b16 %v11116
        %v11412 = vunpack.c.l.b16 %v11117
        %v11413 = vunpack.c.l.b16 %v11118
        %v11414 = vunpack.c.l.b16 %v11119
        %v11415 = vunpack.c.l.b16 %v11120
        %v11416 = vunpack.c.l.b16 %v11121
        %v11417 = vunpack.c.l.b16 %v11122
        %v11418 = vunpack.c.l.b16 %v11123
        %v11419 = vunpack.c.l.b16 %v11124
        %v11420 = vunpack.c.l.b16 %v11125
        %v11421 = vunpack.c.l.b16 %v11126
        %v11422 = vunpack.c.l.b16 %v11127
        %v11423 = vunpack.c.l.b16 %v11128
        %v11424 = vunpack.c.l.b16 %v11129
        %v11425 = vunpack.c.l.b16 %v11130
        %v11426 = vunpack.c.l.b16 %v11131
        %v11427 = vunpack.c.l.b16 %v11132
        %v11428 = vunpack.c.l.b16 %v11133
        %v11429 = vunpack.c.l.b16 %v11134
        %v11430 = vunpack.c.l.b16 %v11135
        %v11431 = vunpack.c.l.b16 %v11136
        %v11432 = vunpack.c.l.b16 %v11137
        %v11433 = vunpack.c.l.b16 %v11138
        %v11434 = vunpack.c.l.b16 %v11139
        %v11435 = vunpack.c.l.b16 %v11140
        %v11436 = vunpack.c.l.b16 %v11141
        %v11437 = vunpack.c.l.b16 %v11142
        %v11438 = vunpack.c.l.b16 %v11143
        %v11439 = vunpack.c.l.b16 %v11144
        %v11440 = vunpack.c.l.b16 %v11145
        %v11441 = vunpack.c.l.b16 %v11146
        %v11442 = vunpack.c.l.b16 %v11147
        %v11443 = vunpack.c.l.b16 %v11148
        %v11444 = vunpack.c.l.b16 %v11149
        %v11445 = vunpack.c.l.b16 %v11150
        %v11446 = vunpack.c.l.b16 %v11151
        %v11447 = vunpack.c.l.b16 %v11152
        %v11448 = vunpack.c.l.b16 %v11153
        %v11449 = vunpack.c.l.b16 %v11154
        %v11450 = vunpack.c.l.b16 %v11155
        %v11451 = vunpack.c.l.b16 %v11156
        %v11452 = vunpack.c.l.b16 %v11157
        %v11453 = vunpack.c.l.b16 %v11158
        %v11454 = vunpack.c.l.b16 %v11159
        %v11455 = vunpack.c.l.b16 %v11160
        %v11456 = vunpack.c.l.b16 %v11161
        %v11457 = vunpack.c.l.b16 %v11162
        %v11458 = vunpack.c.l.b16 %v11163
        %v11459 = vunpack.c.l.b16 %v11164
        %v11460 = vunpack.c.l.b16 %v11165
        %v11461 = vunpack.c.l.b16 %v11166
        %v11462 = vunpack.c.l.b16 %v11167
        %v11463 = vunpack.c.l.b16 %v11168
        %v11464 = vunpack.c.l.b16 %v11169
        %v11465 = vunpack.c.l.b16 %v11170
        %v11466 = vunpack.c.l.b16 %v11171
        %v11467 = vunpack.c.l.b16 %v11172
        %v11468 = vunpack.c.l.b16 %v11173
        %v11469 = vunpack.c.l.b16 %v11174
        %v11470 = vunpack.c.l.b16 %v11175
        %v11471 = vunpack.c.l.b16 %v11176
        %v11472 = vunpack.c.l.b16 %v11177
        %v11473 = vunpack.c.l.b16 %v11178
        %v11474 = vunpack.c.l.b16 %v11179
        %v11475 = vunpack.c.l.b16 %v11180
        %v11476 = vunpack.c.l.b16 %v11181
        %v11477 = vunpack.c.l.b16 %v11182
        %v11478 = vunpack.c.l.b16 %v11183
        %v11479 = vunpack.c.l.b16 %v11184
        %v11480 = vunpack.c.l.b16 %v11185
        %v11481 = vunpack.c.l.b16 %v11186
        %v11482 = vunpack.c.l.b16 %v11187
        %v11483 = vunpack.c.l.b16 %v11188
        %v11484 = vunpack.c.l.b16 %v11189
        %v11485 = vunpack.c.l.b16 %v11190
        %v11486 = vunpack.c.l.b16 %v11191
        %v11487 = vunpack.c.l.b16 %v11192
        %v11488 = vunpack.c.l.b16 %v11193
        %v11489 = vunpack.c.l.b16 %v11194
        %v11490 = vunpack.c.l.b16 %v11195
        %v11491 = vunpack.c.l.b16 %v11196
        %v11492 = vunpack.c.l.b16 %v11197
        %v11493 = vunpack.c.l.b16 %v11198
        %v11494 = vunpack.c.l.b16 %v11199
        %v11495 = vunpack.c.l.b16 %v11200
        %v11496 = vunpack.c.l.b16 %v11201
        %v11497 = vunpack.c.l.b16 %v11202
        %v11498 = vunpack.c.l.b16 %v11203
        %v11499 = vunpack.c.l.b16 %v11204
        %v11500 = vunpack.c.l.b16 %v11205
        %v11501 = vunpack.c.l.b16 %v11206
        %v11502 = vunpack.c.l.b16 %v11207
        %v11503 = vunpack.c.l.b16 %v11208
        %v11504 = vunpack.c.l.b16 %v11209
        %v11505 = vunpack.c.l.b16 %v11210
        %v11506 = vunpack.c.l.b16 %v11211
        %v11507 = vunpack.c.l.b16 %v11212
        %v11508 = vunpack.c.l.b16 %v11213
        %v11509 = vunpack.c.l.b16 %v11214
        %v11510 = vunpack.c.l.b16 %v11215
        %v11511 = vunpack.c.l.b16 %v11216
        %v11512 = vunpack.c.l.b16 %v11217
        %v11513 = vunpack.c.l.b16 %v11218
        %v11514 = vunpack.c.l.b16 %v11219
        %v11515 = vunpack.c.l.b16 %v11220
        %v11516 = vunpack.c.l.b16 %v11221
        %v11517 = vunpack.c.l.b16 %v11222
        %v11518 = vunpack.c.l.b16 %v11223
        %v11519 = vunpack.c.l.b16 %v11224
        %v11520 = vunpack.c.l.b16 %v11225
        %v11521 = vpack.c.b16 %v11378, %v11377
        %v11522 = vpack.c.b16 %v11380, %v11379
        %v11523 = vpack.c.b16 %v11382, %v11381
        %v11524 = vpack.c.b16 %v11384, %v11383
        %v11525 = vpack.c.b16 %v11386, %v11385
        %v11526 = vpack.c.b16 %v11388, %v11387
        %v11527 = vpack.c.b16 %v11390, %v11389
        %v11528 = vpack.c.b16 %v11392, %v11391
        %v11529 = vpack.c.b16 %v11394, %v11393
        %v11530 = vpack.c.b16 %v11396, %v11395
        %v11531 = vpack.c.b16 %v11398, %v11397
        %v11532 = vpack.c.b16 %v11400, %v11399
        %v11533 = vpack.c.b16 %v11402, %v11401
        %v11534 = vpack.c.b16 %v11404, %v11403
        %v11535 = vpack.c.b16 %v11406, %v11405
        %v11536 = vpack.c.b16 %v11408, %v11407
        %v11537 = vpack.c.b16 %v11410, %v11409
        %v11538 = vpack.c.b16 %v11412, %v11411
        %v11539 = vpack.c.b16 %v11414, %v11413
        %v11540 = vpack.c.b16 %v11416, %v11415
        %v11541 = vpack.c.b16 %v11418, %v11417
        %v11542 = vpack.c.b16 %v11420, %v11419
        %v11543 = vpack.c.b16 %v11422, %v11421
        %v11544 = vpack.c.b16 %v11424, %v11423
        %v11545 = vpack.c.b16 %v11426, %v11425
        %v11546 = vpack.c.b16 %v11428, %v11427
        %v11547 = vpack.c.b16 %v11430, %v11429
        %v11548 = vpack.c.b16 %v11432, %v11431
        %v11549 = vpack.c.b16 %v11434, %v11433
        %v11550 = vpack.c.b16 %v11436, %v11435
        %v11551 = vpack.c.b16 %v11438, %v11437
        %v11552 = vpack.c.b16 %v11440, %v11439
        %v11553 = vpack.c.b16 %v11442, %v11441
        %v11554 = vpack.c.b16 %v11444, %v11443
        %v11555 = vpack.c.b16 %v11446, %v11445
        %v11556 = vpack.c.b16 %v11448, %v11447
        %v11557 = vpack.c.b16 %v11450, %v11449
        %v11558 = vpack.c.b16 %v11452, %v11451
        %v11559 = vpack.c.b16 %v11454, %v11453
        %v11560 = vpack.c.b16 %v11456, %v11455
        %v11561 = vpack.c.b16 %v11458, %v11457
        %v11562 = vpack.c.b16 %v11460, %v11459
        %v11563 = vpack.c.b16 %v11462, %v11461
        %v11564 = vpack.c.b16 %v11464, %v11463
        %v11565 = vpack.c.b16 %v11466, %v11465
        %v11566 = vpack.c.b16 %v11468, %v11467
        %v11567 = vpack.c.b16 %v11470, %v11469
        %v11568 = vpack.c.b16 %v11472, %v11471
        %v11569 = vpack.c.b16 %v11474, %v11473
        %v11570 = vpack.c.b16 %v11476, %v11475
        %v11571 = vpack.c.b16 %v11478, %v11477
        %v11572 = vpack.c.b16 %v11480, %v11479
        %v11573 = vpack.c.b16 %v11482, %v11481
        %v11574 = vpack.c.b16 %v11484, %v11483
        %v11575 = vpack.c.b16 %v11486, %v11485
        %v11576 = vpack.c.b16 %v11488, %v11487
        %v11577 = vpack.c.b16 %v11490, %v11489
        %v11578 = vpack.c.b16 %v11492, %v11491
        %v11579 = vpack.c.b16 %v11494, %v11493
        %v11580 = vpack.c.b16 %v11496, %v11495
        %v11581 = vpack.c.b16 %v11498, %v11497
        %v11582 = vpack.c.b16 %v11500, %v11499
        %v11583 = vpack.c.b16 %v11502, %v11501
        %v11584 = vpack.c.b16 %v11504, %v11503
        %v11585 = vpack.c.b16 %v11506, %v11505
        %v11586 = vpack.c.b16 %v11508, %v11507
        %v11587 = vpack.c.b16 %v11510, %v11509
        %v11588 = vpack.c.b16 %v11512, %v11511
        %v11589 = vpack.c.b16 %v11514, %v11513
        %v11590 = vpack.c.b16 %v11516, %v11515
        %v11591 = vpack.c.b16 %v11518, %v11517
        %v11592 = vpack.c.b16 %v11520, %v11519
        %11665 = vmatprep.subr.bf16.mxu0 0
        %11666 = vmatpush1.bf16.msra.mxu0 %v11521
        %11667 = vmatprep.subr.bf16.mxu0 0
        %11668 = vmatpush1.bf16.msra.mxu0 %v11522
        %11669 = vmatprep.subr.bf16.mxu0 0
        %11670 = vmatpush1.bf16.msra.mxu0 %v11523
        %11671 = vmatprep.subr.bf16.mxu0 0
        %11672 = vmatpush1.bf16.msra.mxu0 %v11524
        %11673 = vmatprep.subr.bf16.mxu0 0
        %11674 = vmatpush1.bf16.msra.mxu0 %v11525
        %11675 = vmatprep.subr.bf16.mxu0 0
        %11676 = vmatpush1.bf16.msra.mxu0 %v11526
        %11677 = vmatprep.subr.bf16.mxu0 0
        %11678 = vmatpush1.bf16.msra.mxu0 %v11527
        %11679 = vmatprep.subr.bf16.mxu0 0
        %11680 = vmatpush1.bf16.msra.mxu0 %v11528
        %11681 = vmatprep.subr.bf16.mxu0 0
        %11682 = vmatpush1.bf16.msra.mxu0 %v11529
        %11683 = vmatprep.subr.bf16.mxu0 0
        %11684 = vmatpush1.bf16.msra.mxu0 %v11530
        %11685 = vmatprep.subr.bf16.mxu0 0
        %11686 = vmatpush1.bf16.msra.mxu0 %v11531
        %11687 = vmatprep.subr.bf16.mxu0 0
        %11688 = vmatpush1.bf16.msra.mxu0 %v11532
        %11689 = vmatprep.subr.bf16.mxu0 0
        %11690 = vmatpush1.bf16.msra.mxu0 %v11533
        %11691 = vmatprep.subr.bf16.mxu0 0
        %11692 = vmatpush1.bf16.msra.mxu0 %v11534
        %11693 = vmatprep.subr.bf16.mxu0 0
        %11694 = vmatpush1.bf16.msra.mxu0 %v11535
        %11695 = vmatprep.subr.bf16.mxu0 0
        %11696 = vmatpush1.bf16.msra.mxu0 %v11536
        %11697 = vmatprep.mubr.bf16.mxu0 %v10538
        %11698 = vmatmul.mubr.bf16.gmra.mrb[0].mxu0 %v10474
        %v11699 = vpop.f32.mrb[0].mxu0
        %v11700 = vadd.f32 %v11231, %v11699
        %v11701 = vpop.f32.mrb[0].mxu0
        %v11702 = vpop.f32.mrb[0].mxu0
        %v11703 = vadd.f32 %v11231, %v11702
        %v11704 = vpop.f32.mrb[0].mxu0
        %11705 = vmatprep.mubr.bf16.mxu0 %v10539
        %11706 = vmatmul.mubr.bf16.gmra.mrb[0].mxu0 %v10475
        %v11707 = vpop.f32.mrb[0].mxu0
        %v11708 = vadd.f32 %v11231, %v11707
        %v11709 = vpop.f32.mrb[0].mxu0
        %v11710 = vpop.f32.mrb[0].mxu0
        %v11711 = vadd.f32 %v11231, %v11710
        %v11712 = vpop.f32.mrb[0].mxu0
        %11713 = vmatprep.mubr.bf16.mxu0 %v10540
        %11714 = vmatmul.mubr.bf16.gmra.mrb[0].mxu0 %v10476
        %v11715 = vpop.f32.mrb[0].mxu0
        %v11716 = vadd.f32 %v11231, %v11715
        %v11717 = vpop.f32.mrb[0].mxu0
        %v11718 = vpop.f32.mrb[0].mxu0
        %v11719 = vadd.f32 %v11231, %v11718
        %v11720 = vpop.f32.mrb[0].mxu0
        %11721 = vmatprep.mubr.bf16.mxu0 %v10541
        %11722 = vmatmul.mubr.bf16.gmra.mrb[0].mxu0 %v10477
        %v11723 = vpop.f32.mrb[0].mxu0
        %v11724 = vadd.f32 %v11231, %v11723
        %v11725 = vpop.f32.mrb[0].mxu0
        %v11726 = vpop.f32.mrb[0].mxu0
        %v11727 = vadd.f32 %v11231, %v11726
        %v11728 = vpop.f32.mrb[0].mxu0
        %11729 = vmatprep.mubr.bf16.mxu0 %v10542
        %11730 = vmatmul.mubr.bf16.gmra.mrb[0].mxu0 %v10478
        %v11731 = vpop.f32.mrb[0].mxu0
        %v11732 = vadd.f32 %v11231, %v11731
        %v11733 = vpop.f32.mrb[0].mxu0
        %v11734 = vpop.f32.mrb[0].mxu0
        %v11735 = vadd.f32 %v11231, %v11734
        %v11736 = vpop.f32.mrb[0].mxu0
        %11737 = vmatprep.mubr.bf16.mxu0 %v10543
        %11738 = vmatmul.mubr.bf16.gmra.mrb[0].mxu0 %v10479
        %v11739 = vpop.f32.mrb[0].mxu0
        %v11740 = vadd.f32 %v11231, %v11739
        %v11741 = vpop.f32.mrb[0].mxu0
        %v11742 = vpop.f32.mrb[0].mxu0
        %v11743 = vadd.f32 %v11231, %v11742
        %v11744 = vpop.f32.mrb[0].mxu0
        %11745 = vmatprep.mubr.bf16.mxu0 %v10544
        %11746 = vmatmul.mubr.bf16.gmra.mrb[0].mxu0 %v10480
        %v11747 = vpop.f32.mrb[0].mxu0
        %v11748 = vadd.f32 %v11231, %v11747
        %v11749 = vpop.f32.mrb[0].mxu0
        %v11750 = vpop.f32.mrb[0].mxu0
        %v11751 = vadd.f32 %v11231, %v11750
        %v11752 = vpop.f32.mrb[0].mxu0
        %11753 = vmatprep.mubr.bf16.mxu0 %v10545
        %11754 = vmatmul.mubr.bf16.gmra.mrb[0].mxu0 %v10481
        %v11755 = vpop.f32.mrb[0].mxu0
        %v11756 = vadd.f32 %v11231, %v11755
        %v11757 = vpop.f32.mrb[0].mxu0
        %v11758 = vpop.f32.mrb[0].mxu0
        %v11759 = vadd.f32 %v11231, %v11758
        %v11760 = vpop.f32.mrb[0].mxu0
        %11761 = vmatprep.mubr.bf16.mxu0 %v10546
        %11762 = vmatmul.mubr.bf16.gmra.mrb[0].mxu0 %v10482
        %v11763 = vpop.f32.mrb[0].mxu0
        %v11764 = vadd.f32 %v11231, %v11763
        %v11765 = vpop.f32.mrb[0].mxu0
        %v11766 = vpop.f32.mrb[0].mxu0
        %v11767 = vadd.f32 %v11231, %v11766
        %v11768 = vpop.f32.mrb[0].mxu0
        %11769 = vmatprep.mubr.bf16.mxu0 %v10547
        %11770 = vmatmul.mubr.bf16.gmra.mrb[0].mxu0 %v10483
        %v11771 = vpop.f32.mrb[0].mxu0
        %v11772 = vadd.f32 %v11231, %v11771
        %v11773 = vpop.f32.mrb[0].mxu0
        %v11774 = vpop.f32.mrb[0].mxu0
        %v11775 = vadd.f32 %v11231, %v11774
        %v11776 = vpop.f32.mrb[0].mxu0
        %11777 = vmatprep.mubr.bf16.mxu0 %v10548
        %11778 = vmatmul.mubr.bf16.gmra.mrb[0].mxu0 %v10484
        %v11779 = vpop.f32.mrb[0].mxu0
        %v11780 = vadd.f32 %v11231, %v11779
        %v11781 = vpop.f32.mrb[0].mxu0
        %v11782 = vpop.f32.mrb[0].mxu0
        %v11783 = vadd.f32 %v11231, %v11782
        %v11784 = vpop.f32.mrb[0].mxu0
        %11785 = vmatprep.mubr.bf16.mxu0 %v10549
        %11786 = vmatmul.mubr.bf16.gmra.mrb[0].mxu0 %v10485
        %v11787 = vpop.f32.mrb[0].mxu0
        %v11788 = vadd.f32 %v11231, %v11787
        %v11789 = vpop.f32.mrb[0].mxu0
        %v11790 = vpop.f32.mrb[0].mxu0
        %v11791 = vadd.f32 %v11231, %v11790
        %v11792 = vpop.f32.mrb[0].mxu0
        %11793 = vmatprep.mubr.bf16.mxu0 %v10550
        %11794 = vmatmul.mubr.bf16.gmra.mrb[0].mxu0 %v10486
        %v11795 = vpop.f32.mrb[0].mxu0
        %v11796 = vadd.f32 %v11231, %v11795
        %v11797 = vpop.f32.mrb[0].mxu0
        %v11798 = vpop.f32.mrb[0].mxu0
        %v11799 = vadd.f32 %v11231, %v11798
        %v11800 = vpop.f32.mrb[0].mxu0
        %11801 = vmatprep.mubr.bf16.mxu0 %v10551
        %11802 = vmatmul.mubr.bf16.gmra.mrb[0].mxu0 %v10487
        %v11803 = vpop.f32.mrb[0].mxu0
        %v11804 = vadd.f32 %v11231, %v11803
        %v11805 = vpop.f32.mrb[0].mxu0
        %v11806 = vpop.f32.mrb[0].mxu0
        %v11807 = vadd.f32 %v11231, %v11806
        %v11808 = vpop.f32.mrb[0].mxu0
        %11809 = vmatprep.mubr.bf16.mxu0 %v10552
        %11810 = vmatmul.mubr.bf16.gmra.mrb[0].mxu0 %v10488
        %v11811 = vpop.f32.mrb[0].mxu0
        %v11812 = vadd.f32 %v11231, %v11811
        %v11813 = vpop.f32.mrb[0].mxu0
        %v11814 = vpop.f32.mrb[0].mxu0
        %v11815 = vadd.f32 %v11231, %v11814
        %v11816 = vpop.f32.mrb[0].mxu0
        %11817 = vmatprep.mubr.bf16.mxu0 %v10553
        %11818 = vmatmul.mubr.bf16.gmra.mrb[0].mxu0 %v10489
        %v11819 = vpop.f32.mrb[0].mxu0
        %v11820 = vadd.f32 %v11231, %v11819
        %v11821 = vpop.f32.mrb[0].mxu0
        %v11822 = vpop.f32.mrb[0].mxu0
        %v11823 = vadd.f32 %v11231, %v11822
        %v11824 = vpop.f32.mrb[0].mxu0
        %11825 = vdwg.mxu0
        %11826 = vmatprep.subr.bf16.mxu0 0
        %11827 = vmatpush1.bf16.msra.mxu0 %v11537
        %11828 = vmatprep.subr.bf16.mxu0 0
        %11829 = vmatpush1.bf16.msra.mxu0 %v11538
        %11830 = vmatprep.subr.bf16.mxu0 0
        %11831 = vmatpush1.bf16.msra.mxu0 %v11539
        %11832 = vmatprep.subr.bf16.mxu0 0
        %11833 = vmatpush1.bf16.msra.mxu0 %v11540
        %11834 = vmatprep.subr.bf16.mxu0 0
        %11835 = vmatpush1.bf16.msra.mxu0 %v11541
        %11836 = vmatprep.subr.bf16.mxu0 0
        %11837 = vmatpush1.bf16.msra.mxu0 %v11542
        %11838 = vmatprep.subr.bf16.mxu0 0
        %11839 = vmatpush1.bf16.msra.mxu0 %v11543
        %11840 = vmatprep.subr.bf16.mxu0 0
        %11841 = vmatpush1.bf16.msra.mxu0 %v11544
        %11842 = vmatprep.subr.bf16.mxu0 0
        %11843 = vmatpush1.bf16.msra.mxu0 %v11545
        %11844 = vmatprep.subr.bf16.mxu0 0
        %11845 = vmatpush1.bf16.msra.mxu0 %v11546
        %11846 = vmatprep.subr.bf16.mxu0 0
        %11847 = vmatpush1.bf16.msra.mxu0 %v11547
        %11848 = vmatprep.subr.bf16.mxu0 0
        %11849 = vmatpush1.bf16.msra.mxu0 %v11548
        %11850 = vmatprep.subr.bf16.mxu0 0
        %11851 = vmatpush1.bf16.msra.mxu0 %v11549
        %11852 = vmatprep.subr.bf16.mxu0 0
        %11853 = vmatpush1.bf16.msra.mxu0 %v11550
        %11854 = vmatprep.subr.bf16.mxu0 0
        %11855 = vmatpush1.bf16.msra.mxu0 %v11551
        %11856 = vmatprep.subr.bf16.mxu0 0
        %11857 = vmatpush1.bf16.msra.mxu0 %v11552
        %11858 = vmatprep.mubr.bf16.mxu0 %v10698
        %11859 = vmatmul.mubr.bf16.gmra.mrb[0].mxu0 %v10602
        %v11860 = vpop.f32.mrb[0].mxu0
        %v11861 = vadd.f32 %v11700, %v11860
        %v11862 = vpop.f32.mrb[0].mxu0
        %v11863 = vpop.f32.mrb[0].mxu0
        %v11864 = vadd.f32 %v11703, %v11863
        %v11865 = vpop.f32.mrb[0].mxu0
        %11866 = vmatprep.mubr.bf16.mxu0 %v10699
        %11867 = vmatmul.mubr.bf16.gmra.mrb[0].mxu0 %v10603
        %v11868 = vpop.f32.mrb[0].mxu0
        %v11869 = vadd.f32 %v11708, %v11868
        %v11870 = vpop.f32.mrb[0].mxu0
        %v11871 = vpop.f32.mrb[0].mxu0
        %v11872 = vadd.f32 %v11711, %v11871
        %v11873 = vpop.f32.mrb[0].mxu0
        %11874 = vmatprep.mubr.bf16.mxu0 %v10700
        %11875 = vmatmul.mubr.bf16.gmra.mrb[0].mxu0 %v10604
        %v11876 = vpop.f32.mrb[0].mxu0
        %v11877 = vadd.f32 %v11716, %v11876
        %v11878 = vpop.f32.mrb[0].mxu0
        %v11879 = vpop.f32.mrb[0].mxu0
        %v11880 = vadd.f32 %v11719, %v11879
        %v11881 = vpop.f32.mrb[0].mxu0
        %11882 = vmatprep.mubr.bf16.mxu0 %v10701
        %11883 = vmatmul.mubr.bf16.gmra.mrb[0].mxu0 %v10605
        %v11884 = vpop.f32.mrb[0].mxu0
        %v11885 = vadd.f32 %v11724, %v11884
        %v11886 = vpop.f32.mrb[0].mxu0
        %v11887 = vpop.f32.mrb[0].mxu0
        %v11888 = vadd.f32 %v11727, %v11887
        %v11889 = vpop.f32.mrb[0].mxu0
        %11890 = vmatprep.mubr.bf16.mxu0 %v10702
        %11891 = vmatmul.mubr.bf16.gmra.mrb[0].mxu0 %v10606
        %v11892 = vpop.f32.mrb[0].mxu0
        %v11893 = vadd.f32 %v11732, %v11892
        %v11894 = vpop.f32.mrb[0].mxu0
        %v11895 = vpop.f32.mrb[0].mxu0
        %v11896 = vadd.f32 %v11735, %v11895
        %v11897 = vpop.f32.mrb[0].mxu0
        %11898 = vmatprep.mubr.bf16.mxu0 %v10703
        %11899 = vmatmul.mubr.bf16.gmra.mrb[0].mxu0 %v10607
        %v11900 = vpop.f32.mrb[0].mxu0
        %v11901 = vadd.f32 %v11740, %v11900
        %v11902 = vpop.f32.mrb[0].mxu0
        %v11903 = vpop.f32.mrb[0].mxu0
        %v11904 = vadd.f32 %v11743, %v11903
        %v11905 = vpop.f32.mrb[0].mxu0
        %11906 = vmatprep.mubr.bf16.mxu0 %v10704
        %11907 = vmatmul.mubr.bf16.gmra.mrb[0].mxu0 %v10608
        %v11908 = vpop.f32.mrb[0].mxu0
        %v11909 = vadd.f32 %v11748, %v11908
        %v11910 = vpop.f32.mrb[0].mxu0
        %v11911 = vpop.f32.mrb[0].mxu0
        %v11912 = vadd.f32 %v11751, %v11911
        %v11913 = vpop.f32.mrb[0].mxu0
        %11914 = vmatprep.mubr.bf16.mxu0 %v10705
        %11915 = vmatmul.mubr.bf16.gmra.mrb[0].mxu0 %v10609
        %v11916 = vpop.f32.mrb[0].mxu0
        %v11917 = vadd.f32 %v11756, %v11916
        %v11918 = vpop.f32.mrb[0].mxu0
        %v11919 = vpop.f32.mrb[0].mxu0
        %v11920 = vadd.f32 %v11759, %v11919
        %v11921 = vpop.f32.mrb[0].mxu0
        %11922 = vmatprep.mubr.bf16.mxu0 %v10706
        %11923 = vmatmul.mubr.bf16.gmra.mrb[0].mxu0 %v10610
        %v11924 = vpop.f32.mrb[0].mxu0
        %v11925 = vadd.f32 %v11764, %v11924
        %v11926 = vpop.f32.mrb[0].mxu0
        %v11927 = vpop.f32.mrb[0].mxu0
        %v11928 = vadd.f32 %v11767, %v11927
        %v11929 = vpop.f32.mrb[0].mxu0
        %11930 = vmatprep.mubr.bf16.mxu0 %v10707
        %11931 = vmatmul.mubr.bf16.gmra.mrb[0].mxu0 %v10611
        %v11932 = vpop.f32.mrb[0].mxu0
        %v11933 = vadd.f32 %v11772, %v11932
        %v11934 = vpop.f32.mrb[0].mxu0
        %v11935 = vpop.f32.mrb[0].mxu0
        %v11936 = vadd.f32 %v11775, %v11935
        %v11937 = vpop.f32.mrb[0].mxu0
        %11938 = vmatprep.mubr.bf16.mxu0 %v10708
        %11939 = vmatmul.mubr.bf16.gmra.mrb[0].mxu0 %v10612
        %v11940 = vpop.f32.mrb[0].mxu0
        %v11941 = vadd.f32 %v11780, %v11940
        %v11942 = vpop.f32.mrb[0].mxu0
        %v11943 = vpop.f32.mrb[0].mxu0
        %v11944 = vadd.f32 %v11783, %v11943
        %v11945 = vpop.f32.mrb[0].mxu0
        %11946 = vmatprep.mubr.bf16.mxu0 %v10709
        %11947 = vmatmul.mubr.bf16.gmra.mrb[0].mxu0 %v10613
        %v11948 = vpop.f32.mrb[0].mxu0
        %v11949 = vadd.f32 %v11788, %v11948
        %v11950 = vpop.f32.mrb[0].mxu0
        %v11951 = vpop.f32.mrb[0].mxu0
        %v11952 = vadd.f32 %v11791, %v11951
        %v11953 = vpop.f32.mrb[0].mxu0
        %11954 = vmatprep.mubr.bf16.mxu0 %v10710
        %11955 = vmatmul.mubr.bf16.gmra.mrb[0].mxu0 %v10614
        %v11956 = vpop.f32.mrb[0].mxu0
        %v11957 = vadd.f32 %v11796, %v11956
        %v11958 = vpop.f32.mrb[0].mxu0
        %v11959 = vpop.f32.mrb[0].mxu0
        %v11960 = vadd.f32 %v11799, %v11959
        %v11961 = vpop.f32.mrb[0].mxu0
        %11962 = vmatprep.mubr.bf16.mxu0 %v10711
        %11963 = vmatmul.mubr.bf16.gmra.mrb[0].mxu0 %v10615
        %v11964 = vpop.f32.mrb[0].mxu0
        %v11965 = vadd.f32 %v11804, %v11964
        %v11966 = vpop.f32.mrb[0].mxu0
        %v11967 = vpop.f32.mrb[0].mxu0
        %v11968 = vadd.f32 %v11807, %v11967
        %v11969 = vpop.f32.mrb[0].mxu0
        %11970 = vmatprep.mubr.bf16.mxu0 %v10712
        %11971 = vmatmul.mubr.bf16.gmra.mrb[0].mxu0 %v10616
        %v11972 = vpop.f32.mrb[0].mxu0
        %v11973 = vadd.f32 %v11812, %v11972
        %v11974 = vpop.f32.mrb[0].mxu0
        %v11975 = vpop.f32.mrb[0].mxu0
        %v11976 = vadd.f32 %v11815, %v11975
        %v11977 = vpop.f32.mrb[0].mxu0
        %11978 = vmatprep.mubr.bf16.mxu0 %v10713
        %11979 = vmatmul.mubr.bf16.gmra.mrb[0].mxu0 %v10617
        %v11980 = vpop.f32.mrb[0].mxu0
        %v11981 = vadd.f32 %v11820, %v11980
        %v11982 = vpop.f32.mrb[0].mxu0
        %v11983 = vpop.f32.mrb[0].mxu0
        %v11984 = vadd.f32 %v11823, %v11983
        %v11985 = vpop.f32.mrb[0].mxu0
        %11986 = vdwg.mxu0
        %11987 = vmatprep.subr.bf16.mxu0 0
        %11988 = vmatpush1.bf16.msra.mxu0 %v11553
        %11989 = vmatprep.subr.bf16.mxu0 0
        %11990 = vmatpush1.bf16.msra.mxu0 %v11554
        %11991 = vmatprep.subr.bf16.mxu0 0
        %11992 = vmatpush1.bf16.msra.mxu0 %v11555
        %11993 = vmatprep.subr.bf16.mxu0 0
        %11994 = vmatpush1.bf16.msra.mxu0 %v11556
        %11995 = vmatprep.subr.bf16.mxu0 0
        %11996 = vmatpush1.bf16.msra.mxu0 %v11557
        %11997 = vmatprep.subr.bf16.mxu0 0
        %11998 = vmatpush1.bf16.msra.mxu0 %v11558
        %11999 = vmatprep.subr.bf16.mxu0 0
        %12000 = vmatpush1.bf16.msra.mxu0 %v11559
        %12001 = vmatprep.subr.bf16.mxu0 0
        %12002 = vmatpush1.bf16.msra.mxu0 %v11560
        %12003 = vmatprep.subr.bf16.mxu0 0
        %12004 = vmatpush1.bf16.msra.mxu0 %v11561
        %12005 = vmatprep.subr.bf16.mxu0 0
        %12006 = vmatpush1.bf16.msra.mxu0 %v11562
        %12007 = vmatprep.subr.bf16.mxu0 0
        %12008 = vmatpush1.bf16.msra.mxu0 %v11563
        %12009 = vmatprep.subr.bf16.mxu0 0
        %12010 = vmatpush1.bf16.msra.mxu0 %v11564
        %12011 = vmatprep.subr.bf16.mxu0 0
        %12012 = vmatpush1.bf16.msra.mxu0 %v11565
        %12013 = vmatprep.subr.bf16.mxu0 0
        %12014 = vmatpush1.bf16.msra.mxu0 %v11566
        %12015 = vmatprep.subr.bf16.mxu0 0
        %12016 = vmatpush1.bf16.msra.mxu0 %v11567
        %12017 = vmatprep.subr.bf16.mxu0 0
        %12018 = vmatpush1.bf16.msra.mxu0 %v11568
        %12019 = vmatprep.mubr.bf16.mxu0 %v10826
        %12020 = vmatmul.mubr.bf16.gmra.mrb[0].mxu0 %v10762
        %v12021 = vpop.f32.mrb[0].mxu0
        %v12022 = vadd.f32 %v11861, %v12021
        %v12023 = vpop.f32.mrb[0].mxu0
        %v12024 = vpop.f32.mrb[0].mxu0
        %v12025 = vadd.f32 %v11864, %v12024
        %v12026 = vpop.f32.mrb[0].mxu0
        %12027 = vmatprep.mubr.bf16.mxu0 %v10827
        %12028 = vmatmul.mubr.bf16.gmra.mrb[0].mxu0 %v10763
        %v12029 = vpop.f32.mrb[0].mxu0
        %v12030 = vadd.f32 %v11869, %v12029
        %v12031 = vpop.f32.mrb[0].mxu0
        %v12032 = vpop.f32.mrb[0].mxu0
        %v12033 = vadd.f32 %v11872, %v12032
        %v12034 = vpop.f32.mrb[0].mxu0
        %12035 = vmatprep.mubr.bf16.mxu0 %v10828
        %12036 = vmatmul.mubr.bf16.gmra.mrb[0].mxu0 %v10764
        %v12037 = vpop.f32.mrb[0].mxu0
        %v12038 = vadd.f32 %v11877, %v12037
        %v12039 = vpop.f32.mrb[0].mxu0
        %v12040 = vpop.f32.mrb[0].mxu0
        %v12041 = vadd.f32 %v11880, %v12040
        %v12042 = vpop.f32.mrb[0].mxu0
        %12043 = vmatprep.mubr.bf16.mxu0 %v10829
        %12044 = vmatmul.mubr.bf16.gmra.mrb[0].mxu0 %v10765
        %v12045 = vpop.f32.mrb[0].mxu0
        %v12046 = vadd.f32 %v11885, %v12045
        %v12047 = vpop.f32.mrb[0].mxu0
        %v12048 = vpop.f32.mrb[0].mxu0
        %v12049 = vadd.f32 %v11888, %v12048
        %v12050 = vpop.f32.mrb[0].mxu0
        %12051 = vmatprep.mubr.bf16.mxu0 %v10830
        %12052 = vmatmul.mubr.bf16.gmra.mrb[0].mxu0 %v10766
        %v12053 = vpop.f32.mrb[0].mxu0
        %v12054 = vadd.f32 %v11893, %v12053
        %v12055 = vpop.f32.mrb[0].mxu0
        %v12056 = vpop.f32.mrb[0].mxu0
        %v12057 = vadd.f32 %v11896, %v12056
        %v12058 = vpop.f32.mrb[0].mxu0
        %12059 = vmatprep.mubr.bf16.mxu0 %v10831
        %12060 = vmatmul.mubr.bf16.gmra.mrb[0].mxu0 %v10767
        %v12061 = vpop.f32.mrb[0].mxu0
        %v12062 = vadd.f32 %v11901, %v12061
        %v12063 = vpop.f32.mrb[0].mxu0
        %v12064 = vpop.f32.mrb[0].mxu0
        %v12065 = vadd.f32 %v11904, %v12064
        %v12066 = vpop.f32.mrb[0].mxu0
        %12067 = vmatprep.mubr.bf16.mxu0 %v10832
        %12068 = vmatmul.mubr.bf16.gmra.mrb[0].mxu0 %v10768
        %v12069 = vpop.f32.mrb[0].mxu0
        %v12070 = vadd.f32 %v11909, %v12069
        %v12071 = vpop.f32.mrb[0].mxu0
        %v12072 = vpop.f32.mrb[0].mxu0
        %v12073 = vadd.f32 %v11912, %v12072
        %v12074 = vpop.f32.mrb[0].mxu0
        %12075 = vmatprep.mubr.bf16.mxu0 %v10833
        %12076 = vmatmul.mubr.bf16.gmra.mrb[0].mxu0 %v10769
        %v12077 = vpop.f32.mrb[0].mxu0
        %v12078 = vadd.f32 %v11917, %v12077
        %v12079 = vpop.f32.mrb[0].mxu0
        %v12080 = vpop.f32.mrb[0].mxu0
        %v12081 = vadd.f32 %v11920, %v12080
        %v12082 = vpop.f32.mrb[0].mxu0
        %12083 = vmatprep.mubr.bf16.mxu0 %v10834
        %12084 = vmatmul.mubr.bf16.gmra.mrb[0].mxu0 %v10770
        %v12085 = vpop.f32.mrb[0].mxu0
        %v12086 = vadd.f32 %v11925, %v12085
        %v12087 = vpop.f32.mrb[0].mxu0
        %v12088 = vpop.f32.mrb[0].mxu0
        %v12089 = vadd.f32 %v11928, %v12088
        %v12090 = vpop.f32.mrb[0].mxu0
        %12091 = vmatprep.mubr.bf16.mxu0 %v10835
        %12092 = vmatmul.mubr.bf16.gmra.mrb[0].mxu0 %v10771
        %v12093 = vpop.f32.mrb[0].mxu0
        %v12094 = vadd.f32 %v11933, %v12093
        %v12095 = vpop.f32.mrb[0].mxu0
        %v12096 = vpop.f32.mrb[0].mxu0
        %v12097 = vadd.f32 %v11936, %v12096
        %v12098 = vpop.f32.mrb[0].mxu0
        %12099 = vmatprep.mubr.bf16.mxu0 %v10836
        %12100 = vmatmul.mubr.bf16.gmra.mrb[0].mxu0 %v10772
        %v12101 = vpop.f32.mrb[0].mxu0
        %v12102 = vadd.f32 %v11941, %v12101
        %v12103 = vpop.f32.mrb[0].mxu0
        %v12104 = vpop.f32.mrb[0].mxu0
        %v12105 = vadd.f32 %v11944, %v12104
        %v12106 = vpop.f32.mrb[0].mxu0
        %12107 = vmatprep.mubr.bf16.mxu0 %v10837
        %12108 = vmatmul.mubr.bf16.gmra.mrb[0].mxu0 %v10773
        %v12109 = vpop.f32.mrb[0].mxu0
        %v12110 = vadd.f32 %v11949, %v12109
        %v12111 = vpop.f32.mrb[0].mxu0
        %v12112 = vpop.f32.mrb[0].mxu0
        %v12113 = vadd.f32 %v11952, %v12112
        %v12114 = vpop.f32.mrb[0].mxu0
        %12115 = vmatprep.mubr.bf16.mxu0 %v10838
        %12116 = vmatmul.mubr.bf16.gmra.mrb[0].mxu0 %v10774
        %v12117 = vpop.f32.mrb[0].mxu0
        %v12118 = vadd.f32 %v11957, %v12117
        %v12119 = vpop.f32.mrb[0].mxu0
        %v12120 = vpop.f32.mrb[0].mxu0
        %v12121 = vadd.f32 %v11960, %v12120
        %v12122 = vpop.f32.mrb[0].mxu0
        %12123 = vmatprep.mubr.bf16.mxu0 %v10839
        %12124 = vmatmul.mubr.bf16.gmra.mrb[0].mxu0 %v10775
        %v12125 = vpop.f32.mrb[0].mxu0
        %v12126 = vadd.f32 %v11965, %v12125
        %v12127 = vpop.f32.mrb[0].mxu0
        %v12128 = vpop.f32.mrb[0].mxu0
        %v12129 = vadd.f32 %v11968, %v12128
        %v12130 = vpop.f32.mrb[0].mxu0
        %12131 = vmatprep.mubr.bf16.mxu0 %v10840
        %12132 = vmatmul.mubr.bf16.gmra.mrb[0].mxu0 %v10776
        %v12133 = vpop.f32.mrb[0].mxu0
        %v12134 = vadd.f32 %v11973, %v12133
        %v12135 = vpop.f32.mrb[0].mxu0
        %v12136 = vpop.f32.mrb[0].mxu0
        %v12137 = vadd.f32 %v11976, %v12136
        %v12138 = vpop.f32.mrb[0].mxu0
        %12139 = vmatprep.mubr.bf16.mxu0 %v10841
        %12140 = vmatmul.mubr.bf16.gmra.mrb[0].mxu0 %v10777
        %v12141 = vpop.f32.mrb[0].mxu0
        %v12142 = vadd.f32 %v11981, %v12141
        %v12143 = vpop.f32.mrb[0].mxu0
        %v12144 = vpop.f32.mrb[0].mxu0
        %v12145 = vadd.f32 %v11984, %v12144
        %v12146 = vpop.f32.mrb[0].mxu0
        %12147 = vdwg.mxu0
        %12148 = vmatprep.subr.bf16.mxu0 0
        %12149 = vmatpush1.bf16.msra.mxu0 %v11569
        %12150 = vmatprep.subr.bf16.mxu0 0
        %12151 = vmatpush1.bf16.msra.mxu0 %v11570
        %12152 = vmatprep.subr.bf16.mxu0 0
        %12153 = vmatpush1.bf16.msra.mxu0 %v11571
        %12154 = vmatprep.subr.bf16.mxu0 0
        %12155 = vmatpush1.bf16.msra.mxu0 %v11572
        %12156 = vmatprep.subr.bf16.mxu0 0
        %12157 = vmatpush1.bf16.msra.mxu0 %v11573
        %12158 = vmatprep.subr.bf16.mxu0 0
        %12159 = vmatpush1.bf16.msra.mxu0 %v11574
        %12160 = vmatprep.subr.bf16.mxu0 0
        %12161 = vmatpush1.bf16.msra.mxu0 %v11575
        %12162 = vmatprep.subr.bf16.mxu0 0
        %12163 = vmatpush1.bf16.msra.mxu0 %v11576
        %12164 = vmatprep.subr.bf16.mxu0 0
        %12165 = vmatpush1.bf16.msra.mxu0 %v11577
        %12166 = vmatprep.subr.bf16.mxu0 0
        %12167 = vmatpush1.bf16.msra.mxu0 %v11578
        %12168 = vmatprep.subr.bf16.mxu0 0
        %12169 = vmatpush1.bf16.msra.mxu0 %v11579
        %12170 = vmatprep.subr.bf16.mxu0 0
        %12171 = vmatpush1.bf16.msra.mxu0 %v11580
        %12172 = vmatprep.subr.bf16.mxu0 0
        %12173 = vmatpush1.bf16.msra.mxu0 %v11581
        %12174 = vmatprep.subr.bf16.mxu0 0
        %12175 = vmatpush1.bf16.msra.mxu0 %v11582
        %12176 = vmatprep.subr.bf16.mxu0 0
        %12177 = vmatpush1.bf16.msra.mxu0 %v11583
        %12178 = vmatprep.subr.bf16.mxu0 0
        %12179 = vmatpush1.bf16.msra.mxu0 %v11584
        %12180 = vmatprep.mubr.bf16.mxu0 %v10986
        %12181 = vmatmul.mubr.bf16.gmra.mrb[0].mxu0 %v10922
        %v12182 = vpop.f32.mrb[0].mxu0
        %v12183 = vadd.f32 %v12022, %v12182
        %v12184 = vpop.f32.mrb[0].mxu0
        %v12185 = vpop.f32.mrb[0].mxu0
        %v12186 = vadd.f32 %v12025, %v12185
        %v12187 = vpop.f32.mrb[0].mxu0
        %12188 = vmatprep.mubr.bf16.mxu0 %v10987
        %12189 = vmatmul.mubr.bf16.gmra.mrb[0].mxu0 %v10923
        %v12190 = vpop.f32.mrb[0].mxu0
        %v12191 = vadd.f32 %v12030, %v12190
        %v12192 = vpop.f32.mrb[0].mxu0
        %v12193 = vpop.f32.mrb[0].mxu0
        %v12194 = vadd.f32 %v12033, %v12193
        %v12195 = vpop.f32.mrb[0].mxu0
        %12196 = vmatprep.mubr.bf16.mxu0 %v10988
        %12197 = vmatmul.mubr.bf16.gmra.mrb[0].mxu0 %v10924
        %v12198 = vpop.f32.mrb[0].mxu0
        %v12199 = vadd.f32 %v12038, %v12198
        %v12200 = vpop.f32.mrb[0].mxu0
        %v12201 = vpop.f32.mrb[0].mxu0
        %v12202 = vadd.f32 %v12041, %v12201
        %v12203 = vpop.f32.mrb[0].mxu0
        %12204 = vmatprep.mubr.bf16.mxu0 %v10989
        %12205 = vmatmul.mubr.bf16.gmra.mrb[0].mxu0 %v10925
        %v12206 = vpop.f32.mrb[0].mxu0
        %v12207 = vadd.f32 %v12046, %v12206
        %v12208 = vpop.f32.mrb[0].mxu0
        %v12209 = vpop.f32.mrb[0].mxu0
        %v12210 = vadd.f32 %v12049, %v12209
        %v12211 = vpop.f32.mrb[0].mxu0
        %12212 = vmatprep.mubr.bf16.mxu0 %v10990
        %12213 = vmatmul.mubr.bf16.gmra.mrb[0].mxu0 %v10926
        %v12214 = vpop.f32.mrb[0].mxu0
        %v12215 = vadd.f32 %v12054, %v12214
        %v12216 = vpop.f32.mrb[0].mxu0
        %v12217 = vpop.f32.mrb[0].mxu0
        %v12218 = vadd.f32 %v12057, %v12217
        %v12219 = vpop.f32.mrb[0].mxu0
        %12220 = vmatprep.mubr.bf16.mxu0 %v10991
        %12221 = vmatmul.mubr.bf16.gmra.mrb[0].mxu0 %v10927
        %v12222 = vpop.f32.mrb[0].mxu0
        %v12223 = vadd.f32 %v12062, %v12222
        %v12224 = vpop.f32.mrb[0].mxu0
        %v12225 = vpop.f32.mrb[0].mxu0
        %v12226 = vadd.f32 %v12065, %v12225
        %v12227 = vpop.f32.mrb[0].mxu0
        %12228 = vmatprep.mubr.bf16.mxu0 %v10992
        %12229 = vmatmul.mubr.bf16.gmra.mrb[0].mxu0 %v10928
        %v12230 = vpop.f32.mrb[0].mxu0
        %v12231 = vadd.f32 %v12070, %v12230
        %v12232 = vpop.f32.mrb[0].mxu0
        %v12233 = vpop.f32.mrb[0].mxu0
        %v12234 = vadd.f32 %v12073, %v12233
        %v12235 = vpop.f32.mrb[0].mxu0
        %12236 = vmatprep.mubr.bf16.mxu0 %v10993
        %12237 = vmatmul.mubr.bf16.gmra.mrb[0].mxu0 %v10929
        %v12238 = vpop.f32.mrb[0].mxu0
        %v12239 = vadd.f32 %v12078, %v12238
        %v12240 = vpop.f32.mrb[0].mxu0
        %v12241 = vpop.f32.mrb[0].mxu0
        %v12242 = vadd.f32 %v12081, %v12241
        %v12243 = vpop.f32.mrb[0].mxu0
        %12244 = vmatprep.mubr.bf16.mxu0 %v10994
        %12245 = vmatmul.mubr.bf16.gmra.mrb[0].mxu0 %v10930
        %v12246 = vpop.f32.mrb[0].mxu0
        %v12247 = vadd.f32 %v12086, %v12246
        %v12248 = vpop.f32.mrb[0].mxu0
        %v12249 = vpop.f32.mrb[0].mxu0
        %v12250 = vadd.f32 %v12089, %v12249
        %v12251 = vpop.f32.mrb[0].mxu0
        %12252 = vmatprep.mubr.bf16.mxu0 %v10995
        %12253 = vmatmul.mubr.bf16.gmra.mrb[0].mxu0 %v10931
        %v12254 = vpop.f32.mrb[0].mxu0
        %v12255 = vadd.f32 %v12094, %v12254
        %v12256 = vpop.f32.mrb[0].mxu0
        %v12257 = vpop.f32.mrb[0].mxu0
        %v12258 = vadd.f32 %v12097, %v12257
        %v12259 = vpop.f32.mrb[0].mxu0
        %12260 = vmatprep.mubr.bf16.mxu0 %v10996
        %12261 = vmatmul.mubr.bf16.gmra.mrb[0].mxu0 %v10932
        %v12262 = vpop.f32.mrb[0].mxu0
        %v12263 = vadd.f32 %v12102, %v12262
        %v12264 = vpop.f32.mrb[0].mxu0
        %v12265 = vpop.f32.mrb[0].mxu0
        %v12266 = vadd.f32 %v12105, %v12265
        %v12267 = vpop.f32.mrb[0].mxu0
        %12268 = vmatprep.mubr.bf16.mxu0 %v10997
        %12269 = vmatmul.mubr.bf16.gmra.mrb[0].mxu0 %v10933
        %v12270 = vpop.f32.mrb[0].mxu0
        %v12271 = vadd.f32 %v12110, %v12270
        %v12272 = vpop.f32.mrb[0].mxu0
        %v12273 = vpop.f32.mrb[0].mxu0
        %v12274 = vadd.f32 %v12113, %v12273
        %v12275 = vpop.f32.mrb[0].mxu0
        %12276 = vmatprep.mubr.bf16.mxu0 %v10998
        %12277 = vmatmul.mubr.bf16.gmra.mrb[0].mxu0 %v10934
        %v12278 = vpop.f32.mrb[0].mxu0
        %v12279 = vadd.f32 %v12118, %v12278
        %v12280 = vpop.f32.mrb[0].mxu0
        %v12281 = vpop.f32.mrb[0].mxu0
        %v12282 = vadd.f32 %v12121, %v12281
        %v12283 = vpop.f32.mrb[0].mxu0
        %12284 = vmatprep.mubr.bf16.mxu0 %v10999
        %12285 = vmatmul.mubr.bf16.gmra.mrb[0].mxu0 %v10935
        %v12286 = vpop.f32.mrb[0].mxu0
        %v12287 = vadd.f32 %v12126, %v12286
        %v12288 = vpop.f32.mrb[0].mxu0
        %v12289 = vpop.f32.mrb[0].mxu0
        %v12290 = vadd.f32 %v12129, %v12289
        %v12291 = vpop.f32.mrb[0].mxu0
        %12292 = vmatprep.mubr.bf16.mxu0 %v11000
        %12293 = vmatmul.mubr.bf16.gmra.mrb[0].mxu0 %v10936
        %v12294 = vpop.f32.mrb[0].mxu0
        %v12295 = vadd.f32 %v12134, %v12294
        %v12296 = vpop.f32.mrb[0].mxu0
        %v12297 = vpop.f32.mrb[0].mxu0
        %v12298 = vadd.f32 %v12137, %v12297
        %v12299 = vpop.f32.mrb[0].mxu0
        %12300 = vmatprep.mubr.bf16.mxu0 %v11001
        %12301 = vmatmul.mubr.bf16.gmra.mrb[0].mxu0 %v10937
        %v12302 = vpop.f32.mrb[0].mxu0
        %v12303 = vadd.f32 %v12142, %v12302
        %v12304 = vpop.f32.mrb[0].mxu0
        %v12305 = vpop.f32.mrb[0].mxu0
        %v12306 = vadd.f32 %v12145, %v12305
        %v12307 = vpop.f32.mrb[0].mxu0
        %12308 = vdwg.mxu0
        %12309 = vmatprep.subr.bf16.mxu0 0
        %12310 = vmatpush1.bf16.msra.mxu0 %v11585
        %12311 = vmatprep.subr.bf16.mxu0 0
        %12312 = vmatpush1.bf16.msra.mxu0 %v11586
        %12313 = vmatprep.subr.bf16.mxu0 0
        %12314 = vmatpush1.bf16.msra.mxu0 %v11587
        %12315 = vmatprep.subr.bf16.mxu0 0
        %12316 = vmatpush1.bf16.msra.mxu0 %v11588
        %12317 = vmatprep.subr.bf16.mxu0 0
        %12318 = vmatpush1.bf16.msra.mxu0 %v11589
        %12319 = vmatprep.subr.bf16.mxu0 0
        %12320 = vmatpush1.bf16.msra.mxu0 %v11590
        %12321 = vmatprep.subr.bf16.mxu0 0
        %12322 = vmatpush1.bf16.msra.mxu0 %v11591
        %12323 = vmatprep.subr.bf16.mxu0 0
        %12324 = vmatpush1.bf16.msra.mxu0 %v11592
        %12325 = vmatprep.subr.bf16.mxu0 0
        %12326 = vmatpush1.bf16.msra.mxu0 0
        %12327 = vmatprep.subr.bf16.mxu0 0
        %12328 = vmatpush1.bf16.msra.mxu0 0
        %12329 = vmatprep.subr.bf16.mxu0 0
        %12330 = vmatpush1.bf16.msra.mxu0 0
        %12331 = vmatprep.subr.bf16.mxu0 0
        %12332 = vmatpush1.bf16.msra.mxu0 0
        %12333 = vmatprep.subr.bf16.mxu0 0
        %12334 = vmatpush1.bf16.msra.mxu0 0
        %12335 = vmatprep.subr.bf16.mxu0 0
        %12336 = vmatpush1.bf16.msra.mxu0 0
        %12337 = vmatprep.subr.bf16.mxu0 0
        %12338 = vmatpush1.bf16.msra.mxu0 0
        %12339 = vmatprep.subr.bf16.mxu0 0
        %12340 = vmatpush1.bf16.msra.mxu0 0
        %12341 = vmatprep.mubr.bf16.mxu0 0
        %12342 = vmatmul.mubr.bf16.gmra.mrb[0].mxu0 %v11050
        %v12343 = vpop.f32.mrb[0].mxu0
        %v12344 = vadd.f32 %v12183, %v12343
        %v12345 = vpop.f32.mrb[0].mxu0
        %v12346 = vpop.f32.mrb[0].mxu0
        %v12347 = vadd.f32 %v12186, %v12346
        %v12348 = vpop.f32.mrb[0].mxu0
        %12349 = vmatprep.mubr.bf16.mxu0 0
        %12350 = vmatmul.mubr.bf16.gmra.mrb[0].mxu0 %v11051
        %v12351 = vpop.f32.mrb[0].mxu0
        %v12352 = vadd.f32 %v12191, %v12351
        %v12353 = vpop.f32.mrb[0].mxu0
        %v12354 = vpop.f32.mrb[0].mxu0
        %v12355 = vadd.f32 %v12194, %v12354
        %v12356 = vpop.f32.mrb[0].mxu0
        %12357 = vmatprep.mubr.bf16.mxu0 0
        %12358 = vmatmul.mubr.bf16.gmra.mrb[0].mxu0 %v11052
        %v12359 = vpop.f32.mrb[0].mxu0
        %v12360 = vadd.f32 %v12199, %v12359
        %v12361 = vpop.f32.mrb[0].mxu0
        %v12362 = vpop.f32.mrb[0].mxu0
        %v12363 = vadd.f32 %v12202, %v12362
        %v12364 = vpop.f32.mrb[0].mxu0
        %12365 = vmatprep.mubr.bf16.mxu0 0
        %12366 = vmatmul.mubr.bf16.gmra.mrb[0].mxu0 %v11053
        %v12367 = vpop.f32.mrb[0].mxu0
        %v12368 = vadd.f32 %v12207, %v12367
        %v12369 = vpop.f32.mrb[0].mxu0
        %v12370 = vpop.f32.mrb[0].mxu0
        %v12371 = vadd.f32 %v12210, %v12370
        %v12372 = vpop.f32.mrb[0].mxu0
        %12373 = vmatprep.mubr.bf16.mxu0 0
        %12374 = vmatmul.mubr.bf16.gmra.mrb[0].mxu0 %v11054
        %v12375 = vpop.f32.mrb[0].mxu0
        %v12376 = vadd.f32 %v12215, %v12375
        %v12377 = vpop.f32.mrb[0].mxu0
        %v12378 = vpop.f32.mrb[0].mxu0
        %v12379 = vadd.f32 %v12218, %v12378
        %v12380 = vpop.f32.mrb[0].mxu0
        %12381 = vmatprep.mubr.bf16.mxu0 0
        %12382 = vmatmul.mubr.bf16.gmra.mrb[0].mxu0 %v11055
        %v12383 = vpop.f32.mrb[0].mxu0
        %v12384 = vadd.f32 %v12223, %v12383
        %v12385 = vpop.f32.mrb[0].mxu0
        %v12386 = vpop.f32.mrb[0].mxu0
        %v12387 = vadd.f32 %v12226, %v12386
        %v12388 = vpop.f32.mrb[0].mxu0
        %12389 = vmatprep.mubr.bf16.mxu0 0
        %12390 = vmatmul.mubr.bf16.gmra.mrb[0].mxu0 %v11056
        %v12391 = vpop.f32.mrb[0].mxu0
        %v12392 = vadd.f32 %v12231, %v12391
        %v12393 = vpop.f32.mrb[0].mxu0
        %v12394 = vpop.f32.mrb[0].mxu0
        %v12395 = vadd.f32 %v12234, %v12394
        %v12396 = vpop.f32.mrb[0].mxu0
        %12397 = vmatprep.mubr.bf16.mxu0 0
        %12398 = vmatmul.mubr.bf16.gmra.mrb[0].mxu0 %v11057
        %v12399 = vpop.f32.mrb[0].mxu0
        %v12400 = vadd.f32 %v12239, %v12399
        %v12401 = vpop.f32.mrb[0].mxu0
        %v12402 = vpop.f32.mrb[0].mxu0
        %v12403 = vadd.f32 %v12242, %v12402
        %v12404 = vpop.f32.mrb[0].mxu0
        %12405 = vmatprep.mubr.bf16.mxu0 0
        %12406 = vmatmul.mubr.bf16.gmra.mrb[0].mxu0 %v11058
        %v12407 = vpop.f32.mrb[0].mxu0
        %v12408 = vadd.f32 %v12247, %v12407
        %v12409 = vpop.f32.mrb[0].mxu0
        %v12410 = vpop.f32.mrb[0].mxu0
        %v12411 = vadd.f32 %v12250, %v12410
        %v12412 = vpop.f32.mrb[0].mxu0
        %12413 = vmatprep.mubr.bf16.mxu0 0
        %12414 = vmatmul.mubr.bf16.gmra.mrb[0].mxu0 %v11059
        %v12415 = vpop.f32.mrb[0].mxu0
        %v12416 = vadd.f32 %v12255, %v12415
        %v12417 = vpop.f32.mrb[0].mxu0
        %v12418 = vpop.f32.mrb[0].mxu0
        %v12419 = vadd.f32 %v12258, %v12418
        %v12420 = vpop.f32.mrb[0].mxu0
        %12421 = vmatprep.mubr.bf16.mxu0 0
        %12422 = vmatmul.mubr.bf16.gmra.mrb[0].mxu0 %v11060
        %v12423 = vpop.f32.mrb[0].mxu0
        %v12424 = vadd.f32 %v12263, %v12423
        %v12425 = vpop.f32.mrb[0].mxu0
        %v12426 = vpop.f32.mrb[0].mxu0
        %v12427 = vadd.f32 %v12266, %v12426
        %v12428 = vpop.f32.mrb[0].mxu0
        %12429 = vmatprep.mubr.bf16.mxu0 0
        %12430 = vmatmul.mubr.bf16.gmra.mrb[0].mxu0 %v11061
        %v12431 = vpop.f32.mrb[0].mxu0
        %v12432 = vadd.f32 %v12271, %v12431
        %v12433 = vpop.f32.mrb[0].mxu0
        %v12434 = vpop.f32.mrb[0].mxu0
        %v12435 = vadd.f32 %v12274, %v12434
        %v12436 = vpop.f32.mrb[0].mxu0
        %12437 = vmatprep.mubr.bf16.mxu0 0
        %12438 = vmatmul.mubr.bf16.gmra.mrb[0].mxu0 %v11062
        %v12439 = vpop.f32.mrb[0].mxu0
        %v12440 = vadd.f32 %v12279, %v12439
        %v12441 = vpop.f32.mrb[0].mxu0
        %v12442 = vpop.f32.mrb[0].mxu0
        %v12443 = vadd.f32 %v12282, %v12442
        %v12444 = vpop.f32.mrb[0].mxu0
        %12445 = vmatprep.mubr.bf16.mxu0 0
        %12446 = vmatmul.mubr.bf16.gmra.mrb[0].mxu0 %v11063
        %v12447 = vpop.f32.mrb[0].mxu0
        %v12448 = vadd.f32 %v12287, %v12447
        %v12449 = vpop.f32.mrb[0].mxu0
        %v12450 = vpop.f32.mrb[0].mxu0
        %v12451 = vadd.f32 %v12290, %v12450
        %v12452 = vpop.f32.mrb[0].mxu0
        %12453 = vmatprep.mubr.bf16.mxu0 0
        %12454 = vmatmul.mubr.bf16.gmra.mrb[0].mxu0 %v11064
        %v12455 = vpop.f32.mrb[0].mxu0
        %v12456 = vadd.f32 %v12295, %v12455
        %v12457 = vpop.f32.mrb[0].mxu0
        %v12458 = vpop.f32.mrb[0].mxu0
        %v12459 = vadd.f32 %v12298, %v12458
        %v12460 = vpop.f32.mrb[0].mxu0
        %12461 = vmatprep.mubr.bf16.mxu0 0
        %12462 = vmatmul.mubr.bf16.gmra.mrb[0].mxu0 %v11065
        %v12463 = vpop.f32.mrb[0].mxu0
        %v12464 = vadd.f32 %v12303, %v12463
        %v12465 = vpop.f32.mrb[0].mxu0
        %v12466 = vpop.f32.mrb[0].mxu0
        %v12467 = vadd.f32 %v12306, %v12466
        %v12468 = vpop.f32.mrb[0].mxu0
        %12469 = vdwg.mxu0
        %v12470 = vmax.f32 %v12344, 0.0
        %v12471 = vmax.f32 %v12347, 0.0
        %v12472 = vmax.f32 %v12352, 0.0
        %v12473 = vmax.f32 %v12355, 0.0
        %v12474 = vmax.f32 %v12360, 0.0
        %v12475 = vmax.f32 %v12363, 0.0
        %v12476 = vmax.f32 %v12368, 0.0
        %v12477 = vmax.f32 %v12371, 0.0
        %v12478 = vmax.f32 %v12376, 0.0
        %v12479 = vmax.f32 %v12379, 0.0
        %v12480 = vmax.f32 %v12384, 0.0
        %v12481 = vmax.f32 %v12387, 0.0
        %v12482 = vmax.f32 %v12392, 0.0
        %v12483 = vmax.f32 %v12395, 0.0
        %v12484 = vmax.f32 %v12400, 0.0
        %v12485 = vmax.f32 %v12403, 0.0
        %v12486 = vmax.f32 %v12408, 0.0
        %v12487 = vmax.f32 %v12411, 0.0
        %v12488 = vmax.f32 %v12416, 0.0
        %v12489 = vmax.f32 %v12419, 0.0
        %v12490 = vmax.f32 %v12424, 0.0
        %v12491 = vmax.f32 %v12427, 0.0
        %v12492 = vmax.f32 %v12432, 0.0
        %v12493 = vmax.f32 %v12435, 0.0
        %v12494 = vmax.f32 %v12440, 0.0
        %v12495 = vmax.f32 %v12443, 0.0
        %v12496 = vmax.f32 %v12448, 0.0
        %v12497 = vmax.f32 %v12451, 0.0
        %v12498 = vmax.f32 %v12456, 0.0
        %v12499 = vmax.f32 %v12459, 0.0
        %v12500 = vmax.f32 %v12464, 0.0
        %v12501 = vmax.f32 %v12467, 0.0
        %v12502 = vpack.c.bf16 %v12471, %v12470
        %v12503 = vpack.c.bf16 %v12473, %v12472
        %v12504 = vpack.c.bf16 %v12475, %v12474
        %v12505 = vpack.c.bf16 %v12477, %v12476
        %v12506 = vpack.c.bf16 %v12479, %v12478
        %v12507 = vpack.c.bf16 %v12481, %v12480
        %v12508 = vpack.c.bf16 %v12483, %v12482
        %v12509 = vpack.c.bf16 %v12485, %v12484
        %v12510 = vpack.c.bf16 %v12487, %v12486
        %v12511 = vpack.c.bf16 %v12489, %v12488
        %v12512 = vpack.c.bf16 %v12491, %v12490
        %v12513 = vpack.c.bf16 %v12493, %v12492
        %v12514 = vpack.c.bf16 %v12495, %v12494
        %v12515 = vpack.c.bf16 %v12497, %v12496
        %v12516 = vpack.c.bf16 %v12499, %v12498
        %v12517 = vpack.c.bf16 %v12501, %v12500
        %v12550 = vrot.slane %v1737, 1
        %v12551 = vrot.slane %v1740, 1
        %v12552 = vrot.slane %v1745, 1
        %v12553 = vrot.slane %v1748, 1
        %v12554 = vrot.slane %v1753, 1
        %v12555 = vrot.slane %v1756, 1
        %v12556 = vrot.slane %v1761, 1
        %v12557 = vrot.slane %v1764, 1
        %v12558 = vrot.slane %v1769, 1
        %v12559 = vrot.slane %v1772, 1
        %v12560 = vrot.slane %v1777, 1
        %v12561 = vrot.slane %v1780, 1
        %v12562 = vrot.slane %v1785, 1
        %v12563 = vrot.slane %v1788, 1
        %v12564 = vrot.slane %v1793, 1
        %v12565 = vrot.slane %v1796, 1
        %v12566 = vrot.slane %v1801, 1
        %v12567 = vrot.slane %v1804, 1
        %v12568 = vrot.slane %v1809, 1
        %v12569 = vrot.slane %v1812, 1
        %v12570 = vrot.slane %v1817, 1
        %v12571 = vrot.slane %v1820, 1
        %v12572 = vrot.slane %v1825, 1
        %v12573 = vrot.slane %v1828, 1
        %v12574 = vrot.slane %v1833, 1
        %v12575 = vrot.slane %v1836, 1
        %v12576 = vrot.slane %v1841, 1
        %v12577 = vrot.slane %v1844, 1
        %v12578 = vrot.slane %v1849, 1
        %v12579 = vrot.slane %v1852, 1
        %v12580 = vrot.slane %v1857, 1
        %v12581 = vrot.slane %v1860, 1
        %vm12614 = vcmask 1046528
        %v12615 = vsel %vm12614, %v12550, 0.0
        %v12616 = vsel %vm12614, %v12551, 0.0
        %v12617 = vsel %vm12614, %v12552, 0.0
        %v12618 = vsel %vm12614, %v12553, 0.0
        %v12619 = vsel %vm12614, %v12554, 0.0
        %v12620 = vsel %vm12614, %v12555, 0.0
        %v12621 = vsel %vm12614, %v12556, 0.0
        %v12622 = vsel %vm12614, %v12557, 0.0
        %v12623 = vsel %vm12614, %v12558, 0.0
        %v12624 = vsel %vm12614, %v12559, 0.0
        %v12625 = vsel %vm12614, %v12560, 0.0
        %v12626 = vsel %vm12614, %v12561, 0.0
        %v12627 = vsel %vm12614, %v12562, 0.0
        %v12628 = vsel %vm12614, %v12563, 0.0
        %v12629 = vsel %vm12614, %v12564, 0.0
        %v12630 = vsel %vm12614, %v12565, 0.0
        %v12631 = vsel %vm12614, %v12566, 0.0
        %v12632 = vsel %vm12614, %v12567, 0.0
        %v12633 = vsel %vm12614, %v12568, 0.0
        %v12634 = vsel %vm12614, %v12569, 0.0
        %v12635 = vsel %vm12614, %v12570, 0.0
        %v12636 = vsel %vm12614, %v12571, 0.0
        %v12637 = vsel %vm12614, %v12572, 0.0
        %v12638 = vsel %vm12614, %v12573, 0.0
        %v12639 = vsel %vm12614, %v12574, 0.0
        %v12640 = vsel %vm12614, %v12575, 0.0
        %v12641 = vsel %vm12614, %v12576, 0.0
        %v12642 = vsel %vm12614, %v12577, 0.0
        %v12643 = vsel %vm12614, %v12578, 0.0
        %v12644 = vsel %vm12614, %v12579, 0.0
        %v12645 = vsel %vm12614, %v12580, 0.0
        %v12646 = vsel %vm12614, %v12581, 0.0
        %v12647 = vadd.f32 %v1737, %v12615
        %v12648 = vadd.f32 %v1740, %v12616
        %v12649 = vadd.f32 %v1745, %v12617
        %v12650 = vadd.f32 %v1748, %v12618
        %v12651 = vadd.f32 %v1753, %v12619
        %v12652 = vadd.f32 %v1756, %v12620
        %v12653 = vadd.f32 %v1761, %v12621
        %v12654 = vadd.f32 %v1764, %v12622
        %v12655 = vadd.f32 %v1769, %v12623
        %v12656 = vadd.f32 %v1772, %v12624
        %v12657 = vadd.f32 %v1777, %v12625
        %v12658 = vadd.f32 %v1780, %v12626
        %v12659 = vadd.f32 %v1785, %v12627
        %v12660 = vadd.f32 %v1788, %v12628
        %v12661 = vadd.f32 %v1793, %v12629
        %v12662 = vadd.f32 %v1796, %v12630
        %v12663 = vadd.f32 %v1801, %v12631
        %v12664 = vadd.f32 %v1804, %v12632
        %v12665 = vadd.f32 %v1809, %v12633
        %v12666 = vadd.f32 %v1812, %v12634
        %v12667 = vadd.f32 %v1817, %v12635
        %v12668 = vadd.f32 %v1820, %v12636
        %v12669 = vadd.f32 %v1825, %v12637
        %v12670 = vadd.f32 %v1828, %v12638
        %v12671 = vadd.f32 %v1833, %v12639
        %v12672 = vadd.f32 %v1836, %v12640
        %v12673 = vadd.f32 %v1841, %v12641
        %v12674 = vadd.f32 %v1844, %v12642
        %v12675 = vadd.f32 %v1849, %v12643
        %v12676 = vadd.f32 %v1852, %v12644
        %v12677 = vadd.f32 %v1857, %v12645
        %v12678 = vadd.f32 %v1860, %v12646
        %v12679 = vrot.slane %v1737, 7
        %v12680 = vrot.slane %v1740, 7
        %v12681 = vrot.slane %v1745, 7
        %v12682 = vrot.slane %v1748, 7
        %v12683 = vrot.slane %v1753, 7
        %v12684 = vrot.slane %v1756, 7
        %v12685 = vrot.slane %v1761, 7
        %v12686 = vrot.slane %v1764, 7
        %v12687 = vrot.slane %v1769, 7
        %v12688 = vrot.slane %v1772, 7
        %v12689 = vrot.slane %v1777, 7
        %v12690 = vrot.slane %v1780, 7
        %v12691 = vrot.slane %v1785, 7
        %v12692 = vrot.slane %v1788, 7
        %v12693 = vrot.slane %v1793, 7
        %v12694 = vrot.slane %v1796, 7
        %v12695 = vrot.slane %v1801, 7
        %v12696 = vrot.slane %v1804, 7
        %v12697 = vrot.slane %v1809, 7
        %v12698 = vrot.slane %v1812, 7
        %v12699 = vrot.slane %v1817, 7
        %v12700 = vrot.slane %v1820, 7
        %v12701 = vrot.slane %v1825, 7
        %v12702 = vrot.slane %v1828, 7
        %v12703 = vrot.slane %v1833, 7
        %v12704 = vrot.slane %v1836, 7
        %v12705 = vrot.slane %v1841, 7
        %v12706 = vrot.slane %v1844, 7
        %v12707 = vrot.slane %v1849, 7
        %v12708 = vrot.slane %v1852, 7
        %v12709 = vrot.slane %v1857, 7
        %v12710 = vrot.slane %v1860, 7
        %vm12743 = vcmask 1040384
        %v12744 = vsel %vm12743, 0.0, %v12679
        %v12745 = vsel %vm12743, 0.0, %v12680
        %v12746 = vsel %vm12743, 0.0, %v12681
        %v12747 = vsel %vm12743, 0.0, %v12682
        %v12748 = vsel %vm12743, 0.0, %v12683
        %v12749 = vsel %vm12743, 0.0, %v12684
        %v12750 = vsel %vm12743, 0.0, %v12685
        %v12751 = vsel %vm12743, 0.0, %v12686
        %v12752 = vsel %vm12743, 0.0, %v12687
        %v12753 = vsel %vm12743, 0.0, %v12688
        %v12754 = vsel %vm12743, 0.0, %v12689
        %v12755 = vsel %vm12743, 0.0, %v12690
        %v12756 = vsel %vm12743, 0.0, %v12691
        %v12757 = vsel %vm12743, 0.0, %v12692
        %v12758 = vsel %vm12743, 0.0, %v12693
        %v12759 = vsel %vm12743, 0.0, %v12694
        %v12760 = vsel %vm12743, 0.0, %v12695
        %v12761 = vsel %vm12743, 0.0, %v12696
        %v12762 = vsel %vm12743, 0.0, %v12697
        %v12763 = vsel %vm12743, 0.0, %v12698
        %v12764 = vsel %vm12743, 0.0, %v12699
        %v12765 = vsel %vm12743, 0.0, %v12700
        %v12766 = vsel %vm12743, 0.0, %v12701
        %v12767 = vsel %vm12743, 0.0, %v12702
        %v12768 = vsel %vm12743, 0.0, %v12703
        %v12769 = vsel %vm12743, 0.0, %v12704
        %v12770 = vsel %vm12743, 0.0, %v12705
        %v12771 = vsel %vm12743, 0.0, %v12706
        %v12772 = vsel %vm12743, 0.0, %v12707
        %v12773 = vsel %vm12743, 0.0, %v12708
        %v12774 = vsel %vm12743, 0.0, %v12709
        %v12775 = vsel %vm12743, 0.0, %v12710
        %v12776 = vadd.f32 %v12647, %v12744
        %v12777 = vadd.f32 %v12648, %v12745
        %v12778 = vadd.f32 %v12649, %v12746
        %v12779 = vadd.f32 %v12650, %v12747
        %v12780 = vadd.f32 %v12651, %v12748
        %v12781 = vadd.f32 %v12652, %v12749
        %v12782 = vadd.f32 %v12653, %v12750
        %v12783 = vadd.f32 %v12654, %v12751
        %v12784 = vadd.f32 %v12655, %v12752
        %v12785 = vadd.f32 %v12656, %v12753
        %v12786 = vadd.f32 %v12657, %v12754
        %v12787 = vadd.f32 %v12658, %v12755
        %v12788 = vadd.f32 %v12659, %v12756
        %v12789 = vadd.f32 %v12660, %v12757
        %v12790 = vadd.f32 %v12661, %v12758
        %v12791 = vadd.f32 %v12662, %v12759
        %v12792 = vadd.f32 %v12663, %v12760
        %v12793 = vadd.f32 %v12664, %v12761
        %v12794 = vadd.f32 %v12665, %v12762
        %v12795 = vadd.f32 %v12666, %v12763
        %v12796 = vadd.f32 %v12667, %v12764
        %v12797 = vadd.f32 %v12668, %v12765
        %v12798 = vadd.f32 %v12669, %v12766
        %v12799 = vadd.f32 %v12670, %v12767
        %v12800 = vadd.f32 %v12671, %v12768
        %v12801 = vadd.f32 %v12672, %v12769
        %v12802 = vadd.f32 %v12673, %v12770
        %v12803 = vadd.f32 %v12674, %v12771
        %v12804 = vadd.f32 %v12675, %v12772
        %v12805 = vadd.f32 %v12676, %v12773
        %v12806 = vadd.f32 %v12677, %v12774
        %v12807 = vadd.f32 %v12678, %v12775
        %v12808 = vadd.f32 %v12776, %v12777
        %v12809 = vadd.f32 %v12777, %v12778
        %v12810 = vadd.f32 %v12778, %v12779
        %v12811 = vadd.f32 %v12779, %v12780
        %v12812 = vadd.f32 %v12780, %v12781
        %v12813 = vadd.f32 %v12781, %v12782
        %v12814 = vadd.f32 %v12782, %v12783
        %v12815 = vadd.f32 %v12783, 0.0
        %v12816 = vadd.f32 %v12784, %v12785
        %v12817 = vadd.f32 %v12785, %v12786
        %v12818 = vadd.f32 %v12786, %v12787
        %v12819 = vadd.f32 %v12787, %v12788
        %v12820 = vadd.f32 %v12788, %v12789
        %v12821 = vadd.f32 %v12789, %v12790
        %v12822 = vadd.f32 %v12790, %v12791
        %v12823 = vadd.f32 %v12791, 0.0
        %v12824 = vadd.f32 %v12792, %v12793
        %v12825 = vadd.f32 %v12793, %v12794
        %v12826 = vadd.f32 %v12794, %v12795
        %v12827 = vadd.f32 %v12795, %v12796
        %v12828 = vadd.f32 %v12796, %v12797
        %v12829 = vadd.f32 %v12797, %v12798
        %v12830 = vadd.f32 %v12798, %v12799
        %v12831 = vadd.f32 %v12799, 0.0
        %v12832 = vadd.f32 %v12800, %v12801
        %v12833 = vadd.f32 %v12801, %v12802
        %v12834 = vadd.f32 %v12802, %v12803
        %v12835 = vadd.f32 %v12803, %v12804
        %v12836 = vadd.f32 %v12804, %v12805
        %v12837 = vadd.f32 %v12805, %v12806
        %v12838 = vadd.f32 %v12806, %v12807
        %v12839 = vadd.f32 %v12807, 0.0
        %v12840 = vadd.f32 %v12808, 0.0
        %v12841 = vadd.f32 %v12809, %v12776
        %v12842 = vadd.f32 %v12810, %v12777
        %v12843 = vadd.f32 %v12811, %v12778
        %v12844 = vadd.f32 %v12812, %v12779
        %v12845 = vadd.f32 %v12813, %v12780
        %v12846 = vadd.f32 %v12814, %v12781
        %v12847 = vadd.f32 %v12815, %v12782
        %v12848 = vadd.f32 %v12816, 0.0
        %v12849 = vadd.f32 %v12817, %v12784
        %v12850 = vadd.f32 %v12818, %v12785
        %v12851 = vadd.f32 %v12819, %v12786
        %v12852 = vadd.f32 %v12820, %v12787
        %v12853 = vadd.f32 %v12821, %v12788
        %v12854 = vadd.f32 %v12822, %v12789
        %v12855 = vadd.f32 %v12823, %v12790
        %v12856 = vadd.f32 %v12824, 0.0
        %v12857 = vadd.f32 %v12825, %v12792
        %v12858 = vadd.f32 %v12826, %v12793
        %v12859 = vadd.f32 %v12827, %v12794
        %v12860 = vadd.f32 %v12828, %v12795
        %v12861 = vadd.f32 %v12829, %v12796
        %v12862 = vadd.f32 %v12830, %v12797
        %v12863 = vadd.f32 %v12831, %v12798
        %v12864 = vadd.f32 %v12832, 0.0
        %v12865 = vadd.f32 %v12833, %v12800
        %v12866 = vadd.f32 %v12834, %v12801
        %v12867 = vadd.f32 %v12835, %v12802
        %v12868 = vadd.f32 %v12836, %v12803
        %v12869 = vadd.f32 %v12837, %v12804
        %v12870 = vadd.f32 %v12838, %v12805
        %v12871 = vadd.f32 %v12839, %v12806
        %v12872 = vld [vmem:[%s8] sm:$0xff]
        %v12873 = vld [vmem:[%s8 + $0x8] sm:$0xff]
        %v12874 = vld [vmem:[%s8 + $0x10] sm:$0xff]
        %v12875 = vld [vmem:[%s8 + $0x18] sm:$0xff]
        %v12876 = vld [vmem:[%s8 + $0x20] sm:$0xff]
        %v12877 = vld [vmem:[%s8 + $0x28] sm:$0xff]
        %v12878 = vld [vmem:[%s8 + $0x30] sm:$0xff]
        %v12879 = vld [vmem:[%s8 + $0x38] sm:$0xff]
        %12881 = vset.pattern.permute.xlu0 0
        %12882 = vperm.xlu0 %12881, %v12872
        %v12883 = vpop.permute.xlu0 %12882
        %12886 = vset.pattern.permute.xlu0 0
        %12887 = vperm.xlu0 %12886, %v12873
        %v12888 = vpop.permute.xlu0 %12887
        %12891 = vset.pattern.permute.xlu0 0
        %12892 = vperm.xlu0 %12891, %v12874
        %v12893 = vpop.permute.xlu0 %12892
        %12896 = vset.pattern.permute.xlu0 0
        %12897 = vperm.xlu0 %12896, %v12875
        %v12898 = vpop.permute.xlu0 %12897
        %12901 = vset.pattern.permute.xlu0 0
        %12902 = vperm.xlu0 %12901, %v12876
        %v12903 = vpop.permute.xlu0 %12902
        %12906 = vset.pattern.permute.xlu0 0
        %12907 = vperm.xlu0 %12906, %v12877
        %v12908 = vpop.permute.xlu0 %12907
        %12911 = vset.pattern.permute.xlu0 0
        %12912 = vperm.xlu0 %12911, %v12878
        %v12913 = vpop.permute.xlu0 %12912
        %12916 = vset.pattern.permute.xlu0 0
        %12917 = vperm.xlu0 %12916, %v12879
        %v12918 = vpop.permute.xlu0 %12917
        %v12920 = vmul.f32 %v12840, %v12883
        %v12921 = vmul.f32 %v12841, %v12888
        %v12922 = vmul.f32 %v12842, %v12893
        %v12923 = vmul.f32 %v12843, %v12898
        %v12924 = vmul.f32 %v12844, %v12903
        %v12925 = vmul.f32 %v12845, %v12908
        %v12926 = vmul.f32 %v12846, %v12913
        %v12927 = vmul.f32 %v12847, %v12918
        %v12928 = vmul.f32 %v12848, %v12883
        %v12929 = vmul.f32 %v12849, %v12888
        %v12930 = vmul.f32 %v12850, %v12893
        %v12931 = vmul.f32 %v12851, %v12898
        %v12932 = vmul.f32 %v12852, %v12903
        %v12933 = vmul.f32 %v12853, %v12908
        %v12934 = vmul.f32 %v12854, %v12913
        %v12935 = vmul.f32 %v12855, %v12918
        %v12936 = vmul.f32 %v12856, %v12883
        %v12937 = vmul.f32 %v12857, %v12888
        %v12938 = vmul.f32 %v12858, %v12893
        %v12939 = vmul.f32 %v12859, %v12898
        %v12940 = vmul.f32 %v12860, %v12903
        %v12941 = vmul.f32 %v12861, %v12908
        %v12942 = vmul.f32 %v12862, %v12913
        %v12943 = vmul.f32 %v12863, %v12918
        %v12944 = vmul.f32 %v12864, %v12883
        %v12945 = vmul.f32 %v12865, %v12888
        %v12946 = vmul.f32 %v12866, %v12893
        %v12947 = vmul.f32 %v12867, %v12898
        %v12948 = vmul.f32 %v12868, %v12903
        %v12949 = vmul.f32 %v12869, %v12908
        %v12950 = vmul.f32 %v12870, %v12913
        %v12951 = vmul.f32 %v12871, %v12918
        %v12952 = vld [vmem:[%s7] sm:$0x1]
        %v12954 = vlaneseq
        %v12955 = vshrl.u32 %v12954, 7
        %v12956 = vsub.s32 0, %v12955
        %v12957 = vrot.slane %v12952, %v12956
        %v12959 = vadd.f32 %v12920, %v12957
        %v12960 = vadd.f32 %v12921, %v12957
        %v12961 = vadd.f32 %v12922, %v12957
        %v12962 = vadd.f32 %v12923, %v12957
        %v12963 = vadd.f32 %v12924, %v12957
        %v12964 = vadd.f32 %v12925, %v12957
        %v12965 = vadd.f32 %v12926, %v12957
        %v12966 = vadd.f32 %v12927, %v12957
        %v12967 = vadd.f32 %v12928, %v12957
        %v12968 = vadd.f32 %v12929, %v12957
        %v12969 = vadd.f32 %v12930, %v12957
        %v12970 = vadd.f32 %v12931, %v12957
        %v12971 = vadd.f32 %v12932, %v12957
        %v12972 = vadd.f32 %v12933, %v12957
        %v12973 = vadd.f32 %v12934, %v12957
        %v12974 = vadd.f32 %v12935, %v12957
        %v12975 = vadd.f32 %v12936, %v12957
        %v12976 = vadd.f32 %v12937, %v12957
        %v12977 = vadd.f32 %v12938, %v12957
        %v12978 = vadd.f32 %v12939, %v12957
        %v12979 = vadd.f32 %v12940, %v12957
        %v12980 = vadd.f32 %v12941, %v12957
        %v12981 = vadd.f32 %v12942, %v12957
        %v12982 = vadd.f32 %v12943, %v12957
        %v12983 = vadd.f32 %v12944, %v12957
        %v12984 = vadd.f32 %v12945, %v12957
        %v12985 = vadd.f32 %v12946, %v12957
        %v12986 = vadd.f32 %v12947, %v12957
        %v12987 = vadd.f32 %v12948, %v12957
        %v12988 = vadd.f32 %v12949, %v12957
        %v12989 = vadd.f32 %v12950, %v12957
        %v12990 = vadd.f32 %v12951, %v12957
        %v12991 = vmax.f32 %v12959, 0.0
        %v12992 = vmax.f32 %v12960, 0.0
        %v12993 = vmax.f32 %v12961, 0.0
        %v12994 = vmax.f32 %v12962, 0.0
        %v12995 = vmax.f32 %v12963, 0.0
        %v12996 = vmax.f32 %v12964, 0.0
        %v12997 = vmax.f32 %v12965, 0.0
        %v12998 = vmax.f32 %v12966, 0.0
        %v12999 = vmax.f32 %v12967, 0.0
        %v13000 = vmax.f32 %v12968, 0.0
        %v13001 = vmax.f32 %v12969, 0.0
        %v13002 = vmax.f32 %v12970, 0.0
        %v13003 = vmax.f32 %v12971, 0.0
        %v13004 = vmax.f32 %v12972, 0.0
        %v13005 = vmax.f32 %v12973, 0.0
        %v13006 = vmax.f32 %v12974, 0.0
        %v13007 = vmax.f32 %v12975, 0.0
        %v13008 = vmax.f32 %v12976, 0.0
        %v13009 = vmax.f32 %v12977, 0.0
        %v13010 = vmax.f32 %v12978, 0.0
        %v13011 = vmax.f32 %v12979, 0.0
        %v13012 = vmax.f32 %v12980, 0.0
        %v13013 = vmax.f32 %v12981, 0.0
        %v13014 = vmax.f32 %v12982, 0.0
        %v13015 = vmax.f32 %v12983, 0.0
        %v13016 = vmax.f32 %v12984, 0.0
        %v13017 = vmax.f32 %v12985, 0.0
        %v13018 = vmax.f32 %v12986, 0.0
        %v13019 = vmax.f32 %v12987, 0.0
        %v13020 = vmax.f32 %v12988, 0.0
        %v13021 = vmax.f32 %v12989, 0.0
        %v13022 = vmax.f32 %v12990, 0.0
        %v13023 = vpack.c.bf16 %v12992, %v12991
        %v13024 = vpack.c.bf16 %v12994, %v12993
        %v13025 = vpack.c.bf16 %v12996, %v12995
        %v13026 = vpack.c.bf16 %v12998, %v12997
        %v13027 = vpack.c.bf16 %v13000, %v12999
        %v13028 = vpack.c.bf16 %v13002, %v13001
        %v13029 = vpack.c.bf16 %v13004, %v13003
        %v13030 = vpack.c.bf16 %v13006, %v13005
        %v13031 = vpack.c.bf16 %v13008, %v13007
        %v13032 = vpack.c.bf16 %v13010, %v13009
        %v13033 = vpack.c.bf16 %v13012, %v13011
        %v13034 = vpack.c.bf16 %v13014, %v13013
        %v13035 = vpack.c.bf16 %v13016, %v13015
        %v13036 = vpack.c.bf16 %v13018, %v13017
        %v13037 = vpack.c.bf16 %v13020, %v13019
        %v13038 = vpack.c.bf16 %v13022, %v13021
        %13055 = vrot.lane.b32.xlu0 %v7463, 96
        %v13056 = vpop.permute.xlu0 %13055
        %13057 = vrot.lane.b32.xlu0 %v7464, 96
        %v13058 = vpop.permute.xlu0 %13057
        %13059 = vrot.lane.b32.xlu0 %v7465, 96
        %v13060 = vpop.permute.xlu0 %13059
        %13061 = vrot.lane.b32.xlu0 %v7466, 96
        %v13062 = vpop.permute.xlu0 %13061
        %13063 = vrot.lane.b32.xlu0 %v7467, 96
        %v13064 = vpop.permute.xlu0 %13063
        %13065 = vrot.lane.b32.xlu0 %v7468, 96
        %v13066 = vpop.permute.xlu0 %13065
        %13067 = vrot.lane.b32.xlu0 %v7469, 96
        %v13068 = vpop.permute.xlu0 %13067
        %13069 = vrot.lane.b32.xlu0 %v7470, 96
        %v13070 = vpop.permute.xlu0 %13069
        %13071 = vrot.lane.b32.xlu0 %v7471, 96
        %v13072 = vpop.permute.xlu0 %13071
        %13073 = vrot.lane.b32.xlu0 %v7472, 96
        %v13074 = vpop.permute.xlu0 %13073
        %13075 = vrot.lane.b32.xlu0 %v7473, 96
        %v13076 = vpop.permute.xlu0 %13075
        %13077 = vrot.lane.b32.xlu0 %v7474, 96
        %v13078 = vpop.permute.xlu0 %13077
        %13079 = vrot.lane.b32.xlu0 %v7475, 96
        %v13080 = vpop.permute.xlu0 %13079
        %13081 = vrot.lane.b32.xlu0 %v7476, 96
        %v13082 = vpop.permute.xlu0 %13081
        %13083 = vrot.lane.b32.xlu0 %v7477, 96
        %v13084 = vpop.permute.xlu0 %13083
        %13085 = vrot.lane.b32.xlu0 %v7478, 96
        %v13086 = vpop.permute.xlu0 %13085
        %13103 = vrot.lane.b32.xlu0 %v12502, 64
        %v13104 = vpop.permute.xlu0 %13103
        %13105 = vrot.lane.b32.xlu0 %v12503, 64
        %v13106 = vpop.permute.xlu0 %13105
        %13107 = vrot.lane.b32.xlu0 %v12504, 64
        %v13108 = vpop.permute.xlu0 %13107
        %13109 = vrot.lane.b32.xlu0 %v12505, 64
        %v13110 = vpop.permute.xlu0 %13109
        %13111 = vrot.lane.b32.xlu0 %v12506, 64
        %v13112 = vpop.permute.xlu0 %13111
        %13113 = vrot.lane.b32.xlu0 %v12507, 64
        %v13114 = vpop.permute.xlu0 %13113
        %13115 = vrot.lane.b32.xlu0 %v12508, 64
        %v13116 = vpop.permute.xlu0 %13115
        %13117 = vrot.lane.b32.xlu0 %v12509, 64
        %v13118 = vpop.permute.xlu0 %13117
        %13119 = vrot.lane.b32.xlu0 %v12510, 64
        %v13120 = vpop.permute.xlu0 %13119
        %13121 = vrot.lane.b32.xlu0 %v12511, 64
        %v13122 = vpop.permute.xlu0 %13121
        %13123 = vrot.lane.b32.xlu0 %v12512, 64
        %v13124 = vpop.permute.xlu0 %13123
        %13125 = vrot.lane.b32.xlu0 %v12513, 64
        %v13126 = vpop.permute.xlu0 %13125
        %13127 = vrot.lane.b32.xlu0 %v12514, 64
        %v13128 = vpop.permute.xlu0 %13127
        %13129 = vrot.lane.b32.xlu0 %v12515, 64
        %v13130 = vpop.permute.xlu0 %13129
        %13131 = vrot.lane.b32.xlu0 %v12516, 64
        %v13132 = vpop.permute.xlu0 %13131
        %13133 = vrot.lane.b32.xlu0 %v12517, 64
        %v13134 = vpop.permute.xlu0 %13133
        %13151 = vrot.lane.b32.xlu0 %v13023, 32
        %v13152 = vpop.permute.xlu0 %13151
        %13153 = vrot.lane.b32.xlu0 %v13024, 32
        %v13154 = vpop.permute.xlu0 %13153
        %13155 = vrot.lane.b32.xlu0 %v13025, 32
        %v13156 = vpop.permute.xlu0 %13155
        %13157 = vrot.lane.b32.xlu0 %v13026, 32
        %v13158 = vpop.permute.xlu0 %13157
        %13159 = vrot.lane.b32.xlu0 %v13027, 32
        %v13160 = vpop.permute.xlu0 %13159
        %13161 = vrot.lane.b32.xlu0 %v13028, 32
        %v13162 = vpop.permute.xlu0 %13161
        %13163 = vrot.lane.b32.xlu0 %v13029, 32
        %v13164 = vpop.permute.xlu0 %13163
        %13165 = vrot.lane.b32.xlu0 %v13030, 32
        %v13166 = vpop.permute.xlu0 %13165
        %13167 = vrot.lane.b32.xlu0 %v13031, 32
        %v13168 = vpop.permute.xlu0 %13167
        %13169 = vrot.lane.b32.xlu0 %v13032, 32
        %v13170 = vpop.permute.xlu0 %13169
        %13171 = vrot.lane.b32.xlu0 %v13033, 32
        %v13172 = vpop.permute.xlu0 %13171
        %13173 = vrot.lane.b32.xlu0 %v13034, 32
        %v13174 = vpop.permute.xlu0 %13173
        %13175 = vrot.lane.b32.xlu0 %v13035, 32
        %v13176 = vpop.permute.xlu0 %13175
        %13177 = vrot.lane.b32.xlu0 %v13036, 32
        %v13178 = vpop.permute.xlu0 %13177
        %13179 = vrot.lane.b32.xlu0 %v13037, 32
        %v13180 = vpop.permute.xlu0 %13179
        %13181 = vrot.lane.b32.xlu0 %v13038, 32
        %v13182 = vpop.permute.xlu0 %13181
        %vm13183 = vcmask 785408
        %v13186 = vsel %vm13183, %v1943, %v13056
        %v13189 = vsel %vm13183, %v1944, %v13058
        %v13192 = vsel %vm13183, %v1945, %v13060
        %v13195 = vsel %vm13183, %v1946, %v13062
        %v13198 = vsel %vm13183, %v1947, %v13064
        %v13201 = vsel %vm13183, %v1948, %v13066
        %v13204 = vsel %vm13183, %v1949, %v13068
        %v13207 = vsel %vm13183, %v1950, %v13070
        %v13210 = vsel %vm13183, %v1951, %v13072
        %v13213 = vsel %vm13183, %v1952, %v13074
        %v13216 = vsel %vm13183, %v1953, %v13076
        %v13219 = vsel %vm13183, %v1954, %v13078
        %v13222 = vsel %vm13183, %v1955, %v13080
        %v13225 = vsel %vm13183, %v1956, %v13082
        %v13228 = vsel %vm13183, %v1957, %v13084
        %v13231 = vsel %vm13183, %v1958, %v13086
        %vm13232 = vcmask 523264
        %v13234 = vsel %vm13232, %v13056, %v13104
        %v13236 = vsel %vm13232, %v13058, %v13106
        %v13238 = vsel %vm13232, %v13060, %v13108
        %v13240 = vsel %vm13232, %v13062, %v13110
        %v13242 = vsel %vm13232, %v13064, %v13112
        %v13244 = vsel %vm13232, %v13066, %v13114
        %v13246 = vsel %vm13232, %v13068, %v13116
        %v13248 = vsel %vm13232, %v13070, %v13118
        %v13250 = vsel %vm13232, %v13072, %v13120
        %v13252 = vsel %vm13232, %v13074, %v13122
        %v13254 = vsel %vm13232, %v13076, %v13124
        %v13256 = vsel %vm13232, %v13078, %v13126
        %v13258 = vsel %vm13232, %v13080, %v13128
        %v13260 = vsel %vm13232, %v13082, %v13130
        %v13262 = vsel %vm13232, %v13084, %v13132
        %v13264 = vsel %vm13232, %v13086, %v13134
        %vm13265 = vcmask 261120
        %v13267 = vsel %vm13265, %v13104, %v13152
        %v13269 = vsel %vm13265, %v13106, %v13154
        %v13271 = vsel %vm13265, %v13108, %v13156
        %v13273 = vsel %vm13265, %v13110, %v13158
        %v13275 = vsel %vm13265, %v13112, %v13160
        %v13277 = vsel %vm13265, %v13114, %v13162
        %v13279 = vsel %vm13265, %v13116, %v13164
        %v13281 = vsel %vm13265, %v13118, %v13166
        %v13283 = vsel %vm13265, %v13120, %v13168
        %v13285 = vsel %vm13265, %v13122, %v13170
        %v13287 = vsel %vm13265, %v13124, %v13172
        %v13289 = vsel %vm13265, %v13126, %v13174
        %v13291 = vsel %vm13265, %v13128, %v13176
        %v13293 = vsel %vm13265, %v13130, %v13178
        %v13295 = vsel %vm13265, %v13132, %v13180
        %v13297 = vsel %vm13265, %v13134, %v13182
        %v13346 = vunpack.c.l.b16 %v13186
        %v13347 = vunpack.c.l.b16 %v13234
        %v13348 = vunpack.c.l.b16 %v13267
        %v13349 = vunpack.c.h.b16 %v13186
        %v13350 = vunpack.c.h.b16 %v13234
        %v13351 = vunpack.c.h.b16 %v13267
        %v13352 = vunpack.c.l.b16 %v13189
        %v13353 = vunpack.c.l.b16 %v13236
        %v13354 = vunpack.c.l.b16 %v13269
        %v13355 = vunpack.c.h.b16 %v13189
        %v13356 = vunpack.c.h.b16 %v13236
        %v13357 = vunpack.c.h.b16 %v13269
        %v13358 = vunpack.c.l.b16 %v13192
        %v13359 = vunpack.c.l.b16 %v13238
        %v13360 = vunpack.c.l.b16 %v13271
        %v13361 = vunpack.c.h.b16 %v13192
        %v13362 = vunpack.c.h.b16 %v13238
        %v13363 = vunpack.c.h.b16 %v13271
        %v13364 = vunpack.c.l.b16 %v13195
        %v13365 = vunpack.c.l.b16 %v13240
        %v13366 = vunpack.c.l.b16 %v13273
        %v13367 = vunpack.c.h.b16 %v13195
        %v13368 = vunpack.c.h.b16 %v13240
        %v13369 = vunpack.c.h.b16 %v13273
        %v13370 = vunpack.c.l.b16 %v13198
        %v13371 = vunpack.c.l.b16 %v13242
        %v13372 = vunpack.c.l.b16 %v13275
        %v13373 = vunpack.c.h.b16 %v13198
        %v13374 = vunpack.c.h.b16 %v13242
        %v13375 = vunpack.c.h.b16 %v13275
        %v13376 = vunpack.c.l.b16 %v13201
        %v13377 = vunpack.c.l.b16 %v13244
        %v13378 = vunpack.c.l.b16 %v13277
        %v13379 = vunpack.c.h.b16 %v13201
        %v13380 = vunpack.c.h.b16 %v13244
        %v13381 = vunpack.c.h.b16 %v13277
        %v13382 = vunpack.c.l.b16 %v13204
        %v13383 = vunpack.c.l.b16 %v13246
        %v13384 = vunpack.c.l.b16 %v13279
        %v13385 = vunpack.c.h.b16 %v13204
        %v13386 = vunpack.c.h.b16 %v13246
        %v13387 = vunpack.c.h.b16 %v13279
        %v13388 = vunpack.c.l.b16 %v13207
        %v13389 = vunpack.c.l.b16 %v13248
        %v13390 = vunpack.c.l.b16 %v13281
        %v13391 = vunpack.c.h.b16 %v13207
        %v13392 = vunpack.c.h.b16 %v13248
        %v13393 = vunpack.c.h.b16 %v13281
        %v13394 = vunpack.c.l.b16 %v13210
        %v13395 = vunpack.c.l.b16 %v13250
        %v13396 = vunpack.c.l.b16 %v13283
        %v13397 = vunpack.c.h.b16 %v13210
        %v13398 = vunpack.c.h.b16 %v13250
        %v13399 = vunpack.c.h.b16 %v13283
        %v13400 = vunpack.c.l.b16 %v13213
        %v13401 = vunpack.c.l.b16 %v13252
        %v13402 = vunpack.c.l.b16 %v13285
        %v13403 = vunpack.c.h.b16 %v13213
        %v13404 = vunpack.c.h.b16 %v13252
        %v13405 = vunpack.c.h.b16 %v13285
        %v13406 = vunpack.c.l.b16 %v13216
        %v13407 = vunpack.c.l.b16 %v13254
        %v13408 = vunpack.c.l.b16 %v13287
        %v13409 = vunpack.c.h.b16 %v13216
        %v13410 = vunpack.c.h.b16 %v13254
        %v13411 = vunpack.c.h.b16 %v13287
        %v13412 = vunpack.c.l.b16 %v13219
        %v13413 = vunpack.c.l.b16 %v13256
        %v13414 = vunpack.c.l.b16 %v13289
        %v13415 = vunpack.c.h.b16 %v13219
        %v13416 = vunpack.c.h.b16 %v13256
        %v13417 = vunpack.c.h.b16 %v13289
        %v13418 = vunpack.c.l.b16 %v13222
        %v13419 = vunpack.c.l.b16 %v13258
        %v13420 = vunpack.c.l.b16 %v13291
        %v13421 = vunpack.c.h.b16 %v13222
        %v13422 = vunpack.c.h.b16 %v13258
        %v13423 = vunpack.c.h.b16 %v13291
        %v13424 = vunpack.c.l.b16 %v13225
        %v13425 = vunpack.c.l.b16 %v13260
        %v13426 = vunpack.c.l.b16 %v13293
        %v13427 = vunpack.c.h.b16 %v13225
        %v13428 = vunpack.c.h.b16 %v13260
        %v13429 = vunpack.c.h.b16 %v13293
        %v13430 = vunpack.c.l.b16 %v13228
        %v13431 = vunpack.c.l.b16 %v13262
        %v13432 = vunpack.c.l.b16 %v13295
        %v13433 = vunpack.c.h.b16 %v13228
        %v13434 = vunpack.c.h.b16 %v13262
        %v13435 = vunpack.c.h.b16 %v13295
        %v13436 = vunpack.c.l.b16 %v13231
        %v13437 = vunpack.c.l.b16 %v13264
        %v13438 = vunpack.c.l.b16 %v13297
        %v13439 = vunpack.c.h.b16 %v13231
        %v13440 = vunpack.c.h.b16 %v13264
        %v13441 = vunpack.c.h.b16 %v13297
        %v13442 = vpack.c.b16 %v13347, %v13346
        %v13443 = vpack.c.b16 %v13348, %v13348
        %v13444 = vpack.c.b16 %v13350, %v13349
        %v13445 = vpack.c.b16 %v13351, %v13351
        %v13446 = vpack.c.b16 %v13353, %v13352
        %v13447 = vpack.c.b16 %v13354, %v13354
        %v13448 = vpack.c.b16 %v13356, %v13355
        %v13449 = vpack.c.b16 %v13357, %v13357
        %v13450 = vpack.c.b16 %v13359, %v13358
        %v13451 = vpack.c.b16 %v13360, %v13360
        %v13452 = vpack.c.b16 %v13362, %v13361
        %v13453 = vpack.c.b16 %v13363, %v13363
        %v13454 = vpack.c.b16 %v13365, %v13364
        %v13455 = vpack.c.b16 %v13366, %v13366
        %v13456 = vpack.c.b16 %v13368, %v13367
        %v13457 = vpack.c.b16 %v13369, %v13369
        %v13458 = vpack.c.b16 %v13371, %v13370
        %v13459 = vpack.c.b16 %v13372, %v13372
        %v13460 = vpack.c.b16 %v13374, %v13373
        %v13461 = vpack.c.b16 %v13375, %v13375
        %v13462 = vpack.c.b16 %v13377, %v13376
        %v13463 = vpack.c.b16 %v13378, %v13378
        %v13464 = vpack.c.b16 %v13380, %v13379
        %v13465 = vpack.c.b16 %v13381, %v13381
        %v13466 = vpack.c.b16 %v13383, %v13382
        %v13467 = vpack.c.b16 %v13384, %v13384
        %v13468 = vpack.c.b16 %v13386, %v13385
        %v13469 = vpack.c.b16 %v13387, %v13387
        %v13470 = vpack.c.b16 %v13389, %v13388
        %v13471 = vpack.c.b16 %v13390, %v13390
        %v13472 = vpack.c.b16 %v13392, %v13391
        %v13473 = vpack.c.b16 %v13393, %v13393
        %v13474 = vpack.c.b16 %v13395, %v13394
        %v13475 = vpack.c.b16 %v13396, %v13396
        %v13476 = vpack.c.b16 %v13398, %v13397
        %v13477 = vpack.c.b16 %v13399, %v13399
        %v13478 = vpack.c.b16 %v13401, %v13400
        %v13479 = vpack.c.b16 %v13402, %v13402
        %v13480 = vpack.c.b16 %v13404, %v13403
        %v13481 = vpack.c.b16 %v13405, %v13405
        %v13482 = vpack.c.b16 %v13407, %v13406
        %v13483 = vpack.c.b16 %v13408, %v13408
        %v13484 = vpack.c.b16 %v13410, %v13409
        %v13485 = vpack.c.b16 %v13411, %v13411
        %v13486 = vpack.c.b16 %v13413, %v13412
        %v13487 = vpack.c.b16 %v13414, %v13414
        %v13488 = vpack.c.b16 %v13416, %v13415
        %v13489 = vpack.c.b16 %v13417, %v13417
        %v13490 = vpack.c.b16 %v13419, %v13418
        %v13491 = vpack.c.b16 %v13420, %v13420
        %v13492 = vpack.c.b16 %v13422, %v13421
        %v13493 = vpack.c.b16 %v13423, %v13423
        %v13494 = vpack.c.b16 %v13425, %v13424
        %v13495 = vpack.c.b16 %v13426, %v13426
        %v13496 = vpack.c.b16 %v13428, %v13427
        %v13497 = vpack.c.b16 %v13429, %v13429
        %v13498 = vpack.c.b16 %v13431, %v13430
        %v13499 = vpack.c.b16 %v13432, %v13432
        %v13500 = vpack.c.b16 %v13434, %v13433
        %v13501 = vpack.c.b16 %v13435, %v13435
        %v13502 = vpack.c.b16 %v13437, %v13436
        %v13503 = vpack.c.b16 %v13438, %v13438
        %v13504 = vpack.c.b16 %v13440, %v13439
        %v13505 = vpack.c.b16 %v13441, %v13441
        %13570 = vst [vmem:[%s328] sm:$0xff] %v13442
        %13571 = vst [vmem:[%s328 + $0x8] sm:$0xf] %v13443
        %13572 = vst [vmem:[%s328 + $0xc] sm:$0xff] %v13444
        %13573 = vst [vmem:[%s328 + $0x14] sm:$0xf] %v13445
        %13574 = vst [vmem:[%s328 + $0x18] sm:$0xff] %v13446
        %13575 = vst [vmem:[%s328 + $0x20] sm:$0xf] %v13447
        %13576 = vst [vmem:[%s328 + $0x24] sm:$0xff] %v13448
        %13577 = vst [vmem:[%s328 + $0x2c] sm:$0xf] %v13449
        %13578 = vst [vmem:[%s328 + $0x30] sm:$0xff] %v13450
        %13579 = vst [vmem:[%s328 + $0x38] sm:$0xf] %v13451
        %13580 = vst [vmem:[%s328 + $0x3c] sm:$0xff] %v13452
        %13581 = vst [vmem:[%s328 + $0x44] sm:$0xf] %v13453
        %13582 = vst [vmem:[%s328 + $0x48] sm:$0xff] %v13454
        %13583 = vst [vmem:[%s328 + $0x50] sm:$0xf] %v13455
        %13584 = vst [vmem:[%s328 + $0x54] sm:$0xff] %v13456
        %13585 = vst [vmem:[%s328 + $0x5c] sm:$0xf] %v13457
        %13586 = vst [vmem:[%s328 + $0x60] sm:$0xff] %v13458
        %13587 = vst [vmem:[%s328 + $0x68] sm:$0xf] %v13459
        %13588 = vst [vmem:[%s328 + $0x6c] sm:$0xff] %v13460
        %13589 = vst [vmem:[%s328 + $0x74] sm:$0xf] %v13461
        %13590 = vst [vmem:[%s328 + $0x78] sm:$0xff] %v13462
        %13591 = vst [vmem:[%s328 + $0x80] sm:$0xf] %v13463
        %13592 = vst [vmem:[%s328 + $0x84] sm:$0xff] %v13464
        %13593 = vst [vmem:[%s328 + $0x8c] sm:$0xf] %v13465
        %13594 = vst [vmem:[%s328 + $0x90] sm:$0xff] %v13466
        %13595 = vst [vmem:[%s328 + $0x98] sm:$0xf] %v13467
        %13596 = vst [vmem:[%s328 + $0x9c] sm:$0xff] %v13468
        %13597 = vst [vmem:[%s328 + $0xa4] sm:$0xf] %v13469
        %13598 = vst [vmem:[%s328 + $0xa8] sm:$0xff] %v13470
        %13599 = vst [vmem:[%s328 + $0xb0] sm:$0xf] %v13471
        %13600 = vst [vmem:[%s328 + $0xb4] sm:$0xff] %v13472
        %13601 = vst [vmem:[%s328 + $0xbc] sm:$0xf] %v13473
        %13602 = vst [vmem:[%s328 + $0xc0] sm:$0xff] %v13474
        %13603 = vst [vmem:[%s328 + $0xc8] sm:$0xf] %v13475
        %13604 = vst [vmem:[%s328 + $0xcc] sm:$0xff] %v13476
        %13605 = vst [vmem:[%s328 + $0xd4] sm:$0xf] %v13477
        %13606 = vst [vmem:[%s328 + $0xd8] sm:$0xff] %v13478
        %13607 = vst [vmem:[%s328 + $0xe0] sm:$0xf] %v13479
        %13608 = vst [vmem:[%s328 + $0xe4] sm:$0xff] %v13480
        %13609 = vst [vmem:[%s328 + $0xec] sm:$0xf] %v13481
        %13610 = vst [vmem:[%s328 + $0xf0] sm:$0xff] %v13482
        %13611 = vst [vmem:[%s328 + $0xf8] sm:$0xf] %v13483
        %13612 = vst [vmem:[%s328 + $0xfc] sm:$0xff] %v13484
        %13613 = vst [vmem:[%s328 + $0x104] sm:$0xf] %v13485
        %13614 = vst [vmem:[%s328 + $0x108] sm:$0xff] %v13486
        %13615 = vst [vmem:[%s328 + $0x110] sm:$0xf] %v13487
        %13616 = vst [vmem:[%s328 + $0x114] sm:$0xff] %v13488
        %13617 = vst [vmem:[%s328 + $0x11c] sm:$0xf] %v13489
        %13618 = vst [vmem:[%s328 + $0x120] sm:$0xff] %v13490
        %13619 = vst [vmem:[%s328 + $0x128] sm:$0xf] %v13491
        %13620 = vst [vmem:[%s328 + $0x12c] sm:$0xff] %v13492
        %13621 = vst [vmem:[%s328 + $0x134] sm:$0xf] %v13493
        %13622 = vst [vmem:[%s328 + $0x138] sm:$0xff] %v13494
        %13623 = vst [vmem:[%s328 + $0x140] sm:$0xf] %v13495
        %13624 = vst [vmem:[%s328 + $0x144] sm:$0xff] %v13496
        %13625 = vst [vmem:[%s328 + $0x14c] sm:$0xf] %v13497
        %13626 = vst [vmem:[%s328 + $0x150] sm:$0xff] %v13498
        %13627 = vst [vmem:[%s328 + $0x158] sm:$0xf] %v13499
        %13628 = vst [vmem:[%s328 + $0x15c] sm:$0xff] %v13500
        %13629 = vst [vmem:[%s328 + $0x164] sm:$0xf] %v13501
        %13630 = vst [vmem:[%s328 + $0x168] sm:$0xff] %v13502
        %13631 = vst [vmem:[%s328 + $0x170] sm:$0xf] %v13503
        %13632 = vst [vmem:[%s328 + $0x174] sm:$0xff] %v13504
        %13633 = vst [vmem:[%s328 + $0x17c] sm:$0xf] %v13505
        %s13634 = sand.u32 %s225, 1
        %s13635 = scalar_lea.sflag [#allocation5], %s13634
        %s13636 = sand.u32 %s225, 1
        %s13637 = smul.addr %s13636, 384
        %s13638 = scalar_lea.vmem [#allocation4], %s13637
        // Predicated region
        $region57: #{inception_a_forward.1} parent=55 // pred_check
          %p13639 = pneg %p235
        $region58: #{inception_a_forward.1} parent=55 // pred_check_branch
          %13641 = sbr.rel (%p13639) target = $region60
        $region59: #{inception_a_forward.1} parent=55 // pred_region
          %s13642 = smul.u32 4, %s23
          %s13644 = ssub.s32 6144, 6144
          %13645 = vsyncadd %s13635, %s13644
          %s13646 = smul.addr %s13642, 24
          %s13647 = smul.addr %s13646, 64
          %s13648 = scalar_lea.hbm %s9, %s13647
          %s13649 = sshll.u32 %s13638, 4
          %s13650 = int_to_ptr.vmem [resolvable:$true] %s13649
          %13655 = dma.vmem_to_hbm [thread:$0]  %s13650, 6144, %s13648, %s13635, 192, 192, 12
        $region60: #{inception_a_forward.1} parent=55 // pred_fallthru
          _
      $region56: #{inception_a_forward.1} parent=5 // pred_fallthru
        _
      %p13656 = scmp.le.s32.totalorder 2, %s18
      // Predicated region
      $region61: #{inception_a_forward.1} parent=5 // pred_check
        %p13657 = pneg %p13656
      $region62: #{inception_a_forward.1} parent=5 // pred_check_branch
        %13659 = sbr.rel (%p13657) target = $region64
      $region63: #{inception_a_forward.1} parent=5 // pred_region
        %s13660 = ssub.s32 %s18, 2
        // Predicated region
        $region65: #{inception_a_forward.1} parent=63 // pred_check
          %p13661 = pneg %p241
        $region66: #{inception_a_forward.1} parent=63 // pred_check_branch
          %13663 = sbr.rel (%p13661) target = $region68
        $region67: #{inception_a_forward.1} parent=63 // pred_region
          %s13664 = sand.u32 %s226, 1
          %s13665 = scalar_lea.sflag [#allocation5], %s13664
          %s13666 = sand.u32 %s226, 1
          %s13667 = smul.addr %s13666, 384
          %s13668 = scalar_lea.vmem [#allocation4], %s13667
          %13669 = dma.done %s13665, 6144
        $region68: #{inception_a_forward.1} parent=63 // pred_fallthru
          _
      $region64: #{inception_a_forward.1} parent=5 // pred_fallthru
        _
    $region6: #{inception_a_forward.1} parent=1 // loop_footer
      %s22 = sadd.s32 1, %s18
    $region7: #{inception_a_forward.1} parent=1 // loop_footer_branch
      %17 = sbr.rel target = $region3
    $region8: #{inception_a_forward.1} parent=1 // loop_exit
      _
    %13670 = vsyncpa [#allocation5], 1
    %s13671 = scalar_lea.sflag [#allocation5], 1
    %13672 = vsyncpa %s13671, 1

</llo_original>
